<compile_context>
chip_gen: v5e
topology: v5e:2x2
jax: 0.10.0
libtpu: 0.0.40
codegen_flags: <defaults>
</compile_context>

<pallas_src>
import jax
import jax.numpy as jnp
from jax.experimental import pallas as pl
from jax.experimental.pallas import tpu as pltpu

B = 16              # batch (folded into MXU rows: B * MAX_SEQ_LEN = 128)
MAX_SEQ_LEN = 8     # net.max_seq_len (chunk length)
D = 128             # model dim
V = 256             # vocab size
FF = 4 * D          # feed-forward hidden dim
IGNORE_INDEX = -100
PAD_VALUE = 0       # unused in forward (generation only)


# --------------------------------------------------------------------------
# Fused kernel: whole XL autoregressive forward (all chunks) in one launch.
#   per chunk: attention (+bf16 KV cache in VMEM) -> FF -> out-proj -> CE
# --------------------------------------------------------------------------
def _xl_forward_kernel(h_ref,         # (n_chunks, B*L, D) bf16 chunk embeddings
                       labels_ref,    # (n_chunks, B*L, 1) int32 chunk labels
                       wqkv_ref,      # (D, 3D) bf16  (Wq pre-scaled by D^-0.5)
                       wo_ref,        # (D, D)  bf16
                       w1_ref,        # (D, FF) bf16
                       w2_ref,        # (FF, D) bf16
                       wout_ref,      # (D, V)  bf16
                       loss_ref,      # (8, 128) f32 output (loss broadcast)
                       kcache_ref,    # (B, M+L, D) bf16 scratch: [mems ; cur]
                       vcache_ref):   # (B, M+L, D) bf16 scratch: [mems ; cur]
    n_chunks = h_ref.shape[0]
    L = MAX_SEQ_LEN
    M = MAX_SEQ_LEN          # memory width == one previous chunk
    NL = B * L

    # Chunk 0 has no mems.  The memory columns are masked out below, but the
    # scratch must be zeroed so 0 * garbage (possibly NaN/Inf) cannot leak in.
    kcache_ref[...] = jnp.zeros_like(kcache_ref)
    vcache_ref[...] = jnp.zeros_like(vcache_ref)

    def chunk_body(c, total_loss):
        h = h_ref[c]                                   # (NL, D) bf16
        h_f32 = h.astype(jnp.float32)

        # ---- fused Q/K/V projection: one (NL, D) @ (D, 3D) matmul ----
        qkv = jnp.dot(h, wqkv_ref[...], preferred_element_type=jnp.float32)
        q = qkv[:, :D].astype(jnp.bfloat16)            # already scaled by 1/sqrt(D)
        k_cur = qkv[:, D:2 * D].astype(jnp.bfloat16)
        v_cur = qkv[:, 2 * D:].astype(jnp.bfloat16)

        # Current chunk K/V go into the tail rows of the resident cache; the
        # mems rows [0:M] were written at the end of the previous chunk.
        kcache_ref[:, M:, :] = k_cur.reshape(B, L, D)
        vcache_ref[:, M:, :] = v_cur.reshape(B, L, D)

        q3 = q.reshape(B, L, D)
        k_all = kcache_ref[...]                        # (B, M+L, D) bf16
        v_all = vcache_ref[...]                        # (B, M+L, D) bf16

        # bf16 operands, f32 accumulate; masking/softmax stay f32.
        scores = jnp.einsum('bqd,bkd->bqk', q3, k_all,
                            preferred_element_type=jnp.float32)   # (B, L, M+L)

        row = jax.lax.broadcasted_iota(jnp.int32, (L, M + L), 0)
        col = jax.lax.broadcasted_iota(jnp.int32, (L, M + L), 1)
        # causal within the chunk; memory columns valid only after chunk 0
        mask = (col <= M + row) & ((col >= M) | (c > 0))
        scores = jnp.where(mask[None, :, :], scores, -1e30)

        m = jnp.max(scores, axis=-1, keepdims=True)
        p = jnp.exp(scores - m)
        denom = jnp.sum(p, axis=-1, keepdims=True)
        probs = p * pl.reciprocal(denom, approx=True)

        attn = jnp.einsum('bqk,bkd->bqd', probs.astype(jnp.bfloat16), v_all,
                          preferred_element_type=jnp.float32)     # (B, L, D)
        attn_flat = attn.reshape(NL, D)

        attn_out = (jnp.dot(attn_flat.astype(jnp.bfloat16), wo_ref[...],
                            preferred_element_type=jnp.float32) + h_f32)

        # TODO(synk): PyTorch nn.GELU defaults to exact erf; erf has no
        # reliable Mosaic lowering, so the tanh approximation is used.
        ff = jax.nn.gelu(jnp.dot(attn_out.astype(jnp.bfloat16), w1_ref[...],
                                 preferred_element_type=jnp.float32))
        ff_out = (jnp.dot(ff.astype(jnp.bfloat16), w2_ref[...],
                          preferred_element_type=jnp.float32) + attn_out)  # (NL, D)
        out_bf = ff_out.astype(jnp.bfloat16)

        # ---- fused output projection + cross-entropy (chunk mean) ----
        # TODO(synk): for production vocab sizes, tile wout columns with an
        # online logsumexp ("flash-CE") instead of a full (NL, V) logits tile.
        logits = jnp.dot(out_bf, wout_ref[...],
                         preferred_element_type=jnp.float32)               # (NL, V)
        labels = labels_ref[c]                                             # (NL, 1)

        mlog = jnp.max(logits, axis=-1, keepdims=True)
        lse = mlog + jnp.log(jnp.sum(jnp.exp(logits - mlog), axis=-1, keepdims=True))
        colv = jax.lax.broadcasted_iota(jnp.int32, (NL, V), 1)
        label_logit = jnp.sum(jnp.where(colv == labels, logits, 0.0),
                              axis=-1, keepdims=True)                      # (NL, 1)
        per_tok = lse - label_logit
        valid = (labels != IGNORE_INDEX).astype(jnp.float32)               # (NL, 1)

        chunk_sum = jnp.sum(per_tok * valid)
        chunk_cnt = jnp.sum(valid)
        # guard count==0 (F.cross_entropy mean would NaN) -> contribute 0
        chunk_loss = jnp.where(chunk_cnt > 0.0,
                               chunk_sum / jnp.maximum(chunk_cnt, 1.0), 0.0)

        # mems for the next chunk = this chunk's output hidden states; project
        # their K/V with one fused (D, 2D) matmul (K/V columns of wqkv) and
        # park them in the head rows of the cache.
        new_kv = jnp.dot(out_bf, wqkv_ref[:, D:],
                         preferred_element_type=jnp.float32)               # (NL, 2D)
        kcache_ref[:, :M, :] = new_kv[:, :D].astype(jnp.bfloat16).reshape(B, L, D)
        vcache_ref[:, :M, :] = new_kv[:, D:].astype(jnp.bfloat16).reshape(B, L, D)

        return total_loss + chunk_loss

    total = jax.lax.fori_loop(0, n_chunks, chunk_body, jnp.float32(0.0),
                              unroll=True)

    # exact chunks -> every chunk weight is L / seq_len == 1 / n_chunks
    loss_ref[...] = jnp.broadcast_to(total * (1.0 / n_chunks), (8, 128))


def xl_forward_fused(h_chunks, labels_chunks, params, n_chunks):
    """Single pallas_call over the whole forward; returns an (8,128) f32 tile
    holding the weighted total loss (broadcast)."""
    NL = B * MAX_SEQ_LEN
    const3 = lambda _: (0, 0, 0)
    const2 = lambda _: (0, 0)
    grid_spec = pltpu.PrefetchScalarGridSpec(
        num_scalar_prefetch=0,
        grid=(1,),
        in_specs=[
            pl.BlockSpec((n_chunks, NL, D), const3),   # chunk embeddings
            pl.BlockSpec((n_chunks, NL, 1), const3),   # chunk labels
            pl.BlockSpec((D, 3 * D), const2),          # wqkv
            pl.BlockSpec((D, D), const2),              # wo
            pl.BlockSpec((D, FF), const2),             # w1
            pl.BlockSpec((FF, D), const2),             # w2
            pl.BlockSpec((D, V), const2),              # wout
        ],
        out_specs=pl.BlockSpec((8, 128), const2),
        scratch_shapes=[
            pltpu.VMEM((B, 2 * MAX_SEQ_LEN, D), jnp.bfloat16),  # K cache [mems; cur]
            pltpu.VMEM((B, 2 * MAX_SEQ_LEN, D), jnp.bfloat16),  # V cache [mems; cur]
        ],
    )
    return pl.pallas_call(
        _xl_forward_kernel,
        grid_spec=grid_spec,
        out_shape=jax.ShapeDtypeStruct((8, 128), jnp.float32),
        compiler_params=pltpu.CompilerParams(
            dimension_semantics=("arbitrary",)),
    )(h_chunks, labels_chunks,
      params["wqkv"], params["wo"], params["w1"], params["w2"], params["wout"])


# --------------------------------------------------------------------------
# XLAutoregressiveWrapper.forward (glue in plain JAX)
# --------------------------------------------------------------------------
def init_params(key):
    ks = jax.random.split(key, 8)
    s = 0.02

    def w(k, shape):
        return jax.random.normal(k, shape, jnp.float32) * s

    scale = 1.0 / float(D) ** 0.5
    wq = w(ks[1], (D, D)) * scale           # fold 1/sqrt(D) into Wq
    wk = w(ks[2], (D, D))
    wv = w(ks[3], (D, D))
    return {
        "emb":  w(ks[0], (V, D)).astype(jnp.bfloat16),
        "wqkv": jnp.concatenate([wq, wk, wv], axis=1).astype(jnp.bfloat16),
        "wo":   w(ks[4], (D, D)).astype(jnp.bfloat16),
        "w1":   w(ks[5], (D, FF)).astype(jnp.bfloat16),
        "w2":   w(ks[6], (FF, D)).astype(jnp.bfloat16),
        "wout": w(ks[7], (D, V)).astype(jnp.bfloat16),
    }


def xl_autoregressive_forward(x, params):
    """x: (B, N) int32 tokens. Returns scalar weighted cross-entropy loss."""
    inp, labels = x[:, :-1], x[:, 1:]
    seq_len = inp.shape[1]
    # TODO(synk): a ragged final chunk (seq_len % max_seq_len != 0) would need
    # a separate static kernel instantiation; this script uses exact chunks.
    assert seq_len % MAX_SEQ_LEN == 0
    n_chunks = seq_len // MAX_SEQ_LEN
    L = MAX_SEQ_LEN

    h_all = params["emb"][inp]                        # (B, S, D) bf16 (embedding gather = JAX glue)
    h_chunks = (h_all.reshape(B, n_chunks, L, D)      # (chunk, batch, pos) row order
                     .transpose(1, 0, 2, 3)
                     .reshape(n_chunks, B * L, D))
    labels_chunks = (labels.reshape(B, n_chunks, L)
                           .transpose(1, 0, 2)
                           .reshape(n_chunks, B * L, 1)
                           .astype(jnp.int32))

    loss_tile = xl_forward_fused(h_chunks, labels_chunks, params, n_chunks)
    return loss_tile[0, 0]


if __name__ == "__main__":
    key = jax.random.PRNGKey(0)
    pkey, xkey = jax.random.split(key)
    params = init_params(pkey)

    # x: (B, 2*max_seq_len + 1) tokens -> x[:, :-1] splits into 2 exact chunks.
    N = 2 * MAX_SEQ_LEN + 1
    x = jax.random.randint(xkey, (B, N), 0, V, dtype=jnp.int32)

    loss = jax.jit(xl_autoregressive_forward)(x, params)
    loss = jax.block_until_ready(loss)
    assert loss.shape == () and jnp.isfinite(loss)
    print("KERNEL_OK")
</pallas_src>

<mosaic_0001>
module attributes {stable_mosaic.version = 11 : i64} {
  func.func @_xl_forward_kernel(%arg0: i32, %arg1: memref<2x128x128xbf16, #tpu.memory_space<vmem>>, %arg2: memref<2x128x1xi32, #tpu.memory_space<vmem>>, %arg3: memref<128x384xbf16, #tpu.memory_space<vmem>>, %arg4: memref<128x128xbf16, #tpu.memory_space<vmem>>, %arg5: memref<128x512xbf16, #tpu.memory_space<vmem>>, %arg6: memref<512x128xbf16, #tpu.memory_space<vmem>>, %arg7: memref<128x256xbf16, #tpu.memory_space<vmem>>, %arg8: memref<8x128xf32, #tpu.memory_space<vmem>>, %arg9: memref<16x16x128xbf16, #tpu.memory_space<vmem>>, %arg10: memref<16x16x128xbf16, #tpu.memory_space<vmem>>) attributes {dimension_semantics = [#tpu.dimension_semantics<arbitrary>], iteration_bounds = array<i64: 1>, scalar_prefetch = 0 : i64, scratch_operands = 2 : i64, tpu.core_type = #tpu.core_type<tc>, window_params = [{pipeline_mode = #tpu.pipeline_mode<synchronous>, transform_indices = @transform_0, window_bounds = array<i64: 2, 128, 128>}, {pipeline_mode = #tpu.pipeline_mode<synchronous>, transform_indices = @transform_1, window_bounds = array<i64: 2, 128, 1>}, {pipeline_mode = #tpu.pipeline_mode<synchronous>, transform_indices = @transform_2, window_bounds = array<i64: 128, 384>}, {pipeline_mode = #tpu.pipeline_mode<synchronous>, transform_indices = @transform_3, window_bounds = array<i64: 128, 128>}, {pipeline_mode = #tpu.pipeline_mode<synchronous>, transform_indices = @transform_4, window_bounds = array<i64: 128, 512>}, {pipeline_mode = #tpu.pipeline_mode<synchronous>, transform_indices = @transform_5, window_bounds = array<i64: 512, 128>}, {pipeline_mode = #tpu.pipeline_mode<synchronous>, transform_indices = @transform_6, window_bounds = array<i64: 128, 256>}, {pipeline_mode = #tpu.pipeline_mode<synchronous>, transform_indices = @transform_7, window_bounds = array<i64: 8, 128>}]} {
    %cst = arith.constant 0.000000e+00 : bf16
    %0 = vector.broadcast %cst : bf16 to vector<16x16x128xbf16>
    %c0 = arith.constant 0 : index
    %c0_0 = arith.constant 0 : index
    %c0_1 = arith.constant 0 : index
    %1 = vector.load %arg9[%c0, %c0_0, %c0_1] : memref<16x16x128xbf16, #tpu.memory_space<vmem>>, vector<16x16x128xbf16>
    tpu.vector_store %arg9[%c0, %c0_0, %c0_1], %0 {strides = array<i32>} : memref<16x16x128xbf16, #tpu.memory_space<vmem>>, vector<16x16x128xbf16>,
    %cst_2 = arith.constant 0.000000e+00 : bf16
    %2 = vector.broadcast %cst_2 : bf16 to vector<16x16x128xbf16>
    %c0_3 = arith.constant 0 : index
    %c0_4 = arith.constant 0 : index
    %c0_5 = arith.constant 0 : index
    %3 = vector.load %arg10[%c0_3, %c0_4, %c0_5] : memref<16x16x128xbf16, #tpu.memory_space<vmem>>, vector<16x16x128xbf16>
    tpu.vector_store %arg10[%c0_3, %c0_4, %c0_5], %2 {strides = array<i32>} : memref<16x16x128xbf16, #tpu.memory_space<vmem>>, vector<16x16x128xbf16>,
    %cst_6 = arith.constant 0.000000e+00 : f32
    %c0_i32 = arith.constant 0 : i32
    %4 = arith.index_cast %c0_i32 : i32 to index
    %c0_7 = arith.constant 0 : index
    %c0_8 = arith.constant 0 : index
    %5 = vector.load %arg1[%4, %c0_7, %c0_8] : memref<2x128x128xbf16, #tpu.memory_space<vmem>>, vector<1x128x128xbf16>
    %6 = vector.shape_cast %5 : vector<1x128x128xbf16> to vector<128x128xbf16>
    %7 = arith.extf %6 : vector<128x128xbf16> to vector<128x128xf32>
    %c0_9 = arith.constant 0 : index
    %c0_10 = arith.constant 0 : index
    %8 = vector.load %arg3[%c0_9, %c0_10] : memref<128x384xbf16, #tpu.memory_space<vmem>>, vector<128x384xbf16>
    %cst_11 = arith.constant dense<0.000000e+00> : vector<128x384xf32>
    %9 = tpu.matmul %6, %8, %cst_11 {dimension_numbers = #tpu.dot_dimension_numbers<[1], [0], [0], [1], [0, 0, 1, 1], [], []>} : vector<128x128xbf16>, vector<128x384xbf16>, vector<128x384xf32> -> vector<128x384xf32>
    %10 = vector.extract_strided_slice %9 {offsets = [0, 0], sizes = [128, 128], strides = [1, 1]} : vector<128x384xf32> to vector<128x128xf32>
    %11 = arith.truncf %10 : vector<128x128xf32> to vector<128x128xbf16>
    %12 = vector.extract_strided_slice %9 {offsets = [0, 128], sizes = [128, 128], strides = [1, 1]} : vector<128x384xf32> to vector<128x128xf32>
    %13 = arith.truncf %12 : vector<128x128xf32> to vector<128x128xbf16>
    %14 = vector.extract_strided_slice %9 {offsets = [0, 256], sizes = [128, 128], strides = [1, 1]} : vector<128x384xf32> to vector<128x128xf32>
    %15 = arith.truncf %14 : vector<128x128xf32> to vector<128x128xbf16>
    %16 = vector.shape_cast %13 : vector<128x128xbf16> to vector<16x8x128xbf16>
    %c0_12 = arith.constant 0 : index
    %c8 = arith.constant 8 : index
    %c0_13 = arith.constant 0 : index
    %17 = vector.load %arg9[%c0_12, %c8, %c0_13] : memref<16x16x128xbf16, #tpu.memory_space<vmem>>, vector<16x8x128xbf16>
    tpu.vector_store %arg9[%c0_12, %c8, %c0_13], %16 {strides = array<i32>} : memref<16x16x128xbf16, #tpu.memory_space<vmem>>, vector<16x8x128xbf16>,
    %18 = vector.shape_cast %15 : vector<128x128xbf16> to vector<16x8x128xbf16>
    %c0_14 = arith.constant 0 : index
    %c8_15 = arith.constant 8 : index
    %c0_16 = arith.constant 0 : index
    %19 = vector.load %arg10[%c0_14, %c8_15, %c0_16] : memref<16x16x128xbf16, #tpu.memory_space<vmem>>, vector<16x8x128xbf16>
    tpu.vector_store %arg10[%c0_14, %c8_15, %c0_16], %18 {strides = array<i32>} : memref<16x16x128xbf16, #tpu.memory_space<vmem>>, vector<16x8x128xbf16>,
    %20 = vector.shape_cast %11 : vector<128x128xbf16> to vector<16x8x128xbf16>
    %c0_17 = arith.constant 0 : index
    %c0_18 = arith.constant 0 : index
    %c0_19 = arith.constant 0 : index
    %21 = vector.load %arg9[%c0_17, %c0_18, %c0_19] : memref<16x16x128xbf16, #tpu.memory_space<vmem>>, vector<16x16x128xbf16>
    %c0_20 = arith.constant 0 : index
    %c0_21 = arith.constant 0 : index
    %c0_22 = arith.constant 0 : index
    %22 = vector.load %arg10[%c0_20, %c0_21, %c0_22] : memref<16x16x128xbf16, #tpu.memory_space<vmem>>, vector<16x16x128xbf16>
    "tpu.trace_start"() <{level = 10 : i32, message = "bqd,bkd->bqk"}> : () -> ()
    %cst_23 = arith.constant dense<0.000000e+00> : vector<16x8x16xf32>
    %23 = tpu.matmul %20, %21, %cst_23 {dimension_numbers = #tpu.dot_dimension_numbers<[2], [2], [1], [1], [0, 0, 0, 1, 1, 1], [0], [0]>} : vector<16x8x128xbf16>, vector<16x16x128xbf16>, vector<16x8x16xf32> -> vector<16x8x16xf32>
    "tpu.trace_stop"() : () -> ()
    %24 = tpu.iota {dimensions = array<i32: 0>} : vector<8x16xi32>
    %25 = tpu.iota {dimensions = array<i32: 1>} : vector<8x16xi32>
    %c8_i32 = arith.constant 8 : i32
    %26 = vector.broadcast %c8_i32 : i32 to vector<8x16xi32>
    %27 = arith.addi %26, %24 : vector<8x16xi32>
    %28 = arith.cmpi sle, %25, %27 : vector<8x16xi32>
    %c8_i32_24 = arith.constant 8 : i32
    %29 = vector.broadcast %c8_i32_24 : i32 to vector<8x16xi32>
    %30 = arith.cmpi sge, %25, %29 : vector<8x16xi32>
    %c0_i32_25 = arith.constant 0 : i32
    %31 = arith.cmpi sgt, %c0_i32, %c0_i32_25 : i32
    %32 = vector.broadcast %31 : i1 to vector<8x16xi1>
    %33 = arith.ori %30, %32 : vector<8x16xi1>
    %34 = arith.andi %28, %33 : vector<8x16xi1>
    %35 = vector.shape_cast %34 : vector<8x16xi1> to vector<1x8x16xi1>
    %cst_26 = arith.constant -1.000000e+30 : f32
    %36 = vector.shape_cast %35 : vector<1x8x16xi1> to vector<1x8x16xi1>
    %37 = vector.broadcast %36 : vector<1x8x16xi1> to vector<16x8x16xi1>
    %38 = vector.broadcast %cst_26 : f32 to vector<16x8x16xf32>
    %39 = arith.select %37, %23, %38 : vector<16x8x16xi1>, vector<16x8x16xf32>
    %cst_27 = arith.constant dense<0xFF800000> : vector<16x8xf32>
    %40 = vector.multi_reduction <maximumf>, %39, %cst_27 [2] : vector<16x8x16xf32> to vector<16x8xf32>
    %41 = vector.shape_cast %40 : vector<16x8xf32> to vector<16x8x1xf32>
    %42 = vector.broadcast %41 : vector<16x8x1xf32> to vector<16x8x16xf32>
    %43 = arith.subf %39, %42 : vector<16x8x16xf32>
    %44 = math.exp %43 : vector<16x8x16xf32>
    %cst_28 = arith.constant dense<0.000000e+00> : vector<16x8xf32>
    %45 = vector.multi_reduction <add>, %44, %cst_28 [2] : vector<16x8x16xf32> to vector<16x8xf32>
    %46 = vector.shape_cast %45 : vector<16x8xf32> to vector<16x8x1xf32>
    %47 = tpu.reciprocal %46 {approx = true} : vector<16x8x1xf32> -> vector<16x8x1xf32>
    %48 = vector.broadcast %47 : vector<16x8x1xf32> to vector<16x8x16xf32>
    %49 = arith.mulf %44, %48 : vector<16x8x16xf32>
    %50 = arith.truncf %49 : vector<16x8x16xf32> to vector<16x8x16xbf16>
    "tpu.trace_start"() <{level = 10 : i32, message = "bqk,bkd->bqd"}> : () -> ()
    %cst_29 = arith.constant dense<0.000000e+00> : vector<16x8x128xf32>
    %51 = tpu.matmul %50, %22, %cst_29 {dimension_numbers = #tpu.dot_dimension_numbers<[2], [1], [1], [2], [0, 0, 0, 1, 1, 2], [0], [0]>} : vector<16x8x16xbf16>, vector<16x16x128xbf16>, vector<16x8x128xf32> -> vector<16x8x128xf32>
    "tpu.trace_stop"() : () -> ()
    %52 = vector.shape_cast %51 : vector<16x8x128xf32> to vector<128x128xf32>
    %53 = arith.truncf %52 : vector<128x128xf32> to vector<128x128xbf16>
    %c0_30 = arith.constant 0 : index
    %c0_31 = arith.constant 0 : index
    %54 = vector.load %arg4[%c0_30, %c0_31] : memref<128x128xbf16, #tpu.memory_space<vmem>>, vector<128x128xbf16>
    %cst_32 = arith.constant dense<0.000000e+00> : vector<128x128xf32>
    %55 = tpu.matmul %53, %54, %cst_32 {dimension_numbers = #tpu.dot_dimension_numbers<[1], [0], [0], [1], [0, 0, 1, 1], [], []>} : vector<128x128xbf16>, vector<128x128xbf16>, vector<128x128xf32> -> vector<128x128xf32>
    %56 = arith.addf %55, %7 : vector<128x128xf32>
    %57 = arith.truncf %56 : vector<128x128xf32> to vector<128x128xbf16>
    %c0_33 = arith.constant 0 : index
    %c0_34 = arith.constant 0 : index
    %58 = vector.load %arg5[%c0_33, %c0_34] : memref<128x512xbf16, #tpu.memory_space<vmem>>, vector<128x512xbf16>
    %cst_35 = arith.constant dense<0.000000e+00> : vector<128x512xf32>
    %59 = tpu.matmul %57, %58, %cst_35 {dimension_numbers = #tpu.dot_dimension_numbers<[1], [0], [0], [1], [0, 0, 1, 1], [], []>} : vector<128x128xbf16>, vector<128x512xbf16>, vector<128x512xf32> -> vector<128x512xf32>
    %60 = arith.mulf %59, %59 : vector<128x512xf32>
    %61 = arith.mulf %59, %60 : vector<128x512xf32>
    %cst_36 = arith.constant 4.471500e-02 : f32
    %62 = vector.broadcast %cst_36 : f32 to vector<128x512xf32>
    %63 = arith.mulf %62, %61 : vector<128x512xf32>
    %64 = arith.addf %59, %63 : vector<128x512xf32>
    %cst_37 = arith.constant 0.797884583 : f32
    %65 = vector.broadcast %cst_37 : f32 to vector<128x512xf32>
    %66 = arith.mulf %65, %64 : vector<128x512xf32>
    %67 = math.tanh %66 : vector<128x512xf32>
    %cst_38 = arith.constant 1.000000e+00 : f32
    %68 = vector.broadcast %cst_38 : f32 to vector<128x512xf32>
    %69 = arith.addf %68, %67 : vector<128x512xf32>
    %cst_39 = arith.constant 5.000000e-01 : f32
    %70 = vector.broadcast %cst_39 : f32 to vector<128x512xf32>
    %71 = arith.mulf %70, %69 : vector<128x512xf32>
    %72 = arith.mulf %59, %71 : vector<128x512xf32>
    %73 = arith.truncf %72 : vector<128x512xf32> to vector<128x512xbf16>
    %c0_40 = arith.constant 0 : index
    %c0_41 = arith.constant 0 : index
    %74 = vector.load %arg6[%c0_40, %c0_41] : memref<512x128xbf16, #tpu.memory_space<vmem>>, vector<512x128xbf16>
    %cst_42 = arith.constant dense<0.000000e+00> : vector<128x128xf32>
    %75 = tpu.matmul %73, %74, %cst_42 {dimension_numbers = #tpu.dot_dimension_numbers<[1], [0], [0], [1], [0, 0, 1, 1], [], []>} : vector<128x512xbf16>, vector<512x128xbf16>, vector<128x128xf32> -> vector<128x128xf32>
    %76 = arith.addf %75, %56 : vector<128x128xf32>
    %77 = arith.truncf %76 : vector<128x128xf32> to vector<128x128xbf16>
    %c0_43 = arith.constant 0 : index
    %c0_44 = arith.constant 0 : index
    %78 = vector.load %arg7[%c0_43, %c0_44] : memref<128x256xbf16, #tpu.memory_space<vmem>>, vector<128x256xbf16>
    %cst_45 = arith.constant dense<0.000000e+00> : vector<128x256xf32>
    %79 = tpu.matmul %77, %78, %cst_45 {dimension_numbers = #tpu.dot_dimension_numbers<[1], [0], [0], [1], [0, 0, 1, 1], [], []>} : vector<128x128xbf16>, vector<128x256xbf16>, vector<128x256xf32> -> vector<128x256xf32>
    %80 = arith.index_cast %c0_i32 : i32 to index
    %c0_46 = arith.constant 0 : index
    %c0_47 = arith.constant 0 : index
    %81 = vector.load %arg2[%80, %c0_46, %c0_47] : memref<2x128x1xi32, #tpu.memory_space<vmem>>, vector<1x128x1xi32>
    %82 = vector.shape_cast %81 : vector<1x128x1xi32> to vector<128x1xi32>
    %cst_48 = arith.constant dense<0xFF800000> : vector<128xf32>
    %83 = vector.multi_reduction <maximumf>, %79, %cst_48 [1] : vector<128x256xf32> to vector<128xf32>
    %84 = vector.shape_cast %83 : vector<128xf32> to vector<128x1xf32>
    %85 = vector.broadcast %84 : vector<128x1xf32> to vector<128x256xf32>
    %86 = arith.subf %79, %85 : vector<128x256xf32>
    %87 = math.exp %86 : vector<128x256xf32>
    %cst_49 = arith.constant dense<0.000000e+00> : vector<128xf32>
    %88 = vector.multi_reduction <add>, %87, %cst_49 [1] : vector<128x256xf32> to vector<128xf32>
    %89 = vector.shape_cast %88 : vector<128xf32> to vector<128x1xf32>
    %90 = math.log %89 : vector<128x1xf32>
    %91 = arith.addf %84, %90 : vector<128x1xf32>
    %92 = tpu.iota {dimensions = array<i32: 1>} : vector<128x256xi32>
    %93 = vector.broadcast %82 : vector<128x1xi32> to vector<128x256xi32>
    %94 = arith.cmpi eq, %92, %93 : vector<128x256xi32>
    %cst_50 = arith.constant 0.000000e+00 : f32
    %95 = vector.broadcast %cst_50 : f32 to vector<128x256xf32>
    %96 = arith.select %94, %79, %95 : vector<128x256xi1>, vector<128x256xf32>
    %cst_51 = arith.constant dense<0.000000e+00> : vector<128xf32>
    %97 = vector.multi_reduction <add>, %96, %cst_51 [1] : vector<128x256xf32> to vector<128xf32>
    %98 = vector.shape_cast %97 : vector<128xf32> to vector<128x1xf32>
    %99 = arith.subf %91, %98 : vector<128x1xf32>
    %c-100_i32 = arith.constant -100 : i32
    %100 = vector.broadcast %c-100_i32 : i32 to vector<128x1xi32>
    %101 = arith.cmpi ne, %82, %100 : vector<128x1xi32>
    %102 = arith.extui %101 : vector<128x1xi1> to vector<128x1xi32>
    %103 = arith.sitofp %102 : vector<128x1xi32> to vector<128x1xf32>
    %104 = arith.mulf %99, %103 : vector<128x1xf32>
    %105 = vector.shape_cast %104 : vector<128x1xf32> to vector<1x128x1xf32>
    %cst_52 = arith.constant dense<0.000000e+00> : vector<1xf32>
    %106 = vector.multi_reduction <add>, %105, %cst_52 [1, 2] : vector<1x128x1xf32> to vector<1xf32>
    %107 = vector.shape_cast %106 : vector<1xf32> to vector<1x1x1xf32>
    %108 = vector.extract %107[0, 0, 0] : f32 from vector<1x1x1xf32>
    %109 = vector.shape_cast %103 : vector<128x1xf32> to vector<1x128x1xf32>
    %cst_53 = arith.constant dense<0.000000e+00> : vector<1xf32>
    %110 = vector.multi_reduction <add>, %109, %cst_53 [1, 2] : vector<1x128x1xf32> to vector<1xf32>
    %111 = vector.shape_cast %110 : vector<1xf32> to vector<1x1x1xf32>
    %112 = vector.extract %111[0, 0, 0] : f32 from vector<1x1x1xf32>
    %cst_54 = arith.constant 0.000000e+00 : f32
    %113 = arith.cmpf ogt, %112, %cst_54 : f32
    %cst_55 = arith.constant 1.000000e+00 : f32
    %114 = arith.maximumf %112, %cst_55 : f32
    %115 = arith.divf %108, %114 : f32
    %cst_56 = arith.constant 0.000000e+00 : f32
    %116 = arith.select %113, %115, %cst_56 : f32
    %c0_57 = arith.constant 0 : index
    %c128 = arith.constant 128 : index
    %117 = vector.load %arg3[%c0_57, %c128] : memref<128x384xbf16, #tpu.memory_space<vmem>>, vector<128x256xbf16>
    %cst_58 = arith.constant dense<0.000000e+00> : vector<128x256xf32>
    %118 = tpu.matmul %77, %117, %cst_58 {dimension_numbers = #tpu.dot_dimension_numbers<[1], [0], [0], [1], [0, 0, 1, 1], [], []>} : vector<128x128xbf16>, vector<128x256xbf16>, vector<128x256xf32> -> vector<128x256xf32>
    %119 = vector.extract_strided_slice %118 {offsets = [0, 0], sizes = [128, 128], strides = [1, 1]} : vector<128x256xf32> to vector<128x128xf32>
    %120 = arith.truncf %119 : vector<128x128xf32> to vector<128x128xbf16>
    %121 = vector.shape_cast %120 : vector<128x128xbf16> to vector<16x8x128xbf16>
    %c0_59 = arith.constant 0 : index
    %c0_60 = arith.constant 0 : index
    %c0_61 = arith.constant 0 : index
    %122 = vector.load %arg9[%c0_59, %c0_60, %c0_61] : memref<16x16x128xbf16, #tpu.memory_space<vmem>>, vector<16x8x128xbf16>
    tpu.vector_store %arg9[%c0_59, %c0_60, %c0_61], %121 {strides = array<i32>} : memref<16x16x128xbf16, #tpu.memory_space<vmem>>, vector<16x8x128xbf16>,
    %123 = vector.extract_strided_slice %118 {offsets = [0, 128], sizes = [128, 128], strides = [1, 1]} : vector<128x256xf32> to vector<128x128xf32>
    %124 = arith.truncf %123 : vector<128x128xf32> to vector<128x128xbf16>
    %125 = vector.shape_cast %124 : vector<128x128xbf16> to vector<16x8x128xbf16>
    %c0_62 = arith.constant 0 : index
    %c0_63 = arith.constant 0 : index
    %c0_64 = arith.constant 0 : index
    %126 = vector.load %arg10[%c0_62, %c0_63, %c0_64] : memref<16x16x128xbf16, #tpu.memory_space<vmem>>, vector<16x8x128xbf16>
    tpu.vector_store %arg10[%c0_62, %c0_63, %c0_64], %125 {strides = array<i32>} : memref<16x16x128xbf16, #tpu.memory_space<vmem>>, vector<16x8x128xbf16>,
    %127 = arith.addf %cst_6, %116 : f32
    %c1_i32 = arith.constant 1 : i32
    %128 = arith.index_cast %c1_i32 : i32 to index
    %c0_65 = arith.constant 0 : index
    %c0_66 = arith.constant 0 : index
    %129 = vector.load %arg1[%128, %c0_65, %c0_66] : memref<2x128x128xbf16, #tpu.memory_space<vmem>>, vector<1x128x128xbf16>
    %130 = vector.shape_cast %129 : vector<1x128x128xbf16> to vector<128x128xbf16>
    %131 = arith.extf %130 : vector<128x128xbf16> to vector<128x128xf32>
    %c0_67 = arith.constant 0 : index
    %c0_68 = arith.constant 0 : index
    %132 = vector.load %arg3[%c0_67, %c0_68] : memref<128x384xbf16, #tpu.memory_space<vmem>>, vector<128x384xbf16>
    %cst_69 = arith.constant dense<0.000000e+00> : vector<128x384xf32>
    %133 = tpu.matmul %130, %132, %cst_69 {dimension_numbers = #tpu.dot_dimension_numbers<[1], [0], [0], [1], [0, 0, 1, 1], [], []>} : vector<128x128xbf16>, vector<128x384xbf16>, vector<128x384xf32> -> vector<128x384xf32>
    %134 = vector.extract_strided_slice %133 {offsets = [0, 0], sizes = [128, 128], strides = [1, 1]} : vector<128x384xf32> to vector<128x128xf32>
    %135 = arith.truncf %134 : vector<128x128xf32> to vector<128x128xbf16>
    %136 = vector.extract_strided_slice %133 {offsets = [0, 128], sizes = [128, 128], strides = [1, 1]} : vector<128x384xf32> to vector<128x128xf32>
    %137 = arith.truncf %136 : vector<128x128xf32> to vector<128x128xbf16>
    %138 = vector.extract_strided_slice %133 {offsets = [0, 256], sizes = [128, 128], strides = [1, 1]} : vector<128x384xf32> to vector<128x128xf32>
    %139 = arith.truncf %138 : vector<128x128xf32> to vector<128x128xbf16>
    %140 = vector.shape_cast %137 : vector<128x128xbf16> to vector<16x8x128xbf16>
    %c0_70 = arith.constant 0 : index
    %c8_71 = arith.constant 8 : index
    %c0_72 = arith.constant 0 : index
    %141 = vector.load %arg9[%c0_70, %c8_71, %c0_72] : memref<16x16x128xbf16, #tpu.memory_space<vmem>>, vector<16x8x128xbf16>
    tpu.vector_store %arg9[%c0_70, %c8_71, %c0_72], %140 {strides = array<i32>} : memref<16x16x128xbf16, #tpu.memory_space<vmem>>, vector<16x8x128xbf16>,
    %142 = vector.shape_cast %139 : vector<128x128xbf16> to vector<16x8x128xbf16>
    %c0_73 = arith.constant 0 : index
    %c8_74 = arith.constant 8 : index
    %c0_75 = arith.constant 0 : index
    %143 = vector.load %arg10[%c0_73, %c8_74, %c0_75] : memref<16x16x128xbf16, #tpu.memory_space<vmem>>, vector<16x8x128xbf16>
    tpu.vector_store %arg10[%c0_73, %c8_74, %c0_75], %142 {strides = array<i32>} : memref<16x16x128xbf16, #tpu.memory_space<vmem>>, vector<16x8x128xbf16>,
    %144 = vector.shape_cast %135 : vector<128x128xbf16> to vector<16x8x128xbf16>
    %c0_76 = arith.constant 0 : index
    %c0_77 = arith.constant 0 : index
    %c0_78 = arith.constant 0 : index
    %145 = vector.load %arg9[%c0_76, %c0_77, %c0_78] : memref<16x16x128xbf16, #tpu.memory_space<vmem>>, vector<16x16x128xbf16>
    %c0_79 = arith.constant 0 : index
    %c0_80 = arith.constant 0 : index
    %c0_81 = arith.constant 0 : index
    %146 = vector.load %arg10[%c0_79, %c0_80, %c0_81] : memref<16x16x128xbf16, #tpu.memory_space<vmem>>, vector<16x16x128xbf16>
    "tpu.trace_start"() <{level = 10 : i32, message = "bqd,bkd->bqk"}> : () -> ()
    %cst_82 = arith.constant dense<0.000000e+00> : vector<16x8x16xf32>
    %147 = tpu.matmul %144, %145, %cst_82 {dimension_numbers = #tpu.dot_dimension_numbers<[2], [2], [1], [1], [0, 0, 0, 1, 1, 1], [0], [0]>} : vector<16x8x128xbf16>, vector<16x16x128xbf16>, vector<16x8x16xf32> -> vector<16x8x16xf32>
    "tpu.trace_stop"() : () -> ()
    %148 = tpu.iota {dimensions = array<i32: 0>} : vector<8x16xi32>
    %149 = tpu.iota {dimensions = array<i32: 1>} : vector<8x16xi32>
    %c8_i32_83 = arith.constant 8 : i32
    %150 = vector.broadcast %c8_i32_83 : i32 to vector<8x16xi32>
    %151 = arith.addi %150, %148 : vector<8x16xi32>
    %152 = arith.cmpi sle, %149, %151 : vector<8x16xi32>
    %c8_i32_84 = arith.constant 8 : i32
    %153 = vector.broadcast %c8_i32_84 : i32 to vector<8x16xi32>
    %154 = arith.cmpi sge, %149, %153 : vector<8x16xi32>
    %c0_i32_85 = arith.constant 0 : i32
    %155 = arith.cmpi sgt, %c1_i32, %c0_i32_85 : i32
    %156 = vector.broadcast %155 : i1 to vector<8x16xi1>
    %157 = arith.ori %154, %156 : vector<8x16xi1>
    %158 = arith.andi %152, %157 : vector<8x16xi1>
    %159 = vector.shape_cast %158 : vector<8x16xi1> to vector<1x8x16xi1>
    %cst_86 = arith.constant -1.000000e+30 : f32
    %160 = vector.shape_cast %159 : vector<1x8x16xi1> to vector<1x8x16xi1>
    %161 = vector.broadcast %160 : vector<1x8x16xi1> to vector<16x8x16xi1>
    %162 = vector.broadcast %cst_86 : f32 to vector<16x8x16xf32>
    %163 = arith.select %161, %147, %162 : vector<16x8x16xi1>, vector<16x8x16xf32>
    %cst_87 = arith.constant dense<0xFF800000> : vector<16x8xf32>
    %164 = vector.multi_reduction <maximumf>, %163, %cst_87 [2] : vector<16x8x16xf32> to vector<16x8xf32>
    %165 = vector.shape_cast %164 : vector<16x8xf32> to vector<16x8x1xf32>
    %166 = vector.broadcast %165 : vector<16x8x1xf32> to vector<16x8x16xf32>
    %167 = arith.subf %163, %166 : vector<16x8x16xf32>
    %168 = math.exp %167 : vector<16x8x16xf32>
    %cst_88 = arith.constant dense<0.000000e+00> : vector<16x8xf32>
    %169 = vector.multi_reduction <add>, %168, %cst_88 [2] : vector<16x8x16xf32> to vector<16x8xf32>
    %170 = vector.shape_cast %169 : vector<16x8xf32> to vector<16x8x1xf32>
    %171 = tpu.reciprocal %170 {approx = true} : vector<16x8x1xf32> -> vector<16x8x1xf32>
    %172 = vector.broadcast %171 : vector<16x8x1xf32> to vector<16x8x16xf32>
    %173 = arith.mulf %168, %172 : vector<16x8x16xf32>
    %174 = arith.truncf %173 : vector<16x8x16xf32> to vector<16x8x16xbf16>
    "tpu.trace_start"() <{level = 10 : i32, message = "bqk,bkd->bqd"}> : () -> ()
    %cst_89 = arith.constant dense<0.000000e+00> : vector<16x8x128xf32>
    %175 = tpu.matmul %174, %146, %cst_89 {dimension_numbers = #tpu.dot_dimension_numbers<[2], [1], [1], [2], [0, 0, 0, 1, 1, 2], [0], [0]>} : vector<16x8x16xbf16>, vector<16x16x128xbf16>, vector<16x8x128xf32> -> vector<16x8x128xf32>
    "tpu.trace_stop"() : () -> ()
    %176 = vector.shape_cast %175 : vector<16x8x128xf32> to vector<128x128xf32>
    %177 = arith.truncf %176 : vector<128x128xf32> to vector<128x128xbf16>
    %c0_90 = arith.constant 0 : index
    %c0_91 = arith.constant 0 : index
    %178 = vector.load %arg4[%c0_90, %c0_91] : memref<128x128xbf16, #tpu.memory_space<vmem>>, vector<128x128xbf16>
    %cst_92 = arith.constant dense<0.000000e+00> : vector<128x128xf32>
    %179 = tpu.matmul %177, %178, %cst_92 {dimension_numbers = #tpu.dot_dimension_numbers<[1], [0], [0], [1], [0, 0, 1, 1], [], []>} : vector<128x128xbf16>, vector<128x128xbf16>, vector<128x128xf32> -> vector<128x128xf32>
    %180 = arith.addf %179, %131 : vector<128x128xf32>
    %181 = arith.truncf %180 : vector<128x128xf32> to vector<128x128xbf16>
    %c0_93 = arith.constant 0 : index
    %c0_94 = arith.constant 0 : index
    %182 = vector.load %arg5[%c0_93, %c0_94] : memref<128x512xbf16, #tpu.memory_space<vmem>>, vector<128x512xbf16>
    %cst_95 = arith.constant dense<0.000000e+00> : vector<128x512xf32>
    %183 = tpu.matmul %181, %182, %cst_95 {dimension_numbers = #tpu.dot_dimension_numbers<[1], [0], [0], [1], [0, 0, 1, 1], [], []>} : vector<128x128xbf16>, vector<128x512xbf16>, vector<128x512xf32> -> vector<128x512xf32>
    %184 = arith.mulf %183, %183 : vector<128x512xf32>
    %185 = arith.mulf %183, %184 : vector<128x512xf32>
    %cst_96 = arith.constant 4.471500e-02 : f32
    %186 = vector.broadcast %cst_96 : f32 to vector<128x512xf32>
    %187 = arith.mulf %186, %185 : vector<128x512xf32>
    %188 = arith.addf %183, %187 : vector<128x512xf32>
    %cst_97 = arith.constant 0.797884583 : f32
    %189 = vector.broadcast %cst_97 : f32 to vector<128x512xf32>
    %190 = arith.mulf %189, %188 : vector<128x512xf32>
    %191 = math.tanh %190 : vector<128x512xf32>
    %cst_98 = arith.constant 1.000000e+00 : f32
    %192 = vector.broadcast %cst_98 : f32 to vector<128x512xf32>
    %193 = arith.addf %192, %191 : vector<128x512xf32>
    %cst_99 = arith.constant 5.000000e-01 : f32
    %194 = vector.broadcast %cst_99 : f32 to vector<128x512xf32>
    %195 = arith.mulf %194, %193 : vector<128x512xf32>
    %196 = arith.mulf %183, %195 : vector<128x512xf32>
    %197 = arith.truncf %196 : vector<128x512xf32> to vector<128x512xbf16>
    %c0_100 = arith.constant 0 : index
    %c0_101 = arith.constant 0 : index
    %198 = vector.load %arg6[%c0_100, %c0_101] : memref<512x128xbf16, #tpu.memory_space<vmem>>, vector<512x128xbf16>
    %cst_102 = arith.constant dense<0.000000e+00> : vector<128x128xf32>
    %199 = tpu.matmul %197, %198, %cst_102 {dimension_numbers = #tpu.dot_dimension_numbers<[1], [0], [0], [1], [0, 0, 1, 1], [], []>} : vector<128x512xbf16>, vector<512x128xbf16>, vector<128x128xf32> -> vector<128x128xf32>
    %200 = arith.addf %199, %180 : vector<128x128xf32>
    %201 = arith.truncf %200 : vector<128x128xf32> to vector<128x128xbf16>
    %c0_103 = arith.constant 0 : index
    %c0_104 = arith.constant 0 : index
    %202 = vector.load %arg7[%c0_103, %c0_104] : memref<128x256xbf16, #tpu.memory_space<vmem>>, vector<128x256xbf16>
    %cst_105 = arith.constant dense<0.000000e+00> : vector<128x256xf32>
    %203 = tpu.matmul %201, %202, %cst_105 {dimension_numbers = #tpu.dot_dimension_numbers<[1], [0], [0], [1], [0, 0, 1, 1], [], []>} : vector<128x128xbf16>, vector<128x256xbf16>, vector<128x256xf32> -> vector<128x256xf32>
    %204 = arith.index_cast %c1_i32 : i32 to index
    %c0_106 = arith.constant 0 : index
    %c0_107 = arith.constant 0 : index
    %205 = vector.load %arg2[%204, %c0_106, %c0_107] : memref<2x128x1xi32, #tpu.memory_space<vmem>>, vector<1x128x1xi32>
    %206 = vector.shape_cast %205 : vector<1x128x1xi32> to vector<128x1xi32>
    %cst_108 = arith.constant dense<0xFF800000> : vector<128xf32>
    %207 = vector.multi_reduction <maximumf>, %203, %cst_108 [1] : vector<128x256xf32> to vector<128xf32>
    %208 = vector.shape_cast %207 : vector<128xf32> to vector<128x1xf32>
    %209 = vector.broadcast %208 : vector<128x1xf32> to vector<128x256xf32>
    %210 = arith.subf %203, %209 : vector<128x256xf32>
    %211 = math.exp %210 : vector<128x256xf32>
    %cst_109 = arith.constant dense<0.000000e+00> : vector<128xf32>
    %212 = vector.multi_reduction <add>, %211, %cst_109 [1] : vector<128x256xf32> to vector<128xf32>
    %213 = vector.shape_cast %212 : vector<128xf32> to vector<128x1xf32>
    %214 = math.log %213 : vector<128x1xf32>
    %215 = arith.addf %208, %214 : vector<128x1xf32>
    %216 = tpu.iota {dimensions = array<i32: 1>} : vector<128x256xi32>
    %217 = vector.broadcast %206 : vector<128x1xi32> to vector<128x256xi32>
    %218 = arith.cmpi eq, %216, %217 : vector<128x256xi32>
    %cst_110 = arith.constant 0.000000e+00 : f32
    %219 = vector.broadcast %cst_110 : f32 to vector<128x256xf32>
    %220 = arith.select %218, %203, %219 : vector<128x256xi1>, vector<128x256xf32>
    %cst_111 = arith.constant dense<0.000000e+00> : vector<128xf32>
    %221 = vector.multi_reduction <add>, %220, %cst_111 [1] : vector<128x256xf32> to vector<128xf32>
    %222 = vector.shape_cast %221 : vector<128xf32> to vector<128x1xf32>
    %223 = arith.subf %215, %222 : vector<128x1xf32>
    %c-100_i32_112 = arith.constant -100 : i32
    %224 = vector.broadcast %c-100_i32_112 : i32 to vector<128x1xi32>
    %225 = arith.cmpi ne, %206, %224 : vector<128x1xi32>
    %226 = arith.extui %225 : vector<128x1xi1> to vector<128x1xi32>
    %227 = arith.sitofp %226 : vector<128x1xi32> to vector<128x1xf32>
    %228 = arith.mulf %223, %227 : vector<128x1xf32>
    %229 = vector.shape_cast %228 : vector<128x1xf32> to vector<1x128x1xf32>
    %cst_113 = arith.constant dense<0.000000e+00> : vector<1xf32>
    %230 = vector.multi_reduction <add>, %229, %cst_113 [1, 2] : vector<1x128x1xf32> to vector<1xf32>
    %231 = vector.shape_cast %230 : vector<1xf32> to vector<1x1x1xf32>
    %232 = vector.extract %231[0, 0, 0] : f32 from vector<1x1x1xf32>
    %233 = vector.shape_cast %227 : vector<128x1xf32> to vector<1x128x1xf32>
    %cst_114 = arith.constant dense<0.000000e+00> : vector<1xf32>
    %234 = vector.multi_reduction <add>, %233, %cst_114 [1, 2] : vector<1x128x1xf32> to vector<1xf32>
    %235 = vector.shape_cast %234 : vector<1xf32> to vector<1x1x1xf32>
    %236 = vector.extract %235[0, 0, 0] : f32 from vector<1x1x1xf32>
    %cst_115 = arith.constant 0.000000e+00 : f32
    %237 = arith.cmpf ogt, %236, %cst_115 : f32
    %cst_116 = arith.constant 1.000000e+00 : f32
    %238 = arith.maximumf %236, %cst_116 : f32
    %239 = arith.divf %232, %238 : f32
    %cst_117 = arith.constant 0.000000e+00 : f32
    %240 = arith.select %237, %239, %cst_117 : f32
    %c0_118 = arith.constant 0 : index
    %c128_119 = arith.constant 128 : index
    %241 = vector.load %arg3[%c0_118, %c128_119] : memref<128x384xbf16, #tpu.memory_space<vmem>>, vector<128x256xbf16>
    %cst_120 = arith.constant dense<0.000000e+00> : vector<128x256xf32>
    %242 = tpu.matmul %201, %241, %cst_120 {dimension_numbers = #tpu.dot_dimension_numbers<[1], [0], [0], [1], [0, 0, 1, 1], [], []>} : vector<128x128xbf16>, vector<128x256xbf16>, vector<128x256xf32> -> vector<128x256xf32>
    %243 = vector.extract_strided_slice %242 {offsets = [0, 0], sizes = [128, 128], strides = [1, 1]} : vector<128x256xf32> to vector<128x128xf32>
    %244 = arith.truncf %243 : vector<128x128xf32> to vector<128x128xbf16>
    %245 = vector.shape_cast %244 : vector<128x128xbf16> to vector<16x8x128xbf16>
    %c0_121 = arith.constant 0 : index
    %c0_122 = arith.constant 0 : index
    %c0_123 = arith.constant 0 : index
    %246 = vector.load %arg9[%c0_121, %c0_122, %c0_123] : memref<16x16x128xbf16, #tpu.memory_space<vmem>>, vector<16x8x128xbf16>
    tpu.vector_store %arg9[%c0_121, %c0_122, %c0_123], %245 {strides = array<i32>} : memref<16x16x128xbf16, #tpu.memory_space<vmem>>, vector<16x8x128xbf16>,
    %247 = vector.extract_strided_slice %242 {offsets = [0, 128], sizes = [128, 128], strides = [1, 1]} : vector<128x256xf32> to vector<128x128xf32>
    %248 = arith.truncf %247 : vector<128x128xf32> to vector<128x128xbf16>
    %249 = vector.shape_cast %248 : vector<128x128xbf16> to vector<16x8x128xbf16>
    %c0_124 = arith.constant 0 : index
    %c0_125 = arith.constant 0 : index
    %c0_126 = arith.constant 0 : index
    %250 = vector.load %arg10[%c0_124, %c0_125, %c0_126] : memref<16x16x128xbf16, #tpu.memory_space<vmem>>, vector<16x8x128xbf16>
    tpu.vector_store %arg10[%c0_124, %c0_125, %c0_126], %249 {strides = array<i32>} : memref<16x16x128xbf16, #tpu.memory_space<vmem>>, vector<16x8x128xbf16>,
    %251 = arith.addf %127, %240 : f32
    %c2_i32 = arith.constant 2 : i32
    %cst_127 = arith.constant 5.000000e-01 : f32
    %252 = arith.mulf %251, %cst_127 : f32
    %253 = vector.broadcast %252 : f32 to vector<8x128xf32>
    %c0_128 = arith.constant 0 : index
    %c0_129 = arith.constant 0 : index
    %254 = vector.load %arg8[%c0_128, %c0_129] : memref<8x128xf32, #tpu.memory_space<vmem>>, vector<8x128xf32>
    tpu.vector_store %arg8[%c0_128, %c0_129], %253 {strides = array<i32>} : memref<8x128xf32, #tpu.memory_space<vmem>>, vector<8x128xf32>,
    return
  }
  func.func @transform_0(%arg0: i32) -> (i32, i32, i32) {
    %c0_i32 = arith.constant 0 : i32
    %c0_i32_0 = arith.constant 0 : i32
    %c0_i32_1 = arith.constant 0 : i32
    %c0_i32_2 = arith.constant 0 : i32
    return %c0_i32, %c0_i32_0, %c0_i32_1 : i32, i32, i32
  }
  func.func @transform_1(%arg0: i32) -> (i32, i32, i32) {
    %c0_i32 = arith.constant 0 : i32
    %c0_i32_0 = arith.constant 0 : i32
    %c0_i32_1 = arith.constant 0 : i32
    %c0_i32_2 = arith.constant 0 : i32
    return %c0_i32, %c0_i32_0, %c0_i32_1 : i32, i32, i32
  }
  func.func @transform_2(%arg0: i32) -> (i32, i32) {
    %c0_i32 = arith.constant 0 : i32
    %c0_i32_0 = arith.constant 0 : i32
    %c0_i32_1 = arith.constant 0 : i32
    return %c0_i32, %c0_i32_0 : i32, i32
  }
  func.func @transform_3(%arg0: i32) -> (i32, i32) {
    %c0_i32 = arith.constant 0 : i32
    %c0_i32_0 = arith.constant 0 : i32
    %c0_i32_1 = arith.constant 0 : i32
    return %c0_i32, %c0_i32_0 : i32, i32
  }
  func.func @transform_4(%arg0: i32) -> (i32, i32) {
    %c0_i32 = arith.constant 0 : i32
    %c0_i32_0 = arith.constant 0 : i32
    %c0_i32_1 = arith.constant 0 : i32
    return %c0_i32, %c0_i32_0 : i32, i32
  }
  func.func @transform_5(%arg0: i32) -> (i32, i32) {
    %c0_i32 = arith.constant 0 : i32
    %c0_i32_0 = arith.constant 0 : i32
    %c0_i32_1 = arith.constant 0 : i32
    return %c0_i32, %c0_i32_0 : i32, i32
  }
  func.func @transform_6(%arg0: i32) -> (i32, i32) {
    %c0_i32 = arith.constant 0 : i32
    %c0_i32_0 = arith.constant 0 : i32
    %c0_i32_1 = arith.constant 0 : i32
    return %c0_i32, %c0_i32_0 : i32, i32
  }
  func.func @transform_7(%arg0: i32) -> (i32, i32) {
    %c0_i32 = arith.constant 0 : i32
    %c0_i32_0 = arith.constant 0 : i32
    %c0_i32_1 = arith.constant 0 : i32
    return %c0_i32, %c0_i32_0 : i32, i32
  }
}

</mosaic_0001>

<llo_original>
// kernel: xl_autoregressive_forward.1
$region0: #{xl_autoregressive_forward.1}
  #allocation0 [shape = 'u32[]', space=smem, size = 0x4, offset = 0x4, fixed_abs, tag = 'smem constant byte address 0x4 - core index']
  #allocation1 [shape = 'u32[72,128]{1,0:T(1,128)}', space=vmem, size = 0x9000, scoped, tag = 'internal scratch']
  #allocation2 [shape = 'bf16[16,16,128]{2,1,0:T(8,128)(2,1)}', space=vmem, size = 0x10000, scoped, tag = 'scratch operand']
  #allocation3 [shape = 'bf16[16,16,128]{2,1,0:T(8,128)(2,1)}', space=vmem, size = 0x10000, scoped, tag = 'scratch operand']
  %s0 = inlined_call_operand.vmem [shape: bf16[2,128,128], index: 0, kind: input, shape index: {}]
  %s1 = inlined_call_operand.vmem [shape: s32[2,128,1], index: 1, kind: input, shape index: {}]
  %s2 = inlined_call_operand.vmem [shape: bf16[128,384], index: 2, kind: input, shape index: {}]
  %s3 = inlined_call_operand.vmem [shape: bf16[128,128], index: 3, kind: input, shape index: {}]
  %s4 = inlined_call_operand.vmem [shape: bf16[128,512], index: 4, kind: input, shape index: {}]
  %s5 = inlined_call_operand.vmem [shape: bf16[512,128], index: 5, kind: input, shape index: {}]
  %s6 = inlined_call_operand.vmem [shape: bf16[128,256], index: 6, kind: input, shape index: {}]
  %s7 = inlined_call_operand.vmem [shape: f32[8,128], index: 7, kind: output, shape index: {}]
  %s8 = sld [smem:[#allocation0]]
  $region38: #{xl_autoregressive_forward.1} parent=0
    _
  %s10 = ssub.s32 1, %s8
  %s11 = scalar_select 0, %s10, %s8
  // Predicated region
  $region2: #{xl_autoregressive_forward.1} parent=0 // pred_check
    _
  $region3: #{xl_autoregressive_forward.1} parent=0 // pred_check_branch
    %13 = sbr.rel (0) target = $region5
  $region4: #{xl_autoregressive_forward.1} parent=0 // pred_region
    _
  $region5: #{xl_autoregressive_forward.1} parent=0 // pred_fallthru
    _
  // Predicated region
  $region6: #{xl_autoregressive_forward.1} parent=0 // pred_check
    _
  $region7: #{xl_autoregressive_forward.1} parent=0 // pred_check_branch
    %15 = sbr.rel (0) target = $region9
  $region8: #{xl_autoregressive_forward.1} parent=0 // pred_region
    _
  $region9: #{xl_autoregressive_forward.1} parent=0 // pred_fallthru
    _
  // Predicated region
  $region10: #{xl_autoregressive_forward.1} parent=0 // pred_check
    _
  $region11: #{xl_autoregressive_forward.1} parent=0 // pred_check_branch
    %17 = sbr.rel (0) target = $region13
  $region12: #{xl_autoregressive_forward.1} parent=0 // pred_region
    _
  $region13: #{xl_autoregressive_forward.1} parent=0 // pred_fallthru
    _
  // Predicated region
  $region14: #{xl_autoregressive_forward.1} parent=0 // pred_check
    _
  $region15: #{xl_autoregressive_forward.1} parent=0 // pred_check_branch
    %19 = sbr.rel (0) target = $region17
  $region16: #{xl_autoregressive_forward.1} parent=0 // pred_region
    _
  $region17: #{xl_autoregressive_forward.1} parent=0 // pred_fallthru
    _
  // Predicated region
  $region18: #{xl_autoregressive_forward.1} parent=0 // pred_check
    _
  $region19: #{xl_autoregressive_forward.1} parent=0 // pred_check_branch
    %21 = sbr.rel (0) target = $region21
  $region20: #{xl_autoregressive_forward.1} parent=0 // pred_region
    _
  $region21: #{xl_autoregressive_forward.1} parent=0 // pred_fallthru
    _
  // Predicated region
  $region22: #{xl_autoregressive_forward.1} parent=0 // pred_check
    _
  $region23: #{xl_autoregressive_forward.1} parent=0 // pred_check_branch
    %23 = sbr.rel (0) target = $region25
  $region24: #{xl_autoregressive_forward.1} parent=0 // pred_region
    _
  $region25: #{xl_autoregressive_forward.1} parent=0 // pred_fallthru
    _
  // Predicated region
  $region26: #{xl_autoregressive_forward.1} parent=0 // pred_check
    _
  $region27: #{xl_autoregressive_forward.1} parent=0 // pred_check_branch
    %25 = sbr.rel (0) target = $region29
  $region28: #{xl_autoregressive_forward.1} parent=0 // pred_region
    _
  $region29: #{xl_autoregressive_forward.1} parent=0 // pred_fallthru
    _
  %27 = vst [vmem:[#allocation2] sm:$0xf] 0
  %28 = vst [vmem:[#allocation2 + $0x4] sm:$0xf] 0
  %29 = vst [vmem:[#allocation2 + $0x8] sm:$0xf] 0
  %30 = vst [vmem:[#allocation2 + $0xc] sm:$0xf] 0
  %31 = vst [vmem:[#allocation2 + $0x10] sm:$0xf] 0
  %32 = vst [vmem:[#allocation2 + $0x14] sm:$0xf] 0
  %33 = vst [vmem:[#allocation2 + $0x18] sm:$0xf] 0
  %34 = vst [vmem:[#allocation2 + $0x1c] sm:$0xf] 0
  %35 = vst [vmem:[#allocation2 + $0x20] sm:$0xf] 0
  %36 = vst [vmem:[#allocation2 + $0x24] sm:$0xf] 0
  %37 = vst [vmem:[#allocation2 + $0x28] sm:$0xf] 0
  %38 = vst [vmem:[#allocation2 + $0x2c] sm:$0xf] 0
  %39 = vst [vmem:[#allocation2 + $0x30] sm:$0xf] 0
  %40 = vst [vmem:[#allocation2 + $0x34] sm:$0xf] 0
  %41 = vst [vmem:[#allocation2 + $0x38] sm:$0xf] 0
  %42 = vst [vmem:[#allocation2 + $0x3c] sm:$0xf] 0
  %43 = vst [vmem:[#allocation2 + $0x40] sm:$0xf] 0
  %44 = vst [vmem:[#allocation2 + $0x44] sm:$0xf] 0
  %45 = vst [vmem:[#allocation2 + $0x48] sm:$0xf] 0
  %46 = vst [vmem:[#allocation2 + $0x4c] sm:$0xf] 0
  %47 = vst [vmem:[#allocation2 + $0x50] sm:$0xf] 0
  %48 = vst [vmem:[#allocation2 + $0x54] sm:$0xf] 0
  %49 = vst [vmem:[#allocation2 + $0x58] sm:$0xf] 0
  %50 = vst [vmem:[#allocation2 + $0x5c] sm:$0xf] 0
  %51 = vst [vmem:[#allocation2 + $0x60] sm:$0xf] 0
  %52 = vst [vmem:[#allocation2 + $0x64] sm:$0xf] 0
  %53 = vst [vmem:[#allocation2 + $0x68] sm:$0xf] 0
  %54 = vst [vmem:[#allocation2 + $0x6c] sm:$0xf] 0
  %55 = vst [vmem:[#allocation2 + $0x70] sm:$0xf] 0
  %56 = vst [vmem:[#allocation2 + $0x74] sm:$0xf] 0
  %57 = vst [vmem:[#allocation2 + $0x78] sm:$0xf] 0
  %58 = vst [vmem:[#allocation2 + $0x7c] sm:$0xf] 0
  %59 = vst [vmem:[#allocation3] sm:$0xf] 0
  %60 = vst [vmem:[#allocation3 + $0x4] sm:$0xf] 0
  %61 = vst [vmem:[#allocation3 + $0x8] sm:$0xf] 0
  %62 = vst [vmem:[#allocation3 + $0xc] sm:$0xf] 0
  %63 = vst [vmem:[#allocation3 + $0x10] sm:$0xf] 0
  %64 = vst [vmem:[#allocation3 + $0x14] sm:$0xf] 0
  %65 = vst [vmem:[#allocation3 + $0x18] sm:$0xf] 0
  %66 = vst [vmem:[#allocation3 + $0x1c] sm:$0xf] 0
  %67 = vst [vmem:[#allocation3 + $0x20] sm:$0xf] 0
  %68 = vst [vmem:[#allocation3 + $0x24] sm:$0xf] 0
  %69 = vst [vmem:[#allocation3 + $0x28] sm:$0xf] 0
  %70 = vst [vmem:[#allocation3 + $0x2c] sm:$0xf] 0
  %71 = vst [vmem:[#allocation3 + $0x30] sm:$0xf] 0
  %72 = vst [vmem:[#allocation3 + $0x34] sm:$0xf] 0
  %73 = vst [vmem:[#allocation3 + $0x38] sm:$0xf] 0
  %74 = vst [vmem:[#allocation3 + $0x3c] sm:$0xf] 0
  %75 = vst [vmem:[#allocation3 + $0x40] sm:$0xf] 0
  %76 = vst [vmem:[#allocation3 + $0x44] sm:$0xf] 0
  %77 = vst [vmem:[#allocation3 + $0x48] sm:$0xf] 0
  %78 = vst [vmem:[#allocation3 + $0x4c] sm:$0xf] 0
  %79 = vst [vmem:[#allocation3 + $0x50] sm:$0xf] 0
  %80 = vst [vmem:[#allocation3 + $0x54] sm:$0xf] 0
  %81 = vst [vmem:[#allocation3 + $0x58] sm:$0xf] 0
  %82 = vst [vmem:[#allocation3 + $0x5c] sm:$0xf] 0
  %83 = vst [vmem:[#allocation3 + $0x60] sm:$0xf] 0
  %84 = vst [vmem:[#allocation3 + $0x64] sm:$0xf] 0
  %85 = vst [vmem:[#allocation3 + $0x68] sm:$0xf] 0
  %86 = vst [vmem:[#allocation3 + $0x6c] sm:$0xf] 0
  %87 = vst [vmem:[#allocation3 + $0x70] sm:$0xf] 0
  %88 = vst [vmem:[#allocation3 + $0x74] sm:$0xf] 0
  %89 = vst [vmem:[#allocation3 + $0x78] sm:$0xf] 0
  %90 = vst [vmem:[#allocation3 + $0x7c] sm:$0xf] 0
  %v91 = vld [vmem:[%s0] sm:$0xf]
  %v92 = vld [vmem:[%s0 + $0x4] sm:$0xf]
  %v93 = vld [vmem:[%s0 + $0x8] sm:$0xf]
  %v94 = vld [vmem:[%s0 + $0xc] sm:$0xf]
  %v95 = vld [vmem:[%s0 + $0x10] sm:$0xf]
  %v96 = vld [vmem:[%s0 + $0x14] sm:$0xf]
  %v97 = vld [vmem:[%s0 + $0x18] sm:$0xf]
  %v98 = vld [vmem:[%s0 + $0x1c] sm:$0xf]
  %v99 = vld [vmem:[%s0 + $0x20] sm:$0xf]
  %v100 = vld [vmem:[%s0 + $0x24] sm:$0xf]
  %v101 = vld [vmem:[%s0 + $0x28] sm:$0xf]
  %v102 = vld [vmem:[%s0 + $0x2c] sm:$0xf]
  %v103 = vld [vmem:[%s0 + $0x30] sm:$0xf]
  %v104 = vld [vmem:[%s0 + $0x34] sm:$0xf]
  %v105 = vld [vmem:[%s0 + $0x38] sm:$0xf]
  %v106 = vld [vmem:[%s0 + $0x3c] sm:$0xf]
  %v107 = vunpack.c.l.bf16 %v91
  %v108 = vunpack.c.l.bf16 %v92
  %v109 = vunpack.c.l.bf16 %v93
  %v110 = vunpack.c.l.bf16 %v94
  %v111 = vunpack.c.l.bf16 %v95
  %v112 = vunpack.c.l.bf16 %v96
  %v113 = vunpack.c.l.bf16 %v97
  %v114 = vunpack.c.l.bf16 %v98
  %v115 = vunpack.c.l.bf16 %v99
  %v116 = vunpack.c.l.bf16 %v100
  %v117 = vunpack.c.l.bf16 %v101
  %v118 = vunpack.c.l.bf16 %v102
  %v119 = vunpack.c.l.bf16 %v103
  %v120 = vunpack.c.l.bf16 %v104
  %v121 = vunpack.c.l.bf16 %v105
  %v122 = vunpack.c.l.bf16 %v106
  %v123 = vld [vmem:[%s2] sm:$0xff]
  %v124 = vld [vmem:[%s2 + $0x8] sm:$0xf]
  %v125 = vld [vmem:[%s2 + $0xc] sm:$0xff]
  %v126 = vld [vmem:[%s2 + $0x14] sm:$0xf]
  %v127 = vld [vmem:[%s2 + $0x18] sm:$0xff]
  %v128 = vld [vmem:[%s2 + $0x20] sm:$0xf]
  %v129 = vld [vmem:[%s2 + $0x24] sm:$0xff]
  %v130 = vld [vmem:[%s2 + $0x2c] sm:$0xf]
  %v131 = vld [vmem:[%s2 + $0x30] sm:$0xff]
  %v132 = vld [vmem:[%s2 + $0x38] sm:$0xf]
  %v133 = vld [vmem:[%s2 + $0x3c] sm:$0xff]
  %v134 = vld [vmem:[%s2 + $0x44] sm:$0xf]
  %v135 = vld [vmem:[%s2 + $0x48] sm:$0xff]
  %v136 = vld [vmem:[%s2 + $0x50] sm:$0xf]
  %v137 = vld [vmem:[%s2 + $0x54] sm:$0xff]
  %v138 = vld [vmem:[%s2 + $0x5c] sm:$0xf]
  %v139 = vld [vmem:[%s2 + $0x60] sm:$0xff]
  %v140 = vld [vmem:[%s2 + $0x68] sm:$0xf]
  %v141 = vld [vmem:[%s2 + $0x6c] sm:$0xff]
  %v142 = vld [vmem:[%s2 + $0x74] sm:$0xf]
  %v143 = vld [vmem:[%s2 + $0x78] sm:$0xff]
  %v144 = vld [vmem:[%s2 + $0x80] sm:$0xf]
  %v145 = vld [vmem:[%s2 + $0x84] sm:$0xff]
  %v146 = vld [vmem:[%s2 + $0x8c] sm:$0xf]
  %v147 = vld [vmem:[%s2 + $0x90] sm:$0xff]
  %v148 = vld [vmem:[%s2 + $0x98] sm:$0xf]
  %v149 = vld [vmem:[%s2 + $0x9c] sm:$0xff]
  %v150 = vld [vmem:[%s2 + $0xa4] sm:$0xf]
  %v151 = vld [vmem:[%s2 + $0xa8] sm:$0xff]
  %v152 = vld [vmem:[%s2 + $0xb0] sm:$0xf]
  %v153 = vld [vmem:[%s2 + $0xb4] sm:$0xff]
  %v154 = vld [vmem:[%s2 + $0xbc] sm:$0xf]
  %v171 = vunpack.c.l.b16 %v91
  %v172 = vunpack.c.l.b16 %v92
  %v173 = vunpack.c.l.b16 %v93
  %v174 = vunpack.c.l.b16 %v94
  %v175 = vunpack.c.l.b16 %v95
  %v176 = vunpack.c.l.b16 %v96
  %v177 = vunpack.c.l.b16 %v97
  %v178 = vunpack.c.l.b16 %v98
  %v179 = vunpack.c.l.b16 %v99
  %v180 = vunpack.c.l.b16 %v100
  %v181 = vunpack.c.l.b16 %v101
  %v182 = vunpack.c.l.b16 %v102
  %v183 = vunpack.c.l.b16 %v103
  %v184 = vunpack.c.l.b16 %v104
  %v185 = vunpack.c.l.b16 %v105
  %v186 = vunpack.c.l.b16 %v106
  %v187 = vpack.c.b16 %v172, %v171
  %v188 = vpack.c.b16 %v174, %v173
  %v189 = vpack.c.b16 %v176, %v175
  %v190 = vpack.c.b16 %v178, %v177
  %v191 = vpack.c.b16 %v180, %v179
  %v192 = vpack.c.b16 %v182, %v181
  %v193 = vpack.c.b16 %v184, %v183
  %v194 = vpack.c.b16 %v186, %v185
  %v235 = vunpack.c.l.b16 %v123
  %v236 = vunpack.c.h.b16 %v123
  %v237 = vunpack.c.l.b16 %v124
  %v238 = vunpack.c.l.b16 %v125
  %v239 = vunpack.c.h.b16 %v125
  %v240 = vunpack.c.l.b16 %v126
  %v241 = vunpack.c.l.b16 %v127
  %v242 = vunpack.c.h.b16 %v127
  %v243 = vunpack.c.l.b16 %v128
  %v244 = vunpack.c.l.b16 %v129
  %v245 = vunpack.c.h.b16 %v129
  %v246 = vunpack.c.l.b16 %v130
  %v247 = vunpack.c.l.b16 %v131
  %v248 = vunpack.c.h.b16 %v131
  %v249 = vunpack.c.l.b16 %v132
  %v250 = vunpack.c.l.b16 %v133
  %v251 = vunpack.c.h.b16 %v133
  %v252 = vunpack.c.l.b16 %v134
  %v253 = vunpack.c.l.b16 %v135
  %v254 = vunpack.c.h.b16 %v135
  %v255 = vunpack.c.l.b16 %v136
  %v256 = vunpack.c.l.b16 %v137
  %v257 = vunpack.c.h.b16 %v137
  %v258 = vunpack.c.l.b16 %v138
  %v259 = vunpack.c.l.b16 %v139
  %v260 = vunpack.c.h.b16 %v139
  %v261 = vunpack.c.l.b16 %v140
  %v262 = vunpack.c.l.b16 %v141
  %v263 = vunpack.c.h.b16 %v141
  %v264 = vunpack.c.l.b16 %v142
  %v265 = vunpack.c.l.b16 %v143
  %v266 = vunpack.c.h.b16 %v143
  %v267 = vunpack.c.l.b16 %v144
  %v268 = vunpack.c.l.b16 %v145
  %v269 = vunpack.c.h.b16 %v145
  %v270 = vunpack.c.l.b16 %v146
  %v271 = vunpack.c.l.b16 %v147
  %v272 = vunpack.c.h.b16 %v147
  %v273 = vunpack.c.l.b16 %v148
  %v274 = vunpack.c.l.b16 %v149
  %v275 = vunpack.c.h.b16 %v149
  %v276 = vunpack.c.l.b16 %v150
  %v277 = vunpack.c.l.b16 %v151
  %v278 = vunpack.c.h.b16 %v151
  %v279 = vunpack.c.l.b16 %v152
  %v280 = vunpack.c.l.b16 %v153
  %v281 = vunpack.c.h.b16 %v153
  %v282 = vunpack.c.l.b16 %v154
  %v283 = vpack.c.b16 %v238, %v235
  %v284 = vpack.c.b16 %v239, %v236
  %v285 = vpack.c.b16 %v240, %v237
  %v286 = vpack.c.b16 %v244, %v241
  %v287 = vpack.c.b16 %v245, %v242
  %v288 = vpack.c.b16 %v246, %v243
  %v289 = vpack.c.b16 %v250, %v247
  %v290 = vpack.c.b16 %v251, %v248
  %v291 = vpack.c.b16 %v252, %v249
  %v292 = vpack.c.b16 %v256, %v253
  %v293 = vpack.c.b16 %v257, %v254
  %v294 = vpack.c.b16 %v258, %v255
  %v295 = vpack.c.b16 %v262, %v259
  %v296 = vpack.c.b16 %v263, %v260
  %v297 = vpack.c.b16 %v264, %v261
  %v298 = vpack.c.b16 %v268, %v265
  %v299 = vpack.c.b16 %v269, %v266
  %v300 = vpack.c.b16 %v270, %v267
  %v301 = vpack.c.b16 %v274, %v271
  %v302 = vpack.c.b16 %v275, %v272
  %v303 = vpack.c.b16 %v276, %v273
  %v304 = vpack.c.b16 %v280, %v277
  %v305 = vpack.c.b16 %v281, %v278
  %v306 = vpack.c.b16 %v282, %v279
  %331 = vmatpush.bf16.msra.mxu0 %v304
  %332 = vmatpush.bf16.msra.mxu0 %v301
  %333 = vmatpush.bf16.msra.mxu0 %v298
  %334 = vmatpush.bf16.msra.mxu0 %v295
  %335 = vmatpush.bf16.msra.mxu0 %v292
  %336 = vmatpush.bf16.msra.mxu0 %v289
  %337 = vmatpush.bf16.msra.mxu0 %v286
  %338 = vmatpush.bf16.msra.mxu0 %v283
  %339 = vmatmul.bf16.gmra.mxu0 %v187
  %v340 = vpop.f32.mrf.mxu0
  %v341 = vadd.f32 0.0, %v340
  %v342 = vpop.f32.mrf.mxu0
  %v343 = vadd.f32 0.0, %v342
  %344 = vmatmul.bf16.gmra.mxu0 %v188
  %v345 = vpop.f32.mrf.mxu0
  %v346 = vadd.f32 0.0, %v345
  %v347 = vpop.f32.mrf.mxu0
  %v348 = vadd.f32 0.0, %v347
  %349 = vmatmul.bf16.gmra.mxu0 %v189
  %v350 = vpop.f32.mrf.mxu0
  %v351 = vadd.f32 0.0, %v350
  %v352 = vpop.f32.mrf.mxu0
  %v353 = vadd.f32 0.0, %v352
  %354 = vmatmul.bf16.gmra.mxu0 %v190
  %v355 = vpop.f32.mrf.mxu0
  %v356 = vadd.f32 0.0, %v355
  %v357 = vpop.f32.mrf.mxu0
  %v358 = vadd.f32 0.0, %v357
  %359 = vmatmul.bf16.gmra.mxu0 %v191
  %v360 = vpop.f32.mrf.mxu0
  %v361 = vadd.f32 0.0, %v360
  %v362 = vpop.f32.mrf.mxu0
  %v363 = vadd.f32 0.0, %v362
  %364 = vmatmul.bf16.gmra.mxu0 %v192
  %v365 = vpop.f32.mrf.mxu0
  %v366 = vadd.f32 0.0, %v365
  %v367 = vpop.f32.mrf.mxu0
  %v368 = vadd.f32 0.0, %v367
  %369 = vmatmul.bf16.gmra.mxu0 %v193
  %v370 = vpop.f32.mrf.mxu0
  %v371 = vadd.f32 0.0, %v370
  %v372 = vpop.f32.mrf.mxu0
  %v373 = vadd.f32 0.0, %v372
  %374 = vmatmul.bf16.gmra.mxu0 %v194
  %v375 = vpop.f32.mrf.mxu0
  %v376 = vadd.f32 0.0, %v375
  %v377 = vpop.f32.mrf.mxu0
  %v378 = vadd.f32 0.0, %v377
  %379 = vdwg.mxu0
  %380 = vmatpush.bf16.msra.mxu0 %v305
  %381 = vmatpush.bf16.msra.mxu0 %v302
  %382 = vmatpush.bf16.msra.mxu0 %v299
  %383 = vmatpush.bf16.msra.mxu0 %v296
  %384 = vmatpush.bf16.msra.mxu0 %v293
  %385 = vmatpush.bf16.msra.mxu0 %v290
  %386 = vmatpush.bf16.msra.mxu0 %v287
  %387 = vmatpush.bf16.msra.mxu0 %v284
  %388 = vmatmul.bf16.gmra.mxu0 %v187
  %v389 = vpop.f32.mrf.mxu0
  %v390 = vadd.f32 0.0, %v389
  %v391 = vpop.f32.mrf.mxu0
  %v392 = vadd.f32 0.0, %v391
  %393 = vmatmul.bf16.gmra.mxu0 %v188
  %v394 = vpop.f32.mrf.mxu0
  %v395 = vadd.f32 0.0, %v394
  %v396 = vpop.f32.mrf.mxu0
  %v397 = vadd.f32 0.0, %v396
  %398 = vmatmul.bf16.gmra.mxu0 %v189
  %v399 = vpop.f32.mrf.mxu0
  %v400 = vadd.f32 0.0, %v399
  %v401 = vpop.f32.mrf.mxu0
  %v402 = vadd.f32 0.0, %v401
  %403 = vmatmul.bf16.gmra.mxu0 %v190
  %v404 = vpop.f32.mrf.mxu0
  %v405 = vadd.f32 0.0, %v404
  %v406 = vpop.f32.mrf.mxu0
  %v407 = vadd.f32 0.0, %v406
  %408 = vmatmul.bf16.gmra.mxu0 %v191
  %v409 = vpop.f32.mrf.mxu0
  %v410 = vadd.f32 0.0, %v409
  %v411 = vpop.f32.mrf.mxu0
  %v412 = vadd.f32 0.0, %v411
  %413 = vmatmul.bf16.gmra.mxu0 %v192
  %v414 = vpop.f32.mrf.mxu0
  %v415 = vadd.f32 0.0, %v414
  %v416 = vpop.f32.mrf.mxu0
  %v417 = vadd.f32 0.0, %v416
  %418 = vmatmul.bf16.gmra.mxu0 %v193
  %v419 = vpop.f32.mrf.mxu0
  %v420 = vadd.f32 0.0, %v419
  %v421 = vpop.f32.mrf.mxu0
  %v422 = vadd.f32 0.0, %v421
  %423 = vmatmul.bf16.gmra.mxu0 %v194
  %v424 = vpop.f32.mrf.mxu0
  %v425 = vadd.f32 0.0, %v424
  %v426 = vpop.f32.mrf.mxu0
  %v427 = vadd.f32 0.0, %v426
  %428 = vdwg.mxu0
  %429 = vmatpush.bf16.msra.mxu0 %v306
  %430 = vmatpush.bf16.msra.mxu0 %v303
  %431 = vmatpush.bf16.msra.mxu0 %v300
  %432 = vmatpush.bf16.msra.mxu0 %v297
  %433 = vmatpush.bf16.msra.mxu0 %v294
  %434 = vmatpush.bf16.msra.mxu0 %v291
  %435 = vmatpush.bf16.msra.mxu0 %v288
  %436 = vmatpush.bf16.msra.mxu0 %v285
  %437 = vmatmul.bf16.gmra.mxu0 %v187
  %v438 = vpop.f32.mrf.mxu0
  %v439 = vadd.f32 0.0, %v438
  %v440 = vpop.f32.mrf.mxu0
  %v441 = vadd.f32 0.0, %v440
  %442 = vmatmul.bf16.gmra.mxu0 %v188
  %v443 = vpop.f32.mrf.mxu0
  %v444 = vadd.f32 0.0, %v443
  %v445 = vpop.f32.mrf.mxu0
  %v446 = vadd.f32 0.0, %v445
  %447 = vmatmul.bf16.gmra.mxu0 %v189
  %v448 = vpop.f32.mrf.mxu0
  %v449 = vadd.f32 0.0, %v448
  %v450 = vpop.f32.mrf.mxu0
  %v451 = vadd.f32 0.0, %v450
  %452 = vmatmul.bf16.gmra.mxu0 %v190
  %v453 = vpop.f32.mrf.mxu0
  %v454 = vadd.f32 0.0, %v453
  %v455 = vpop.f32.mrf.mxu0
  %v456 = vadd.f32 0.0, %v455
  %457 = vmatmul.bf16.gmra.mxu0 %v191
  %v458 = vpop.f32.mrf.mxu0
  %v459 = vadd.f32 0.0, %v458
  %v460 = vpop.f32.mrf.mxu0
  %v461 = vadd.f32 0.0, %v460
  %462 = vmatmul.bf16.gmra.mxu0 %v192
  %v463 = vpop.f32.mrf.mxu0
  %v464 = vadd.f32 0.0, %v463
  %v465 = vpop.f32.mrf.mxu0
  %v466 = vadd.f32 0.0, %v465
  %467 = vmatmul.bf16.gmra.mxu0 %v193
  %v468 = vpop.f32.mrf.mxu0
  %v469 = vadd.f32 0.0, %v468
  %v470 = vpop.f32.mrf.mxu0
  %v471 = vadd.f32 0.0, %v470
  %472 = vmatmul.bf16.gmra.mxu0 %v194
  %v473 = vpop.f32.mrf.mxu0
  %v474 = vadd.f32 0.0, %v473
  %v475 = vpop.f32.mrf.mxu0
  %v476 = vadd.f32 0.0, %v475
  %477 = vdwg.mxu0
  %v478 = vpack.c.bf16 %v341, %v341
  %v479 = vpack.c.bf16 %v343, %v343
  %v480 = vpack.c.bf16 %v346, %v346
  %v481 = vpack.c.bf16 %v348, %v348
  %v482 = vpack.c.bf16 %v351, %v351
  %v483 = vpack.c.bf16 %v353, %v353
  %v484 = vpack.c.bf16 %v356, %v356
  %v485 = vpack.c.bf16 %v358, %v358
  %v486 = vpack.c.bf16 %v361, %v361
  %v487 = vpack.c.bf16 %v363, %v363
  %v488 = vpack.c.bf16 %v366, %v366
  %v489 = vpack.c.bf16 %v368, %v368
  %v490 = vpack.c.bf16 %v371, %v371
  %v491 = vpack.c.bf16 %v373, %v373
  %v492 = vpack.c.bf16 %v376, %v376
  %v493 = vpack.c.bf16 %v378, %v378
  %v494 = vpack.c.bf16 %v390, %v390
  %v495 = vpack.c.bf16 %v392, %v392
  %v496 = vpack.c.bf16 %v395, %v395
  %v497 = vpack.c.bf16 %v397, %v397
  %v498 = vpack.c.bf16 %v400, %v400
  %v499 = vpack.c.bf16 %v402, %v402
  %v500 = vpack.c.bf16 %v405, %v405
  %v501 = vpack.c.bf16 %v407, %v407
  %v502 = vpack.c.bf16 %v410, %v410
  %v503 = vpack.c.bf16 %v412, %v412
  %v504 = vpack.c.bf16 %v415, %v415
  %v505 = vpack.c.bf16 %v417, %v417
  %v506 = vpack.c.bf16 %v420, %v420
  %v507 = vpack.c.bf16 %v422, %v422
  %v508 = vpack.c.bf16 %v425, %v425
  %v509 = vpack.c.bf16 %v427, %v427
  %v510 = vpack.c.bf16 %v439, %v439
  %v511 = vpack.c.bf16 %v441, %v441
  %v512 = vpack.c.bf16 %v444, %v444
  %v513 = vpack.c.bf16 %v446, %v446
  %v514 = vpack.c.bf16 %v449, %v449
  %v515 = vpack.c.bf16 %v451, %v451
  %v516 = vpack.c.bf16 %v454, %v454
  %v517 = vpack.c.bf16 %v456, %v456
  %v518 = vpack.c.bf16 %v459, %v459
  %v519 = vpack.c.bf16 %v461, %v461
  %v520 = vpack.c.bf16 %v464, %v464
  %v521 = vpack.c.bf16 %v466, %v466
  %v522 = vpack.c.bf16 %v469, %v469
  %v523 = vpack.c.bf16 %v471, %v471
  %v524 = vpack.c.bf16 %v474, %v474
  %v525 = vpack.c.bf16 %v476, %v476
  %526 = vst [vmem:[#allocation2 + $0x4] sm:$0xf] %v494
  %527 = vst [vmem:[#allocation2 + $0xc] sm:$0xf] %v495
  %528 = vst [vmem:[#allocation2 + $0x14] sm:$0xf] %v496
  %529 = vst [vmem:[#allocation2 + $0x1c] sm:$0xf] %v497
  %530 = vst [vmem:[#allocation2 + $0x24] sm:$0xf] %v498
  %531 = vst [vmem:[#allocation2 + $0x2c] sm:$0xf] %v499
  %532 = vst [vmem:[#allocation2 + $0x34] sm:$0xf] %v500
  %533 = vst [vmem:[#allocation2 + $0x3c] sm:$0xf] %v501
  %534 = vst [vmem:[#allocation2 + $0x44] sm:$0xf] %v502
  %535 = vst [vmem:[#allocation2 + $0x4c] sm:$0xf] %v503
  %536 = vst [vmem:[#allocation2 + $0x54] sm:$0xf] %v504
  %537 = vst [vmem:[#allocation2 + $0x5c] sm:$0xf] %v505
  %538 = vst [vmem:[#allocation2 + $0x64] sm:$0xf] %v506
  %539 = vst [vmem:[#allocation2 + $0x6c] sm:$0xf] %v507
  %540 = vst [vmem:[#allocation2 + $0x74] sm:$0xf] %v508
  %541 = vst [vmem:[#allocation2 + $0x7c] sm:$0xf] %v509
  %542 = vst [vmem:[#allocation3 + $0x4] sm:$0xf] %v510
  %543 = vst [vmem:[#allocation3 + $0xc] sm:$0xf] %v511
  %544 = vst [vmem:[#allocation3 + $0x14] sm:$0xf] %v512
  %545 = vst [vmem:[#allocation3 + $0x1c] sm:$0xf] %v513
  %546 = vst [vmem:[#allocation3 + $0x24] sm:$0xf] %v514
  %547 = vst [vmem:[#allocation3 + $0x2c] sm:$0xf] %v515
  %548 = vst [vmem:[#allocation3 + $0x34] sm:$0xf] %v516
  %549 = vst [vmem:[#allocation3 + $0x3c] sm:$0xf] %v517
  %550 = vst [vmem:[#allocation3 + $0x44] sm:$0xf] %v518
  %551 = vst [vmem:[#allocation3 + $0x4c] sm:$0xf] %v519
  %552 = vst [vmem:[#allocation3 + $0x54] sm:$0xf] %v520
  %553 = vst [vmem:[#allocation3 + $0x5c] sm:$0xf] %v521
  %554 = vst [vmem:[#allocation3 + $0x64] sm:$0xf] %v522
  %555 = vst [vmem:[#allocation3 + $0x6c] sm:$0xf] %v523
  %556 = vst [vmem:[#allocation3 + $0x74] sm:$0xf] %v524
  %557 = vst [vmem:[#allocation3 + $0x7c] sm:$0xf] %v525
  %v558 = vld [vmem:[#allocation2] sm:$0xf]
  %v559 = vld [vmem:[#allocation2 + $0x4] sm:$0xf]
  %v560 = vld [vmem:[#allocation2 + $0x8] sm:$0xf]
  %v561 = vld [vmem:[#allocation2 + $0xc] sm:$0xf]
  %v562 = vld [vmem:[#allocation2 + $0x10] sm:$0xf]
  %v563 = vld [vmem:[#allocation2 + $0x14] sm:$0xf]
  %v564 = vld [vmem:[#allocation2 + $0x18] sm:$0xf]
  %v565 = vld [vmem:[#allocation2 + $0x1c] sm:$0xf]
  %v566 = vld [vmem:[#allocation2 + $0x20] sm:$0xf]
  %v567 = vld [vmem:[#allocation2 + $0x24] sm:$0xf]
  %v568 = vld [vmem:[#allocation2 + $0x28] sm:$0xf]
  %v569 = vld [vmem:[#allocation2 + $0x2c] sm:$0xf]
  %v570 = vld [vmem:[#allocation2 + $0x30] sm:$0xf]
  %v571 = vld [vmem:[#allocation2 + $0x34] sm:$0xf]
  %v572 = vld [vmem:[#allocation2 + $0x38] sm:$0xf]
  %v573 = vld [vmem:[#allocation2 + $0x3c] sm:$0xf]
  %v574 = vld [vmem:[#allocation2 + $0x40] sm:$0xf]
  %v575 = vld [vmem:[#allocation2 + $0x44] sm:$0xf]
  %v576 = vld [vmem:[#allocation2 + $0x48] sm:$0xf]
  %v577 = vld [vmem:[#allocation2 + $0x4c] sm:$0xf]
  %v578 = vld [vmem:[#allocation2 + $0x50] sm:$0xf]
  %v579 = vld [vmem:[#allocation2 + $0x54] sm:$0xf]
  %v580 = vld [vmem:[#allocation2 + $0x58] sm:$0xf]
  %v581 = vld [vmem:[#allocation2 + $0x5c] sm:$0xf]
  %v582 = vld [vmem:[#allocation2 + $0x60] sm:$0xf]
  %v583 = vld [vmem:[#allocation2 + $0x64] sm:$0xf]
  %v584 = vld [vmem:[#allocation2 + $0x68] sm:$0xf]
  %v585 = vld [vmem:[#allocation2 + $0x6c] sm:$0xf]
  %v586 = vld [vmem:[#allocation2 + $0x70] sm:$0xf]
  %v587 = vld [vmem:[#allocation2 + $0x74] sm:$0xf]
  %v588 = vld [vmem:[#allocation2 + $0x78] sm:$0xf]
  %v589 = vld [vmem:[#allocation2 + $0x7c] sm:$0xf]
  %v590 = vld [vmem:[#allocation3] sm:$0xf]
  %v591 = vld [vmem:[#allocation3 + $0x4] sm:$0xf]
  %v592 = vld [vmem:[#allocation3 + $0x8] sm:$0xf]
  %v593 = vld [vmem:[#allocation3 + $0xc] sm:$0xf]
  %v594 = vld [vmem:[#allocation3 + $0x10] sm:$0xf]
  %v595 = vld [vmem:[#allocation3 + $0x14] sm:$0xf]
  %v596 = vld [vmem:[#allocation3 + $0x18] sm:$0xf]
  %v597 = vld [vmem:[#allocation3 + $0x1c] sm:$0xf]
  %v598 = vld [vmem:[#allocation3 + $0x20] sm:$0xf]
  %v599 = vld [vmem:[#allocation3 + $0x24] sm:$0xf]
  %v600 = vld [vmem:[#allocation3 + $0x28] sm:$0xf]
  %v601 = vld [vmem:[#allocation3 + $0x2c] sm:$0xf]
  %v602 = vld [vmem:[#allocation3 + $0x30] sm:$0xf]
  %v603 = vld [vmem:[#allocation3 + $0x34] sm:$0xf]
  %v604 = vld [vmem:[#allocation3 + $0x38] sm:$0xf]
  %v605 = vld [vmem:[#allocation3 + $0x3c] sm:$0xf]
  %v606 = vld [vmem:[#allocation3 + $0x40] sm:$0xf]
  %v607 = vld [vmem:[#allocation3 + $0x44] sm:$0xf]
  %v608 = vld [vmem:[#allocation3 + $0x48] sm:$0xf]
  %v609 = vld [vmem:[#allocation3 + $0x4c] sm:$0xf]
  %v610 = vld [vmem:[#allocation3 + $0x50] sm:$0xf]
  %v611 = vld [vmem:[#allocation3 + $0x54] sm:$0xf]
  %v612 = vld [vmem:[#allocation3 + $0x58] sm:$0xf]
  %v613 = vld [vmem:[#allocation3 + $0x5c] sm:$0xf]
  %v614 = vld [vmem:[#allocation3 + $0x60] sm:$0xf]
  %v615 = vld [vmem:[#allocation3 + $0x64] sm:$0xf]
  %v616 = vld [vmem:[#allocation3 + $0x68] sm:$0xf]
  %v617 = vld [vmem:[#allocation3 + $0x6c] sm:$0xf]
  %v618 = vld [vmem:[#allocation3 + $0x70] sm:$0xf]
  %v619 = vld [vmem:[#allocation3 + $0x74] sm:$0xf]
  %v620 = vld [vmem:[#allocation3 + $0x78] sm:$0xf]
  %v621 = vld [vmem:[#allocation3 + $0x7c] sm:$0xf]
  %v624 = vunpack.c.l.b16 %v558
  %v625 = vunpack.c.l.b16 %v559
  %v626 = vpack.c.b16 %v625, %v624
  %628 = vmatpush.bf16.xpose.msra.mxu0 0
  %629 = vmatpush.bf16.xpose.msra.mxu0 0
  %630 = vmatpush.bf16.xpose.msra.mxu0 0
  %631 = vmatpush.bf16.xpose.msra.mxu0 0
  %632 = vmatpush.bf16.xpose.msra.mxu0 0
  %633 = vmatpush.bf16.xpose.msra.mxu0 0
  %634 = vmatpush.bf16.xpose.msra.mxu0 0
  %635 = vmatpush.bf16.xpose.msra.mxu0 %v626
  %636 = vmatmul.bf16.gmra.mxu0 %v478
  %v637 = vpop.f32.mrf.mxu0
  %v638 = vadd.f32 0.0, %v637
  %v639 = vpop.f32.mrf.mxu0
  %640 = vdwg.mxu0
  %v643 = vunpack.c.l.b16 %v560
  %v644 = vunpack.c.l.b16 %v561
  %v645 = vpack.c.b16 %v644, %v643
  %647 = vmatpush.bf16.xpose.msra.mxu0 0
  %648 = vmatpush.bf16.xpose.msra.mxu0 0
  %649 = vmatpush.bf16.xpose.msra.mxu0 0
  %650 = vmatpush.bf16.xpose.msra.mxu0 0
  %651 = vmatpush.bf16.xpose.msra.mxu0 0
  %652 = vmatpush.bf16.xpose.msra.mxu0 0
  %653 = vmatpush.bf16.xpose.msra.mxu0 0
  %654 = vmatpush.bf16.xpose.msra.mxu0 %v645
  %655 = vmatmul.bf16.gmra.mxu0 %v479
  %v656 = vpop.f32.mrf.mxu0
  %v657 = vadd.f32 0.0, %v656
  %v658 = vpop.f32.mrf.mxu0
  %659 = vdwg.mxu0
  %v662 = vunpack.c.l.b16 %v562
  %v663 = vunpack.c.l.b16 %v563
  %v664 = vpack.c.b16 %v663, %v662
  %666 = vmatpush.bf16.xpose.msra.mxu0 0
  %667 = vmatpush.bf16.xpose.msra.mxu0 0
  %668 = vmatpush.bf16.xpose.msra.mxu0 0
  %669 = vmatpush.bf16.xpose.msra.mxu0 0
  %670 = vmatpush.bf16.xpose.msra.mxu0 0
  %671 = vmatpush.bf16.xpose.msra.mxu0 0
  %672 = vmatpush.bf16.xpose.msra.mxu0 0
  %673 = vmatpush.bf16.xpose.msra.mxu0 %v664
  %674 = vmatmul.bf16.gmra.mxu0 %v480
  %v675 = vpop.f32.mrf.mxu0
  %v676 = vadd.f32 0.0, %v675
  %v677 = vpop.f32.mrf.mxu0
  %678 = vdwg.mxu0
  %v681 = vunpack.c.l.b16 %v564
  %v682 = vunpack.c.l.b16 %v565
  %v683 = vpack.c.b16 %v682, %v681
  %685 = vmatpush.bf16.xpose.msra.mxu0 0
  %686 = vmatpush.bf16.xpose.msra.mxu0 0
  %687 = vmatpush.bf16.xpose.msra.mxu0 0
  %688 = vmatpush.bf16.xpose.msra.mxu0 0
  %689 = vmatpush.bf16.xpose.msra.mxu0 0
  %690 = vmatpush.bf16.xpose.msra.mxu0 0
  %691 = vmatpush.bf16.xpose.msra.mxu0 0
  %692 = vmatpush.bf16.xpose.msra.mxu0 %v683
  %693 = vmatmul.bf16.gmra.mxu0 %v481
  %v694 = vpop.f32.mrf.mxu0
  %v695 = vadd.f32 0.0, %v694
  %v696 = vpop.f32.mrf.mxu0
  %697 = vdwg.mxu0
  %v700 = vunpack.c.l.b16 %v566
  %v701 = vunpack.c.l.b16 %v567
  %v702 = vpack.c.b16 %v701, %v700
  %704 = vmatpush.bf16.xpose.msra.mxu0 0
  %705 = vmatpush.bf16.xpose.msra.mxu0 0
  %706 = vmatpush.bf16.xpose.msra.mxu0 0
  %707 = vmatpush.bf16.xpose.msra.mxu0 0
  %708 = vmatpush.bf16.xpose.msra.mxu0 0
  %709 = vmatpush.bf16.xpose.msra.mxu0 0
  %710 = vmatpush.bf16.xpose.msra.mxu0 0
  %711 = vmatpush.bf16.xpose.msra.mxu0 %v702
  %712 = vmatmul.bf16.gmra.mxu0 %v482
  %v713 = vpop.f32.mrf.mxu0
  %v714 = vadd.f32 0.0, %v713
  %v715 = vpop.f32.mrf.mxu0
  %716 = vdwg.mxu0
  %v719 = vunpack.c.l.b16 %v568
  %v720 = vunpack.c.l.b16 %v569
  %v721 = vpack.c.b16 %v720, %v719
  %723 = vmatpush.bf16.xpose.msra.mxu0 0
  %724 = vmatpush.bf16.xpose.msra.mxu0 0
  %725 = vmatpush.bf16.xpose.msra.mxu0 0
  %726 = vmatpush.bf16.xpose.msra.mxu0 0
  %727 = vmatpush.bf16.xpose.msra.mxu0 0
  %728 = vmatpush.bf16.xpose.msra.mxu0 0
  %729 = vmatpush.bf16.xpose.msra.mxu0 0
  %730 = vmatpush.bf16.xpose.msra.mxu0 %v721
  %731 = vmatmul.bf16.gmra.mxu0 %v483
  %v732 = vpop.f32.mrf.mxu0
  %v733 = vadd.f32 0.0, %v732
  %v734 = vpop.f32.mrf.mxu0
  %735 = vdwg.mxu0
  %v738 = vunpack.c.l.b16 %v570
  %v739 = vunpack.c.l.b16 %v571
  %v740 = vpack.c.b16 %v739, %v738
  %742 = vmatpush.bf16.xpose.msra.mxu0 0
  %743 = vmatpush.bf16.xpose.msra.mxu0 0
  %744 = vmatpush.bf16.xpose.msra.mxu0 0
  %745 = vmatpush.bf16.xpose.msra.mxu0 0
  %746 = vmatpush.bf16.xpose.msra.mxu0 0
  %747 = vmatpush.bf16.xpose.msra.mxu0 0
  %748 = vmatpush.bf16.xpose.msra.mxu0 0
  %749 = vmatpush.bf16.xpose.msra.mxu0 %v740
  %750 = vmatmul.bf16.gmra.mxu0 %v484
  %v751 = vpop.f32.mrf.mxu0
  %v752 = vadd.f32 0.0, %v751
  %v753 = vpop.f32.mrf.mxu0
  %754 = vdwg.mxu0
  %v757 = vunpack.c.l.b16 %v572
  %v758 = vunpack.c.l.b16 %v573
  %v759 = vpack.c.b16 %v758, %v757
  %761 = vmatpush.bf16.xpose.msra.mxu0 0
  %762 = vmatpush.bf16.xpose.msra.mxu0 0
  %763 = vmatpush.bf16.xpose.msra.mxu0 0
  %764 = vmatpush.bf16.xpose.msra.mxu0 0
  %765 = vmatpush.bf16.xpose.msra.mxu0 0
  %766 = vmatpush.bf16.xpose.msra.mxu0 0
  %767 = vmatpush.bf16.xpose.msra.mxu0 0
  %768 = vmatpush.bf16.xpose.msra.mxu0 %v759
  %769 = vmatmul.bf16.gmra.mxu0 %v485
  %v770 = vpop.f32.mrf.mxu0
  %v771 = vadd.f32 0.0, %v770
  %v772 = vpop.f32.mrf.mxu0
  %773 = vdwg.mxu0
  %v776 = vunpack.c.l.b16 %v574
  %v777 = vunpack.c.l.b16 %v575
  %v778 = vpack.c.b16 %v777, %v776
  %780 = vmatpush.bf16.xpose.msra.mxu0 0
  %781 = vmatpush.bf16.xpose.msra.mxu0 0
  %782 = vmatpush.bf16.xpose.msra.mxu0 0
  %783 = vmatpush.bf16.xpose.msra.mxu0 0
  %784 = vmatpush.bf16.xpose.msra.mxu0 0
  %785 = vmatpush.bf16.xpose.msra.mxu0 0
  %786 = vmatpush.bf16.xpose.msra.mxu0 0
  %787 = vmatpush.bf16.xpose.msra.mxu0 %v778
  %788 = vmatmul.bf16.gmra.mxu0 %v486
  %v789 = vpop.f32.mrf.mxu0
  %v790 = vadd.f32 0.0, %v789
  %v791 = vpop.f32.mrf.mxu0
  %792 = vdwg.mxu0
  %v795 = vunpack.c.l.b16 %v576
  %v796 = vunpack.c.l.b16 %v577
  %v797 = vpack.c.b16 %v796, %v795
  %799 = vmatpush.bf16.xpose.msra.mxu0 0
  %800 = vmatpush.bf16.xpose.msra.mxu0 0
  %801 = vmatpush.bf16.xpose.msra.mxu0 0
  %802 = vmatpush.bf16.xpose.msra.mxu0 0
  %803 = vmatpush.bf16.xpose.msra.mxu0 0
  %804 = vmatpush.bf16.xpose.msra.mxu0 0
  %805 = vmatpush.bf16.xpose.msra.mxu0 0
  %806 = vmatpush.bf16.xpose.msra.mxu0 %v797
  %807 = vmatmul.bf16.gmra.mxu0 %v487
  %v808 = vpop.f32.mrf.mxu0
  %v809 = vadd.f32 0.0, %v808
  %v810 = vpop.f32.mrf.mxu0
  %811 = vdwg.mxu0
  %v814 = vunpack.c.l.b16 %v578
  %v815 = vunpack.c.l.b16 %v579
  %v816 = vpack.c.b16 %v815, %v814
  %818 = vmatpush.bf16.xpose.msra.mxu0 0
  %819 = vmatpush.bf16.xpose.msra.mxu0 0
  %820 = vmatpush.bf16.xpose.msra.mxu0 0
  %821 = vmatpush.bf16.xpose.msra.mxu0 0
  %822 = vmatpush.bf16.xpose.msra.mxu0 0
  %823 = vmatpush.bf16.xpose.msra.mxu0 0
  %824 = vmatpush.bf16.xpose.msra.mxu0 0
  %825 = vmatpush.bf16.xpose.msra.mxu0 %v816
  %826 = vmatmul.bf16.gmra.mxu0 %v488
  %v827 = vpop.f32.mrf.mxu0
  %v828 = vadd.f32 0.0, %v827
  %v829 = vpop.f32.mrf.mxu0
  %830 = vdwg.mxu0
  %v833 = vunpack.c.l.b16 %v580
  %v834 = vunpack.c.l.b16 %v581
  %v835 = vpack.c.b16 %v834, %v833
  %837 = vmatpush.bf16.xpose.msra.mxu0 0
  %838 = vmatpush.bf16.xpose.msra.mxu0 0
  %839 = vmatpush.bf16.xpose.msra.mxu0 0
  %840 = vmatpush.bf16.xpose.msra.mxu0 0
  %841 = vmatpush.bf16.xpose.msra.mxu0 0
  %842 = vmatpush.bf16.xpose.msra.mxu0 0
  %843 = vmatpush.bf16.xpose.msra.mxu0 0
  %844 = vmatpush.bf16.xpose.msra.mxu0 %v835
  %845 = vmatmul.bf16.gmra.mxu0 %v489
  %v846 = vpop.f32.mrf.mxu0
  %v847 = vadd.f32 0.0, %v846
  %v848 = vpop.f32.mrf.mxu0
  %849 = vdwg.mxu0
  %v852 = vunpack.c.l.b16 %v582
  %v853 = vunpack.c.l.b16 %v583
  %v854 = vpack.c.b16 %v853, %v852
  %856 = vmatpush.bf16.xpose.msra.mxu0 0
  %857 = vmatpush.bf16.xpose.msra.mxu0 0
  %858 = vmatpush.bf16.xpose.msra.mxu0 0
  %859 = vmatpush.bf16.xpose.msra.mxu0 0
  %860 = vmatpush.bf16.xpose.msra.mxu0 0
  %861 = vmatpush.bf16.xpose.msra.mxu0 0
  %862 = vmatpush.bf16.xpose.msra.mxu0 0
  %863 = vmatpush.bf16.xpose.msra.mxu0 %v854
  %864 = vmatmul.bf16.gmra.mxu0 %v490
  %v865 = vpop.f32.mrf.mxu0
  %v866 = vadd.f32 0.0, %v865
  %v867 = vpop.f32.mrf.mxu0
  %868 = vdwg.mxu0
  %v871 = vunpack.c.l.b16 %v584
  %v872 = vunpack.c.l.b16 %v585
  %v873 = vpack.c.b16 %v872, %v871
  %875 = vmatpush.bf16.xpose.msra.mxu0 0
  %876 = vmatpush.bf16.xpose.msra.mxu0 0
  %877 = vmatpush.bf16.xpose.msra.mxu0 0
  %878 = vmatpush.bf16.xpose.msra.mxu0 0
  %879 = vmatpush.bf16.xpose.msra.mxu0 0
  %880 = vmatpush.bf16.xpose.msra.mxu0 0
  %881 = vmatpush.bf16.xpose.msra.mxu0 0
  %882 = vmatpush.bf16.xpose.msra.mxu0 %v873
  %883 = vmatmul.bf16.gmra.mxu0 %v491
  %v884 = vpop.f32.mrf.mxu0
  %v885 = vadd.f32 0.0, %v884
  %v886 = vpop.f32.mrf.mxu0
  %887 = vdwg.mxu0
  %v890 = vunpack.c.l.b16 %v586
  %v891 = vunpack.c.l.b16 %v587
  %v892 = vpack.c.b16 %v891, %v890
  %894 = vmatpush.bf16.xpose.msra.mxu0 0
  %895 = vmatpush.bf16.xpose.msra.mxu0 0
  %896 = vmatpush.bf16.xpose.msra.mxu0 0
  %897 = vmatpush.bf16.xpose.msra.mxu0 0
  %898 = vmatpush.bf16.xpose.msra.mxu0 0
  %899 = vmatpush.bf16.xpose.msra.mxu0 0
  %900 = vmatpush.bf16.xpose.msra.mxu0 0
  %901 = vmatpush.bf16.xpose.msra.mxu0 %v892
  %902 = vmatmul.bf16.gmra.mxu0 %v492
  %v903 = vpop.f32.mrf.mxu0
  %v904 = vadd.f32 0.0, %v903
  %v905 = vpop.f32.mrf.mxu0
  %906 = vdwg.mxu0
  %v909 = vunpack.c.l.b16 %v588
  %v910 = vunpack.c.l.b16 %v589
  %v911 = vpack.c.b16 %v910, %v909
  %913 = vmatpush.bf16.xpose.msra.mxu0 0
  %914 = vmatpush.bf16.xpose.msra.mxu0 0
  %915 = vmatpush.bf16.xpose.msra.mxu0 0
  %916 = vmatpush.bf16.xpose.msra.mxu0 0
  %917 = vmatpush.bf16.xpose.msra.mxu0 0
  %918 = vmatpush.bf16.xpose.msra.mxu0 0
  %919 = vmatpush.bf16.xpose.msra.mxu0 0
  %920 = vmatpush.bf16.xpose.msra.mxu0 %v911
  %921 = vmatmul.bf16.gmra.mxu0 %v493
  %v922 = vpop.f32.mrf.mxu0
  %v923 = vadd.f32 0.0, %v922
  %v924 = vpop.f32.mrf.mxu0
  %925 = vdwg.mxu0
  %v926 = vlaneseq
  %v927 = vshrl.u32 %v926, 7
  %v928 = vlaneseq
  %v929 = vand.u32 %v928, 127
  %v930 = vadd.s32 %v927, 8
  %vm931 = vcmp.le.s32.totalorder %v929, %v930
  %vm932 = vcmp.ge.s32.totalorder %v929, 8
  %vm933 = vmand %vm931, %vm932
  %v934 = vsel %vm933, 1, 0
  %vm935 = vcmp.eq.s32.totalorder %v934, 1
  %v936 = vsel %vm935, %v638, -1e+30
  %v937 = vsel %vm935, %v657, -1e+30
  %v938 = vsel %vm935, %v676, -1e+30
  %v939 = vsel %vm935, %v695, -1e+30
  %v940 = vsel %vm935, %v714, -1e+30
  %v941 = vsel %vm935, %v733, -1e+30
  %v942 = vsel %vm935, %v752, -1e+30
  %v943 = vsel %vm935, %v771, -1e+30
  %v944 = vsel %vm935, %v790, -1e+30
  %v945 = vsel %vm935, %v809, -1e+30
  %v946 = vsel %vm935, %v828, -1e+30
  %v947 = vsel %vm935, %v847, -1e+30
  %v948 = vsel %vm935, %v866, -1e+30
  %v949 = vsel %vm935, %v885, -1e+30
  %v950 = vsel %vm935, %v904, -1e+30
  %v951 = vsel %vm935, %v923, -1e+30
  %vm952 = vcmask 130048
  %v953 = vsel %vm952, %v936, -inf
  %954 = vmax.xlane.f32.xlu0 %v953
  %v955 = vpop.xlane.xlu0 %954
  %v956 = vsel %vm952, %v937, -inf
  %957 = vmax.xlane.f32.xlu0 %v956
  %v958 = vpop.xlane.xlu0 %957
  %v959 = vsel %vm952, %v938, -inf
  %960 = vmax.xlane.f32.xlu0 %v959
  %v961 = vpop.xlane.xlu0 %960
  %v962 = vsel %vm952, %v939, -inf
  %963 = vmax.xlane.f32.xlu0 %v962
  %v964 = vpop.xlane.xlu0 %963
  %v965 = vsel %vm952, %v940, -inf
  %966 = vmax.xlane.f32.xlu0 %v965
  %v967 = vpop.xlane.xlu0 %966
  %v968 = vsel %vm952, %v941, -inf
  %969 = vmax.xlane.f32.xlu0 %v968
  %v970 = vpop.xlane.xlu0 %969
  %v971 = vsel %vm952, %v942, -inf
  %972 = vmax.xlane.f32.xlu0 %v971
  %v973 = vpop.xlane.xlu0 %972
  %v974 = vsel %vm952, %v943, -inf
  %975 = vmax.xlane.f32.xlu0 %v974
  %v976 = vpop.xlane.xlu0 %975
  %v977 = vsel %vm952, %v944, -inf
  %978 = vmax.xlane.f32.xlu0 %v977
  %v979 = vpop.xlane.xlu0 %978
  %v980 = vsel %vm952, %v945, -inf
  %981 = vmax.xlane.f32.xlu0 %v980
  %v982 = vpop.xlane.xlu0 %981
  %v983 = vsel %vm952, %v946, -inf
  %984 = vmax.xlane.f32.xlu0 %v983
  %v985 = vpop.xlane.xlu0 %984
  %v986 = vsel %vm952, %v947, -inf
  %987 = vmax.xlane.f32.xlu0 %v986
  %v988 = vpop.xlane.xlu0 %987
  %v989 = vsel %vm952, %v948, -inf
  %990 = vmax.xlane.f32.xlu0 %v989
  %v991 = vpop.xlane.xlu0 %990
  %v992 = vsel %vm952, %v949, -inf
  %993 = vmax.xlane.f32.xlu0 %v992
  %v994 = vpop.xlane.xlu0 %993
  %v995 = vsel %vm952, %v950, -inf
  %996 = vmax.xlane.f32.xlu0 %v995
  %v997 = vpop.xlane.xlu0 %996
  %v998 = vsel %vm952, %v951, -inf
  %999 = vmax.xlane.f32.xlu0 %v998
  %v1000 = vpop.xlane.xlu0 %999
  %v1001 = vsub.f32 %v936, %v955
  %v1002 = vsub.f32 %v937, %v958
  %v1003 = vsub.f32 %v938, %v961
  %v1004 = vsub.f32 %v939, %v964
  %v1005 = vsub.f32 %v940, %v967
  %v1006 = vsub.f32 %v941, %v970
  %v1007 = vsub.f32 %v942, %v973
  %v1008 = vsub.f32 %v943, %v976
  %v1009 = vsub.f32 %v944, %v979
  %v1010 = vsub.f32 %v945, %v982
  %v1011 = vsub.f32 %v946, %v985
  %v1012 = vsub.f32 %v947, %v988
  %v1013 = vsub.f32 %v948, %v991
  %v1014 = vsub.f32 %v949, %v994
  %v1015 = vsub.f32 %v950, %v997
  %v1016 = vsub.f32 %v951, %v1000
  %v1017 = vmul.f32 %v1001, 1.442695
  %v1018 = vpow.pop %v1017
  %v1019 = vmul.f32 %v1002, 1.442695
  %v1020 = vpow.pop %v1019
  %v1021 = vmul.f32 %v1003, 1.442695
  %v1022 = vpow.pop %v1021
  %v1023 = vmul.f32 %v1004, 1.442695
  %v1024 = vpow.pop %v1023
  %v1025 = vmul.f32 %v1005, 1.442695
  %v1026 = vpow.pop %v1025
  %v1027 = vmul.f32 %v1006, 1.442695
  %v1028 = vpow.pop %v1027
  %v1029 = vmul.f32 %v1007, 1.442695
  %v1030 = vpow.pop %v1029
  %v1031 = vmul.f32 %v1008, 1.442695
  %v1032 = vpow.pop %v1031
  %v1033 = vmul.f32 %v1009, 1.442695
  %v1034 = vpow.pop %v1033
  %v1035 = vmul.f32 %v1010, 1.442695
  %v1036 = vpow.pop %v1035
  %v1037 = vmul.f32 %v1011, 1.442695
  %v1038 = vpow.pop %v1037
  %v1039 = vmul.f32 %v1012, 1.442695
  %v1040 = vpow.pop %v1039
  %v1041 = vmul.f32 %v1013, 1.442695
  %v1042 = vpow.pop %v1041
  %v1043 = vmul.f32 %v1014, 1.442695
  %v1044 = vpow.pop %v1043
  %v1045 = vmul.f32 %v1015, 1.442695
  %v1046 = vpow.pop %v1045
  %v1047 = vmul.f32 %v1016, 1.442695
  %v1048 = vpow.pop %v1047
  %v1049 = vsel %vm952, %v1018, 0.0
  %1050 = vadd.xlane.f32.xlu0 %v1049
  %v1051 = vpop.xlane.xlu0 %1050
  %v1052 = vsel %vm952, %v1020, 0.0
  %1053 = vadd.xlane.f32.xlu0 %v1052
  %v1054 = vpop.xlane.xlu0 %1053
  %v1055 = vsel %vm952, %v1022, 0.0
  %1056 = vadd.xlane.f32.xlu0 %v1055
  %v1057 = vpop.xlane.xlu0 %1056
  %v1058 = vsel %vm952, %v1024, 0.0
  %1059 = vadd.xlane.f32.xlu0 %v1058
  %v1060 = vpop.xlane.xlu0 %1059
  %v1061 = vsel %vm952, %v1026, 0.0
  %1062 = vadd.xlane.f32.xlu0 %v1061
  %v1063 = vpop.xlane.xlu0 %1062
  %v1064 = vsel %vm952, %v1028, 0.0
  %1065 = vadd.xlane.f32.xlu0 %v1064
  %v1066 = vpop.xlane.xlu0 %1065
  %v1067 = vsel %vm952, %v1030, 0.0
  %1068 = vadd.xlane.f32.xlu0 %v1067
  %v1069 = vpop.xlane.xlu0 %1068
  %v1070 = vsel %vm952, %v1032, 0.0
  %1071 = vadd.xlane.f32.xlu0 %v1070
  %v1072 = vpop.xlane.xlu0 %1071
  %v1073 = vsel %vm952, %v1034, 0.0
  %1074 = vadd.xlane.f32.xlu0 %v1073
  %v1075 = vpop.xlane.xlu0 %1074
  %v1076 = vsel %vm952, %v1036, 0.0
  %1077 = vadd.xlane.f32.xlu0 %v1076
  %v1078 = vpop.xlane.xlu0 %1077
  %v1079 = vsel %vm952, %v1038, 0.0
  %1080 = vadd.xlane.f32.xlu0 %v1079
  %v1081 = vpop.xlane.xlu0 %1080
  %v1082 = vsel %vm952, %v1040, 0.0
  %1083 = vadd.xlane.f32.xlu0 %v1082
  %v1084 = vpop.xlane.xlu0 %1083
  %v1085 = vsel %vm952, %v1042, 0.0
  %1086 = vadd.xlane.f32.xlu0 %v1085
  %v1087 = vpop.xlane.xlu0 %1086
  %v1088 = vsel %vm952, %v1044, 0.0
  %1089 = vadd.xlane.f32.xlu0 %v1088
  %v1090 = vpop.xlane.xlu0 %1089
  %v1091 = vsel %vm952, %v1046, 0.0
  %1092 = vadd.xlane.f32.xlu0 %v1091
  %v1093 = vpop.xlane.xlu0 %1092
  %v1094 = vsel %vm952, %v1048, 0.0
  %1095 = vadd.xlane.f32.xlu0 %v1094
  %v1096 = vpop.xlane.xlu0 %1095
  %v1097 = vrcp.pop %v1051
  %v1098 = vrcp.pop %v1054
  %v1099 = vrcp.pop %v1057
  %v1100 = vrcp.pop %v1060
  %v1101 = vrcp.pop %v1063
  %v1102 = vrcp.pop %v1066
  %v1103 = vrcp.pop %v1069
  %v1104 = vrcp.pop %v1072
  %v1105 = vrcp.pop %v1075
  %v1106 = vrcp.pop %v1078
  %v1107 = vrcp.pop %v1081
  %v1108 = vrcp.pop %v1084
  %v1109 = vrcp.pop %v1087
  %v1110 = vrcp.pop %v1090
  %v1111 = vrcp.pop %v1093
  %v1112 = vrcp.pop %v1096
  %v1113 = vmul.f32 %v1018, %v1097
  %v1114 = vmul.f32 %v1020, %v1098
  %v1115 = vmul.f32 %v1022, %v1099
  %v1116 = vmul.f32 %v1024, %v1100
  %v1117 = vmul.f32 %v1026, %v1101
  %v1118 = vmul.f32 %v1028, %v1102
  %v1119 = vmul.f32 %v1030, %v1103
  %v1120 = vmul.f32 %v1032, %v1104
  %v1121 = vmul.f32 %v1034, %v1105
  %v1122 = vmul.f32 %v1036, %v1106
  %v1123 = vmul.f32 %v1038, %v1107
  %v1124 = vmul.f32 %v1040, %v1108
  %v1125 = vmul.f32 %v1042, %v1109
  %v1126 = vmul.f32 %v1044, %v1110
  %v1127 = vmul.f32 %v1046, %v1111
  %v1128 = vmul.f32 %v1048, %v1112
  %v1129 = vpack.c.bf16 %v1113, %v1113
  %v1130 = vpack.c.bf16 %v1114, %v1114
  %v1131 = vpack.c.bf16 %v1115, %v1115
  %v1132 = vpack.c.bf16 %v1116, %v1116
  %v1133 = vpack.c.bf16 %v1117, %v1117
  %v1134 = vpack.c.bf16 %v1118, %v1118
  %v1135 = vpack.c.bf16 %v1119, %v1119
  %v1136 = vpack.c.bf16 %v1120, %v1120
  %v1137 = vpack.c.bf16 %v1121, %v1121
  %v1138 = vpack.c.bf16 %v1122, %v1122
  %v1139 = vpack.c.bf16 %v1123, %v1123
  %v1140 = vpack.c.bf16 %v1124, %v1124
  %v1141 = vpack.c.bf16 %v1125, %v1125
  %v1142 = vpack.c.bf16 %v1126, %v1126
  %v1143 = vpack.c.bf16 %v1127, %v1127
  %v1144 = vpack.c.bf16 %v1128, %v1128
  %v1147 = vunpack.c.l.b16 %v590
  %v1148 = vunpack.c.l.b16 %v591
  %v1149 = vpack.c.b16 %v1148, %v1147
  %v1152 = vsel %vm952, %v1129, 0
  %1154 = vmatpush.bf16.msra.mxu0 0
  %1155 = vmatpush.bf16.msra.mxu0 0
  %1156 = vmatpush.bf16.msra.mxu0 0
  %1157 = vmatpush.bf16.msra.mxu0 0
  %1158 = vmatpush.bf16.msra.mxu0 0
  %1159 = vmatpush.bf16.msra.mxu0 0
  %1160 = vmatpush.bf16.msra.mxu0 0
  %1161 = vmatpush.bf16.msra.mxu0 %v1149
  %1162 = vmatmul.bf16.gmra.mxu0 %v1152
  %v1163 = vpop.f32.mrf.mxu0
  %v1164 = vadd.f32 0.0, %v1163
  %v1165 = vpop.f32.mrf.mxu0
  %1166 = vdwg.mxu0
  %v1169 = vunpack.c.l.b16 %v592
  %v1170 = vunpack.c.l.b16 %v593
  %v1171 = vpack.c.b16 %v1170, %v1169
  %v1174 = vsel %vm952, %v1130, 0
  %1176 = vmatpush.bf16.msra.mxu0 0
  %1177 = vmatpush.bf16.msra.mxu0 0
  %1178 = vmatpush.bf16.msra.mxu0 0
  %1179 = vmatpush.bf16.msra.mxu0 0
  %1180 = vmatpush.bf16.msra.mxu0 0
  %1181 = vmatpush.bf16.msra.mxu0 0
  %1182 = vmatpush.bf16.msra.mxu0 0
  %1183 = vmatpush.bf16.msra.mxu0 %v1171
  %1184 = vmatmul.bf16.gmra.mxu0 %v1174
  %v1185 = vpop.f32.mrf.mxu0
  %v1186 = vadd.f32 0.0, %v1185
  %v1187 = vpop.f32.mrf.mxu0
  %1188 = vdwg.mxu0
  %v1191 = vunpack.c.l.b16 %v594
  %v1192 = vunpack.c.l.b16 %v595
  %v1193 = vpack.c.b16 %v1192, %v1191
  %v1196 = vsel %vm952, %v1131, 0
  %1198 = vmatpush.bf16.msra.mxu0 0
  %1199 = vmatpush.bf16.msra.mxu0 0
  %1200 = vmatpush.bf16.msra.mxu0 0
  %1201 = vmatpush.bf16.msra.mxu0 0
  %1202 = vmatpush.bf16.msra.mxu0 0
  %1203 = vmatpush.bf16.msra.mxu0 0
  %1204 = vmatpush.bf16.msra.mxu0 0
  %1205 = vmatpush.bf16.msra.mxu0 %v1193
  %1206 = vmatmul.bf16.gmra.mxu0 %v1196
  %v1207 = vpop.f32.mrf.mxu0
  %v1208 = vadd.f32 0.0, %v1207
  %v1209 = vpop.f32.mrf.mxu0
  %1210 = vdwg.mxu0
  %v1213 = vunpack.c.l.b16 %v596
  %v1214 = vunpack.c.l.b16 %v597
  %v1215 = vpack.c.b16 %v1214, %v1213
  %v1218 = vsel %vm952, %v1132, 0
  %1220 = vmatpush.bf16.msra.mxu0 0
  %1221 = vmatpush.bf16.msra.mxu0 0
  %1222 = vmatpush.bf16.msra.mxu0 0
  %1223 = vmatpush.bf16.msra.mxu0 0
  %1224 = vmatpush.bf16.msra.mxu0 0
  %1225 = vmatpush.bf16.msra.mxu0 0
  %1226 = vmatpush.bf16.msra.mxu0 0
  %1227 = vmatpush.bf16.msra.mxu0 %v1215
  %1228 = vmatmul.bf16.gmra.mxu0 %v1218
  %v1229 = vpop.f32.mrf.mxu0
  %v1230 = vadd.f32 0.0, %v1229
  %v1231 = vpop.f32.mrf.mxu0
  %1232 = vdwg.mxu0
  %v1235 = vunpack.c.l.b16 %v598
  %v1236 = vunpack.c.l.b16 %v599
  %v1237 = vpack.c.b16 %v1236, %v1235
  %v1240 = vsel %vm952, %v1133, 0
  %1242 = vmatpush.bf16.msra.mxu0 0
  %1243 = vmatpush.bf16.msra.mxu0 0
  %1244 = vmatpush.bf16.msra.mxu0 0
  %1245 = vmatpush.bf16.msra.mxu0 0
  %1246 = vmatpush.bf16.msra.mxu0 0
  %1247 = vmatpush.bf16.msra.mxu0 0
  %1248 = vmatpush.bf16.msra.mxu0 0
  %1249 = vmatpush.bf16.msra.mxu0 %v1237
  %1250 = vmatmul.bf16.gmra.mxu0 %v1240
  %v1251 = vpop.f32.mrf.mxu0
  %v1252 = vadd.f32 0.0, %v1251
  %v1253 = vpop.f32.mrf.mxu0
  %1254 = vdwg.mxu0
  %v1257 = vunpack.c.l.b16 %v600
  %v1258 = vunpack.c.l.b16 %v601
  %v1259 = vpack.c.b16 %v1258, %v1257
  %v1262 = vsel %vm952, %v1134, 0
  %1264 = vmatpush.bf16.msra.mxu0 0
  %1265 = vmatpush.bf16.msra.mxu0 0
  %1266 = vmatpush.bf16.msra.mxu0 0
  %1267 = vmatpush.bf16.msra.mxu0 0
  %1268 = vmatpush.bf16.msra.mxu0 0
  %1269 = vmatpush.bf16.msra.mxu0 0
  %1270 = vmatpush.bf16.msra.mxu0 0
  %1271 = vmatpush.bf16.msra.mxu0 %v1259
  %1272 = vmatmul.bf16.gmra.mxu0 %v1262
  %v1273 = vpop.f32.mrf.mxu0
  %v1274 = vadd.f32 0.0, %v1273
  %v1275 = vpop.f32.mrf.mxu0
  %1276 = vdwg.mxu0
  %v1279 = vunpack.c.l.b16 %v602
  %v1280 = vunpack.c.l.b16 %v603
  %v1281 = vpack.c.b16 %v1280, %v1279
  %v1284 = vsel %vm952, %v1135, 0
  %1286 = vmatpush.bf16.msra.mxu0 0
  %1287 = vmatpush.bf16.msra.mxu0 0
  %1288 = vmatpush.bf16.msra.mxu0 0
  %1289 = vmatpush.bf16.msra.mxu0 0
  %1290 = vmatpush.bf16.msra.mxu0 0
  %1291 = vmatpush.bf16.msra.mxu0 0
  %1292 = vmatpush.bf16.msra.mxu0 0
  %1293 = vmatpush.bf16.msra.mxu0 %v1281
  %1294 = vmatmul.bf16.gmra.mxu0 %v1284
  %v1295 = vpop.f32.mrf.mxu0
  %v1296 = vadd.f32 0.0, %v1295
  %v1297 = vpop.f32.mrf.mxu0
  %1298 = vdwg.mxu0
  %v1301 = vunpack.c.l.b16 %v604
  %v1302 = vunpack.c.l.b16 %v605
  %v1303 = vpack.c.b16 %v1302, %v1301
  %v1306 = vsel %vm952, %v1136, 0
  %1308 = vmatpush.bf16.msra.mxu0 0
  %1309 = vmatpush.bf16.msra.mxu0 0
  %1310 = vmatpush.bf16.msra.mxu0 0
  %1311 = vmatpush.bf16.msra.mxu0 0
  %1312 = vmatpush.bf16.msra.mxu0 0
  %1313 = vmatpush.bf16.msra.mxu0 0
  %1314 = vmatpush.bf16.msra.mxu0 0
  %1315 = vmatpush.bf16.msra.mxu0 %v1303
  %1316 = vmatmul.bf16.gmra.mxu0 %v1306
  %v1317 = vpop.f32.mrf.mxu0
  %v1318 = vadd.f32 0.0, %v1317
  %v1319 = vpop.f32.mrf.mxu0
  %1320 = vdwg.mxu0
  %v1323 = vunpack.c.l.b16 %v606
  %v1324 = vunpack.c.l.b16 %v607
  %v1325 = vpack.c.b16 %v1324, %v1323
  %v1328 = vsel %vm952, %v1137, 0
  %1330 = vmatpush.bf16.msra.mxu0 0
  %1331 = vmatpush.bf16.msra.mxu0 0
  %1332 = vmatpush.bf16.msra.mxu0 0
  %1333 = vmatpush.bf16.msra.mxu0 0
  %1334 = vmatpush.bf16.msra.mxu0 0
  %1335 = vmatpush.bf16.msra.mxu0 0
  %1336 = vmatpush.bf16.msra.mxu0 0
  %1337 = vmatpush.bf16.msra.mxu0 %v1325
  %1338 = vmatmul.bf16.gmra.mxu0 %v1328
  %v1339 = vpop.f32.mrf.mxu0
  %v1340 = vadd.f32 0.0, %v1339
  %v1341 = vpop.f32.mrf.mxu0
  %1342 = vdwg.mxu0
  %v1345 = vunpack.c.l.b16 %v608
  %v1346 = vunpack.c.l.b16 %v609
  %v1347 = vpack.c.b16 %v1346, %v1345
  %v1350 = vsel %vm952, %v1138, 0
  %1352 = vmatpush.bf16.msra.mxu0 0
  %1353 = vmatpush.bf16.msra.mxu0 0
  %1354 = vmatpush.bf16.msra.mxu0 0
  %1355 = vmatpush.bf16.msra.mxu0 0
  %1356 = vmatpush.bf16.msra.mxu0 0
  %1357 = vmatpush.bf16.msra.mxu0 0
  %1358 = vmatpush.bf16.msra.mxu0 0
  %1359 = vmatpush.bf16.msra.mxu0 %v1347
  %1360 = vmatmul.bf16.gmra.mxu0 %v1350
  %v1361 = vpop.f32.mrf.mxu0
  %v1362 = vadd.f32 0.0, %v1361
  %v1363 = vpop.f32.mrf.mxu0
  %1364 = vdwg.mxu0
  %v1367 = vunpack.c.l.b16 %v610
  %v1368 = vunpack.c.l.b16 %v611
  %v1369 = vpack.c.b16 %v1368, %v1367
  %v1372 = vsel %vm952, %v1139, 0
  %1374 = vmatpush.bf16.msra.mxu0 0
  %1375 = vmatpush.bf16.msra.mxu0 0
  %1376 = vmatpush.bf16.msra.mxu0 0
  %1377 = vmatpush.bf16.msra.mxu0 0
  %1378 = vmatpush.bf16.msra.mxu0 0
  %1379 = vmatpush.bf16.msra.mxu0 0
  %1380 = vmatpush.bf16.msra.mxu0 0
  %1381 = vmatpush.bf16.msra.mxu0 %v1369
  %1382 = vmatmul.bf16.gmra.mxu0 %v1372
  %v1383 = vpop.f32.mrf.mxu0
  %v1384 = vadd.f32 0.0, %v1383
  %v1385 = vpop.f32.mrf.mxu0
  %1386 = vdwg.mxu0
  %v1389 = vunpack.c.l.b16 %v612
  %v1390 = vunpack.c.l.b16 %v613
  %v1391 = vpack.c.b16 %v1390, %v1389
  %v1394 = vsel %vm952, %v1140, 0
  %1396 = vmatpush.bf16.msra.mxu0 0
  %1397 = vmatpush.bf16.msra.mxu0 0
  %1398 = vmatpush.bf16.msra.mxu0 0
  %1399 = vmatpush.bf16.msra.mxu0 0
  %1400 = vmatpush.bf16.msra.mxu0 0
  %1401 = vmatpush.bf16.msra.mxu0 0
  %1402 = vmatpush.bf16.msra.mxu0 0
  %1403 = vmatpush.bf16.msra.mxu0 %v1391
  %1404 = vmatmul.bf16.gmra.mxu0 %v1394
  %v1405 = vpop.f32.mrf.mxu0
  %v1406 = vadd.f32 0.0, %v1405
  %v1407 = vpop.f32.mrf.mxu0
  %1408 = vdwg.mxu0
  %v1411 = vunpack.c.l.b16 %v614
  %v1412 = vunpack.c.l.b16 %v615
  %v1413 = vpack.c.b16 %v1412, %v1411
  %v1416 = vsel %vm952, %v1141, 0
  %1418 = vmatpush.bf16.msra.mxu0 0
  %1419 = vmatpush.bf16.msra.mxu0 0
  %1420 = vmatpush.bf16.msra.mxu0 0
  %1421 = vmatpush.bf16.msra.mxu0 0
  %1422 = vmatpush.bf16.msra.mxu0 0
  %1423 = vmatpush.bf16.msra.mxu0 0
  %1424 = vmatpush.bf16.msra.mxu0 0
  %1425 = vmatpush.bf16.msra.mxu0 %v1413
  %1426 = vmatmul.bf16.gmra.mxu0 %v1416
  %v1427 = vpop.f32.mrf.mxu0
  %v1428 = vadd.f32 0.0, %v1427
  %v1429 = vpop.f32.mrf.mxu0
  %1430 = vdwg.mxu0
  %v1433 = vunpack.c.l.b16 %v616
  %v1434 = vunpack.c.l.b16 %v617
  %v1435 = vpack.c.b16 %v1434, %v1433
  %v1438 = vsel %vm952, %v1142, 0
  %1440 = vmatpush.bf16.msra.mxu0 0
  %1441 = vmatpush.bf16.msra.mxu0 0
  %1442 = vmatpush.bf16.msra.mxu0 0
  %1443 = vmatpush.bf16.msra.mxu0 0
  %1444 = vmatpush.bf16.msra.mxu0 0
  %1445 = vmatpush.bf16.msra.mxu0 0
  %1446 = vmatpush.bf16.msra.mxu0 0
  %1447 = vmatpush.bf16.msra.mxu0 %v1435
  %1448 = vmatmul.bf16.gmra.mxu0 %v1438
  %v1449 = vpop.f32.mrf.mxu0
  %v1450 = vadd.f32 0.0, %v1449
  %v1451 = vpop.f32.mrf.mxu0
  %1452 = vdwg.mxu0
  %v1455 = vunpack.c.l.b16 %v618
  %v1456 = vunpack.c.l.b16 %v619
  %v1457 = vpack.c.b16 %v1456, %v1455
  %v1460 = vsel %vm952, %v1143, 0
  %1462 = vmatpush.bf16.msra.mxu0 0
  %1463 = vmatpush.bf16.msra.mxu0 0
  %1464 = vmatpush.bf16.msra.mxu0 0
  %1465 = vmatpush.bf16.msra.mxu0 0
  %1466 = vmatpush.bf16.msra.mxu0 0
  %1467 = vmatpush.bf16.msra.mxu0 0
  %1468 = vmatpush.bf16.msra.mxu0 0
  %1469 = vmatpush.bf16.msra.mxu0 %v1457
  %1470 = vmatmul.bf16.gmra.mxu0 %v1460
  %v1471 = vpop.f32.mrf.mxu0
  %v1472 = vadd.f32 0.0, %v1471
  %v1473 = vpop.f32.mrf.mxu0
  %1474 = vdwg.mxu0
  %v1477 = vunpack.c.l.b16 %v620
  %v1478 = vunpack.c.l.b16 %v621
  %v1479 = vpack.c.b16 %v1478, %v1477
  %v1482 = vsel %vm952, %v1144, 0
  %1484 = vmatpush.bf16.msra.mxu0 0
  %1485 = vmatpush.bf16.msra.mxu0 0
  %1486 = vmatpush.bf16.msra.mxu0 0
  %1487 = vmatpush.bf16.msra.mxu0 0
  %1488 = vmatpush.bf16.msra.mxu0 0
  %1489 = vmatpush.bf16.msra.mxu0 0
  %1490 = vmatpush.bf16.msra.mxu0 0
  %1491 = vmatpush.bf16.msra.mxu0 %v1479
  %1492 = vmatmul.bf16.gmra.mxu0 %v1482
  %v1493 = vpop.f32.mrf.mxu0
  %v1494 = vadd.f32 0.0, %v1493
  %v1495 = vpop.f32.mrf.mxu0
  %1496 = vdwg.mxu0
  %v1497 = vpack.c.bf16 %v1186, %v1164
  %v1498 = vpack.c.bf16 %v1230, %v1208
  %v1499 = vpack.c.bf16 %v1274, %v1252
  %v1500 = vpack.c.bf16 %v1318, %v1296
  %v1501 = vpack.c.bf16 %v1362, %v1340
  %v1502 = vpack.c.bf16 %v1406, %v1384
  %v1503 = vpack.c.bf16 %v1450, %v1428
  %v1504 = vpack.c.bf16 %v1494, %v1472
  %v1505 = vld [vmem:[%s3] sm:$0xf]
  %v1506 = vld [vmem:[%s3 + $0x4] sm:$0xf]
  %v1507 = vld [vmem:[%s3 + $0x8] sm:$0xf]
  %v1508 = vld [vmem:[%s3 + $0xc] sm:$0xf]
  %v1509 = vld [vmem:[%s3 + $0x10] sm:$0xf]
  %v1510 = vld [vmem:[%s3 + $0x14] sm:$0xf]
  %v1511 = vld [vmem:[%s3 + $0x18] sm:$0xf]
  %v1512 = vld [vmem:[%s3 + $0x1c] sm:$0xf]
  %v1513 = vld [vmem:[%s3 + $0x20] sm:$0xf]
  %v1514 = vld [vmem:[%s3 + $0x24] sm:$0xf]
  %v1515 = vld [vmem:[%s3 + $0x28] sm:$0xf]
  %v1516 = vld [vmem:[%s3 + $0x2c] sm:$0xf]
  %v1517 = vld [vmem:[%s3 + $0x30] sm:$0xf]
  %v1518 = vld [vmem:[%s3 + $0x34] sm:$0xf]
  %v1519 = vld [vmem:[%s3 + $0x38] sm:$0xf]
  %v1520 = vld [vmem:[%s3 + $0x3c] sm:$0xf]
  %v1537 = vunpack.c.l.b16 %v1505
  %v1538 = vunpack.c.l.b16 %v1506
  %v1539 = vunpack.c.l.b16 %v1507
  %v1540 = vunpack.c.l.b16 %v1508
  %v1541 = vunpack.c.l.b16 %v1509
  %v1542 = vunpack.c.l.b16 %v1510
  %v1543 = vunpack.c.l.b16 %v1511
  %v1544 = vunpack.c.l.b16 %v1512
  %v1545 = vunpack.c.l.b16 %v1513
  %v1546 = vunpack.c.l.b16 %v1514
  %v1547 = vunpack.c.l.b16 %v1515
  %v1548 = vunpack.c.l.b16 %v1516
  %v1549 = vunpack.c.l.b16 %v1517
  %v1550 = vunpack.c.l.b16 %v1518
  %v1551 = vunpack.c.l.b16 %v1519
  %v1552 = vunpack.c.l.b16 %v1520
  %v1553 = vpack.c.b16 %v1538, %v1537
  %v1554 = vpack.c.b16 %v1540, %v1539
  %v1555 = vpack.c.b16 %v1542, %v1541
  %v1556 = vpack.c.b16 %v1544, %v1543
  %v1557 = vpack.c.b16 %v1546, %v1545
  %v1558 = vpack.c.b16 %v1548, %v1547
  %v1559 = vpack.c.b16 %v1550, %v1549
  %v1560 = vpack.c.b16 %v1552, %v1551
  %1569 = vmatpush.bf16.msra.mxu0 %v1560
  %1570 = vmatpush.bf16.msra.mxu0 %v1559
  %1571 = vmatpush.bf16.msra.mxu0 %v1558
  %1572 = vmatpush.bf16.msra.mxu0 %v1557
  %1573 = vmatpush.bf16.msra.mxu0 %v1556
  %1574 = vmatpush.bf16.msra.mxu0 %v1555
  %1575 = vmatpush.bf16.msra.mxu0 %v1554
  %1576 = vmatpush.bf16.msra.mxu0 %v1553
  %1577 = vmatmul.bf16.gmra.mxu0 %v1497
  %v1578 = vpop.f32.mrf.mxu0
  %v1579 = vadd.f32 %v107, %v1578
  %v1580 = vpop.f32.mrf.mxu0
  %v1581 = vadd.f32 %v108, %v1580
  %1582 = vmatmul.bf16.gmra.mxu0 %v1498
  %v1583 = vpop.f32.mrf.mxu0
  %v1584 = vadd.f32 %v109, %v1583
  %v1585 = vpop.f32.mrf.mxu0
  %v1586 = vadd.f32 %v110, %v1585
  %1587 = vmatmul.bf16.gmra.mxu0 %v1499
  %v1588 = vpop.f32.mrf.mxu0
  %v1589 = vadd.f32 %v111, %v1588
  %v1590 = vpop.f32.mrf.mxu0
  %v1591 = vadd.f32 %v112, %v1590
  %1592 = vmatmul.bf16.gmra.mxu0 %v1500
  %v1593 = vpop.f32.mrf.mxu0
  %v1594 = vadd.f32 %v113, %v1593
  %v1595 = vpop.f32.mrf.mxu0
  %v1596 = vadd.f32 %v114, %v1595
  %1597 = vmatmul.bf16.gmra.mxu0 %v1501
  %v1598 = vpop.f32.mrf.mxu0
  %v1599 = vadd.f32 %v115, %v1598
  %v1600 = vpop.f32.mrf.mxu0
  %v1601 = vadd.f32 %v116, %v1600
  %1602 = vmatmul.bf16.gmra.mxu0 %v1502
  %v1603 = vpop.f32.mrf.mxu0
  %v1604 = vadd.f32 %v117, %v1603
  %v1605 = vpop.f32.mrf.mxu0
  %v1606 = vadd.f32 %v118, %v1605
  %1607 = vmatmul.bf16.gmra.mxu0 %v1503
  %v1608 = vpop.f32.mrf.mxu0
  %v1609 = vadd.f32 %v119, %v1608
  %v1610 = vpop.f32.mrf.mxu0
  %v1611 = vadd.f32 %v120, %v1610
  %1612 = vmatmul.bf16.gmra.mxu0 %v1504
  %v1613 = vpop.f32.mrf.mxu0
  %v1614 = vadd.f32 %v121, %v1613
  %v1615 = vpop.f32.mrf.mxu0
  %v1616 = vadd.f32 %v122, %v1615
  %1617 = vdwg.mxu0
  %v1618 = vpack.c.bf16 %v1581, %v1579
  %v1619 = vpack.c.bf16 %v1586, %v1584
  %v1620 = vpack.c.bf16 %v1591, %v1589
  %v1621 = vpack.c.bf16 %v1596, %v1594
  %v1622 = vpack.c.bf16 %v1601, %v1599
  %v1623 = vpack.c.bf16 %v1606, %v1604
  %v1624 = vpack.c.bf16 %v1611, %v1609
  %v1625 = vpack.c.bf16 %v1616, %v1614
  %v1626 = vld [vmem:[%s4] sm:$0xff]
  %v1627 = vld [vmem:[%s4 + $0x8] sm:$0xff]
  %v1628 = vld [vmem:[%s4 + $0x10] sm:$0xff]
  %v1629 = vld [vmem:[%s4 + $0x18] sm:$0xff]
  %v1630 = vld [vmem:[%s4 + $0x20] sm:$0xff]
  %v1631 = vld [vmem:[%s4 + $0x28] sm:$0xff]
  %v1632 = vld [vmem:[%s4 + $0x30] sm:$0xff]
  %v1633 = vld [vmem:[%s4 + $0x38] sm:$0xff]
  %v1634 = vld [vmem:[%s4 + $0x40] sm:$0xff]
  %v1635 = vld [vmem:[%s4 + $0x48] sm:$0xff]
  %v1636 = vld [vmem:[%s4 + $0x50] sm:$0xff]
  %v1637 = vld [vmem:[%s4 + $0x58] sm:$0xff]
  %v1638 = vld [vmem:[%s4 + $0x60] sm:$0xff]
  %v1639 = vld [vmem:[%s4 + $0x68] sm:$0xff]
  %v1640 = vld [vmem:[%s4 + $0x70] sm:$0xff]
  %v1641 = vld [vmem:[%s4 + $0x78] sm:$0xff]
  %v1642 = vld [vmem:[%s4 + $0x80] sm:$0xff]
  %v1643 = vld [vmem:[%s4 + $0x88] sm:$0xff]
  %v1644 = vld [vmem:[%s4 + $0x90] sm:$0xff]
  %v1645 = vld [vmem:[%s4 + $0x98] sm:$0xff]
  %v1646 = vld [vmem:[%s4 + $0xa0] sm:$0xff]
  %v1647 = vld [vmem:[%s4 + $0xa8] sm:$0xff]
  %v1648 = vld [vmem:[%s4 + $0xb0] sm:$0xff]
  %v1649 = vld [vmem:[%s4 + $0xb8] sm:$0xff]
  %v1650 = vld [vmem:[%s4 + $0xc0] sm:$0xff]
  %v1651 = vld [vmem:[%s4 + $0xc8] sm:$0xff]
  %v1652 = vld [vmem:[%s4 + $0xd0] sm:$0xff]
  %v1653 = vld [vmem:[%s4 + $0xd8] sm:$0xff]
  %v1654 = vld [vmem:[%s4 + $0xe0] sm:$0xff]
  %v1655 = vld [vmem:[%s4 + $0xe8] sm:$0xff]
  %v1656 = vld [vmem:[%s4 + $0xf0] sm:$0xff]
  %v1657 = vld [vmem:[%s4 + $0xf8] sm:$0xff]
  %v1690 = vunpack.c.l.b16 %v1626
  %v1691 = vunpack.c.h.b16 %v1626
  %v1692 = vunpack.c.l.b16 %v1627
  %v1693 = vunpack.c.h.b16 %v1627
  %v1694 = vunpack.c.l.b16 %v1628
  %v1695 = vunpack.c.h.b16 %v1628
  %v1696 = vunpack.c.l.b16 %v1629
  %v1697 = vunpack.c.h.b16 %v1629
  %v1698 = vunpack.c.l.b16 %v1630
  %v1699 = vunpack.c.h.b16 %v1630
  %v1700 = vunpack.c.l.b16 %v1631
  %v1701 = vunpack.c.h.b16 %v1631
  %v1702 = vunpack.c.l.b16 %v1632
  %v1703 = vunpack.c.h.b16 %v1632
  %v1704 = vunpack.c.l.b16 %v1633
  %v1705 = vunpack.c.h.b16 %v1633
  %v1706 = vunpack.c.l.b16 %v1634
  %v1707 = vunpack.c.h.b16 %v1634
  %v1708 = vunpack.c.l.b16 %v1635
  %v1709 = vunpack.c.h.b16 %v1635
  %v1710 = vunpack.c.l.b16 %v1636
  %v1711 = vunpack.c.h.b16 %v1636
  %v1712 = vunpack.c.l.b16 %v1637
  %v1713 = vunpack.c.h.b16 %v1637
  %v1714 = vunpack.c.l.b16 %v1638
  %v1715 = vunpack.c.h.b16 %v1638
  %v1716 = vunpack.c.l.b16 %v1639
  %v1717 = vunpack.c.h.b16 %v1639
  %v1718 = vunpack.c.l.b16 %v1640
  %v1719 = vunpack.c.h.b16 %v1640
  %v1720 = vunpack.c.l.b16 %v1641
  %v1721 = vunpack.c.h.b16 %v1641
  %v1722 = vunpack.c.l.b16 %v1642
  %v1723 = vunpack.c.h.b16 %v1642
  %v1724 = vunpack.c.l.b16 %v1643
  %v1725 = vunpack.c.h.b16 %v1643
  %v1726 = vunpack.c.l.b16 %v1644
  %v1727 = vunpack.c.h.b16 %v1644
  %v1728 = vunpack.c.l.b16 %v1645
  %v1729 = vunpack.c.h.b16 %v1645
  %v1730 = vunpack.c.l.b16 %v1646
  %v1731 = vunpack.c.h.b16 %v1646
  %v1732 = vunpack.c.l.b16 %v1647
  %v1733 = vunpack.c.h.b16 %v1647
  %v1734 = vunpack.c.l.b16 %v1648
  %v1735 = vunpack.c.h.b16 %v1648
  %v1736 = vunpack.c.l.b16 %v1649
  %v1737 = vunpack.c.h.b16 %v1649
  %v1738 = vunpack.c.l.b16 %v1650
  %v1739 = vunpack.c.h.b16 %v1650
  %v1740 = vunpack.c.l.b16 %v1651
  %v1741 = vunpack.c.h.b16 %v1651
  %v1742 = vunpack.c.l.b16 %v1652
  %v1743 = vunpack.c.h.b16 %v1652
  %v1744 = vunpack.c.l.b16 %v1653
  %v1745 = vunpack.c.h.b16 %v1653
  %v1746 = vunpack.c.l.b16 %v1654
  %v1747 = vunpack.c.h.b16 %v1654
  %v1748 = vunpack.c.l.b16 %v1655
  %v1749 = vunpack.c.h.b16 %v1655
  %v1750 = vunpack.c.l.b16 %v1656
  %v1751 = vunpack.c.h.b16 %v1656
  %v1752 = vunpack.c.l.b16 %v1657
  %v1753 = vunpack.c.h.b16 %v1657
  %v1754 = vpack.c.b16 %v1694, %v1690
  %v1755 = vpack.c.b16 %v1695, %v1691
  %v1756 = vpack.c.b16 %v1696, %v1692
  %v1757 = vpack.c.b16 %v1697, %v1693
  %v1758 = vpack.c.b16 %v1702, %v1698
  %v1759 = vpack.c.b16 %v1703, %v1699
  %v1760 = vpack.c.b16 %v1704, %v1700
  %v1761 = vpack.c.b16 %v1705, %v1701
  %v1762 = vpack.c.b16 %v1710, %v1706
  %v1763 = vpack.c.b16 %v1711, %v1707
  %v1764 = vpack.c.b16 %v1712, %v1708
  %v1765 = vpack.c.b16 %v1713, %v1709
  %v1766 = vpack.c.b16 %v1718, %v1714
  %v1767 = vpack.c.b16 %v1719, %v1715
  %v1768 = vpack.c.b16 %v1720, %v1716
  %v1769 = vpack.c.b16 %v1721, %v1717
  %v1770 = vpack.c.b16 %v1726, %v1722
  %v1771 = vpack.c.b16 %v1727, %v1723
  %v1772 = vpack.c.b16 %v1728, %v1724
  %v1773 = vpack.c.b16 %v1729, %v1725
  %v1774 = vpack.c.b16 %v1734, %v1730
  %v1775 = vpack.c.b16 %v1735, %v1731
  %v1776 = vpack.c.b16 %v1736, %v1732
  %v1777 = vpack.c.b16 %v1737, %v1733
  %v1778 = vpack.c.b16 %v1742, %v1738
  %v1779 = vpack.c.b16 %v1743, %v1739
  %v1780 = vpack.c.b16 %v1744, %v1740
  %v1781 = vpack.c.b16 %v1745, %v1741
  %v1782 = vpack.c.b16 %v1750, %v1746
  %v1783 = vpack.c.b16 %v1751, %v1747
  %v1784 = vpack.c.b16 %v1752, %v1748
  %v1785 = vpack.c.b16 %v1753, %v1749
  %1818 = vmatpush.bf16.msra.mxu0 %v1782
  %1819 = vmatpush.bf16.msra.mxu0 %v1778
  %1820 = vmatpush.bf16.msra.mxu0 %v1774
  %1821 = vmatpush.bf16.msra.mxu0 %v1770
  %1822 = vmatpush.bf16.msra.mxu0 %v1766
  %1823 = vmatpush.bf16.msra.mxu0 %v1762
  %1824 = vmatpush.bf16.msra.mxu0 %v1758
  %1825 = vmatpush.bf16.msra.mxu0 %v1754
  %1826 = vmatmul.bf16.gmra.mxu0 %v1618
  %v1827 = vpop.f32.mrf.mxu0
  %v1828 = vadd.f32 0.0, %v1827
  %v1829 = vpop.f32.mrf.mxu0
  %v1830 = vadd.f32 0.0, %v1829
  %1831 = vmatmul.bf16.gmra.mxu0 %v1619
  %v1832 = vpop.f32.mrf.mxu0
  %v1833 = vadd.f32 0.0, %v1832
  %v1834 = vpop.f32.mrf.mxu0
  %v1835 = vadd.f32 0.0, %v1834
  %1836 = vmatmul.bf16.gmra.mxu0 %v1620
  %v1837 = vpop.f32.mrf.mxu0
  %v1838 = vadd.f32 0.0, %v1837
  %v1839 = vpop.f32.mrf.mxu0
  %v1840 = vadd.f32 0.0, %v1839
  %1841 = vmatmul.bf16.gmra.mxu0 %v1621
  %v1842 = vpop.f32.mrf.mxu0
  %v1843 = vadd.f32 0.0, %v1842
  %v1844 = vpop.f32.mrf.mxu0
  %v1845 = vadd.f32 0.0, %v1844
  %1846 = vmatmul.bf16.gmra.mxu0 %v1622
  %v1847 = vpop.f32.mrf.mxu0
  %v1848 = vadd.f32 0.0, %v1847
  %v1849 = vpop.f32.mrf.mxu0
  %v1850 = vadd.f32 0.0, %v1849
  %1851 = vmatmul.bf16.gmra.mxu0 %v1623
  %v1852 = vpop.f32.mrf.mxu0
  %v1853 = vadd.f32 0.0, %v1852
  %v1854 = vpop.f32.mrf.mxu0
  %v1855 = vadd.f32 0.0, %v1854
  %1856 = vmatmul.bf16.gmra.mxu0 %v1624
  %v1857 = vpop.f32.mrf.mxu0
  %v1858 = vadd.f32 0.0, %v1857
  %v1859 = vpop.f32.mrf.mxu0
  %v1860 = vadd.f32 0.0, %v1859
  %1861 = vmatmul.bf16.gmra.mxu0 %v1625
  %v1862 = vpop.f32.mrf.mxu0
  %v1863 = vadd.f32 0.0, %v1862
  %v1864 = vpop.f32.mrf.mxu0
  %v1865 = vadd.f32 0.0, %v1864
  %1866 = vdwg.mxu0
  %1867 = vmatpush.bf16.msra.mxu0 %v1783
  %1868 = vmatpush.bf16.msra.mxu0 %v1779
  %1869 = vmatpush.bf16.msra.mxu0 %v1775
  %1870 = vmatpush.bf16.msra.mxu0 %v1771
  %1871 = vmatpush.bf16.msra.mxu0 %v1767
  %1872 = vmatpush.bf16.msra.mxu0 %v1763
  %1873 = vmatpush.bf16.msra.mxu0 %v1759
  %1874 = vmatpush.bf16.msra.mxu0 %v1755
  %1875 = vmatmul.bf16.gmra.mxu0 %v1618
  %v1876 = vpop.f32.mrf.mxu0
  %v1877 = vadd.f32 0.0, %v1876
  %v1878 = vpop.f32.mrf.mxu0
  %v1879 = vadd.f32 0.0, %v1878
  %1880 = vmatmul.bf16.gmra.mxu0 %v1619
  %v1881 = vpop.f32.mrf.mxu0
  %v1882 = vadd.f32 0.0, %v1881
  %v1883 = vpop.f32.mrf.mxu0
  %v1884 = vadd.f32 0.0, %v1883
  %1885 = vmatmul.bf16.gmra.mxu0 %v1620
  %v1886 = vpop.f32.mrf.mxu0
  %v1887 = vadd.f32 0.0, %v1886
  %v1888 = vpop.f32.mrf.mxu0
  %v1889 = vadd.f32 0.0, %v1888
  %1890 = vmatmul.bf16.gmra.mxu0 %v1621
  %v1891 = vpop.f32.mrf.mxu0
  %v1892 = vadd.f32 0.0, %v1891
  %v1893 = vpop.f32.mrf.mxu0
  %v1894 = vadd.f32 0.0, %v1893
  %1895 = vmatmul.bf16.gmra.mxu0 %v1622
  %v1896 = vpop.f32.mrf.mxu0
  %v1897 = vadd.f32 0.0, %v1896
  %v1898 = vpop.f32.mrf.mxu0
  %v1899 = vadd.f32 0.0, %v1898
  %1900 = vmatmul.bf16.gmra.mxu0 %v1623
  %v1901 = vpop.f32.mrf.mxu0
  %v1902 = vadd.f32 0.0, %v1901
  %v1903 = vpop.f32.mrf.mxu0
  %v1904 = vadd.f32 0.0, %v1903
  %1905 = vmatmul.bf16.gmra.mxu0 %v1624
  %v1906 = vpop.f32.mrf.mxu0
  %v1907 = vadd.f32 0.0, %v1906
  %v1908 = vpop.f32.mrf.mxu0
  %v1909 = vadd.f32 0.0, %v1908
  %1910 = vmatmul.bf16.gmra.mxu0 %v1625
  %v1911 = vpop.f32.mrf.mxu0
  %v1912 = vadd.f32 0.0, %v1911
  %v1913 = vpop.f32.mrf.mxu0
  %v1914 = vadd.f32 0.0, %v1913
  %1915 = vdwg.mxu0
  %1916 = vmatpush.bf16.msra.mxu0 %v1784
  %1917 = vmatpush.bf16.msra.mxu0 %v1780
  %1918 = vmatpush.bf16.msra.mxu0 %v1776
  %1919 = vmatpush.bf16.msra.mxu0 %v1772
  %1920 = vmatpush.bf16.msra.mxu0 %v1768
  %1921 = vmatpush.bf16.msra.mxu0 %v1764
  %1922 = vmatpush.bf16.msra.mxu0 %v1760
  %1923 = vmatpush.bf16.msra.mxu0 %v1756
  %1924 = vmatmul.bf16.gmra.mxu0 %v1618
  %v1925 = vpop.f32.mrf.mxu0
  %v1926 = vadd.f32 0.0, %v1925
  %v1927 = vpop.f32.mrf.mxu0
  %v1928 = vadd.f32 0.0, %v1927
  %1929 = vmatmul.bf16.gmra.mxu0 %v1619
  %v1930 = vpop.f32.mrf.mxu0
  %v1931 = vadd.f32 0.0, %v1930
  %v1932 = vpop.f32.mrf.mxu0
  %v1933 = vadd.f32 0.0, %v1932
  %1934 = vmatmul.bf16.gmra.mxu0 %v1620
  %v1935 = vpop.f32.mrf.mxu0
  %v1936 = vadd.f32 0.0, %v1935
  %v1937 = vpop.f32.mrf.mxu0
  %v1938 = vadd.f32 0.0, %v1937
  %1939 = vmatmul.bf16.gmra.mxu0 %v1621
  %v1940 = vpop.f32.mrf.mxu0
  %v1941 = vadd.f32 0.0, %v1940
  %v1942 = vpop.f32.mrf.mxu0
  %v1943 = vadd.f32 0.0, %v1942
  %1944 = vmatmul.bf16.gmra.mxu0 %v1622
  %v1945 = vpop.f32.mrf.mxu0
  %v1946 = vadd.f32 0.0, %v1945
  %v1947 = vpop.f32.mrf.mxu0
  %v1948 = vadd.f32 0.0, %v1947
  %1949 = vmatmul.bf16.gmra.mxu0 %v1623
  %v1950 = vpop.f32.mrf.mxu0
  %v1951 = vadd.f32 0.0, %v1950
  %v1952 = vpop.f32.mrf.mxu0
  %v1953 = vadd.f32 0.0, %v1952
  %1954 = vmatmul.bf16.gmra.mxu0 %v1624
  %v1955 = vpop.f32.mrf.mxu0
  %v1956 = vadd.f32 0.0, %v1955
  %v1957 = vpop.f32.mrf.mxu0
  %v1958 = vadd.f32 0.0, %v1957
  %1959 = vmatmul.bf16.gmra.mxu0 %v1625
  %v1960 = vpop.f32.mrf.mxu0
  %v1961 = vadd.f32 0.0, %v1960
  %v1962 = vpop.f32.mrf.mxu0
  %v1963 = vadd.f32 0.0, %v1962
  %1964 = vdwg.mxu0
  %1965 = vmatpush.bf16.msra.mxu0 %v1785
  %1966 = vmatpush.bf16.msra.mxu0 %v1781
  %1967 = vmatpush.bf16.msra.mxu0 %v1777
  %1968 = vmatpush.bf16.msra.mxu0 %v1773
  %1969 = vmatpush.bf16.msra.mxu0 %v1769
  %1970 = vmatpush.bf16.msra.mxu0 %v1765
  %1971 = vmatpush.bf16.msra.mxu0 %v1761
  %1972 = vmatpush.bf16.msra.mxu0 %v1757
  %1973 = vmatmul.bf16.gmra.mxu0 %v1618
  %v1974 = vpop.f32.mrf.mxu0
  %v1975 = vadd.f32 0.0, %v1974
  %v1976 = vpop.f32.mrf.mxu0
  %v1977 = vadd.f32 0.0, %v1976
  %1978 = vmatmul.bf16.gmra.mxu0 %v1619
  %v1979 = vpop.f32.mrf.mxu0
  %v1980 = vadd.f32 0.0, %v1979
  %v1981 = vpop.f32.mrf.mxu0
  %v1982 = vadd.f32 0.0, %v1981
  %1983 = vmatmul.bf16.gmra.mxu0 %v1620
  %v1984 = vpop.f32.mrf.mxu0
  %v1985 = vadd.f32 0.0, %v1984
  %v1986 = vpop.f32.mrf.mxu0
  %v1987 = vadd.f32 0.0, %v1986
  %1988 = vmatmul.bf16.gmra.mxu0 %v1621
  %v1989 = vpop.f32.mrf.mxu0
  %v1990 = vadd.f32 0.0, %v1989
  %v1991 = vpop.f32.mrf.mxu0
  %v1992 = vadd.f32 0.0, %v1991
  %1993 = vmatmul.bf16.gmra.mxu0 %v1622
  %v1994 = vpop.f32.mrf.mxu0
  %v1995 = vadd.f32 0.0, %v1994
  %v1996 = vpop.f32.mrf.mxu0
  %v1997 = vadd.f32 0.0, %v1996
  %1998 = vmatmul.bf16.gmra.mxu0 %v1623
  %v1999 = vpop.f32.mrf.mxu0
  %v2000 = vadd.f32 0.0, %v1999
  %v2001 = vpop.f32.mrf.mxu0
  %v2002 = vadd.f32 0.0, %v2001
  %2003 = vmatmul.bf16.gmra.mxu0 %v1624
  %v2004 = vpop.f32.mrf.mxu0
  %v2005 = vadd.f32 0.0, %v2004
  %v2006 = vpop.f32.mrf.mxu0
  %v2007 = vadd.f32 0.0, %v2006
  %2008 = vmatmul.bf16.gmra.mxu0 %v1625
  %v2009 = vpop.f32.mrf.mxu0
  %v2010 = vadd.f32 0.0, %v2009
  %v2011 = vpop.f32.mrf.mxu0
  %v2012 = vadd.f32 0.0, %v2011
  %2013 = vdwg.mxu0
  %v2014 = vmul.f32 %v1828, %v1828
  %v2015 = vmul.f32 %v1877, %v1877
  %v2016 = vmul.f32 %v1926, %v1926
  %v2017 = vmul.f32 %v1975, %v1975
  %v2018 = vmul.f32 %v1830, %v1830
  %v2019 = vmul.f32 %v1879, %v1879
  %v2020 = vmul.f32 %v1928, %v1928
  %v2021 = vmul.f32 %v1977, %v1977
  %v2022 = vmul.f32 %v1833, %v1833
  %v2023 = vmul.f32 %v1882, %v1882
  %v2024 = vmul.f32 %v1931, %v1931
  %v2025 = vmul.f32 %v1980, %v1980
  %v2026 = vmul.f32 %v1835, %v1835
  %v2027 = vmul.f32 %v1884, %v1884
  %v2028 = vmul.f32 %v1933, %v1933
  %v2029 = vmul.f32 %v1982, %v1982
  %v2030 = vmul.f32 %v1838, %v1838
  %v2031 = vmul.f32 %v1887, %v1887
  %v2032 = vmul.f32 %v1936, %v1936
  %v2033 = vmul.f32 %v1985, %v1985
  %v2034 = vmul.f32 %v1840, %v1840
  %v2035 = vmul.f32 %v1889, %v1889
  %v2036 = vmul.f32 %v1938, %v1938
  %v2037 = vmul.f32 %v1987, %v1987
  %v2038 = vmul.f32 %v1843, %v1843
  %v2039 = vmul.f32 %v1892, %v1892
  %v2040 = vmul.f32 %v1941, %v1941
  %v2041 = vmul.f32 %v1990, %v1990
  %v2042 = vmul.f32 %v1845, %v1845
  %v2043 = vmul.f32 %v1894, %v1894
  %v2044 = vmul.f32 %v1943, %v1943
  %v2045 = vmul.f32 %v1992, %v1992
  %v2046 = vmul.f32 %v1848, %v1848
  %v2047 = vmul.f32 %v1897, %v1897
  %v2048 = vmul.f32 %v1946, %v1946
  %v2049 = vmul.f32 %v1995, %v1995
  %v2050 = vmul.f32 %v1850, %v1850
  %v2051 = vmul.f32 %v1899, %v1899
  %v2052 = vmul.f32 %v1948, %v1948
  %v2053 = vmul.f32 %v1997, %v1997
  %v2054 = vmul.f32 %v1853, %v1853
  %v2055 = vmul.f32 %v1902, %v1902
  %v2056 = vmul.f32 %v1951, %v1951
  %v2057 = vmul.f32 %v2000, %v2000
  %v2058 = vmul.f32 %v1855, %v1855
  %v2059 = vmul.f32 %v1904, %v1904
  %v2060 = vmul.f32 %v1953, %v1953
  %v2061 = vmul.f32 %v2002, %v2002
  %v2062 = vmul.f32 %v1858, %v1858
  %v2063 = vmul.f32 %v1907, %v1907
  %v2064 = vmul.f32 %v1956, %v1956
  %v2065 = vmul.f32 %v2005, %v2005
  %v2066 = vmul.f32 %v1860, %v1860
  %v2067 = vmul.f32 %v1909, %v1909
  %v2068 = vmul.f32 %v1958, %v1958
  %v2069 = vmul.f32 %v2007, %v2007
  %v2070 = vmul.f32 %v1863, %v1863
  %v2071 = vmul.f32 %v1912, %v1912
  %v2072 = vmul.f32 %v1961, %v1961
  %v2073 = vmul.f32 %v2010, %v2010
  %v2074 = vmul.f32 %v1865, %v1865
  %v2075 = vmul.f32 %v1914, %v1914
  %v2076 = vmul.f32 %v1963, %v1963
  %v2077 = vmul.f32 %v2012, %v2012
  %v2078 = vmul.f32 %v1828, %v2014
  %v2079 = vmul.f32 %v1877, %v2015
  %v2080 = vmul.f32 %v1926, %v2016
  %v2081 = vmul.f32 %v1975, %v2017
  %v2082 = vmul.f32 %v1830, %v2018
  %v2083 = vmul.f32 %v1879, %v2019
  %v2084 = vmul.f32 %v1928, %v2020
  %v2085 = vmul.f32 %v1977, %v2021
  %v2086 = vmul.f32 %v1833, %v2022
  %v2087 = vmul.f32 %v1882, %v2023
  %v2088 = vmul.f32 %v1931, %v2024
  %v2089 = vmul.f32 %v1980, %v2025
  %v2090 = vmul.f32 %v1835, %v2026
  %v2091 = vmul.f32 %v1884, %v2027
  %v2092 = vmul.f32 %v1933, %v2028
  %v2093 = vmul.f32 %v1982, %v2029
  %v2094 = vmul.f32 %v1838, %v2030
  %v2095 = vmul.f32 %v1887, %v2031
  %v2096 = vmul.f32 %v1936, %v2032
  %v2097 = vmul.f32 %v1985, %v2033
  %v2098 = vmul.f32 %v1840, %v2034
  %v2099 = vmul.f32 %v1889, %v2035
  %v2100 = vmul.f32 %v1938, %v2036
  %v2101 = vmul.f32 %v1987, %v2037
  %v2102 = vmul.f32 %v1843, %v2038
  %v2103 = vmul.f32 %v1892, %v2039
  %v2104 = vmul.f32 %v1941, %v2040
  %v2105 = vmul.f32 %v1990, %v2041
  %v2106 = vmul.f32 %v1845, %v2042
  %v2107 = vmul.f32 %v1894, %v2043
  %v2108 = vmul.f32 %v1943, %v2044
  %v2109 = vmul.f32 %v1992, %v2045
  %v2110 = vmul.f32 %v1848, %v2046
  %v2111 = vmul.f32 %v1897, %v2047
  %v2112 = vmul.f32 %v1946, %v2048
  %v2113 = vmul.f32 %v1995, %v2049
  %v2114 = vmul.f32 %v1850, %v2050
  %v2115 = vmul.f32 %v1899, %v2051
  %v2116 = vmul.f32 %v1948, %v2052
  %v2117 = vmul.f32 %v1997, %v2053
  %v2118 = vmul.f32 %v1853, %v2054
  %v2119 = vmul.f32 %v1902, %v2055
  %v2120 = vmul.f32 %v1951, %v2056
  %v2121 = vmul.f32 %v2000, %v2057
  %v2122 = vmul.f32 %v1855, %v2058
  %v2123 = vmul.f32 %v1904, %v2059
  %v2124 = vmul.f32 %v1953, %v2060
  %v2125 = vmul.f32 %v2002, %v2061
  %v2126 = vmul.f32 %v1858, %v2062
  %v2127 = vmul.f32 %v1907, %v2063
  %v2128 = vmul.f32 %v1956, %v2064
  %v2129 = vmul.f32 %v2005, %v2065
  %v2130 = vmul.f32 %v1860, %v2066
  %v2131 = vmul.f32 %v1909, %v2067
  %v2132 = vmul.f32 %v1958, %v2068
  %v2133 = vmul.f32 %v2007, %v2069
  %v2134 = vmul.f32 %v1863, %v2070
  %v2135 = vmul.f32 %v1912, %v2071
  %v2136 = vmul.f32 %v1961, %v2072
  %v2137 = vmul.f32 %v2010, %v2073
  %v2138 = vmul.f32 %v1865, %v2074
  %v2139 = vmul.f32 %v1914, %v2075
  %v2140 = vmul.f32 %v1963, %v2076
  %v2141 = vmul.f32 %v2012, %v2077
  %v2142 = vmul.f32 %v2078, 0.044715
  %v2143 = vmul.f32 %v2079, 0.044715
  %v2144 = vmul.f32 %v2080, 0.044715
  %v2145 = vmul.f32 %v2081, 0.044715
  %v2146 = vmul.f32 %v2082, 0.044715
  %v2147 = vmul.f32 %v2083, 0.044715
  %v2148 = vmul.f32 %v2084, 0.044715
  %v2149 = vmul.f32 %v2085, 0.044715
  %v2150 = vmul.f32 %v2086, 0.044715
  %v2151 = vmul.f32 %v2087, 0.044715
  %v2152 = vmul.f32 %v2088, 0.044715
  %v2153 = vmul.f32 %v2089, 0.044715
  %v2154 = vmul.f32 %v2090, 0.044715
  %v2155 = vmul.f32 %v2091, 0.044715
  %v2156 = vmul.f32 %v2092, 0.044715
  %v2157 = vmul.f32 %v2093, 0.044715
  %v2158 = vmul.f32 %v2094, 0.044715
  %v2159 = vmul.f32 %v2095, 0.044715
  %v2160 = vmul.f32 %v2096, 0.044715
  %v2161 = vmul.f32 %v2097, 0.044715
  %v2162 = vmul.f32 %v2098, 0.044715
  %v2163 = vmul.f32 %v2099, 0.044715
  %v2164 = vmul.f32 %v2100, 0.044715
  %v2165 = vmul.f32 %v2101, 0.044715
  %v2166 = vmul.f32 %v2102, 0.044715
  %v2167 = vmul.f32 %v2103, 0.044715
  %v2168 = vmul.f32 %v2104, 0.044715
  %v2169 = vmul.f32 %v2105, 0.044715
  %v2170 = vmul.f32 %v2106, 0.044715
  %v2171 = vmul.f32 %v2107, 0.044715
  %v2172 = vmul.f32 %v2108, 0.044715
  %v2173 = vmul.f32 %v2109, 0.044715
  %v2174 = vmul.f32 %v2110, 0.044715
  %v2175 = vmul.f32 %v2111, 0.044715
  %v2176 = vmul.f32 %v2112, 0.044715
  %v2177 = vmul.f32 %v2113, 0.044715
  %v2178 = vmul.f32 %v2114, 0.044715
  %v2179 = vmul.f32 %v2115, 0.044715
  %v2180 = vmul.f32 %v2116, 0.044715
  %v2181 = vmul.f32 %v2117, 0.044715
  %v2182 = vmul.f32 %v2118, 0.044715
  %v2183 = vmul.f32 %v2119, 0.044715
  %v2184 = vmul.f32 %v2120, 0.044715
  %v2185 = vmul.f32 %v2121, 0.044715
  %v2186 = vmul.f32 %v2122, 0.044715
  %v2187 = vmul.f32 %v2123, 0.044715
  %v2188 = vmul.f32 %v2124, 0.044715
  %v2189 = vmul.f32 %v2125, 0.044715
  %v2190 = vmul.f32 %v2126, 0.044715
  %v2191 = vmul.f32 %v2127, 0.044715
  %v2192 = vmul.f32 %v2128, 0.044715
  %v2193 = vmul.f32 %v2129, 0.044715
  %v2194 = vmul.f32 %v2130, 0.044715
  %v2195 = vmul.f32 %v2131, 0.044715
  %v2196 = vmul.f32 %v2132, 0.044715
  %v2197 = vmul.f32 %v2133, 0.044715
  %v2198 = vmul.f32 %v2134, 0.044715
  %v2199 = vmul.f32 %v2135, 0.044715
  %v2200 = vmul.f32 %v2136, 0.044715
  %v2201 = vmul.f32 %v2137, 0.044715
  %v2202 = vmul.f32 %v2138, 0.044715
  %v2203 = vmul.f32 %v2139, 0.044715
  %v2204 = vmul.f32 %v2140, 0.044715
  %v2205 = vmul.f32 %v2141, 0.044715
  %v2206 = vadd.f32 %v1828, %v2142
  %v2207 = vadd.f32 %v1877, %v2143
  %v2208 = vadd.f32 %v1926, %v2144
  %v2209 = vadd.f32 %v1975, %v2145
  %v2210 = vadd.f32 %v1830, %v2146
  %v2211 = vadd.f32 %v1879, %v2147
  %v2212 = vadd.f32 %v1928, %v2148
  %v2213 = vadd.f32 %v1977, %v2149
  %v2214 = vadd.f32 %v1833, %v2150
  %v2215 = vadd.f32 %v1882, %v2151
  %v2216 = vadd.f32 %v1931, %v2152
  %v2217 = vadd.f32 %v1980, %v2153
  %v2218 = vadd.f32 %v1835, %v2154
  %v2219 = vadd.f32 %v1884, %v2155
  %v2220 = vadd.f32 %v1933, %v2156
  %v2221 = vadd.f32 %v1982, %v2157
  %v2222 = vadd.f32 %v1838, %v2158
  %v2223 = vadd.f32 %v1887, %v2159
  %v2224 = vadd.f32 %v1936, %v2160
  %v2225 = vadd.f32 %v1985, %v2161
  %v2226 = vadd.f32 %v1840, %v2162
  %v2227 = vadd.f32 %v1889, %v2163
  %v2228 = vadd.f32 %v1938, %v2164
  %v2229 = vadd.f32 %v1987, %v2165
  %v2230 = vadd.f32 %v1843, %v2166
  %v2231 = vadd.f32 %v1892, %v2167
  %v2232 = vadd.f32 %v1941, %v2168
  %v2233 = vadd.f32 %v1990, %v2169
  %v2234 = vadd.f32 %v1845, %v2170
  %v2235 = vadd.f32 %v1894, %v2171
  %v2236 = vadd.f32 %v1943, %v2172
  %v2237 = vadd.f32 %v1992, %v2173
  %v2238 = vadd.f32 %v1848, %v2174
  %v2239 = vadd.f32 %v1897, %v2175
  %v2240 = vadd.f32 %v1946, %v2176
  %v2241 = vadd.f32 %v1995, %v2177
  %v2242 = vadd.f32 %v1850, %v2178
  %v2243 = vadd.f32 %v1899, %v2179
  %v2244 = vadd.f32 %v1948, %v2180
  %v2245 = vadd.f32 %v1997, %v2181
  %v2246 = vadd.f32 %v1853, %v2182
  %v2247 = vadd.f32 %v1902, %v2183
  %v2248 = vadd.f32 %v1951, %v2184
  %v2249 = vadd.f32 %v2000, %v2185
  %v2250 = vadd.f32 %v1855, %v2186
  %v2251 = vadd.f32 %v1904, %v2187
  %v2252 = vadd.f32 %v1953, %v2188
  %v2253 = vadd.f32 %v2002, %v2189
  %v2254 = vadd.f32 %v1858, %v2190
  %v2255 = vadd.f32 %v1907, %v2191
  %v2256 = vadd.f32 %v1956, %v2192
  %v2257 = vadd.f32 %v2005, %v2193
  %v2258 = vadd.f32 %v1860, %v2194
  %v2259 = vadd.f32 %v1909, %v2195
  %v2260 = vadd.f32 %v1958, %v2196
  %v2261 = vadd.f32 %v2007, %v2197
  %v2262 = vadd.f32 %v1863, %v2198
  %v2263 = vadd.f32 %v1912, %v2199
  %v2264 = vadd.f32 %v1961, %v2200
  %v2265 = vadd.f32 %v2010, %v2201
  %v2266 = vadd.f32 %v1865, %v2202
  %v2267 = vadd.f32 %v1914, %v2203
  %v2268 = vadd.f32 %v1963, %v2204
  %v2269 = vadd.f32 %v2012, %v2205
  %v2270 = vmul.f32 %v2206, 0.7978846
  %v2271 = vmul.f32 %v2207, 0.7978846
  %v2272 = vmul.f32 %v2208, 0.7978846
  %v2273 = vmul.f32 %v2209, 0.7978846
  %v2274 = vmul.f32 %v2210, 0.7978846
  %v2275 = vmul.f32 %v2211, 0.7978846
  %v2276 = vmul.f32 %v2212, 0.7978846
  %v2277 = vmul.f32 %v2213, 0.7978846
  %v2278 = vmul.f32 %v2214, 0.7978846
  %v2279 = vmul.f32 %v2215, 0.7978846
  %v2280 = vmul.f32 %v2216, 0.7978846
  %v2281 = vmul.f32 %v2217, 0.7978846
  %v2282 = vmul.f32 %v2218, 0.7978846
  %v2283 = vmul.f32 %v2219, 0.7978846
  %v2284 = vmul.f32 %v2220, 0.7978846
  %v2285 = vmul.f32 %v2221, 0.7978846
  %v2286 = vmul.f32 %v2222, 0.7978846
  %v2287 = vmul.f32 %v2223, 0.7978846
  %v2288 = vmul.f32 %v2224, 0.7978846
  %v2289 = vmul.f32 %v2225, 0.7978846
  %v2290 = vmul.f32 %v2226, 0.7978846
  %v2291 = vmul.f32 %v2227, 0.7978846
  %v2292 = vmul.f32 %v2228, 0.7978846
  %v2293 = vmul.f32 %v2229, 0.7978846
  %v2294 = vmul.f32 %v2230, 0.7978846
  %v2295 = vmul.f32 %v2231, 0.7978846
  %v2296 = vmul.f32 %v2232, 0.7978846
  %v2297 = vmul.f32 %v2233, 0.7978846
  %v2298 = vmul.f32 %v2234, 0.7978846
  %v2299 = vmul.f32 %v2235, 0.7978846
  %v2300 = vmul.f32 %v2236, 0.7978846
  %v2301 = vmul.f32 %v2237, 0.7978846
  %v2302 = vmul.f32 %v2238, 0.7978846
  %v2303 = vmul.f32 %v2239, 0.7978846
  %v2304 = vmul.f32 %v2240, 0.7978846
  %v2305 = vmul.f32 %v2241, 0.7978846
  %v2306 = vmul.f32 %v2242, 0.7978846
  %v2307 = vmul.f32 %v2243, 0.7978846
  %v2308 = vmul.f32 %v2244, 0.7978846
  %v2309 = vmul.f32 %v2245, 0.7978846
  %v2310 = vmul.f32 %v2246, 0.7978846
  %v2311 = vmul.f32 %v2247, 0.7978846
  %v2312 = vmul.f32 %v2248, 0.7978846
  %v2313 = vmul.f32 %v2249, 0.7978846
  %v2314 = vmul.f32 %v2250, 0.7978846
  %v2315 = vmul.f32 %v2251, 0.7978846
  %v2316 = vmul.f32 %v2252, 0.7978846
  %v2317 = vmul.f32 %v2253, 0.7978846
  %v2318 = vmul.f32 %v2254, 0.7978846
  %v2319 = vmul.f32 %v2255, 0.7978846
  %v2320 = vmul.f32 %v2256, 0.7978846
  %v2321 = vmul.f32 %v2257, 0.7978846
  %v2322 = vmul.f32 %v2258, 0.7978846
  %v2323 = vmul.f32 %v2259, 0.7978846
  %v2324 = vmul.f32 %v2260, 0.7978846
  %v2325 = vmul.f32 %v2261, 0.7978846
  %v2326 = vmul.f32 %v2262, 0.7978846
  %v2327 = vmul.f32 %v2263, 0.7978846
  %v2328 = vmul.f32 %v2264, 0.7978846
  %v2329 = vmul.f32 %v2265, 0.7978846
  %v2330 = vmul.f32 %v2266, 0.7978846
  %v2331 = vmul.f32 %v2267, 0.7978846
  %v2332 = vmul.f32 %v2268, 0.7978846
  %v2333 = vmul.f32 %v2269, 0.7978846
  %v2334 = vtanh.pop %v2270
  %v2335 = vtanh.pop %v2271
  %v2336 = vtanh.pop %v2272
  %v2337 = vtanh.pop %v2273
  %v2338 = vtanh.pop %v2274
  %v2339 = vtanh.pop %v2275
  %v2340 = vtanh.pop %v2276
  %v2341 = vtanh.pop %v2277
  %v2342 = vtanh.pop %v2278
  %v2343 = vtanh.pop %v2279
  %v2344 = vtanh.pop %v2280
  %v2345 = vtanh.pop %v2281
  %v2346 = vtanh.pop %v2282
  %v2347 = vtanh.pop %v2283
  %v2348 = vtanh.pop %v2284
  %v2349 = vtanh.pop %v2285
  %v2350 = vtanh.pop %v2286
  %v2351 = vtanh.pop %v2287
  %v2352 = vtanh.pop %v2288
  %v2353 = vtanh.pop %v2289
  %v2354 = vtanh.pop %v2290
  %v2355 = vtanh.pop %v2291
  %v2356 = vtanh.pop %v2292
  %v2357 = vtanh.pop %v2293
  %v2358 = vtanh.pop %v2294
  %v2359 = vtanh.pop %v2295
  %v2360 = vtanh.pop %v2296
  %v2361 = vtanh.pop %v2297
  %v2362 = vtanh.pop %v2298
  %v2363 = vtanh.pop %v2299
  %v2364 = vtanh.pop %v2300
  %v2365 = vtanh.pop %v2301
  %v2366 = vtanh.pop %v2302
  %v2367 = vtanh.pop %v2303
  %v2368 = vtanh.pop %v2304
  %v2369 = vtanh.pop %v2305
  %v2370 = vtanh.pop %v2306
  %v2371 = vtanh.pop %v2307
  %v2372 = vtanh.pop %v2308
  %v2373 = vtanh.pop %v2309
  %v2374 = vtanh.pop %v2310
  %v2375 = vtanh.pop %v2311
  %v2376 = vtanh.pop %v2312
  %v2377 = vtanh.pop %v2313
  %v2378 = vtanh.pop %v2314
  %v2379 = vtanh.pop %v2315
  %v2380 = vtanh.pop %v2316
  %v2381 = vtanh.pop %v2317
  %v2382 = vtanh.pop %v2318
  %v2383 = vtanh.pop %v2319
  %v2384 = vtanh.pop %v2320
  %v2385 = vtanh.pop %v2321
  %v2386 = vtanh.pop %v2322
  %v2387 = vtanh.pop %v2323
  %v2388 = vtanh.pop %v2324
  %v2389 = vtanh.pop %v2325
  %v2390 = vtanh.pop %v2326
  %v2391 = vtanh.pop %v2327
  %v2392 = vtanh.pop %v2328
  %v2393 = vtanh.pop %v2329
  %v2394 = vtanh.pop %v2330
  %v2395 = vtanh.pop %v2331
  %v2396 = vtanh.pop %v2332
  %v2397 = vtanh.pop %v2333
  %v2398 = vadd.f32 %v2334, 1.0
  %v2399 = vadd.f32 %v2335, 1.0
  %v2400 = vadd.f32 %v2336, 1.0
  %v2401 = vadd.f32 %v2337, 1.0
  %v2402 = vadd.f32 %v2338, 1.0
  %v2403 = vadd.f32 %v2339, 1.0
  %v2404 = vadd.f32 %v2340, 1.0
  %v2405 = vadd.f32 %v2341, 1.0
  %v2406 = vadd.f32 %v2342, 1.0
  %v2407 = vadd.f32 %v2343, 1.0
  %v2408 = vadd.f32 %v2344, 1.0
  %v2409 = vadd.f32 %v2345, 1.0
  %v2410 = vadd.f32 %v2346, 1.0
  %v2411 = vadd.f32 %v2347, 1.0
  %v2412 = vadd.f32 %v2348, 1.0
  %v2413 = vadd.f32 %v2349, 1.0
  %v2414 = vadd.f32 %v2350, 1.0
  %v2415 = vadd.f32 %v2351, 1.0
  %v2416 = vadd.f32 %v2352, 1.0
  %v2417 = vadd.f32 %v2353, 1.0
  %v2418 = vadd.f32 %v2354, 1.0
  %v2419 = vadd.f32 %v2355, 1.0
  %v2420 = vadd.f32 %v2356, 1.0
  %v2421 = vadd.f32 %v2357, 1.0
  %v2422 = vadd.f32 %v2358, 1.0
  %v2423 = vadd.f32 %v2359, 1.0
  %v2424 = vadd.f32 %v2360, 1.0
  %v2425 = vadd.f32 %v2361, 1.0
  %v2426 = vadd.f32 %v2362, 1.0
  %v2427 = vadd.f32 %v2363, 1.0
  %v2428 = vadd.f32 %v2364, 1.0
  %v2429 = vadd.f32 %v2365, 1.0
  %v2430 = vadd.f32 %v2366, 1.0
  %v2431 = vadd.f32 %v2367, 1.0
  %v2432 = vadd.f32 %v2368, 1.0
  %v2433 = vadd.f32 %v2369, 1.0
  %v2434 = vadd.f32 %v2370, 1.0
  %v2435 = vadd.f32 %v2371, 1.0
  %v2436 = vadd.f32 %v2372, 1.0
  %v2437 = vadd.f32 %v2373, 1.0
  %v2438 = vadd.f32 %v2374, 1.0
  %v2439 = vadd.f32 %v2375, 1.0
  %v2440 = vadd.f32 %v2376, 1.0
  %v2441 = vadd.f32 %v2377, 1.0
  %v2442 = vadd.f32 %v2378, 1.0
  %v2443 = vadd.f32 %v2379, 1.0
  %v2444 = vadd.f32 %v2380, 1.0
  %v2445 = vadd.f32 %v2381, 1.0
  %v2446 = vadd.f32 %v2382, 1.0
  %v2447 = vadd.f32 %v2383, 1.0
  %v2448 = vadd.f32 %v2384, 1.0
  %v2449 = vadd.f32 %v2385, 1.0
  %v2450 = vadd.f32 %v2386, 1.0
  %v2451 = vadd.f32 %v2387, 1.0
  %v2452 = vadd.f32 %v2388, 1.0
  %v2453 = vadd.f32 %v2389, 1.0
  %v2454 = vadd.f32 %v2390, 1.0
  %v2455 = vadd.f32 %v2391, 1.0
  %v2456 = vadd.f32 %v2392, 1.0
  %v2457 = vadd.f32 %v2393, 1.0
  %v2458 = vadd.f32 %v2394, 1.0
  %v2459 = vadd.f32 %v2395, 1.0
  %v2460 = vadd.f32 %v2396, 1.0
  %v2461 = vadd.f32 %v2397, 1.0
  %v2462 = vmul.f32 %v2398, 0.5
  %v2463 = vmul.f32 %v2399, 0.5
  %v2464 = vmul.f32 %v2400, 0.5
  %v2465 = vmul.f32 %v2401, 0.5
  %v2466 = vmul.f32 %v2402, 0.5
  %v2467 = vmul.f32 %v2403, 0.5
  %v2468 = vmul.f32 %v2404, 0.5
  %v2469 = vmul.f32 %v2405, 0.5
  %v2470 = vmul.f32 %v2406, 0.5
  %v2471 = vmul.f32 %v2407, 0.5
  %v2472 = vmul.f32 %v2408, 0.5
  %v2473 = vmul.f32 %v2409, 0.5
  %v2474 = vmul.f32 %v2410, 0.5
  %v2475 = vmul.f32 %v2411, 0.5
  %v2476 = vmul.f32 %v2412, 0.5
  %v2477 = vmul.f32 %v2413, 0.5
  %v2478 = vmul.f32 %v2414, 0.5
  %v2479 = vmul.f32 %v2415, 0.5
  %v2480 = vmul.f32 %v2416, 0.5
  %v2481 = vmul.f32 %v2417, 0.5
  %v2482 = vmul.f32 %v2418, 0.5
  %v2483 = vmul.f32 %v2419, 0.5
  %v2484 = vmul.f32 %v2420, 0.5
  %v2485 = vmul.f32 %v2421, 0.5
  %v2486 = vmul.f32 %v2422, 0.5
  %v2487 = vmul.f32 %v2423, 0.5
  %v2488 = vmul.f32 %v2424, 0.5
  %v2489 = vmul.f32 %v2425, 0.5
  %v2490 = vmul.f32 %v2426, 0.5
  %v2491 = vmul.f32 %v2427, 0.5
  %v2492 = vmul.f32 %v2428, 0.5
  %v2493 = vmul.f32 %v2429, 0.5
  %v2494 = vmul.f32 %v2430, 0.5
  %v2495 = vmul.f32 %v2431, 0.5
  %v2496 = vmul.f32 %v2432, 0.5
  %v2497 = vmul.f32 %v2433, 0.5
  %v2498 = vmul.f32 %v2434, 0.5
  %v2499 = vmul.f32 %v2435, 0.5
  %v2500 = vmul.f32 %v2436, 0.5
  %v2501 = vmul.f32 %v2437, 0.5
  %v2502 = vmul.f32 %v2438, 0.5
  %v2503 = vmul.f32 %v2439, 0.5
  %v2504 = vmul.f32 %v2440, 0.5
  %v2505 = vmul.f32 %v2441, 0.5
  %v2506 = vmul.f32 %v2442, 0.5
  %v2507 = vmul.f32 %v2443, 0.5
  %v2508 = vmul.f32 %v2444, 0.5
  %v2509 = vmul.f32 %v2445, 0.5
  %v2510 = vmul.f32 %v2446, 0.5
  %v2511 = vmul.f32 %v2447, 0.5
  %v2512 = vmul.f32 %v2448, 0.5
  %v2513 = vmul.f32 %v2449, 0.5
  %v2514 = vmul.f32 %v2450, 0.5
  %v2515 = vmul.f32 %v2451, 0.5
  %v2516 = vmul.f32 %v2452, 0.5
  %v2517 = vmul.f32 %v2453, 0.5
  %v2518 = vmul.f32 %v2454, 0.5
  %v2519 = vmul.f32 %v2455, 0.5
  %v2520 = vmul.f32 %v2456, 0.5
  %v2521 = vmul.f32 %v2457, 0.5
  %v2522 = vmul.f32 %v2458, 0.5
  %v2523 = vmul.f32 %v2459, 0.5
  %v2524 = vmul.f32 %v2460, 0.5
  %v2525 = vmul.f32 %v2461, 0.5
  %v2526 = vmul.f32 %v1828, %v2462
  %v2527 = vmul.f32 %v1877, %v2463
  %v2528 = vmul.f32 %v1926, %v2464
  %v2529 = vmul.f32 %v1975, %v2465
  %v2530 = vmul.f32 %v1830, %v2466
  %v2531 = vmul.f32 %v1879, %v2467
  %v2532 = vmul.f32 %v1928, %v2468
  %v2533 = vmul.f32 %v1977, %v2469
  %v2534 = vmul.f32 %v1833, %v2470
  %v2535 = vmul.f32 %v1882, %v2471
  %v2536 = vmul.f32 %v1931, %v2472
  %v2537 = vmul.f32 %v1980, %v2473
  %v2538 = vmul.f32 %v1835, %v2474
  %v2539 = vmul.f32 %v1884, %v2475
  %v2540 = vmul.f32 %v1933, %v2476
  %v2541 = vmul.f32 %v1982, %v2477
  %v2542 = vmul.f32 %v1838, %v2478
  %v2543 = vmul.f32 %v1887, %v2479
  %v2544 = vmul.f32 %v1936, %v2480
  %v2545 = vmul.f32 %v1985, %v2481
  %v2546 = vmul.f32 %v1840, %v2482
  %v2547 = vmul.f32 %v1889, %v2483
  %v2548 = vmul.f32 %v1938, %v2484
  %v2549 = vmul.f32 %v1987, %v2485
  %v2550 = vmul.f32 %v1843, %v2486
  %v2551 = vmul.f32 %v1892, %v2487
  %v2552 = vmul.f32 %v1941, %v2488
  %v2553 = vmul.f32 %v1990, %v2489
  %v2554 = vmul.f32 %v1845, %v2490
  %v2555 = vmul.f32 %v1894, %v2491
  %v2556 = vmul.f32 %v1943, %v2492
  %v2557 = vmul.f32 %v1992, %v2493
  %v2558 = vmul.f32 %v1848, %v2494
  %v2559 = vmul.f32 %v1897, %v2495
  %v2560 = vmul.f32 %v1946, %v2496
  %v2561 = vmul.f32 %v1995, %v2497
  %v2562 = vmul.f32 %v1850, %v2498
  %v2563 = vmul.f32 %v1899, %v2499
  %v2564 = vmul.f32 %v1948, %v2500
  %v2565 = vmul.f32 %v1997, %v2501
  %v2566 = vmul.f32 %v1853, %v2502
  %v2567 = vmul.f32 %v1902, %v2503
  %v2568 = vmul.f32 %v1951, %v2504
  %v2569 = vmul.f32 %v2000, %v2505
  %v2570 = vmul.f32 %v1855, %v2506
  %v2571 = vmul.f32 %v1904, %v2507
  %v2572 = vmul.f32 %v1953, %v2508
  %v2573 = vmul.f32 %v2002, %v2509
  %v2574 = vmul.f32 %v1858, %v2510
  %v2575 = vmul.f32 %v1907, %v2511
  %v2576 = vmul.f32 %v1956, %v2512
  %v2577 = vmul.f32 %v2005, %v2513
  %v2578 = vmul.f32 %v1860, %v2514
  %v2579 = vmul.f32 %v1909, %v2515
  %v2580 = vmul.f32 %v1958, %v2516
  %v2581 = vmul.f32 %v2007, %v2517
  %v2582 = vmul.f32 %v1863, %v2518
  %v2583 = vmul.f32 %v1912, %v2519
  %v2584 = vmul.f32 %v1961, %v2520
  %v2585 = vmul.f32 %v2010, %v2521
  %v2586 = vmul.f32 %v1865, %v2522
  %v2587 = vmul.f32 %v1914, %v2523
  %v2588 = vmul.f32 %v1963, %v2524
  %v2589 = vmul.f32 %v2012, %v2525
  %v2590 = vpack.c.bf16 %v2530, %v2526
  %v2591 = vpack.c.bf16 %v2531, %v2527
  %v2592 = vpack.c.bf16 %v2532, %v2528
  %v2593 = vpack.c.bf16 %v2533, %v2529
  %v2594 = vpack.c.bf16 %v2538, %v2534
  %v2595 = vpack.c.bf16 %v2539, %v2535
  %v2596 = vpack.c.bf16 %v2540, %v2536
  %v2597 = vpack.c.bf16 %v2541, %v2537
  %v2598 = vpack.c.bf16 %v2546, %v2542
  %v2599 = vpack.c.bf16 %v2547, %v2543
  %v2600 = vpack.c.bf16 %v2548, %v2544
  %v2601 = vpack.c.bf16 %v2549, %v2545
  %v2602 = vpack.c.bf16 %v2554, %v2550
  %v2603 = vpack.c.bf16 %v2555, %v2551
  %v2604 = vpack.c.bf16 %v2556, %v2552
  %v2605 = vpack.c.bf16 %v2557, %v2553
  %v2606 = vpack.c.bf16 %v2562, %v2558
  %v2607 = vpack.c.bf16 %v2563, %v2559
  %v2608 = vpack.c.bf16 %v2564, %v2560
  %v2609 = vpack.c.bf16 %v2565, %v2561
  %v2610 = vpack.c.bf16 %v2570, %v2566
  %v2611 = vpack.c.bf16 %v2571, %v2567
  %v2612 = vpack.c.bf16 %v2572, %v2568
  %v2613 = vpack.c.bf16 %v2573, %v2569
  %v2614 = vpack.c.bf16 %v2578, %v2574
  %v2615 = vpack.c.bf16 %v2579, %v2575
  %v2616 = vpack.c.bf16 %v2580, %v2576
  %v2617 = vpack.c.bf16 %v2581, %v2577
  %v2618 = vpack.c.bf16 %v2586, %v2582
  %v2619 = vpack.c.bf16 %v2587, %v2583
  %v2620 = vpack.c.bf16 %v2588, %v2584
  %v2621 = vpack.c.bf16 %v2589, %v2585
  %v2622 = vld [vmem:[%s5] sm:$0xf]
  %v2623 = vld [vmem:[%s5 + $0x4] sm:$0xf]
  %v2624 = vld [vmem:[%s5 + $0x8] sm:$0xf]
  %v2625 = vld [vmem:[%s5 + $0xc] sm:$0xf]
  %v2626 = vld [vmem:[%s5 + $0x10] sm:$0xf]
  %v2627 = vld [vmem:[%s5 + $0x14] sm:$0xf]
  %v2628 = vld [vmem:[%s5 + $0x18] sm:$0xf]
  %v2629 = vld [vmem:[%s5 + $0x1c] sm:$0xf]
  %v2630 = vld [vmem:[%s5 + $0x20] sm:$0xf]
  %v2631 = vld [vmem:[%s5 + $0x24] sm:$0xf]
  %v2632 = vld [vmem:[%s5 + $0x28] sm:$0xf]
  %v2633 = vld [vmem:[%s5 + $0x2c] sm:$0xf]
  %v2634 = vld [vmem:[%s5 + $0x30] sm:$0xf]
  %v2635 = vld [vmem:[%s5 + $0x34] sm:$0xf]
  %v2636 = vld [vmem:[%s5 + $0x38] sm:$0xf]
  %v2637 = vld [vmem:[%s5 + $0x3c] sm:$0xf]
  %v2638 = vld [vmem:[%s5 + $0x40] sm:$0xf]
  %v2639 = vld [vmem:[%s5 + $0x44] sm:$0xf]
  %v2640 = vld [vmem:[%s5 + $0x48] sm:$0xf]
  %v2641 = vld [vmem:[%s5 + $0x4c] sm:$0xf]
  %v2642 = vld [vmem:[%s5 + $0x50] sm:$0xf]
  %v2643 = vld [vmem:[%s5 + $0x54] sm:$0xf]
  %v2644 = vld [vmem:[%s5 + $0x58] sm:$0xf]
  %v2645 = vld [vmem:[%s5 + $0x5c] sm:$0xf]
  %v2646 = vld [vmem:[%s5 + $0x60] sm:$0xf]
  %v2647 = vld [vmem:[%s5 + $0x64] sm:$0xf]
  %v2648 = vld [vmem:[%s5 + $0x68] sm:$0xf]
  %v2649 = vld [vmem:[%s5 + $0x6c] sm:$0xf]
  %v2650 = vld [vmem:[%s5 + $0x70] sm:$0xf]
  %v2651 = vld [vmem:[%s5 + $0x74] sm:$0xf]
  %v2652 = vld [vmem:[%s5 + $0x78] sm:$0xf]
  %v2653 = vld [vmem:[%s5 + $0x7c] sm:$0xf]
  %v2654 = vld [vmem:[%s5 + $0x80] sm:$0xf]
  %v2655 = vld [vmem:[%s5 + $0x84] sm:$0xf]
  %v2656 = vld [vmem:[%s5 + $0x88] sm:$0xf]
  %v2657 = vld [vmem:[%s5 + $0x8c] sm:$0xf]
  %v2658 = vld [vmem:[%s5 + $0x90] sm:$0xf]
  %v2659 = vld [vmem:[%s5 + $0x94] sm:$0xf]
  %v2660 = vld [vmem:[%s5 + $0x98] sm:$0xf]
  %v2661 = vld [vmem:[%s5 + $0x9c] sm:$0xf]
  %v2662 = vld [vmem:[%s5 + $0xa0] sm:$0xf]
  %v2663 = vld [vmem:[%s5 + $0xa4] sm:$0xf]
  %v2664 = vld [vmem:[%s5 + $0xa8] sm:$0xf]
  %v2665 = vld [vmem:[%s5 + $0xac] sm:$0xf]
  %v2666 = vld [vmem:[%s5 + $0xb0] sm:$0xf]
  %v2667 = vld [vmem:[%s5 + $0xb4] sm:$0xf]
  %v2668 = vld [vmem:[%s5 + $0xb8] sm:$0xf]
  %v2669 = vld [vmem:[%s5 + $0xbc] sm:$0xf]
  %v2670 = vld [vmem:[%s5 + $0xc0] sm:$0xf]
  %v2671 = vld [vmem:[%s5 + $0xc4] sm:$0xf]
  %v2672 = vld [vmem:[%s5 + $0xc8] sm:$0xf]
  %v2673 = vld [vmem:[%s5 + $0xcc] sm:$0xf]
  %v2674 = vld [vmem:[%s5 + $0xd0] sm:$0xf]
  %v2675 = vld [vmem:[%s5 + $0xd4] sm:$0xf]
  %v2676 = vld [vmem:[%s5 + $0xd8] sm:$0xf]
  %v2677 = vld [vmem:[%s5 + $0xdc] sm:$0xf]
  %v2678 = vld [vmem:[%s5 + $0xe0] sm:$0xf]
  %v2679 = vld [vmem:[%s5 + $0xe4] sm:$0xf]
  %v2680 = vld [vmem:[%s5 + $0xe8] sm:$0xf]
  %v2681 = vld [vmem:[%s5 + $0xec] sm:$0xf]
  %v2682 = vld [vmem:[%s5 + $0xf0] sm:$0xf]
  %v2683 = vld [vmem:[%s5 + $0xf4] sm:$0xf]
  %v2684 = vld [vmem:[%s5 + $0xf8] sm:$0xf]
  %v2685 = vld [vmem:[%s5 + $0xfc] sm:$0xf]
  %v2750 = vunpack.c.l.b16 %v2622
  %v2751 = vunpack.c.l.b16 %v2623
  %v2752 = vunpack.c.l.b16 %v2624
  %v2753 = vunpack.c.l.b16 %v2625
  %v2754 = vunpack.c.l.b16 %v2626
  %v2755 = vunpack.c.l.b16 %v2627
  %v2756 = vunpack.c.l.b16 %v2628
  %v2757 = vunpack.c.l.b16 %v2629
  %v2758 = vunpack.c.l.b16 %v2630
  %v2759 = vunpack.c.l.b16 %v2631
  %v2760 = vunpack.c.l.b16 %v2632
  %v2761 = vunpack.c.l.b16 %v2633
  %v2762 = vunpack.c.l.b16 %v2634
  %v2763 = vunpack.c.l.b16 %v2635
  %v2764 = vunpack.c.l.b16 %v2636
  %v2765 = vunpack.c.l.b16 %v2637
  %v2766 = vunpack.c.l.b16 %v2638
  %v2767 = vunpack.c.l.b16 %v2639
  %v2768 = vunpack.c.l.b16 %v2640
  %v2769 = vunpack.c.l.b16 %v2641
  %v2770 = vunpack.c.l.b16 %v2642
  %v2771 = vunpack.c.l.b16 %v2643
  %v2772 = vunpack.c.l.b16 %v2644
  %v2773 = vunpack.c.l.b16 %v2645
  %v2774 = vunpack.c.l.b16 %v2646
  %v2775 = vunpack.c.l.b16 %v2647
  %v2776 = vunpack.c.l.b16 %v2648
  %v2777 = vunpack.c.l.b16 %v2649
  %v2778 = vunpack.c.l.b16 %v2650
  %v2779 = vunpack.c.l.b16 %v2651
  %v2780 = vunpack.c.l.b16 %v2652
  %v2781 = vunpack.c.l.b16 %v2653
  %v2782 = vunpack.c.l.b16 %v2654
  %v2783 = vunpack.c.l.b16 %v2655
  %v2784 = vunpack.c.l.b16 %v2656
  %v2785 = vunpack.c.l.b16 %v2657
  %v2786 = vunpack.c.l.b16 %v2658
  %v2787 = vunpack.c.l.b16 %v2659
  %v2788 = vunpack.c.l.b16 %v2660
  %v2789 = vunpack.c.l.b16 %v2661
  %v2790 = vunpack.c.l.b16 %v2662
  %v2791 = vunpack.c.l.b16 %v2663
  %v2792 = vunpack.c.l.b16 %v2664
  %v2793 = vunpack.c.l.b16 %v2665
  %v2794 = vunpack.c.l.b16 %v2666
  %v2795 = vunpack.c.l.b16 %v2667
  %v2796 = vunpack.c.l.b16 %v2668
  %v2797 = vunpack.c.l.b16 %v2669
  %v2798 = vunpack.c.l.b16 %v2670
  %v2799 = vunpack.c.l.b16 %v2671
  %v2800 = vunpack.c.l.b16 %v2672
  %v2801 = vunpack.c.l.b16 %v2673
  %v2802 = vunpack.c.l.b16 %v2674
  %v2803 = vunpack.c.l.b16 %v2675
  %v2804 = vunpack.c.l.b16 %v2676
  %v2805 = vunpack.c.l.b16 %v2677
  %v2806 = vunpack.c.l.b16 %v2678
  %v2807 = vunpack.c.l.b16 %v2679
  %v2808 = vunpack.c.l.b16 %v2680
  %v2809 = vunpack.c.l.b16 %v2681
  %v2810 = vunpack.c.l.b16 %v2682
  %v2811 = vunpack.c.l.b16 %v2683
  %v2812 = vunpack.c.l.b16 %v2684
  %v2813 = vunpack.c.l.b16 %v2685
  %v2814 = vpack.c.b16 %v2751, %v2750
  %v2815 = vpack.c.b16 %v2753, %v2752
  %v2816 = vpack.c.b16 %v2755, %v2754
  %v2817 = vpack.c.b16 %v2757, %v2756
  %v2818 = vpack.c.b16 %v2759, %v2758
  %v2819 = vpack.c.b16 %v2761, %v2760
  %v2820 = vpack.c.b16 %v2763, %v2762
  %v2821 = vpack.c.b16 %v2765, %v2764
  %v2822 = vpack.c.b16 %v2767, %v2766
  %v2823 = vpack.c.b16 %v2769, %v2768
  %v2824 = vpack.c.b16 %v2771, %v2770
  %v2825 = vpack.c.b16 %v2773, %v2772
  %v2826 = vpack.c.b16 %v2775, %v2774
  %v2827 = vpack.c.b16 %v2777, %v2776
  %v2828 = vpack.c.b16 %v2779, %v2778
  %v2829 = vpack.c.b16 %v2781, %v2780
  %v2830 = vpack.c.b16 %v2783, %v2782
  %v2831 = vpack.c.b16 %v2785, %v2784
  %v2832 = vpack.c.b16 %v2787, %v2786
  %v2833 = vpack.c.b16 %v2789, %v2788
  %v2834 = vpack.c.b16 %v2791, %v2790
  %v2835 = vpack.c.b16 %v2793, %v2792
  %v2836 = vpack.c.b16 %v2795, %v2794
  %v2837 = vpack.c.b16 %v2797, %v2796
  %v2838 = vpack.c.b16 %v2799, %v2798
  %v2839 = vpack.c.b16 %v2801, %v2800
  %v2840 = vpack.c.b16 %v2803, %v2802
  %v2841 = vpack.c.b16 %v2805, %v2804
  %v2842 = vpack.c.b16 %v2807, %v2806
  %v2843 = vpack.c.b16 %v2809, %v2808
  %v2844 = vpack.c.b16 %v2811, %v2810
  %v2845 = vpack.c.b16 %v2813, %v2812
  %2878 = vmatpush.bf16.msra.mxu0 %v2821
  %2879 = vmatpush.bf16.msra.mxu0 %v2820
  %2880 = vmatpush.bf16.msra.mxu0 %v2819
  %2881 = vmatpush.bf16.msra.mxu0 %v2818
  %2882 = vmatpush.bf16.msra.mxu0 %v2817
  %2883 = vmatpush.bf16.msra.mxu0 %v2816
  %2884 = vmatpush.bf16.msra.mxu0 %v2815
  %2885 = vmatpush.bf16.msra.mxu0 %v2814
  %2886 = vmatmul.bf16.gmra.mxu0 %v2590
  %v2887 = vpop.f32.mrf.mxu0
  %v2888 = vadd.f32 %v1579, %v2887
  %v2889 = vpop.f32.mrf.mxu0
  %v2890 = vadd.f32 %v1581, %v2889
  %2891 = vmatmul.bf16.gmra.mxu0 %v2594
  %v2892 = vpop.f32.mrf.mxu0
  %v2893 = vadd.f32 %v1584, %v2892
  %v2894 = vpop.f32.mrf.mxu0
  %v2895 = vadd.f32 %v1586, %v2894
  %2896 = vmatmul.bf16.gmra.mxu0 %v2598
  %v2897 = vpop.f32.mrf.mxu0
  %v2898 = vadd.f32 %v1589, %v2897
  %v2899 = vpop.f32.mrf.mxu0
  %v2900 = vadd.f32 %v1591, %v2899
  %2901 = vmatmul.bf16.gmra.mxu0 %v2602
  %v2902 = vpop.f32.mrf.mxu0
  %v2903 = vadd.f32 %v1594, %v2902
  %v2904 = vpop.f32.mrf.mxu0
  %v2905 = vadd.f32 %v1596, %v2904
  %2906 = vmatmul.bf16.gmra.mxu0 %v2606
  %v2907 = vpop.f32.mrf.mxu0
  %v2908 = vadd.f32 %v1599, %v2907
  %v2909 = vpop.f32.mrf.mxu0
  %v2910 = vadd.f32 %v1601, %v2909
  %2911 = vmatmul.bf16.gmra.mxu0 %v2610
  %v2912 = vpop.f32.mrf.mxu0
  %v2913 = vadd.f32 %v1604, %v2912
  %v2914 = vpop.f32.mrf.mxu0
  %v2915 = vadd.f32 %v1606, %v2914
  %2916 = vmatmul.bf16.gmra.mxu0 %v2614
  %v2917 = vpop.f32.mrf.mxu0
  %v2918 = vadd.f32 %v1609, %v2917
  %v2919 = vpop.f32.mrf.mxu0
  %v2920 = vadd.f32 %v1611, %v2919
  %2921 = vmatmul.bf16.gmra.mxu0 %v2618
  %v2922 = vpop.f32.mrf.mxu0
  %v2923 = vadd.f32 %v1614, %v2922
  %v2924 = vpop.f32.mrf.mxu0
  %v2925 = vadd.f32 %v1616, %v2924
  %2926 = vdwg.mxu0
  %2927 = vmatpush.bf16.msra.mxu0 %v2829
  %2928 = vmatpush.bf16.msra.mxu0 %v2828
  %2929 = vmatpush.bf16.msra.mxu0 %v2827
  %2930 = vmatpush.bf16.msra.mxu0 %v2826
  %2931 = vmatpush.bf16.msra.mxu0 %v2825
  %2932 = vmatpush.bf16.msra.mxu0 %v2824
  %2933 = vmatpush.bf16.msra.mxu0 %v2823
  %2934 = vmatpush.bf16.msra.mxu0 %v2822
  %2935 = vmatmul.bf16.gmra.mxu0 %v2591
  %v2936 = vpop.f32.mrf.mxu0
  %v2937 = vadd.f32 %v2888, %v2936
  %v2938 = vpop.f32.mrf.mxu0
  %v2939 = vadd.f32 %v2890, %v2938
  %2940 = vmatmul.bf16.gmra.mxu0 %v2595
  %v2941 = vpop.f32.mrf.mxu0
  %v2942 = vadd.f32 %v2893, %v2941
  %v2943 = vpop.f32.mrf.mxu0
  %v2944 = vadd.f32 %v2895, %v2943
  %2945 = vmatmul.bf16.gmra.mxu0 %v2599
  %v2946 = vpop.f32.mrf.mxu0
  %v2947 = vadd.f32 %v2898, %v2946
  %v2948 = vpop.f32.mrf.mxu0
  %v2949 = vadd.f32 %v2900, %v2948
  %2950 = vmatmul.bf16.gmra.mxu0 %v2603
  %v2951 = vpop.f32.mrf.mxu0
  %v2952 = vadd.f32 %v2903, %v2951
  %v2953 = vpop.f32.mrf.mxu0
  %v2954 = vadd.f32 %v2905, %v2953
  %2955 = vmatmul.bf16.gmra.mxu0 %v2607
  %v2956 = vpop.f32.mrf.mxu0
  %v2957 = vadd.f32 %v2908, %v2956
  %v2958 = vpop.f32.mrf.mxu0
  %v2959 = vadd.f32 %v2910, %v2958
  %2960 = vmatmul.bf16.gmra.mxu0 %v2611
  %v2961 = vpop.f32.mrf.mxu0
  %v2962 = vadd.f32 %v2913, %v2961
  %v2963 = vpop.f32.mrf.mxu0
  %v2964 = vadd.f32 %v2915, %v2963
  %2965 = vmatmul.bf16.gmra.mxu0 %v2615
  %v2966 = vpop.f32.mrf.mxu0
  %v2967 = vadd.f32 %v2918, %v2966
  %v2968 = vpop.f32.mrf.mxu0
  %v2969 = vadd.f32 %v2920, %v2968
  %2970 = vmatmul.bf16.gmra.mxu0 %v2619
  %v2971 = vpop.f32.mrf.mxu0
  %v2972 = vadd.f32 %v2923, %v2971
  %v2973 = vpop.f32.mrf.mxu0
  %v2974 = vadd.f32 %v2925, %v2973
  %2975 = vdwg.mxu0
  %2976 = vmatpush.bf16.msra.mxu0 %v2837
  %2977 = vmatpush.bf16.msra.mxu0 %v2836
  %2978 = vmatpush.bf16.msra.mxu0 %v2835
  %2979 = vmatpush.bf16.msra.mxu0 %v2834
  %2980 = vmatpush.bf16.msra.mxu0 %v2833
  %2981 = vmatpush.bf16.msra.mxu0 %v2832
  %2982 = vmatpush.bf16.msra.mxu0 %v2831
  %2983 = vmatpush.bf16.msra.mxu0 %v2830
  %2984 = vmatmul.bf16.gmra.mxu0 %v2592
  %v2985 = vpop.f32.mrf.mxu0
  %v2986 = vadd.f32 %v2937, %v2985
  %v2987 = vpop.f32.mrf.mxu0
  %v2988 = vadd.f32 %v2939, %v2987
  %2989 = vmatmul.bf16.gmra.mxu0 %v2596
  %v2990 = vpop.f32.mrf.mxu0
  %v2991 = vadd.f32 %v2942, %v2990
  %v2992 = vpop.f32.mrf.mxu0
  %v2993 = vadd.f32 %v2944, %v2992
  %2994 = vmatmul.bf16.gmra.mxu0 %v2600
  %v2995 = vpop.f32.mrf.mxu0
  %v2996 = vadd.f32 %v2947, %v2995
  %v2997 = vpop.f32.mrf.mxu0
  %v2998 = vadd.f32 %v2949, %v2997
  %2999 = vmatmul.bf16.gmra.mxu0 %v2604
  %v3000 = vpop.f32.mrf.mxu0
  %v3001 = vadd.f32 %v2952, %v3000
  %v3002 = vpop.f32.mrf.mxu0
  %v3003 = vadd.f32 %v2954, %v3002
  %3004 = vmatmul.bf16.gmra.mxu0 %v2608
  %v3005 = vpop.f32.mrf.mxu0
  %v3006 = vadd.f32 %v2957, %v3005
  %v3007 = vpop.f32.mrf.mxu0
  %v3008 = vadd.f32 %v2959, %v3007
  %3009 = vmatmul.bf16.gmra.mxu0 %v2612
  %v3010 = vpop.f32.mrf.mxu0
  %v3011 = vadd.f32 %v2962, %v3010
  %v3012 = vpop.f32.mrf.mxu0
  %v3013 = vadd.f32 %v2964, %v3012
  %3014 = vmatmul.bf16.gmra.mxu0 %v2616
  %v3015 = vpop.f32.mrf.mxu0
  %v3016 = vadd.f32 %v2967, %v3015
  %v3017 = vpop.f32.mrf.mxu0
  %v3018 = vadd.f32 %v2969, %v3017
  %3019 = vmatmul.bf16.gmra.mxu0 %v2620
  %v3020 = vpop.f32.mrf.mxu0
  %v3021 = vadd.f32 %v2972, %v3020
  %v3022 = vpop.f32.mrf.mxu0
  %v3023 = vadd.f32 %v2974, %v3022
  %3024 = vdwg.mxu0
  %3025 = vmatpush.bf16.msra.mxu0 %v2845
  %3026 = vmatpush.bf16.msra.mxu0 %v2844
  %3027 = vmatpush.bf16.msra.mxu0 %v2843
  %3028 = vmatpush.bf16.msra.mxu0 %v2842
  %3029 = vmatpush.bf16.msra.mxu0 %v2841
  %3030 = vmatpush.bf16.msra.mxu0 %v2840
  %3031 = vmatpush.bf16.msra.mxu0 %v2839
  %3032 = vmatpush.bf16.msra.mxu0 %v2838
  %3033 = vmatmul.bf16.gmra.mxu0 %v2593
  %v3034 = vpop.f32.mrf.mxu0
  %v3035 = vadd.f32 %v2986, %v3034
  %v3036 = vpop.f32.mrf.mxu0
  %v3037 = vadd.f32 %v2988, %v3036
  %3038 = vmatmul.bf16.gmra.mxu0 %v2597
  %v3039 = vpop.f32.mrf.mxu0
  %v3040 = vadd.f32 %v2991, %v3039
  %v3041 = vpop.f32.mrf.mxu0
  %v3042 = vadd.f32 %v2993, %v3041
  %3043 = vmatmul.bf16.gmra.mxu0 %v2601
  %v3044 = vpop.f32.mrf.mxu0
  %v3045 = vadd.f32 %v2996, %v3044
  %v3046 = vpop.f32.mrf.mxu0
  %v3047 = vadd.f32 %v2998, %v3046
  %3048 = vmatmul.bf16.gmra.mxu0 %v2605
  %v3049 = vpop.f32.mrf.mxu0
  %v3050 = vadd.f32 %v3001, %v3049
  %v3051 = vpop.f32.mrf.mxu0
  %v3052 = vadd.f32 %v3003, %v3051
  %3053 = vmatmul.bf16.gmra.mxu0 %v2609
  %v3054 = vpop.f32.mrf.mxu0
  %v3055 = vadd.f32 %v3006, %v3054
  %v3056 = vpop.f32.mrf.mxu0
  %v3057 = vadd.f32 %v3008, %v3056
  %3058 = vmatmul.bf16.gmra.mxu0 %v2613
  %v3059 = vpop.f32.mrf.mxu0
  %v3060 = vadd.f32 %v3011, %v3059
  %v3061 = vpop.f32.mrf.mxu0
  %v3062 = vadd.f32 %v3013, %v3061
  %3063 = vmatmul.bf16.gmra.mxu0 %v2617
  %v3064 = vpop.f32.mrf.mxu0
  %v3065 = vadd.f32 %v3016, %v3064
  %v3066 = vpop.f32.mrf.mxu0
  %v3067 = vadd.f32 %v3018, %v3066
  %3068 = vmatmul.bf16.gmra.mxu0 %v2621
  %v3069 = vpop.f32.mrf.mxu0
  %v3070 = vadd.f32 %v3021, %v3069
  %v3071 = vpop.f32.mrf.mxu0
  %v3072 = vadd.f32 %v3023, %v3071
  %3073 = vdwg.mxu0
  %v3074 = vpack.c.bf16 %v3037, %v3035
  %v3075 = vpack.c.bf16 %v3042, %v3040
  %v3076 = vpack.c.bf16 %v3047, %v3045
  %v3077 = vpack.c.bf16 %v3052, %v3050
  %v3078 = vpack.c.bf16 %v3057, %v3055
  %v3079 = vpack.c.bf16 %v3062, %v3060
  %v3080 = vpack.c.bf16 %v3067, %v3065
  %v3081 = vpack.c.bf16 %v3072, %v3070
  %v3082 = vld [vmem:[%s6] sm:$0xff]
  %v3083 = vld [vmem:[%s6 + $0x8] sm:$0xff]
  %v3084 = vld [vmem:[%s6 + $0x10] sm:$0xff]
  %v3085 = vld [vmem:[%s6 + $0x18] sm:$0xff]
  %v3086 = vld [vmem:[%s6 + $0x20] sm:$0xff]
  %v3087 = vld [vmem:[%s6 + $0x28] sm:$0xff]
  %v3088 = vld [vmem:[%s6 + $0x30] sm:$0xff]
  %v3089 = vld [vmem:[%s6 + $0x38] sm:$0xff]
  %v3090 = vld [vmem:[%s6 + $0x40] sm:$0xff]
  %v3091 = vld [vmem:[%s6 + $0x48] sm:$0xff]
  %v3092 = vld [vmem:[%s6 + $0x50] sm:$0xff]
  %v3093 = vld [vmem:[%s6 + $0x58] sm:$0xff]
  %v3094 = vld [vmem:[%s6 + $0x60] sm:$0xff]
  %v3095 = vld [vmem:[%s6 + $0x68] sm:$0xff]
  %v3096 = vld [vmem:[%s6 + $0x70] sm:$0xff]
  %v3097 = vld [vmem:[%s6 + $0x78] sm:$0xff]
  %v3114 = vunpack.c.l.b16 %v3082
  %v3115 = vunpack.c.h.b16 %v3082
  %v3116 = vunpack.c.l.b16 %v3083
  %v3117 = vunpack.c.h.b16 %v3083
  %v3118 = vunpack.c.l.b16 %v3084
  %v3119 = vunpack.c.h.b16 %v3084
  %v3120 = vunpack.c.l.b16 %v3085
  %v3121 = vunpack.c.h.b16 %v3085
  %v3122 = vunpack.c.l.b16 %v3086
  %v3123 = vunpack.c.h.b16 %v3086
  %v3124 = vunpack.c.l.b16 %v3087
  %v3125 = vunpack.c.h.b16 %v3087
  %v3126 = vunpack.c.l.b16 %v3088
  %v3127 = vunpack.c.h.b16 %v3088
  %v3128 = vunpack.c.l.b16 %v3089
  %v3129 = vunpack.c.h.b16 %v3089
  %v3130 = vunpack.c.l.b16 %v3090
  %v3131 = vunpack.c.h.b16 %v3090
  %v3132 = vunpack.c.l.b16 %v3091
  %v3133 = vunpack.c.h.b16 %v3091
  %v3134 = vunpack.c.l.b16 %v3092
  %v3135 = vunpack.c.h.b16 %v3092
  %v3136 = vunpack.c.l.b16 %v3093
  %v3137 = vunpack.c.h.b16 %v3093
  %v3138 = vunpack.c.l.b16 %v3094
  %v3139 = vunpack.c.h.b16 %v3094
  %v3140 = vunpack.c.l.b16 %v3095
  %v3141 = vunpack.c.h.b16 %v3095
  %v3142 = vunpack.c.l.b16 %v3096
  %v3143 = vunpack.c.h.b16 %v3096
  %v3144 = vunpack.c.l.b16 %v3097
  %v3145 = vunpack.c.h.b16 %v3097
  %v3146 = vpack.c.b16 %v3116, %v3114
  %v3147 = vpack.c.b16 %v3117, %v3115
  %v3148 = vpack.c.b16 %v3120, %v3118
  %v3149 = vpack.c.b16 %v3121, %v3119
  %v3150 = vpack.c.b16 %v3124, %v3122
  %v3151 = vpack.c.b16 %v3125, %v3123
  %v3152 = vpack.c.b16 %v3128, %v3126
  %v3153 = vpack.c.b16 %v3129, %v3127
  %v3154 = vpack.c.b16 %v3132, %v3130
  %v3155 = vpack.c.b16 %v3133, %v3131
  %v3156 = vpack.c.b16 %v3136, %v3134
  %v3157 = vpack.c.b16 %v3137, %v3135
  %v3158 = vpack.c.b16 %v3140, %v3138
  %v3159 = vpack.c.b16 %v3141, %v3139
  %v3160 = vpack.c.b16 %v3144, %v3142
  %v3161 = vpack.c.b16 %v3145, %v3143
  %3178 = vmatpush.bf16.msra.mxu0 %v3160
  %3179 = vmatpush.bf16.msra.mxu0 %v3158
  %3180 = vmatpush.bf16.msra.mxu0 %v3156
  %3181 = vmatpush.bf16.msra.mxu0 %v3154
  %3182 = vmatpush.bf16.msra.mxu0 %v3152
  %3183 = vmatpush.bf16.msra.mxu0 %v3150
  %3184 = vmatpush.bf16.msra.mxu0 %v3148
  %3185 = vmatpush.bf16.msra.mxu0 %v3146
  %3186 = vmatmul.bf16.gmra.mxu0 %v3074
  %v3187 = vpop.f32.mrf.mxu0
  %v3188 = vadd.f32 0.0, %v3187
  %v3189 = vpop.f32.mrf.mxu0
  %v3190 = vadd.f32 0.0, %v3189
  %3191 = vmatmul.bf16.gmra.mxu0 %v3075
  %v3192 = vpop.f32.mrf.mxu0
  %v3193 = vadd.f32 0.0, %v3192
  %v3194 = vpop.f32.mrf.mxu0
  %v3195 = vadd.f32 0.0, %v3194
  %3196 = vmatmul.bf16.gmra.mxu0 %v3076
  %v3197 = vpop.f32.mrf.mxu0
  %v3198 = vadd.f32 0.0, %v3197
  %v3199 = vpop.f32.mrf.mxu0
  %v3200 = vadd.f32 0.0, %v3199
  %3201 = vmatmul.bf16.gmra.mxu0 %v3077
  %v3202 = vpop.f32.mrf.mxu0
  %v3203 = vadd.f32 0.0, %v3202
  %v3204 = vpop.f32.mrf.mxu0
  %v3205 = vadd.f32 0.0, %v3204
  %3206 = vmatmul.bf16.gmra.mxu0 %v3078
  %v3207 = vpop.f32.mrf.mxu0
  %v3208 = vadd.f32 0.0, %v3207
  %v3209 = vpop.f32.mrf.mxu0
  %v3210 = vadd.f32 0.0, %v3209
  %3211 = vmatmul.bf16.gmra.mxu0 %v3079
  %v3212 = vpop.f32.mrf.mxu0
  %v3213 = vadd.f32 0.0, %v3212
  %v3214 = vpop.f32.mrf.mxu0
  %v3215 = vadd.f32 0.0, %v3214
  %3216 = vmatmul.bf16.gmra.mxu0 %v3080
  %v3217 = vpop.f32.mrf.mxu0
  %v3218 = vadd.f32 0.0, %v3217
  %v3219 = vpop.f32.mrf.mxu0
  %v3220 = vadd.f32 0.0, %v3219
  %3221 = vmatmul.bf16.gmra.mxu0 %v3081
  %v3222 = vpop.f32.mrf.mxu0
  %v3223 = vadd.f32 0.0, %v3222
  %v3224 = vpop.f32.mrf.mxu0
  %v3225 = vadd.f32 0.0, %v3224
  %3226 = vdwg.mxu0
  %3227 = vmatpush.bf16.msra.mxu0 %v3161
  %3228 = vmatpush.bf16.msra.mxu0 %v3159
  %3229 = vmatpush.bf16.msra.mxu0 %v3157
  %3230 = vmatpush.bf16.msra.mxu0 %v3155
  %3231 = vmatpush.bf16.msra.mxu0 %v3153
  %3232 = vmatpush.bf16.msra.mxu0 %v3151
  %3233 = vmatpush.bf16.msra.mxu0 %v3149
  %3234 = vmatpush.bf16.msra.mxu0 %v3147
  %3235 = vmatmul.bf16.gmra.mxu0 %v3074
  %v3236 = vpop.f32.mrf.mxu0
  %v3237 = vadd.f32 0.0, %v3236
  %v3238 = vpop.f32.mrf.mxu0
  %v3239 = vadd.f32 0.0, %v3238
  %3240 = vmatmul.bf16.gmra.mxu0 %v3075
  %v3241 = vpop.f32.mrf.mxu0
  %v3242 = vadd.f32 0.0, %v3241
  %v3243 = vpop.f32.mrf.mxu0
  %v3244 = vadd.f32 0.0, %v3243
  %3245 = vmatmul.bf16.gmra.mxu0 %v3076
  %v3246 = vpop.f32.mrf.mxu0
  %v3247 = vadd.f32 0.0, %v3246
  %v3248 = vpop.f32.mrf.mxu0
  %v3249 = vadd.f32 0.0, %v3248
  %3250 = vmatmul.bf16.gmra.mxu0 %v3077
  %v3251 = vpop.f32.mrf.mxu0
  %v3252 = vadd.f32 0.0, %v3251
  %v3253 = vpop.f32.mrf.mxu0
  %v3254 = vadd.f32 0.0, %v3253
  %3255 = vmatmul.bf16.gmra.mxu0 %v3078
  %v3256 = vpop.f32.mrf.mxu0
  %v3257 = vadd.f32 0.0, %v3256
  %v3258 = vpop.f32.mrf.mxu0
  %v3259 = vadd.f32 0.0, %v3258
  %3260 = vmatmul.bf16.gmra.mxu0 %v3079
  %v3261 = vpop.f32.mrf.mxu0
  %v3262 = vadd.f32 0.0, %v3261
  %v3263 = vpop.f32.mrf.mxu0
  %v3264 = vadd.f32 0.0, %v3263
  %3265 = vmatmul.bf16.gmra.mxu0 %v3080
  %v3266 = vpop.f32.mrf.mxu0
  %v3267 = vadd.f32 0.0, %v3266
  %v3268 = vpop.f32.mrf.mxu0
  %v3269 = vadd.f32 0.0, %v3268
  %3270 = vmatmul.bf16.gmra.mxu0 %v3081
  %v3271 = vpop.f32.mrf.mxu0
  %v3272 = vadd.f32 0.0, %v3271
  %v3273 = vpop.f32.mrf.mxu0
  %v3274 = vadd.f32 0.0, %v3273
  %3275 = vdwg.mxu0
  %v3276 = vld [vmem:[%s1] sm:$0xff]
  %v3277 = vld [vmem:[%s1 + $0x8] sm:$0xff]
  %v3278 = vld [vmem:[%s1 + $0x10] sm:$0xff]
  %v3279 = vld [vmem:[%s1 + $0x18] sm:$0xff]
  %v3280 = vld [vmem:[%s1 + $0x20] sm:$0xff]
  %v3281 = vld [vmem:[%s1 + $0x28] sm:$0xff]
  %v3282 = vld [vmem:[%s1 + $0x30] sm:$0xff]
  %v3283 = vld [vmem:[%s1 + $0x38] sm:$0xff]
  %v3284 = vld [vmem:[%s1 + $0x40] sm:$0xff]
  %v3285 = vld [vmem:[%s1 + $0x48] sm:$0xff]
  %v3286 = vld [vmem:[%s1 + $0x50] sm:$0xff]
  %v3287 = vld [vmem:[%s1 + $0x58] sm:$0xff]
  %v3288 = vld [vmem:[%s1 + $0x60] sm:$0xff]
  %v3289 = vld [vmem:[%s1 + $0x68] sm:$0xff]
  %v3290 = vld [vmem:[%s1 + $0x70] sm:$0xff]
  %v3291 = vld [vmem:[%s1 + $0x78] sm:$0xff]
  %v3292 = vmax.f32 %v3188, %v3237
  %3293 = vmax.xlane.f32.xlu0 %v3292
  %v3294 = vpop.xlane.xlu0 %3293
  %v3295 = vmax.f32 %v3190, %v3239
  %3296 = vmax.xlane.f32.xlu0 %v3295
  %v3297 = vpop.xlane.xlu0 %3296
  %v3298 = vmax.f32 %v3193, %v3242
  %3299 = vmax.xlane.f32.xlu0 %v3298
  %v3300 = vpop.xlane.xlu0 %3299
  %v3301 = vmax.f32 %v3195, %v3244
  %3302 = vmax.xlane.f32.xlu0 %v3301
  %v3303 = vpop.xlane.xlu0 %3302
  %v3304 = vmax.f32 %v3198, %v3247
  %3305 = vmax.xlane.f32.xlu0 %v3304
  %v3306 = vpop.xlane.xlu0 %3305
  %v3307 = vmax.f32 %v3200, %v3249
  %3308 = vmax.xlane.f32.xlu0 %v3307
  %v3309 = vpop.xlane.xlu0 %3308
  %v3310 = vmax.f32 %v3203, %v3252
  %3311 = vmax.xlane.f32.xlu0 %v3310
  %v3312 = vpop.xlane.xlu0 %3311
  %v3313 = vmax.f32 %v3205, %v3254
  %3314 = vmax.xlane.f32.xlu0 %v3313
  %v3315 = vpop.xlane.xlu0 %3314
  %v3316 = vmax.f32 %v3208, %v3257
  %3317 = vmax.xlane.f32.xlu0 %v3316
  %v3318 = vpop.xlane.xlu0 %3317
  %v3319 = vmax.f32 %v3210, %v3259
  %3320 = vmax.xlane.f32.xlu0 %v3319
  %v3321 = vpop.xlane.xlu0 %3320
  %v3322 = vmax.f32 %v3213, %v3262
  %3323 = vmax.xlane.f32.xlu0 %v3322
  %v3324 = vpop.xlane.xlu0 %3323
  %v3325 = vmax.f32 %v3215, %v3264
  %3326 = vmax.xlane.f32.xlu0 %v3325
  %v3327 = vpop.xlane.xlu0 %3326
  %v3328 = vmax.f32 %v3218, %v3267
  %3329 = vmax.xlane.f32.xlu0 %v3328
  %v3330 = vpop.xlane.xlu0 %3329
  %v3331 = vmax.f32 %v3220, %v3269
  %3332 = vmax.xlane.f32.xlu0 %v3331
  %v3333 = vpop.xlane.xlu0 %3332
  %v3334 = vmax.f32 %v3223, %v3272
  %3335 = vmax.xlane.f32.xlu0 %v3334
  %v3336 = vpop.xlane.xlu0 %3335
  %v3337 = vmax.f32 %v3225, %v3274
  %3338 = vmax.xlane.f32.xlu0 %v3337
  %v3339 = vpop.xlane.xlu0 %3338
  %v3340 = vsub.f32 %v3188, %v3294
  %v3341 = vsub.f32 %v3237, %v3294
  %v3342 = vsub.f32 %v3190, %v3297
  %v3343 = vsub.f32 %v3239, %v3297
  %v3344 = vsub.f32 %v3193, %v3300
  %v3345 = vsub.f32 %v3242, %v3300
  %v3346 = vsub.f32 %v3195, %v3303
  %v3347 = vsub.f32 %v3244, %v3303
  %v3348 = vsub.f32 %v3198, %v3306
  %v3349 = vsub.f32 %v3247, %v3306
  %v3350 = vsub.f32 %v3200, %v3309
  %v3351 = vsub.f32 %v3249, %v3309
  %v3352 = vsub.f32 %v3203, %v3312
  %v3353 = vsub.f32 %v3252, %v3312
  %v3354 = vsub.f32 %v3205, %v3315
  %v3355 = vsub.f32 %v3254, %v3315
  %v3356 = vsub.f32 %v3208, %v3318
  %v3357 = vsub.f32 %v3257, %v3318
  %v3358 = vsub.f32 %v3210, %v3321
  %v3359 = vsub.f32 %v3259, %v3321
  %v3360 = vsub.f32 %v3213, %v3324
  %v3361 = vsub.f32 %v3262, %v3324
  %v3362 = vsub.f32 %v3215, %v3327
  %v3363 = vsub.f32 %v3264, %v3327
  %v3364 = vsub.f32 %v3218, %v3330
  %v3365 = vsub.f32 %v3267, %v3330
  %v3366 = vsub.f32 %v3220, %v3333
  %v3367 = vsub.f32 %v3269, %v3333
  %v3368 = vsub.f32 %v3223, %v3336
  %v3369 = vsub.f32 %v3272, %v3336
  %v3370 = vsub.f32 %v3225, %v3339
  %v3371 = vsub.f32 %v3274, %v3339
  %v3372 = vmul.f32 %v3340, 1.442695
  %v3373 = vpow.pop %v3372
  %v3374 = vmul.f32 %v3341, 1.442695
  %v3375 = vpow.pop %v3374
  %v3376 = vmul.f32 %v3342, 1.442695
  %v3377 = vpow.pop %v3376
  %v3378 = vmul.f32 %v3343, 1.442695
  %v3379 = vpow.pop %v3378
  %v3380 = vmul.f32 %v3344, 1.442695
  %v3381 = vpow.pop %v3380
  %v3382 = vmul.f32 %v3345, 1.442695
  %v3383 = vpow.pop %v3382
  %v3384 = vmul.f32 %v3346, 1.442695
  %v3385 = vpow.pop %v3384
  %v3386 = vmul.f32 %v3347, 1.442695
  %v3387 = vpow.pop %v3386
  %v3388 = vmul.f32 %v3348, 1.442695
  %v3389 = vpow.pop %v3388
  %v3390 = vmul.f32 %v3349, 1.442695
  %v3391 = vpow.pop %v3390
  %v3392 = vmul.f32 %v3350, 1.442695
  %v3393 = vpow.pop %v3392
  %v3394 = vmul.f32 %v3351, 1.442695
  %v3395 = vpow.pop %v3394
  %v3396 = vmul.f32 %v3352, 1.442695
  %v3397 = vpow.pop %v3396
  %v3398 = vmul.f32 %v3353, 1.442695
  %v3399 = vpow.pop %v3398
  %v3400 = vmul.f32 %v3354, 1.442695
  %v3401 = vpow.pop %v3400
  %v3402 = vmul.f32 %v3355, 1.442695
  %v3403 = vpow.pop %v3402
  %v3404 = vmul.f32 %v3356, 1.442695
  %v3405 = vpow.pop %v3404
  %v3406 = vmul.f32 %v3357, 1.442695
  %v3407 = vpow.pop %v3406
  %v3408 = vmul.f32 %v3358, 1.442695
  %v3409 = vpow.pop %v3408
  %v3410 = vmul.f32 %v3359, 1.442695
  %v3411 = vpow.pop %v3410
  %v3412 = vmul.f32 %v3360, 1.442695
  %v3413 = vpow.pop %v3412
  %v3414 = vmul.f32 %v3361, 1.442695
  %v3415 = vpow.pop %v3414
  %v3416 = vmul.f32 %v3362, 1.442695
  %v3417 = vpow.pop %v3416
  %v3418 = vmul.f32 %v3363, 1.442695
  %v3419 = vpow.pop %v3418
  %v3420 = vmul.f32 %v3364, 1.442695
  %v3421 = vpow.pop %v3420
  %v3422 = vmul.f32 %v3365, 1.442695
  %v3423 = vpow.pop %v3422
  %v3424 = vmul.f32 %v3366, 1.442695
  %v3425 = vpow.pop %v3424
  %v3426 = vmul.f32 %v3367, 1.442695
  %v3427 = vpow.pop %v3426
  %v3428 = vmul.f32 %v3368, 1.442695
  %v3429 = vpow.pop %v3428
  %v3430 = vmul.f32 %v3369, 1.442695
  %v3431 = vpow.pop %v3430
  %v3432 = vmul.f32 %v3370, 1.442695
  %v3433 = vpow.pop %v3432
  %v3434 = vmul.f32 %v3371, 1.442695
  %v3435 = vpow.pop %v3434
  %v3436 = vadd.f32 %v3373, %v3375
  %3437 = vadd.xlane.f32.xlu0 %v3436
  %v3438 = vpop.xlane.xlu0 %3437
  %v3439 = vadd.f32 %v3377, %v3379
  %3440 = vadd.xlane.f32.xlu0 %v3439
  %v3441 = vpop.xlane.xlu0 %3440
  %v3442 = vadd.f32 %v3381, %v3383
  %3443 = vadd.xlane.f32.xlu0 %v3442
  %v3444 = vpop.xlane.xlu0 %3443
  %v3445 = vadd.f32 %v3385, %v3387
  %3446 = vadd.xlane.f32.xlu0 %v3445
  %v3447 = vpop.xlane.xlu0 %3446
  %v3448 = vadd.f32 %v3389, %v3391
  %3449 = vadd.xlane.f32.xlu0 %v3448
  %v3450 = vpop.xlane.xlu0 %3449
  %v3451 = vadd.f32 %v3393, %v3395
  %3452 = vadd.xlane.f32.xlu0 %v3451
  %v3453 = vpop.xlane.xlu0 %3452
  %v3454 = vadd.f32 %v3397, %v3399
  %3455 = vadd.xlane.f32.xlu0 %v3454
  %v3456 = vpop.xlane.xlu0 %3455
  %v3457 = vadd.f32 %v3401, %v3403
  %3458 = vadd.xlane.f32.xlu0 %v3457
  %v3459 = vpop.xlane.xlu0 %3458
  %v3460 = vadd.f32 %v3405, %v3407
  %3461 = vadd.xlane.f32.xlu0 %v3460
  %v3462 = vpop.xlane.xlu0 %3461
  %v3463 = vadd.f32 %v3409, %v3411
  %3464 = vadd.xlane.f32.xlu0 %v3463
  %v3465 = vpop.xlane.xlu0 %3464
  %v3466 = vadd.f32 %v3413, %v3415
  %3467 = vadd.xlane.f32.xlu0 %v3466
  %v3468 = vpop.xlane.xlu0 %3467
  %v3469 = vadd.f32 %v3417, %v3419
  %3470 = vadd.xlane.f32.xlu0 %v3469
  %v3471 = vpop.xlane.xlu0 %3470
  %v3472 = vadd.f32 %v3421, %v3423
  %3473 = vadd.xlane.f32.xlu0 %v3472
  %v3474 = vpop.xlane.xlu0 %3473
  %v3475 = vadd.f32 %v3425, %v3427
  %3476 = vadd.xlane.f32.xlu0 %v3475
  %v3477 = vpop.xlane.xlu0 %3476
  %v3478 = vadd.f32 %v3429, %v3431
  %3479 = vadd.xlane.f32.xlu0 %v3478
  %v3480 = vpop.xlane.xlu0 %3479
  %v3481 = vadd.f32 %v3433, %v3435
  %3482 = vadd.xlane.f32.xlu0 %v3481
  %v3483 = vpop.xlane.xlu0 %3482
  %v3484 = vlog2.pop %v3438
  %v3485 = vmul.f32 %v3484, 0.6931472
  %v3486 = vlog2.pop %v3441
  %v3487 = vmul.f32 %v3486, 0.6931472
  %v3488 = vlog2.pop %v3444
  %v3489 = vmul.f32 %v3488, 0.6931472
  %v3490 = vlog2.pop %v3447
  %v3491 = vmul.f32 %v3490, 0.6931472
  %v3492 = vlog2.pop %v3450
  %v3493 = vmul.f32 %v3492, 0.6931472
  %v3494 = vlog2.pop %v3453
  %v3495 = vmul.f32 %v3494, 0.6931472
  %v3496 = vlog2.pop %v3456
  %v3497 = vmul.f32 %v3496, 0.6931472
  %v3498 = vlog2.pop %v3459
  %v3499 = vmul.f32 %v3498, 0.6931472
  %v3500 = vlog2.pop %v3462
  %v3501 = vmul.f32 %v3500, 0.6931472
  %v3502 = vlog2.pop %v3465
  %v3503 = vmul.f32 %v3502, 0.6931472
  %v3504 = vlog2.pop %v3468
  %v3505 = vmul.f32 %v3504, 0.6931472
  %v3506 = vlog2.pop %v3471
  %v3507 = vmul.f32 %v3506, 0.6931472
  %v3508 = vlog2.pop %v3474
  %v3509 = vmul.f32 %v3508, 0.6931472
  %v3510 = vlog2.pop %v3477
  %v3511 = vmul.f32 %v3510, 0.6931472
  %v3512 = vlog2.pop %v3480
  %v3513 = vmul.f32 %v3512, 0.6931472
  %v3514 = vlog2.pop %v3483
  %v3515 = vmul.f32 %v3514, 0.6931472
  %v3516 = vadd.f32 %v3294, %v3485
  %v3517 = vadd.f32 %v3297, %v3487
  %v3518 = vadd.f32 %v3300, %v3489
  %v3519 = vadd.f32 %v3303, %v3491
  %v3520 = vadd.f32 %v3306, %v3493
  %v3521 = vadd.f32 %v3309, %v3495
  %v3522 = vadd.f32 %v3312, %v3497
  %v3523 = vadd.f32 %v3315, %v3499
  %v3524 = vadd.f32 %v3318, %v3501
  %v3525 = vadd.f32 %v3321, %v3503
  %v3526 = vadd.f32 %v3324, %v3505
  %v3527 = vadd.f32 %v3327, %v3507
  %v3528 = vadd.f32 %v3330, %v3509
  %v3529 = vadd.f32 %v3333, %v3511
  %v3530 = vadd.f32 %v3336, %v3513
  %v3531 = vadd.f32 %v3339, %v3515
  %v3532 = vadd.s32 %v929, 128
  %3533 = vset.pattern.permute.xlu0 0
  %3534 = vperm.xlu0 %3533, %v3276
  %v3535 = vpop.permute.xlu0 %3534
  %3536 = vset.pattern.permute.xlu0 0
  %3537 = vperm.xlu0 %3536, %v3277
  %v3538 = vpop.permute.xlu0 %3537
  %3539 = vset.pattern.permute.xlu0 0
  %3540 = vperm.xlu0 %3539, %v3278
  %v3541 = vpop.permute.xlu0 %3540
  %3542 = vset.pattern.permute.xlu0 0
  %3543 = vperm.xlu0 %3542, %v3279
  %v3544 = vpop.permute.xlu0 %3543
  %3545 = vset.pattern.permute.xlu0 0
  %3546 = vperm.xlu0 %3545, %v3280
  %v3547 = vpop.permute.xlu0 %3546
  %3548 = vset.pattern.permute.xlu0 0
  %3549 = vperm.xlu0 %3548, %v3281
  %v3550 = vpop.permute.xlu0 %3549
  %3551 = vset.pattern.permute.xlu0 0
  %3552 = vperm.xlu0 %3551, %v3282
  %v3553 = vpop.permute.xlu0 %3552
  %3554 = vset.pattern.permute.xlu0 0
  %3555 = vperm.xlu0 %3554, %v3283
  %v3556 = vpop.permute.xlu0 %3555
  %3557 = vset.pattern.permute.xlu0 0
  %3558 = vperm.xlu0 %3557, %v3284
  %v3559 = vpop.permute.xlu0 %3558
  %3560 = vset.pattern.permute.xlu0 0
  %3561 = vperm.xlu0 %3560, %v3285
  %v3562 = vpop.permute.xlu0 %3561
  %3563 = vset.pattern.permute.xlu0 0
  %3564 = vperm.xlu0 %3563, %v3286
  %v3565 = vpop.permute.xlu0 %3564
  %3566 = vset.pattern.permute.xlu0 0
  %3567 = vperm.xlu0 %3566, %v3287
  %v3568 = vpop.permute.xlu0 %3567
  %3569 = vset.pattern.permute.xlu0 0
  %3570 = vperm.xlu0 %3569, %v3288
  %v3571 = vpop.permute.xlu0 %3570
  %3572 = vset.pattern.permute.xlu0 0
  %3573 = vperm.xlu0 %3572, %v3289
  %v3574 = vpop.permute.xlu0 %3573
  %3575 = vset.pattern.permute.xlu0 0
  %3576 = vperm.xlu0 %3575, %v3290
  %v3577 = vpop.permute.xlu0 %3576
  %3578 = vset.pattern.permute.xlu0 0
  %3579 = vperm.xlu0 %3578, %v3291
  %v3580 = vpop.permute.xlu0 %3579
  %vm3581 = vcmp.eq.s32.totalorder %v929, %v3535
  %vm3582 = vcmp.eq.s32.totalorder %v3532, %v3535
  %vm3583 = vcmp.eq.s32.totalorder %v929, %v3538
  %vm3584 = vcmp.eq.s32.totalorder %v3532, %v3538
  %vm3585 = vcmp.eq.s32.totalorder %v929, %v3541
  %vm3586 = vcmp.eq.s32.totalorder %v3532, %v3541
  %vm3587 = vcmp.eq.s32.totalorder %v929, %v3544
  %vm3588 = vcmp.eq.s32.totalorder %v3532, %v3544
  %vm3589 = vcmp.eq.s32.totalorder %v929, %v3547
  %vm3590 = vcmp.eq.s32.totalorder %v3532, %v3547
  %vm3591 = vcmp.eq.s32.totalorder %v929, %v3550
  %vm3592 = vcmp.eq.s32.totalorder %v3532, %v3550
  %vm3593 = vcmp.eq.s32.totalorder %v929, %v3553
  %vm3594 = vcmp.eq.s32.totalorder %v3532, %v3553
  %vm3595 = vcmp.eq.s32.totalorder %v929, %v3556
  %vm3596 = vcmp.eq.s32.totalorder %v3532, %v3556
  %vm3597 = vcmp.eq.s32.totalorder %v929, %v3559
  %vm3598 = vcmp.eq.s32.totalorder %v3532, %v3559
  %vm3599 = vcmp.eq.s32.totalorder %v929, %v3562
  %vm3600 = vcmp.eq.s32.totalorder %v3532, %v3562
  %vm3601 = vcmp.eq.s32.totalorder %v929, %v3565
  %vm3602 = vcmp.eq.s32.totalorder %v3532, %v3565
  %vm3603 = vcmp.eq.s32.totalorder %v929, %v3568
  %vm3604 = vcmp.eq.s32.totalorder %v3532, %v3568
  %vm3605 = vcmp.eq.s32.totalorder %v929, %v3571
  %vm3606 = vcmp.eq.s32.totalorder %v3532, %v3571
  %vm3607 = vcmp.eq.s32.totalorder %v929, %v3574
  %vm3608 = vcmp.eq.s32.totalorder %v3532, %v3574
  %vm3609 = vcmp.eq.s32.totalorder %v929, %v3577
  %vm3610 = vcmp.eq.s32.totalorder %v3532, %v3577
  %vm3611 = vcmp.eq.s32.totalorder %v929, %v3580
  %vm3612 = vcmp.eq.s32.totalorder %v3532, %v3580
  %v3613 = vsel %vm3581, %v3188, 0.0
  %v3614 = vsel %vm3582, %v3237, 0.0
  %v3615 = vsel %vm3583, %v3190, 0.0
  %v3616 = vsel %vm3584, %v3239, 0.0
  %v3617 = vsel %vm3585, %v3193, 0.0
  %v3618 = vsel %vm3586, %v3242, 0.0
  %v3619 = vsel %vm3587, %v3195, 0.0
  %v3620 = vsel %vm3588, %v3244, 0.0
  %v3621 = vsel %vm3589, %v3198, 0.0
  %v3622 = vsel %vm3590, %v3247, 0.0
  %v3623 = vsel %vm3591, %v3200, 0.0
  %v3624 = vsel %vm3592, %v3249, 0.0
  %v3625 = vsel %vm3593, %v3203, 0.0
  %v3626 = vsel %vm3594, %v3252, 0.0
  %v3627 = vsel %vm3595, %v3205, 0.0
  %v3628 = vsel %vm3596, %v3254, 0.0
  %v3629 = vsel %vm3597, %v3208, 0.0
  %v3630 = vsel %vm3598, %v3257, 0.0
  %v3631 = vsel %vm3599, %v3210, 0.0
  %v3632 = vsel %vm3600, %v3259, 0.0
  %v3633 = vsel %vm3601, %v3213, 0.0
  %v3634 = vsel %vm3602, %v3262, 0.0
  %v3635 = vsel %vm3603, %v3215, 0.0
  %v3636 = vsel %vm3604, %v3264, 0.0
  %v3637 = vsel %vm3605, %v3218, 0.0
  %v3638 = vsel %vm3606, %v3267, 0.0
  %v3639 = vsel %vm3607, %v3220, 0.0
  %v3640 = vsel %vm3608, %v3269, 0.0
  %v3641 = vsel %vm3609, %v3223, 0.0
  %v3642 = vsel %vm3610, %v3272, 0.0
  %v3643 = vsel %vm3611, %v3225, 0.0
  %v3644 = vsel %vm3612, %v3274, 0.0
  %v3645 = vadd.f32 %v3613, %v3614
  %3646 = vadd.xlane.f32.xlu0 %v3645
  %v3647 = vpop.xlane.xlu0 %3646
  %v3648 = vadd.f32 %v3615, %v3616
  %3649 = vadd.xlane.f32.xlu0 %v3648
  %v3650 = vpop.xlane.xlu0 %3649
  %v3651 = vadd.f32 %v3617, %v3618
  %3652 = vadd.xlane.f32.xlu0 %v3651
  %v3653 = vpop.xlane.xlu0 %3652
  %v3654 = vadd.f32 %v3619, %v3620
  %3655 = vadd.xlane.f32.xlu0 %v3654
  %v3656 = vpop.xlane.xlu0 %3655
  %v3657 = vadd.f32 %v3621, %v3622
  %3658 = vadd.xlane.f32.xlu0 %v3657
  %v3659 = vpop.xlane.xlu0 %3658
  %v3660 = vadd.f32 %v3623, %v3624
  %3661 = vadd.xlane.f32.xlu0 %v3660
  %v3662 = vpop.xlane.xlu0 %3661
  %v3663 = vadd.f32 %v3625, %v3626
  %3664 = vadd.xlane.f32.xlu0 %v3663
  %v3665 = vpop.xlane.xlu0 %3664
  %v3666 = vadd.f32 %v3627, %v3628
  %3667 = vadd.xlane.f32.xlu0 %v3666
  %v3668 = vpop.xlane.xlu0 %3667
  %v3669 = vadd.f32 %v3629, %v3630
  %3670 = vadd.xlane.f32.xlu0 %v3669
  %v3671 = vpop.xlane.xlu0 %3670
  %v3672 = vadd.f32 %v3631, %v3632
  %3673 = vadd.xlane.f32.xlu0 %v3672
  %v3674 = vpop.xlane.xlu0 %3673
  %v3675 = vadd.f32 %v3633, %v3634
  %3676 = vadd.xlane.f32.xlu0 %v3675
  %v3677 = vpop.xlane.xlu0 %3676
  %v3678 = vadd.f32 %v3635, %v3636
  %3679 = vadd.xlane.f32.xlu0 %v3678
  %v3680 = vpop.xlane.xlu0 %3679
  %v3681 = vadd.f32 %v3637, %v3638
  %3682 = vadd.xlane.f32.xlu0 %v3681
  %v3683 = vpop.xlane.xlu0 %3682
  %v3684 = vadd.f32 %v3639, %v3640
  %3685 = vadd.xlane.f32.xlu0 %v3684
  %v3686 = vpop.xlane.xlu0 %3685
  %v3687 = vadd.f32 %v3641, %v3642
  %3688 = vadd.xlane.f32.xlu0 %v3687
  %v3689 = vpop.xlane.xlu0 %3688
  %v3690 = vadd.f32 %v3643, %v3644
  %3691 = vadd.xlane.f32.xlu0 %v3690
  %v3692 = vpop.xlane.xlu0 %3691
  %v3693 = vsub.f32 %v3516, %v3647
  %v3694 = vsub.f32 %v3517, %v3650
  %v3695 = vsub.f32 %v3518, %v3653
  %v3696 = vsub.f32 %v3519, %v3656
  %v3697 = vsub.f32 %v3520, %v3659
  %v3698 = vsub.f32 %v3521, %v3662
  %v3699 = vsub.f32 %v3522, %v3665
  %v3700 = vsub.f32 %v3523, %v3668
  %v3701 = vsub.f32 %v3524, %v3671
  %v3702 = vsub.f32 %v3525, %v3674
  %v3703 = vsub.f32 %v3526, %v3677
  %v3704 = vsub.f32 %v3527, %v3680
  %v3705 = vsub.f32 %v3528, %v3683
  %v3706 = vsub.f32 %v3529, %v3686
  %v3707 = vsub.f32 %v3530, %v3689
  %v3708 = vsub.f32 %v3531, %v3692
  %vm3709 = vcmp.ne.s32.totalorder %v3276, 4294967196
  %vm3710 = vcmp.ne.s32.totalorder %v3277, 4294967196
  %vm3711 = vcmp.ne.s32.totalorder %v3278, 4294967196
  %vm3712 = vcmp.ne.s32.totalorder %v3279, 4294967196
  %vm3713 = vcmp.ne.s32.totalorder %v3280, 4294967196
  %vm3714 = vcmp.ne.s32.totalorder %v3281, 4294967196
  %vm3715 = vcmp.ne.s32.totalorder %v3282, 4294967196
  %vm3716 = vcmp.ne.s32.totalorder %v3283, 4294967196
  %vm3717 = vcmp.ne.s32.totalorder %v3284, 4294967196
  %vm3718 = vcmp.ne.s32.totalorder %v3285, 4294967196
  %vm3719 = vcmp.ne.s32.totalorder %v3286, 4294967196
  %vm3720 = vcmp.ne.s32.totalorder %v3287, 4294967196
  %vm3721 = vcmp.ne.s32.totalorder %v3288, 4294967196
  %vm3722 = vcmp.ne.s32.totalorder %v3289, 4294967196
  %vm3723 = vcmp.ne.s32.totalorder %v3290, 4294967196
  %vm3724 = vcmp.ne.s32.totalorder %v3291, 4294967196
  %v3725 = vsel %vm3709, 1, 0
  %v3726 = vsel %vm3710, 1, 0
  %v3727 = vsel %vm3711, 1, 0
  %v3728 = vsel %vm3712, 1, 0
  %v3729 = vsel %vm3713, 1, 0
  %v3730 = vsel %vm3714, 1, 0
  %v3731 = vsel %vm3715, 1, 0
  %v3732 = vsel %vm3716, 1, 0
  %v3733 = vsel %vm3717, 1, 0
  %v3734 = vsel %vm3718, 1, 0
  %v3735 = vsel %vm3719, 1, 0
  %v3736 = vsel %vm3720, 1, 0
  %v3737 = vsel %vm3721, 1, 0
  %v3738 = vsel %vm3722, 1, 0
  %v3739 = vsel %vm3723, 1, 0
  %v3740 = vsel %vm3724, 1, 0
  %v3741 = vcvt.s32.f32 %v3725
  %v3742 = vcvt.s32.f32 %v3726
  %v3743 = vcvt.s32.f32 %v3727
  %v3744 = vcvt.s32.f32 %v3728
  %v3745 = vcvt.s32.f32 %v3729
  %v3746 = vcvt.s32.f32 %v3730
  %v3747 = vcvt.s32.f32 %v3731
  %v3748 = vcvt.s32.f32 %v3732
  %v3749 = vcvt.s32.f32 %v3733
  %v3750 = vcvt.s32.f32 %v3734
  %v3751 = vcvt.s32.f32 %v3735
  %v3752 = vcvt.s32.f32 %v3736
  %v3753 = vcvt.s32.f32 %v3737
  %v3754 = vcvt.s32.f32 %v3738
  %v3755 = vcvt.s32.f32 %v3739
  %v3756 = vcvt.s32.f32 %v3740
  %v3757 = vmul.f32 %v3693, %v3741
  %v3758 = vmul.f32 %v3694, %v3742
  %v3759 = vmul.f32 %v3695, %v3743
  %v3760 = vmul.f32 %v3696, %v3744
  %v3761 = vmul.f32 %v3697, %v3745
  %v3762 = vmul.f32 %v3698, %v3746
  %v3763 = vmul.f32 %v3699, %v3747
  %v3764 = vmul.f32 %v3700, %v3748
  %v3765 = vmul.f32 %v3701, %v3749
  %v3766 = vmul.f32 %v3702, %v3750
  %v3767 = vmul.f32 %v3703, %v3751
  %v3768 = vmul.f32 %v3704, %v3752
  %v3769 = vmul.f32 %v3705, %v3753
  %v3770 = vmul.f32 %v3706, %v3754
  %v3771 = vmul.f32 %v3707, %v3755
  %v3772 = vmul.f32 %v3708, %v3756
  %vm3773 = vcmask 7168
  %v3774 = vsel %vm3773, %v3757, 0.0
  %v3775 = vsel %vm3773, %v3758, 0.0
  %v3776 = vadd.f32 %v3774, %v3775
  %v3777 = vsel %vm3773, %v3759, 0.0
  %v3778 = vadd.f32 %v3776, %v3777
  %v3779 = vsel %vm3773, %v3760, 0.0
  %v3780 = vadd.f32 %v3778, %v3779
  %v3781 = vsel %vm3773, %v3761, 0.0
  %v3782 = vadd.f32 %v3780, %v3781
  %v3783 = vsel %vm3773, %v3762, 0.0
  %v3784 = vadd.f32 %v3782, %v3783
  %v3785 = vsel %vm3773, %v3763, 0.0
  %v3786 = vadd.f32 %v3784, %v3785
  %v3787 = vsel %vm3773, %v3764, 0.0
  %v3788 = vadd.f32 %v3786, %v3787
  %v3789 = vsel %vm3773, %v3765, 0.0
  %v3790 = vadd.f32 %v3788, %v3789
  %v3791 = vsel %vm3773, %v3766, 0.0
  %v3792 = vadd.f32 %v3790, %v3791
  %v3793 = vsel %vm3773, %v3767, 0.0
  %v3794 = vadd.f32 %v3792, %v3793
  %v3795 = vsel %vm3773, %v3768, 0.0
  %v3796 = vadd.f32 %v3794, %v3795
  %v3797 = vsel %vm3773, %v3769, 0.0
  %v3798 = vadd.f32 %v3796, %v3797
  %v3799 = vsel %vm3773, %v3770, 0.0
  %v3800 = vadd.f32 %v3798, %v3799
  %v3801 = vsel %vm3773, %v3771, 0.0
  %v3802 = vadd.f32 %v3800, %v3801
  %v3803 = vsel %vm3773, %v3772, 0.0
  %v3804 = vadd.f32 %v3802, %v3803
  %3805 = vadd.xlane.f32.xlu0 %v3804
  %v3806 = vpop.xlane.xlu0 %3805
  %v3807 = vrot.slane %v3806, 4
  %v3808 = vadd.f32 %v3806, %v3807
  %v3809 = vrot.slane %v3808, 2
  %v3810 = vadd.f32 %v3808, %v3809
  %v3811 = vrot.slane %v3810, 1
  %v3812 = vadd.f32 %v3810, %v3811
  %s3813 = vtos %v3812
  %v3814 = vsel %vm3773, %v3741, 0.0
  %v3815 = vsel %vm3773, %v3742, 0.0
  %v3816 = vadd.f32 %v3814, %v3815
  %v3817 = vsel %vm3773, %v3743, 0.0
  %v3818 = vadd.f32 %v3816, %v3817
  %v3819 = vsel %vm3773, %v3744, 0.0
  %v3820 = vadd.f32 %v3818, %v3819
  %v3821 = vsel %vm3773, %v3745, 0.0
  %v3822 = vadd.f32 %v3820, %v3821
  %v3823 = vsel %vm3773, %v3746, 0.0
  %v3824 = vadd.f32 %v3822, %v3823
  %v3825 = vsel %vm3773, %v3747, 0.0
  %v3826 = vadd.f32 %v3824, %v3825
  %v3827 = vsel %vm3773, %v3748, 0.0
  %v3828 = vadd.f32 %v3826, %v3827
  %v3829 = vsel %vm3773, %v3749, 0.0
  %v3830 = vadd.f32 %v3828, %v3829
  %v3831 = vsel %vm3773, %v3750, 0.0
  %v3832 = vadd.f32 %v3830, %v3831
  %v3833 = vsel %vm3773, %v3751, 0.0
  %v3834 = vadd.f32 %v3832, %v3833
  %v3835 = vsel %vm3773, %v3752, 0.0
  %v3836 = vadd.f32 %v3834, %v3835
  %v3837 = vsel %vm3773, %v3753, 0.0
  %v3838 = vadd.f32 %v3836, %v3837
  %v3839 = vsel %vm3773, %v3754, 0.0
  %v3840 = vadd.f32 %v3838, %v3839
  %v3841 = vsel %vm3773, %v3755, 0.0
  %v3842 = vadd.f32 %v3840, %v3841
  %v3843 = vsel %vm3773, %v3756, 0.0
  %v3844 = vadd.f32 %v3842, %v3843
  %3845 = vadd.xlane.f32.xlu0 %v3844
  %v3846 = vpop.xlane.xlu0 %3845
  %v3847 = vrot.slane %v3846, 4
  %v3848 = vadd.f32 %v3846, %v3847
  %v3849 = vrot.slane %v3848, 2
  %v3850 = vadd.f32 %v3848, %v3849
  %v3851 = vrot.slane %v3850, 1
  %v3852 = vadd.f32 %v3850, %v3851
  %s3853 = vtos %v3852
  %p3854 = scmp.gt.f32.partialorder %s3853, 0.0
  %s3855 = smax.f32 %s3853, 1.0
  %v3856 = vstv %s3855
  %v3857 = vrcp.pop %v3856
  %v3858 = vmul.f32 %v3856, %v3857
  %v3859 = vsub.f32 1.0, %v3858
  %v3860 = vmul.f32 %v3857, %v3859
  %v3861 = vadd.f32 %v3857, %v3860
  %vm3862 = vweird.f32 %v3856
  %vm3863 = vweird.f32 %v3857
  %vm3864 = vmor %vm3862, %vm3863
  %v3865 = vsel %vm3864, %v3857, %v3861
  %v3866 = vand.u32 2147483647, %v3856
  %vm3867 = vcmp.eq.f32.partialorder %v3866, 8.507059e+37
  %v3868 = vand.u32 %v3856, 2147483648
  %v3869 = vor.u32 1.1754944e-38, %v3868
  %v3870 = vsel %vm3867, %v3869, %v3865
  %s3871 = vtos %v3870
  %s3872 = smul.f32 %s3813, %s3871
  %s3873 = scalar_select %p3854, %s3872, 0.0
  %v3874 = vld [vmem:[%s2 + $0x4] sm:$0xff]
  %v3875 = vld [vmem:[%s2 + $0x10] sm:$0xff]
  %v3876 = vld [vmem:[%s2 + $0x1c] sm:$0xff]
  %v3877 = vld [vmem:[%s2 + $0x28] sm:$0xff]
  %v3878 = vld [vmem:[%s2 + $0x34] sm:$0xff]
  %v3879 = vld [vmem:[%s2 + $0x40] sm:$0xff]
  %v3880 = vld [vmem:[%s2 + $0x4c] sm:$0xff]
  %v3881 = vld [vmem:[%s2 + $0x58] sm:$0xff]
  %v3882 = vld [vmem:[%s2 + $0x64] sm:$0xff]
  %v3883 = vld [vmem:[%s2 + $0x70] sm:$0xff]
  %v3884 = vld [vmem:[%s2 + $0x7c] sm:$0xff]
  %v3885 = vld [vmem:[%s2 + $0x88] sm:$0xff]
  %v3886 = vld [vmem:[%s2 + $0x94] sm:$0xff]
  %v3887 = vld [vmem:[%s2 + $0xa0] sm:$0xff]
  %v3888 = vld [vmem:[%s2 + $0xac] sm:$0xff]
  %v3889 = vld [vmem:[%s2 + $0xb8] sm:$0xff]
  %v3906 = vunpack.c.l.b16 %v3874
  %v3907 = vunpack.c.h.b16 %v3874
  %v3908 = vunpack.c.l.b16 %v3875
  %v3909 = vunpack.c.h.b16 %v3875
  %v3910 = vunpack.c.l.b16 %v3876
  %v3911 = vunpack.c.h.b16 %v3876
  %v3912 = vunpack.c.l.b16 %v3877
  %v3913 = vunpack.c.h.b16 %v3877
  %v3914 = vunpack.c.l.b16 %v3878
  %v3915 = vunpack.c.h.b16 %v3878
  %v3916 = vunpack.c.l.b16 %v3879
  %v3917 = vunpack.c.h.b16 %v3879
  %v3918 = vunpack.c.l.b16 %v3880
  %v3919 = vunpack.c.h.b16 %v3880
  %v3920 = vunpack.c.l.b16 %v3881
  %v3921 = vunpack.c.h.b16 %v3881
  %v3922 = vunpack.c.l.b16 %v3882
  %v3923 = vunpack.c.h.b16 %v3882
  %v3924 = vunpack.c.l.b16 %v3883
  %v3925 = vunpack.c.h.b16 %v3883
  %v3926 = vunpack.c.l.b16 %v3884
  %v3927 = vunpack.c.h.b16 %v3884
  %v3928 = vunpack.c.l.b16 %v3885
  %v3929 = vunpack.c.h.b16 %v3885
  %v3930 = vunpack.c.l.b16 %v3886
  %v3931 = vunpack.c.h.b16 %v3886
  %v3932 = vunpack.c.l.b16 %v3887
  %v3933 = vunpack.c.h.b16 %v3887
  %v3934 = vunpack.c.l.b16 %v3888
  %v3935 = vunpack.c.h.b16 %v3888
  %v3936 = vunpack.c.l.b16 %v3889
  %v3937 = vunpack.c.h.b16 %v3889
  %v3938 = vpack.c.b16 %v3908, %v3906
  %v3939 = vpack.c.b16 %v3909, %v3907
  %v3940 = vpack.c.b16 %v3912, %v3910
  %v3941 = vpack.c.b16 %v3913, %v3911
  %v3942 = vpack.c.b16 %v3916, %v3914
  %v3943 = vpack.c.b16 %v3917, %v3915
  %v3944 = vpack.c.b16 %v3920, %v3918
  %v3945 = vpack.c.b16 %v3921, %v3919
  %v3946 = vpack.c.b16 %v3924, %v3922
  %v3947 = vpack.c.b16 %v3925, %v3923
  %v3948 = vpack.c.b16 %v3928, %v3926
  %v3949 = vpack.c.b16 %v3929, %v3927
  %v3950 = vpack.c.b16 %v3932, %v3930
  %v3951 = vpack.c.b16 %v3933, %v3931
  %v3952 = vpack.c.b16 %v3936, %v3934
  %v3953 = vpack.c.b16 %v3937, %v3935
  %3970 = vmatpush.bf16.msra.mxu0 %v3952
  %3971 = vmatpush.bf16.msra.mxu0 %v3950
  %3972 = vmatpush.bf16.msra.mxu0 %v3948
  %3973 = vmatpush.bf16.msra.mxu0 %v3946
  %3974 = vmatpush.bf16.msra.mxu0 %v3944
  %3975 = vmatpush.bf16.msra.mxu0 %v3942
  %3976 = vmatpush.bf16.msra.mxu0 %v3940
  %3977 = vmatpush.bf16.msra.mxu0 %v3938
  %3978 = vmatmul.bf16.gmra.mxu0 %v3074
  %v3979 = vpop.f32.mrf.mxu0
  %v3980 = vadd.f32 0.0, %v3979
  %v3981 = vpop.f32.mrf.mxu0
  %v3982 = vadd.f32 0.0, %v3981
  %3983 = vmatmul.bf16.gmra.mxu0 %v3075
  %v3984 = vpop.f32.mrf.mxu0
  %v3985 = vadd.f32 0.0, %v3984
  %v3986 = vpop.f32.mrf.mxu0
  %v3987 = vadd.f32 0.0, %v3986
  %3988 = vmatmul.bf16.gmra.mxu0 %v3076
  %v3989 = vpop.f32.mrf.mxu0
  %v3990 = vadd.f32 0.0, %v3989
  %v3991 = vpop.f32.mrf.mxu0
  %v3992 = vadd.f32 0.0, %v3991
  %3993 = vmatmul.bf16.gmra.mxu0 %v3077
  %v3994 = vpop.f32.mrf.mxu0
  %v3995 = vadd.f32 0.0, %v3994
  %v3996 = vpop.f32.mrf.mxu0
  %v3997 = vadd.f32 0.0, %v3996
  %3998 = vmatmul.bf16.gmra.mxu0 %v3078
  %v3999 = vpop.f32.mrf.mxu0
  %v4000 = vadd.f32 0.0, %v3999
  %v4001 = vpop.f32.mrf.mxu0
  %v4002 = vadd.f32 0.0, %v4001
  %4003 = vmatmul.bf16.gmra.mxu0 %v3079
  %v4004 = vpop.f32.mrf.mxu0
  %v4005 = vadd.f32 0.0, %v4004
  %v4006 = vpop.f32.mrf.mxu0
  %v4007 = vadd.f32 0.0, %v4006
  %4008 = vmatmul.bf16.gmra.mxu0 %v3080
  %v4009 = vpop.f32.mrf.mxu0
  %v4010 = vadd.f32 0.0, %v4009
  %v4011 = vpop.f32.mrf.mxu0
  %v4012 = vadd.f32 0.0, %v4011
  %4013 = vmatmul.bf16.gmra.mxu0 %v3081
  %v4014 = vpop.f32.mrf.mxu0
  %v4015 = vadd.f32 0.0, %v4014
  %v4016 = vpop.f32.mrf.mxu0
  %v4017 = vadd.f32 0.0, %v4016
  %4018 = vdwg.mxu0
  %4019 = vmatpush.bf16.msra.mxu0 %v3953
  %4020 = vmatpush.bf16.msra.mxu0 %v3951
  %4021 = vmatpush.bf16.msra.mxu0 %v3949
  %4022 = vmatpush.bf16.msra.mxu0 %v3947
  %4023 = vmatpush.bf16.msra.mxu0 %v3945
  %4024 = vmatpush.bf16.msra.mxu0 %v3943
  %4025 = vmatpush.bf16.msra.mxu0 %v3941
  %4026 = vmatpush.bf16.msra.mxu0 %v3939
  %4027 = vmatmul.bf16.gmra.mxu0 %v3074
  %v4028 = vpop.f32.mrf.mxu0
  %v4029 = vadd.f32 0.0, %v4028
  %v4030 = vpop.f32.mrf.mxu0
  %v4031 = vadd.f32 0.0, %v4030
  %4032 = vmatmul.bf16.gmra.mxu0 %v3075
  %v4033 = vpop.f32.mrf.mxu0
  %v4034 = vadd.f32 0.0, %v4033
  %v4035 = vpop.f32.mrf.mxu0
  %v4036 = vadd.f32 0.0, %v4035
  %4037 = vmatmul.bf16.gmra.mxu0 %v3076
  %v4038 = vpop.f32.mrf.mxu0
  %v4039 = vadd.f32 0.0, %v4038
  %v4040 = vpop.f32.mrf.mxu0
  %v4041 = vadd.f32 0.0, %v4040
  %4042 = vmatmul.bf16.gmra.mxu0 %v3077
  %v4043 = vpop.f32.mrf.mxu0
  %v4044 = vadd.f32 0.0, %v4043
  %v4045 = vpop.f32.mrf.mxu0
  %v4046 = vadd.f32 0.0, %v4045
  %4047 = vmatmul.bf16.gmra.mxu0 %v3078
  %v4048 = vpop.f32.mrf.mxu0
  %v4049 = vadd.f32 0.0, %v4048
  %v4050 = vpop.f32.mrf.mxu0
  %v4051 = vadd.f32 0.0, %v4050
  %4052 = vmatmul.bf16.gmra.mxu0 %v3079
  %v4053 = vpop.f32.mrf.mxu0
  %v4054 = vadd.f32 0.0, %v4053
  %v4055 = vpop.f32.mrf.mxu0
  %v4056 = vadd.f32 0.0, %v4055
  %4057 = vmatmul.bf16.gmra.mxu0 %v3080
  %v4058 = vpop.f32.mrf.mxu0
  %v4059 = vadd.f32 0.0, %v4058
  %v4060 = vpop.f32.mrf.mxu0
  %v4061 = vadd.f32 0.0, %v4060
  %4062 = vmatmul.bf16.gmra.mxu0 %v3081
  %v4063 = vpop.f32.mrf.mxu0
  %v4064 = vadd.f32 0.0, %v4063
  %v4065 = vpop.f32.mrf.mxu0
  %v4066 = vadd.f32 0.0, %v4065
  %4067 = vdwg.mxu0
  %v4068 = vpack.c.bf16 %v3980, %v3980
  %v4069 = vpack.c.bf16 %v3982, %v3982
  %v4070 = vpack.c.bf16 %v3985, %v3985
  %v4071 = vpack.c.bf16 %v3987, %v3987
  %v4072 = vpack.c.bf16 %v3990, %v3990
  %v4073 = vpack.c.bf16 %v3992, %v3992
  %v4074 = vpack.c.bf16 %v3995, %v3995
  %v4075 = vpack.c.bf16 %v3997, %v3997
  %v4076 = vpack.c.bf16 %v4000, %v4000
  %v4077 = vpack.c.bf16 %v4002, %v4002
  %v4078 = vpack.c.bf16 %v4005, %v4005
  %v4079 = vpack.c.bf16 %v4007, %v4007
  %v4080 = vpack.c.bf16 %v4010, %v4010
  %v4081 = vpack.c.bf16 %v4012, %v4012
  %v4082 = vpack.c.bf16 %v4015, %v4015
  %v4083 = vpack.c.bf16 %v4017, %v4017
  %4084 = vst [vmem:[#allocation2] sm:$0xf] %v4068
  %4085 = vst [vmem:[#allocation2 + $0x8] sm:$0xf] %v4069
  %4086 = vst [vmem:[#allocation2 + $0x10] sm:$0xf] %v4070
  %4087 = vst [vmem:[#allocation2 + $0x18] sm:$0xf] %v4071
  %4088 = vst [vmem:[#allocation2 + $0x20] sm:$0xf] %v4072
  %4089 = vst [vmem:[#allocation2 + $0x28] sm:$0xf] %v4073
  %4090 = vst [vmem:[#allocation2 + $0x30] sm:$0xf] %v4074
  %4091 = vst [vmem:[#allocation2 + $0x38] sm:$0xf] %v4075
  %4092 = vst [vmem:[#allocation2 + $0x40] sm:$0xf] %v4076
  %4093 = vst [vmem:[#allocation2 + $0x48] sm:$0xf] %v4077
  %4094 = vst [vmem:[#allocation2 + $0x50] sm:$0xf] %v4078
  %4095 = vst [vmem:[#allocation2 + $0x58] sm:$0xf] %v4079
  %4096 = vst [vmem:[#allocation2 + $0x60] sm:$0xf] %v4080
  %4097 = vst [vmem:[#allocation2 + $0x68] sm:$0xf] %v4081
  %4098 = vst [vmem:[#allocation2 + $0x70] sm:$0xf] %v4082
  %4099 = vst [vmem:[#allocation2 + $0x78] sm:$0xf] %v4083
  %v4100 = vpack.c.bf16 %v4029, %v4029
  %v4101 = vpack.c.bf16 %v4031, %v4031
  %v4102 = vpack.c.bf16 %v4034, %v4034
  %v4103 = vpack.c.bf16 %v4036, %v4036
  %v4104 = vpack.c.bf16 %v4039, %v4039
  %v4105 = vpack.c.bf16 %v4041, %v4041
  %v4106 = vpack.c.bf16 %v4044, %v4044
  %v4107 = vpack.c.bf16 %v4046, %v4046
  %v4108 = vpack.c.bf16 %v4049, %v4049
  %v4109 = vpack.c.bf16 %v4051, %v4051
  %v4110 = vpack.c.bf16 %v4054, %v4054
  %v4111 = vpack.c.bf16 %v4056, %v4056
  %v4112 = vpack.c.bf16 %v4059, %v4059
  %v4113 = vpack.c.bf16 %v4061, %v4061
  %v4114 = vpack.c.bf16 %v4064, %v4064
  %v4115 = vpack.c.bf16 %v4066, %v4066
  %4116 = vst [vmem:[#allocation3] sm:$0xf] %v4100
  %4117 = vst [vmem:[#allocation3 + $0x8] sm:$0xf] %v4101
  %4118 = vst [vmem:[#allocation3 + $0x10] sm:$0xf] %v4102
  %4119 = vst [vmem:[#allocation3 + $0x18] sm:$0xf] %v4103
  %4120 = vst [vmem:[#allocation3 + $0x20] sm:$0xf] %v4104
  %4121 = vst [vmem:[#allocation3 + $0x28] sm:$0xf] %v4105
  %4122 = vst [vmem:[#allocation3 + $0x30] sm:$0xf] %v4106
  %4123 = vst [vmem:[#allocation3 + $0x38] sm:$0xf] %v4107
  %4124 = vst [vmem:[#allocation3 + $0x40] sm:$0xf] %v4108
  %4125 = vst [vmem:[#allocation3 + $0x48] sm:$0xf] %v4109
  %4126 = vst [vmem:[#allocation3 + $0x50] sm:$0xf] %v4110
  %4127 = vst [vmem:[#allocation3 + $0x58] sm:$0xf] %v4111
  %4128 = vst [vmem:[#allocation3 + $0x60] sm:$0xf] %v4112
  %4129 = vst [vmem:[#allocation3 + $0x68] sm:$0xf] %v4113
  %4130 = vst [vmem:[#allocation3 + $0x70] sm:$0xf] %v4114
  %4131 = vst [vmem:[#allocation3 + $0x78] sm:$0xf] %v4115
  %s4132 = sadd.f32 %s3873, 0.0
  %s4133 = scalar_lea.vmem %s0, 64
  %v4134 = vld [vmem:[%s4133] sm:$0xf]
  %v4135 = vld [vmem:[%s4133 + $0x4] sm:$0xf]
  %v4136 = vld [vmem:[%s4133 + $0x8] sm:$0xf]
  %v4137 = vld [vmem:[%s4133 + $0xc] sm:$0xf]
  %v4138 = vld [vmem:[%s4133 + $0x10] sm:$0xf]
  %v4139 = vld [vmem:[%s4133 + $0x14] sm:$0xf]
  %v4140 = vld [vmem:[%s4133 + $0x18] sm:$0xf]
  %v4141 = vld [vmem:[%s4133 + $0x1c] sm:$0xf]
  %v4142 = vld [vmem:[%s4133 + $0x20] sm:$0xf]
  %v4143 = vld [vmem:[%s4133 + $0x24] sm:$0xf]
  %v4144 = vld [vmem:[%s4133 + $0x28] sm:$0xf]
  %v4145 = vld [vmem:[%s4133 + $0x2c] sm:$0xf]
  %v4146 = vld [vmem:[%s4133 + $0x30] sm:$0xf]
  %v4147 = vld [vmem:[%s4133 + $0x34] sm:$0xf]
  %v4148 = vld [vmem:[%s4133 + $0x38] sm:$0xf]
  %v4149 = vld [vmem:[%s4133 + $0x3c] sm:$0xf]
  %v4150 = vunpack.c.l.bf16 %v4134
  %v4151 = vunpack.c.l.bf16 %v4135
  %v4152 = vunpack.c.l.bf16 %v4136
  %v4153 = vunpack.c.l.bf16 %v4137
  %v4154 = vunpack.c.l.bf16 %v4138
  %v4155 = vunpack.c.l.bf16 %v4139
  %v4156 = vunpack.c.l.bf16 %v4140
  %v4157 = vunpack.c.l.bf16 %v4141
  %v4158 = vunpack.c.l.bf16 %v4142
  %v4159 = vunpack.c.l.bf16 %v4143
  %v4160 = vunpack.c.l.bf16 %v4144
  %v4161 = vunpack.c.l.bf16 %v4145
  %v4162 = vunpack.c.l.bf16 %v4146
  %v4163 = vunpack.c.l.bf16 %v4147
  %v4164 = vunpack.c.l.bf16 %v4148
  %v4165 = vunpack.c.l.bf16 %v4149
  %v4166 = vld [vmem:[%s2] sm:$0xff]
  %v4167 = vld [vmem:[%s2 + $0x8] sm:$0xf]
  %v4168 = vld [vmem:[%s2 + $0xc] sm:$0xff]
  %v4169 = vld [vmem:[%s2 + $0x14] sm:$0xf]
  %v4170 = vld [vmem:[%s2 + $0x18] sm:$0xff]
  %v4171 = vld [vmem:[%s2 + $0x20] sm:$0xf]
  %v4172 = vld [vmem:[%s2 + $0x24] sm:$0xff]
  %v4173 = vld [vmem:[%s2 + $0x2c] sm:$0xf]
  %v4174 = vld [vmem:[%s2 + $0x30] sm:$0xff]
  %v4175 = vld [vmem:[%s2 + $0x38] sm:$0xf]
  %v4176 = vld [vmem:[%s2 + $0x3c] sm:$0xff]
  %v4177 = vld [vmem:[%s2 + $0x44] sm:$0xf]
  %v4178 = vld [vmem:[%s2 + $0x48] sm:$0xff]
  %v4179 = vld [vmem:[%s2 + $0x50] sm:$0xf]
  %v4180 = vld [vmem:[%s2 + $0x54] sm:$0xff]
  %v4181 = vld [vmem:[%s2 + $0x5c] sm:$0xf]
  %v4182 = vld [vmem:[%s2 + $0x60] sm:$0xff]
  %v4183 = vld [vmem:[%s2 + $0x68] sm:$0xf]
  %v4184 = vld [vmem:[%s2 + $0x6c] sm:$0xff]
  %v4185 = vld [vmem:[%s2 + $0x74] sm:$0xf]
  %v4186 = vld [vmem:[%s2 + $0x78] sm:$0xff]
  %v4187 = vld [vmem:[%s2 + $0x80] sm:$0xf]
  %v4188 = vld [vmem:[%s2 + $0x84] sm:$0xff]
  %v4189 = vld [vmem:[%s2 + $0x8c] sm:$0xf]
  %v4190 = vld [vmem:[%s2 + $0x90] sm:$0xff]
  %v4191 = vld [vmem:[%s2 + $0x98] sm:$0xf]
  %v4192 = vld [vmem:[%s2 + $0x9c] sm:$0xff]
  %v4193 = vld [vmem:[%s2 + $0xa4] sm:$0xf]
  %v4194 = vld [vmem:[%s2 + $0xa8] sm:$0xff]
  %v4195 = vld [vmem:[%s2 + $0xb0] sm:$0xf]
  %v4196 = vld [vmem:[%s2 + $0xb4] sm:$0xff]
  %v4197 = vld [vmem:[%s2 + $0xbc] sm:$0xf]
  %v4214 = vunpack.c.l.b16 %v4134
  %v4215 = vunpack.c.l.b16 %v4135
  %v4216 = vunpack.c.l.b16 %v4136
  %v4217 = vunpack.c.l.b16 %v4137
  %v4218 = vunpack.c.l.b16 %v4138
  %v4219 = vunpack.c.l.b16 %v4139
  %v4220 = vunpack.c.l.b16 %v4140
  %v4221 = vunpack.c.l.b16 %v4141
  %v4222 = vunpack.c.l.b16 %v4142
  %v4223 = vunpack.c.l.b16 %v4143
  %v4224 = vunpack.c.l.b16 %v4144
  %v4225 = vunpack.c.l.b16 %v4145
  %v4226 = vunpack.c.l.b16 %v4146
  %v4227 = vunpack.c.l.b16 %v4147
  %v4228 = vunpack.c.l.b16 %v4148
  %v4229 = vunpack.c.l.b16 %v4149
  %v4230 = vpack.c.b16 %v4215, %v4214
  %v4231 = vpack.c.b16 %v4217, %v4216
  %v4232 = vpack.c.b16 %v4219, %v4218
  %v4233 = vpack.c.b16 %v4221, %v4220
  %v4234 = vpack.c.b16 %v4223, %v4222
  %v4235 = vpack.c.b16 %v4225, %v4224
  %v4236 = vpack.c.b16 %v4227, %v4226
  %v4237 = vpack.c.b16 %v4229, %v4228
  %v4278 = vunpack.c.l.b16 %v4166
  %v4279 = vunpack.c.h.b16 %v4166
  %v4280 = vunpack.c.l.b16 %v4167
  %v4281 = vunpack.c.l.b16 %v4168
  %v4282 = vunpack.c.h.b16 %v4168
  %v4283 = vunpack.c.l.b16 %v4169
  %v4284 = vunpack.c.l.b16 %v4170
  %v4285 = vunpack.c.h.b16 %v4170
  %v4286 = vunpack.c.l.b16 %v4171
  %v4287 = vunpack.c.l.b16 %v4172
  %v4288 = vunpack.c.h.b16 %v4172
  %v4289 = vunpack.c.l.b16 %v4173
  %v4290 = vunpack.c.l.b16 %v4174
  %v4291 = vunpack.c.h.b16 %v4174
  %v4292 = vunpack.c.l.b16 %v4175
  %v4293 = vunpack.c.l.b16 %v4176
  %v4294 = vunpack.c.h.b16 %v4176
  %v4295 = vunpack.c.l.b16 %v4177
  %v4296 = vunpack.c.l.b16 %v4178
  %v4297 = vunpack.c.h.b16 %v4178
  %v4298 = vunpack.c.l.b16 %v4179
  %v4299 = vunpack.c.l.b16 %v4180
  %v4300 = vunpack.c.h.b16 %v4180
  %v4301 = vunpack.c.l.b16 %v4181
  %v4302 = vunpack.c.l.b16 %v4182
  %v4303 = vunpack.c.h.b16 %v4182
  %v4304 = vunpack.c.l.b16 %v4183
  %v4305 = vunpack.c.l.b16 %v4184
  %v4306 = vunpack.c.h.b16 %v4184
  %v4307 = vunpack.c.l.b16 %v4185
  %v4308 = vunpack.c.l.b16 %v4186
  %v4309 = vunpack.c.h.b16 %v4186
  %v4310 = vunpack.c.l.b16 %v4187
  %v4311 = vunpack.c.l.b16 %v4188
  %v4312 = vunpack.c.h.b16 %v4188
  %v4313 = vunpack.c.l.b16 %v4189
  %v4314 = vunpack.c.l.b16 %v4190
  %v4315 = vunpack.c.h.b16 %v4190
  %v4316 = vunpack.c.l.b16 %v4191
  %v4317 = vunpack.c.l.b16 %v4192
  %v4318 = vunpack.c.h.b16 %v4192
  %v4319 = vunpack.c.l.b16 %v4193
  %v4320 = vunpack.c.l.b16 %v4194
  %v4321 = vunpack.c.h.b16 %v4194
  %v4322 = vunpack.c.l.b16 %v4195
  %v4323 = vunpack.c.l.b16 %v4196
  %v4324 = vunpack.c.h.b16 %v4196
  %v4325 = vunpack.c.l.b16 %v4197
  %v4326 = vpack.c.b16 %v4281, %v4278
  %v4327 = vpack.c.b16 %v4282, %v4279
  %v4328 = vpack.c.b16 %v4283, %v4280
  %v4329 = vpack.c.b16 %v4287, %v4284
  %v4330 = vpack.c.b16 %v4288, %v4285
  %v4331 = vpack.c.b16 %v4289, %v4286
  %v4332 = vpack.c.b16 %v4293, %v4290
  %v4333 = vpack.c.b16 %v4294, %v4291
  %v4334 = vpack.c.b16 %v4295, %v4292
  %v4335 = vpack.c.b16 %v4299, %v4296
  %v4336 = vpack.c.b16 %v4300, %v4297
  %v4337 = vpack.c.b16 %v4301, %v4298
  %v4338 = vpack.c.b16 %v4305, %v4302
  %v4339 = vpack.c.b16 %v4306, %v4303
  %v4340 = vpack.c.b16 %v4307, %v4304
  %v4341 = vpack.c.b16 %v4311, %v4308
  %v4342 = vpack.c.b16 %v4312, %v4309
  %v4343 = vpack.c.b16 %v4313, %v4310
  %v4344 = vpack.c.b16 %v4317, %v4314
  %v4345 = vpack.c.b16 %v4318, %v4315
  %v4346 = vpack.c.b16 %v4319, %v4316
  %v4347 = vpack.c.b16 %v4323, %v4320
  %v4348 = vpack.c.b16 %v4324, %v4321
  %v4349 = vpack.c.b16 %v4325, %v4322
  %4374 = vmatpush.bf16.msra.mxu0 %v4347
  %4375 = vmatpush.bf16.msra.mxu0 %v4344
  %4376 = vmatpush.bf16.msra.mxu0 %v4341
  %4377 = vmatpush.bf16.msra.mxu0 %v4338
  %4378 = vmatpush.bf16.msra.mxu0 %v4335
  %4379 = vmatpush.bf16.msra.mxu0 %v4332
  %4380 = vmatpush.bf16.msra.mxu0 %v4329
  %4381 = vmatpush.bf16.msra.mxu0 %v4326
  %4382 = vmatmul.bf16.gmra.mxu0 %v4230
  %v4383 = vpop.f32.mrf.mxu0
  %v4384 = vadd.f32 0.0, %v4383
  %v4385 = vpop.f32.mrf.mxu0
  %v4386 = vadd.f32 0.0, %v4385
  %4387 = vmatmul.bf16.gmra.mxu0 %v4231
  %v4388 = vpop.f32.mrf.mxu0
  %v4389 = vadd.f32 0.0, %v4388
  %v4390 = vpop.f32.mrf.mxu0
  %v4391 = vadd.f32 0.0, %v4390
  %4392 = vmatmul.bf16.gmra.mxu0 %v4232
  %v4393 = vpop.f32.mrf.mxu0
  %v4394 = vadd.f32 0.0, %v4393
  %v4395 = vpop.f32.mrf.mxu0
  %v4396 = vadd.f32 0.0, %v4395
  %4397 = vmatmul.bf16.gmra.mxu0 %v4233
  %v4398 = vpop.f32.mrf.mxu0
  %v4399 = vadd.f32 0.0, %v4398
  %v4400 = vpop.f32.mrf.mxu0
  %v4401 = vadd.f32 0.0, %v4400
  %4402 = vmatmul.bf16.gmra.mxu0 %v4234
  %v4403 = vpop.f32.mrf.mxu0
  %v4404 = vadd.f32 0.0, %v4403
  %v4405 = vpop.f32.mrf.mxu0
  %v4406 = vadd.f32 0.0, %v4405
  %4407 = vmatmul.bf16.gmra.mxu0 %v4235
  %v4408 = vpop.f32.mrf.mxu0
  %v4409 = vadd.f32 0.0, %v4408
  %v4410 = vpop.f32.mrf.mxu0
  %v4411 = vadd.f32 0.0, %v4410
  %4412 = vmatmul.bf16.gmra.mxu0 %v4236
  %v4413 = vpop.f32.mrf.mxu0
  %v4414 = vadd.f32 0.0, %v4413
  %v4415 = vpop.f32.mrf.mxu0
  %v4416 = vadd.f32 0.0, %v4415
  %4417 = vmatmul.bf16.gmra.mxu0 %v4237
  %v4418 = vpop.f32.mrf.mxu0
  %v4419 = vadd.f32 0.0, %v4418
  %v4420 = vpop.f32.mrf.mxu0
  %v4421 = vadd.f32 0.0, %v4420
  %4422 = vdwg.mxu0
  %4423 = vmatpush.bf16.msra.mxu0 %v4348
  %4424 = vmatpush.bf16.msra.mxu0 %v4345
  %4425 = vmatpush.bf16.msra.mxu0 %v4342
  %4426 = vmatpush.bf16.msra.mxu0 %v4339
  %4427 = vmatpush.bf16.msra.mxu0 %v4336
  %4428 = vmatpush.bf16.msra.mxu0 %v4333
  %4429 = vmatpush.bf16.msra.mxu0 %v4330
  %4430 = vmatpush.bf16.msra.mxu0 %v4327
  %4431 = vmatmul.bf16.gmra.mxu0 %v4230
  %v4432 = vpop.f32.mrf.mxu0
  %v4433 = vadd.f32 0.0, %v4432
  %v4434 = vpop.f32.mrf.mxu0
  %v4435 = vadd.f32 0.0, %v4434
  %4436 = vmatmul.bf16.gmra.mxu0 %v4231
  %v4437 = vpop.f32.mrf.mxu0
  %v4438 = vadd.f32 0.0, %v4437
  %v4439 = vpop.f32.mrf.mxu0
  %v4440 = vadd.f32 0.0, %v4439
  %4441 = vmatmul.bf16.gmra.mxu0 %v4232
  %v4442 = vpop.f32.mrf.mxu0
  %v4443 = vadd.f32 0.0, %v4442
  %v4444 = vpop.f32.mrf.mxu0
  %v4445 = vadd.f32 0.0, %v4444
  %4446 = vmatmul.bf16.gmra.mxu0 %v4233
  %v4447 = vpop.f32.mrf.mxu0
  %v4448 = vadd.f32 0.0, %v4447
  %v4449 = vpop.f32.mrf.mxu0
  %v4450 = vadd.f32 0.0, %v4449
  %4451 = vmatmul.bf16.gmra.mxu0 %v4234
  %v4452 = vpop.f32.mrf.mxu0
  %v4453 = vadd.f32 0.0, %v4452
  %v4454 = vpop.f32.mrf.mxu0
  %v4455 = vadd.f32 0.0, %v4454
  %4456 = vmatmul.bf16.gmra.mxu0 %v4235
  %v4457 = vpop.f32.mrf.mxu0
  %v4458 = vadd.f32 0.0, %v4457
  %v4459 = vpop.f32.mrf.mxu0
  %v4460 = vadd.f32 0.0, %v4459
  %4461 = vmatmul.bf16.gmra.mxu0 %v4236
  %v4462 = vpop.f32.mrf.mxu0
  %v4463 = vadd.f32 0.0, %v4462
  %v4464 = vpop.f32.mrf.mxu0
  %v4465 = vadd.f32 0.0, %v4464
  %4466 = vmatmul.bf16.gmra.mxu0 %v4237
  %v4467 = vpop.f32.mrf.mxu0
  %v4468 = vadd.f32 0.0, %v4467
  %v4469 = vpop.f32.mrf.mxu0
  %v4470 = vadd.f32 0.0, %v4469
  %4471 = vdwg.mxu0
  %4472 = vmatpush.bf16.msra.mxu0 %v4349
  %4473 = vmatpush.bf16.msra.mxu0 %v4346
  %4474 = vmatpush.bf16.msra.mxu0 %v4343
  %4475 = vmatpush.bf16.msra.mxu0 %v4340
  %4476 = vmatpush.bf16.msra.mxu0 %v4337
  %4477 = vmatpush.bf16.msra.mxu0 %v4334
  %4478 = vmatpush.bf16.msra.mxu0 %v4331
  %4479 = vmatpush.bf16.msra.mxu0 %v4328
  %4480 = vmatmul.bf16.gmra.mxu0 %v4230
  %v4481 = vpop.f32.mrf.mxu0
  %v4482 = vadd.f32 0.0, %v4481
  %v4483 = vpop.f32.mrf.mxu0
  %v4484 = vadd.f32 0.0, %v4483
  %4485 = vmatmul.bf16.gmra.mxu0 %v4231
  %v4486 = vpop.f32.mrf.mxu0
  %v4487 = vadd.f32 0.0, %v4486
  %v4488 = vpop.f32.mrf.mxu0
  %v4489 = vadd.f32 0.0, %v4488
  %4490 = vmatmul.bf16.gmra.mxu0 %v4232
  %v4491 = vpop.f32.mrf.mxu0
  %v4492 = vadd.f32 0.0, %v4491
  %v4493 = vpop.f32.mrf.mxu0
  %v4494 = vadd.f32 0.0, %v4493
  %4495 = vmatmul.bf16.gmra.mxu0 %v4233
  %v4496 = vpop.f32.mrf.mxu0
  %v4497 = vadd.f32 0.0, %v4496
  %v4498 = vpop.f32.mrf.mxu0
  %v4499 = vadd.f32 0.0, %v4498
  %4500 = vmatmul.bf16.gmra.mxu0 %v4234
  %v4501 = vpop.f32.mrf.mxu0
  %v4502 = vadd.f32 0.0, %v4501
  %v4503 = vpop.f32.mrf.mxu0
  %v4504 = vadd.f32 0.0, %v4503
  %4505 = vmatmul.bf16.gmra.mxu0 %v4235
  %v4506 = vpop.f32.mrf.mxu0
  %v4507 = vadd.f32 0.0, %v4506
  %v4508 = vpop.f32.mrf.mxu0
  %v4509 = vadd.f32 0.0, %v4508
  %4510 = vmatmul.bf16.gmra.mxu0 %v4236
  %v4511 = vpop.f32.mrf.mxu0
  %v4512 = vadd.f32 0.0, %v4511
  %v4513 = vpop.f32.mrf.mxu0
  %v4514 = vadd.f32 0.0, %v4513
  %4515 = vmatmul.bf16.gmra.mxu0 %v4237
  %v4516 = vpop.f32.mrf.mxu0
  %v4517 = vadd.f32 0.0, %v4516
  %v4518 = vpop.f32.mrf.mxu0
  %v4519 = vadd.f32 0.0, %v4518
  %4520 = vdwg.mxu0
  %v4521 = vpack.c.bf16 %v4384, %v4384
  %v4522 = vpack.c.bf16 %v4386, %v4386
  %v4523 = vpack.c.bf16 %v4389, %v4389
  %v4524 = vpack.c.bf16 %v4391, %v4391
  %v4525 = vpack.c.bf16 %v4394, %v4394
  %v4526 = vpack.c.bf16 %v4396, %v4396
  %v4527 = vpack.c.bf16 %v4399, %v4399
  %v4528 = vpack.c.bf16 %v4401, %v4401
  %v4529 = vpack.c.bf16 %v4404, %v4404
  %v4530 = vpack.c.bf16 %v4406, %v4406
  %v4531 = vpack.c.bf16 %v4409, %v4409
  %v4532 = vpack.c.bf16 %v4411, %v4411
  %v4533 = vpack.c.bf16 %v4414, %v4414
  %v4534 = vpack.c.bf16 %v4416, %v4416
  %v4535 = vpack.c.bf16 %v4419, %v4419
  %v4536 = vpack.c.bf16 %v4421, %v4421
  %v4537 = vpack.c.bf16 %v4433, %v4433
  %v4538 = vpack.c.bf16 %v4435, %v4435
  %v4539 = vpack.c.bf16 %v4438, %v4438
  %v4540 = vpack.c.bf16 %v4440, %v4440
  %v4541 = vpack.c.bf16 %v4443, %v4443
  %v4542 = vpack.c.bf16 %v4445, %v4445
  %v4543 = vpack.c.bf16 %v4448, %v4448
  %v4544 = vpack.c.bf16 %v4450, %v4450
  %v4545 = vpack.c.bf16 %v4453, %v4453
  %v4546 = vpack.c.bf16 %v4455, %v4455
  %v4547 = vpack.c.bf16 %v4458, %v4458
  %v4548 = vpack.c.bf16 %v4460, %v4460
  %v4549 = vpack.c.bf16 %v4463, %v4463
  %v4550 = vpack.c.bf16 %v4465, %v4465
  %v4551 = vpack.c.bf16 %v4468, %v4468
  %v4552 = vpack.c.bf16 %v4470, %v4470
  %v4553 = vpack.c.bf16 %v4482, %v4482
  %v4554 = vpack.c.bf16 %v4484, %v4484
  %v4555 = vpack.c.bf16 %v4487, %v4487
  %v4556 = vpack.c.bf16 %v4489, %v4489
  %v4557 = vpack.c.bf16 %v4492, %v4492
  %v4558 = vpack.c.bf16 %v4494, %v4494
  %v4559 = vpack.c.bf16 %v4497, %v4497
  %v4560 = vpack.c.bf16 %v4499, %v4499
  %v4561 = vpack.c.bf16 %v4502, %v4502
  %v4562 = vpack.c.bf16 %v4504, %v4504
  %v4563 = vpack.c.bf16 %v4507, %v4507
  %v4564 = vpack.c.bf16 %v4509, %v4509
  %v4565 = vpack.c.bf16 %v4512, %v4512
  %v4566 = vpack.c.bf16 %v4514, %v4514
  %v4567 = vpack.c.bf16 %v4517, %v4517
  %v4568 = vpack.c.bf16 %v4519, %v4519
  %4569 = vst [vmem:[#allocation2 + $0x4] sm:$0xf] %v4537
  %4570 = vst [vmem:[#allocation2 + $0xc] sm:$0xf] %v4538
  %4571 = vst [vmem:[#allocation2 + $0x14] sm:$0xf] %v4539
  %4572 = vst [vmem:[#allocation2 + $0x1c] sm:$0xf] %v4540
  %4573 = vst [vmem:[#allocation2 + $0x24] sm:$0xf] %v4541
  %4574 = vst [vmem:[#allocation2 + $0x2c] sm:$0xf] %v4542
  %4575 = vst [vmem:[#allocation2 + $0x34] sm:$0xf] %v4543
  %4576 = vst [vmem:[#allocation2 + $0x3c] sm:$0xf] %v4544
  %4577 = vst [vmem:[#allocation2 + $0x44] sm:$0xf] %v4545
  %4578 = vst [vmem:[#allocation2 + $0x4c] sm:$0xf] %v4546
  %4579 = vst [vmem:[#allocation2 + $0x54] sm:$0xf] %v4547
  %4580 = vst [vmem:[#allocation2 + $0x5c] sm:$0xf] %v4548
  %4581 = vst [vmem:[#allocation2 + $0x64] sm:$0xf] %v4549
  %4582 = vst [vmem:[#allocation2 + $0x6c] sm:$0xf] %v4550
  %4583 = vst [vmem:[#allocation2 + $0x74] sm:$0xf] %v4551
  %4584 = vst [vmem:[#allocation2 + $0x7c] sm:$0xf] %v4552
  %4585 = vst [vmem:[#allocation3 + $0x4] sm:$0xf] %v4553
  %4586 = vst [vmem:[#allocation3 + $0xc] sm:$0xf] %v4554
  %4587 = vst [vmem:[#allocation3 + $0x14] sm:$0xf] %v4555
  %4588 = vst [vmem:[#allocation3 + $0x1c] sm:$0xf] %v4556
  %4589 = vst [vmem:[#allocation3 + $0x24] sm:$0xf] %v4557
  %4590 = vst [vmem:[#allocation3 + $0x2c] sm:$0xf] %v4558
  %4591 = vst [vmem:[#allocation3 + $0x34] sm:$0xf] %v4559
  %4592 = vst [vmem:[#allocation3 + $0x3c] sm:$0xf] %v4560
  %4593 = vst [vmem:[#allocation3 + $0x44] sm:$0xf] %v4561
  %4594 = vst [vmem:[#allocation3 + $0x4c] sm:$0xf] %v4562
  %4595 = vst [vmem:[#allocation3 + $0x54] sm:$0xf] %v4563
  %4596 = vst [vmem:[#allocation3 + $0x5c] sm:$0xf] %v4564
  %4597 = vst [vmem:[#allocation3 + $0x64] sm:$0xf] %v4565
  %4598 = vst [vmem:[#allocation3 + $0x6c] sm:$0xf] %v4566
  %4599 = vst [vmem:[#allocation3 + $0x74] sm:$0xf] %v4567
  %4600 = vst [vmem:[#allocation3 + $0x7c] sm:$0xf] %v4568
  %v4601 = vld [vmem:[#allocation2] sm:$0xf]
  %v4602 = vld [vmem:[#allocation2 + $0x4] sm:$0xf]
  %v4603 = vld [vmem:[#allocation2 + $0x8] sm:$0xf]
  %v4604 = vld [vmem:[#allocation2 + $0xc] sm:$0xf]
  %v4605 = vld [vmem:[#allocation2 + $0x10] sm:$0xf]
  %v4606 = vld [vmem:[#allocation2 + $0x14] sm:$0xf]
  %v4607 = vld [vmem:[#allocation2 + $0x18] sm:$0xf]
  %v4608 = vld [vmem:[#allocation2 + $0x1c] sm:$0xf]
  %v4609 = vld [vmem:[#allocation2 + $0x20] sm:$0xf]
  %v4610 = vld [vmem:[#allocation2 + $0x24] sm:$0xf]
  %v4611 = vld [vmem:[#allocation2 + $0x28] sm:$0xf]
  %v4612 = vld [vmem:[#allocation2 + $0x2c] sm:$0xf]
  %v4613 = vld [vmem:[#allocation2 + $0x30] sm:$0xf]
  %v4614 = vld [vmem:[#allocation2 + $0x34] sm:$0xf]
  %v4615 = vld [vmem:[#allocation2 + $0x38] sm:$0xf]
  %v4616 = vld [vmem:[#allocation2 + $0x3c] sm:$0xf]
  %v4617 = vld [vmem:[#allocation2 + $0x40] sm:$0xf]
  %v4618 = vld [vmem:[#allocation2 + $0x44] sm:$0xf]
  %v4619 = vld [vmem:[#allocation2 + $0x48] sm:$0xf]
  %v4620 = vld [vmem:[#allocation2 + $0x4c] sm:$0xf]
  %v4621 = vld [vmem:[#allocation2 + $0x50] sm:$0xf]
  %v4622 = vld [vmem:[#allocation2 + $0x54] sm:$0xf]
  %v4623 = vld [vmem:[#allocation2 + $0x58] sm:$0xf]
  %v4624 = vld [vmem:[#allocation2 + $0x5c] sm:$0xf]
  %v4625 = vld [vmem:[#allocation2 + $0x60] sm:$0xf]
  %v4626 = vld [vmem:[#allocation2 + $0x64] sm:$0xf]
  %v4627 = vld [vmem:[#allocation2 + $0x68] sm:$0xf]
  %v4628 = vld [vmem:[#allocation2 + $0x6c] sm:$0xf]
  %v4629 = vld [vmem:[#allocation2 + $0x70] sm:$0xf]
  %v4630 = vld [vmem:[#allocation2 + $0x74] sm:$0xf]
  %v4631 = vld [vmem:[#allocation2 + $0x78] sm:$0xf]
  %v4632 = vld [vmem:[#allocation2 + $0x7c] sm:$0xf]
  %v4633 = vld [vmem:[#allocation3] sm:$0xf]
  %v4634 = vld [vmem:[#allocation3 + $0x4] sm:$0xf]
  %v4635 = vld [vmem:[#allocation3 + $0x8] sm:$0xf]
  %v4636 = vld [vmem:[#allocation3 + $0xc] sm:$0xf]
  %v4637 = vld [vmem:[#allocation3 + $0x10] sm:$0xf]
  %v4638 = vld [vmem:[#allocation3 + $0x14] sm:$0xf]
  %v4639 = vld [vmem:[#allocation3 + $0x18] sm:$0xf]
  %v4640 = vld [vmem:[#allocation3 + $0x1c] sm:$0xf]
  %v4641 = vld [vmem:[#allocation3 + $0x20] sm:$0xf]
  %v4642 = vld [vmem:[#allocation3 + $0x24] sm:$0xf]
  %v4643 = vld [vmem:[#allocation3 + $0x28] sm:$0xf]
  %v4644 = vld [vmem:[#allocation3 + $0x2c] sm:$0xf]
  %v4645 = vld [vmem:[#allocation3 + $0x30] sm:$0xf]
  %v4646 = vld [vmem:[#allocation3 + $0x34] sm:$0xf]
  %v4647 = vld [vmem:[#allocation3 + $0x38] sm:$0xf]
  %v4648 = vld [vmem:[#allocation3 + $0x3c] sm:$0xf]
  %v4649 = vld [vmem:[#allocation3 + $0x40] sm:$0xf]
  %v4650 = vld [vmem:[#allocation3 + $0x44] sm:$0xf]
  %v4651 = vld [vmem:[#allocation3 + $0x48] sm:$0xf]
  %v4652 = vld [vmem:[#allocation3 + $0x4c] sm:$0xf]
  %v4653 = vld [vmem:[#allocation3 + $0x50] sm:$0xf]
  %v4654 = vld [vmem:[#allocation3 + $0x54] sm:$0xf]
  %v4655 = vld [vmem:[#allocation3 + $0x58] sm:$0xf]
  %v4656 = vld [vmem:[#allocation3 + $0x5c] sm:$0xf]
  %v4657 = vld [vmem:[#allocation3 + $0x60] sm:$0xf]
  %v4658 = vld [vmem:[#allocation3 + $0x64] sm:$0xf]
  %v4659 = vld [vmem:[#allocation3 + $0x68] sm:$0xf]
  %v4660 = vld [vmem:[#allocation3 + $0x6c] sm:$0xf]
  %v4661 = vld [vmem:[#allocation3 + $0x70] sm:$0xf]
  %v4662 = vld [vmem:[#allocation3 + $0x74] sm:$0xf]
  %v4663 = vld [vmem:[#allocation3 + $0x78] sm:$0xf]
  %v4664 = vld [vmem:[#allocation3 + $0x7c] sm:$0xf]
  %v4667 = vunpack.c.l.b16 %v4601
  %v4668 = vunpack.c.l.b16 %v4602
  %v4669 = vpack.c.b16 %v4668, %v4667
  %4671 = vmatpush.bf16.xpose.msra.mxu0 0
  %4672 = vmatpush.bf16.xpose.msra.mxu0 0
  %4673 = vmatpush.bf16.xpose.msra.mxu0 0
  %4674 = vmatpush.bf16.xpose.msra.mxu0 0
  %4675 = vmatpush.bf16.xpose.msra.mxu0 0
  %4676 = vmatpush.bf16.xpose.msra.mxu0 0
  %4677 = vmatpush.bf16.xpose.msra.mxu0 0
  %4678 = vmatpush.bf16.xpose.msra.mxu0 %v4669
  %4679 = vmatmul.bf16.gmra.mxu0 %v4521
  %v4680 = vpop.f32.mrf.mxu0
  %v4681 = vadd.f32 0.0, %v4680
  %v4682 = vpop.f32.mrf.mxu0
  %4683 = vdwg.mxu0
  %v4686 = vunpack.c.l.b16 %v4603
  %v4687 = vunpack.c.l.b16 %v4604
  %v4688 = vpack.c.b16 %v4687, %v4686
  %4690 = vmatpush.bf16.xpose.msra.mxu0 0
  %4691 = vmatpush.bf16.xpose.msra.mxu0 0
  %4692 = vmatpush.bf16.xpose.msra.mxu0 0
  %4693 = vmatpush.bf16.xpose.msra.mxu0 0
  %4694 = vmatpush.bf16.xpose.msra.mxu0 0
  %4695 = vmatpush.bf16.xpose.msra.mxu0 0
  %4696 = vmatpush.bf16.xpose.msra.mxu0 0
  %4697 = vmatpush.bf16.xpose.msra.mxu0 %v4688
  %4698 = vmatmul.bf16.gmra.mxu0 %v4522
  %v4699 = vpop.f32.mrf.mxu0
  %v4700 = vadd.f32 0.0, %v4699
  %v4701 = vpop.f32.mrf.mxu0
  %4702 = vdwg.mxu0
  %v4705 = vunpack.c.l.b16 %v4605
  %v4706 = vunpack.c.l.b16 %v4606
  %v4707 = vpack.c.b16 %v4706, %v4705
  %4709 = vmatpush.bf16.xpose.msra.mxu0 0
  %4710 = vmatpush.bf16.xpose.msra.mxu0 0
  %4711 = vmatpush.bf16.xpose.msra.mxu0 0
  %4712 = vmatpush.bf16.xpose.msra.mxu0 0
  %4713 = vmatpush.bf16.xpose.msra.mxu0 0
  %4714 = vmatpush.bf16.xpose.msra.mxu0 0
  %4715 = vmatpush.bf16.xpose.msra.mxu0 0
  %4716 = vmatpush.bf16.xpose.msra.mxu0 %v4707
  %4717 = vmatmul.bf16.gmra.mxu0 %v4523
  %v4718 = vpop.f32.mrf.mxu0
  %v4719 = vadd.f32 0.0, %v4718
  %v4720 = vpop.f32.mrf.mxu0
  %4721 = vdwg.mxu0
  %v4724 = vunpack.c.l.b16 %v4607
  %v4725 = vunpack.c.l.b16 %v4608
  %v4726 = vpack.c.b16 %v4725, %v4724
  %4728 = vmatpush.bf16.xpose.msra.mxu0 0
  %4729 = vmatpush.bf16.xpose.msra.mxu0 0
  %4730 = vmatpush.bf16.xpose.msra.mxu0 0
  %4731 = vmatpush.bf16.xpose.msra.mxu0 0
  %4732 = vmatpush.bf16.xpose.msra.mxu0 0
  %4733 = vmatpush.bf16.xpose.msra.mxu0 0
  %4734 = vmatpush.bf16.xpose.msra.mxu0 0
  %4735 = vmatpush.bf16.xpose.msra.mxu0 %v4726
  %4736 = vmatmul.bf16.gmra.mxu0 %v4524
  %v4737 = vpop.f32.mrf.mxu0
  %v4738 = vadd.f32 0.0, %v4737
  %v4739 = vpop.f32.mrf.mxu0
  %4740 = vdwg.mxu0
  %v4743 = vunpack.c.l.b16 %v4609
  %v4744 = vunpack.c.l.b16 %v4610
  %v4745 = vpack.c.b16 %v4744, %v4743
  %4747 = vmatpush.bf16.xpose.msra.mxu0 0
  %4748 = vmatpush.bf16.xpose.msra.mxu0 0
  %4749 = vmatpush.bf16.xpose.msra.mxu0 0
  %4750 = vmatpush.bf16.xpose.msra.mxu0 0
  %4751 = vmatpush.bf16.xpose.msra.mxu0 0
  %4752 = vmatpush.bf16.xpose.msra.mxu0 0
  %4753 = vmatpush.bf16.xpose.msra.mxu0 0
  %4754 = vmatpush.bf16.xpose.msra.mxu0 %v4745
  %4755 = vmatmul.bf16.gmra.mxu0 %v4525
  %v4756 = vpop.f32.mrf.mxu0
  %v4757 = vadd.f32 0.0, %v4756
  %v4758 = vpop.f32.mrf.mxu0
  %4759 = vdwg.mxu0
  %v4762 = vunpack.c.l.b16 %v4611
  %v4763 = vunpack.c.l.b16 %v4612
  %v4764 = vpack.c.b16 %v4763, %v4762
  %4766 = vmatpush.bf16.xpose.msra.mxu0 0
  %4767 = vmatpush.bf16.xpose.msra.mxu0 0
  %4768 = vmatpush.bf16.xpose.msra.mxu0 0
  %4769 = vmatpush.bf16.xpose.msra.mxu0 0
  %4770 = vmatpush.bf16.xpose.msra.mxu0 0
  %4771 = vmatpush.bf16.xpose.msra.mxu0 0
  %4772 = vmatpush.bf16.xpose.msra.mxu0 0
  %4773 = vmatpush.bf16.xpose.msra.mxu0 %v4764
  %4774 = vmatmul.bf16.gmra.mxu0 %v4526
  %v4775 = vpop.f32.mrf.mxu0
  %v4776 = vadd.f32 0.0, %v4775
  %v4777 = vpop.f32.mrf.mxu0
  %4778 = vdwg.mxu0
  %v4781 = vunpack.c.l.b16 %v4613
  %v4782 = vunpack.c.l.b16 %v4614
  %v4783 = vpack.c.b16 %v4782, %v4781
  %4785 = vmatpush.bf16.xpose.msra.mxu0 0
  %4786 = vmatpush.bf16.xpose.msra.mxu0 0
  %4787 = vmatpush.bf16.xpose.msra.mxu0 0
  %4788 = vmatpush.bf16.xpose.msra.mxu0 0
  %4789 = vmatpush.bf16.xpose.msra.mxu0 0
  %4790 = vmatpush.bf16.xpose.msra.mxu0 0
  %4791 = vmatpush.bf16.xpose.msra.mxu0 0
  %4792 = vmatpush.bf16.xpose.msra.mxu0 %v4783
  %4793 = vmatmul.bf16.gmra.mxu0 %v4527
  %v4794 = vpop.f32.mrf.mxu0
  %v4795 = vadd.f32 0.0, %v4794
  %v4796 = vpop.f32.mrf.mxu0
  %4797 = vdwg.mxu0
  %v4800 = vunpack.c.l.b16 %v4615
  %v4801 = vunpack.c.l.b16 %v4616
  %v4802 = vpack.c.b16 %v4801, %v4800
  %4804 = vmatpush.bf16.xpose.msra.mxu0 0
  %4805 = vmatpush.bf16.xpose.msra.mxu0 0
  %4806 = vmatpush.bf16.xpose.msra.mxu0 0
  %4807 = vmatpush.bf16.xpose.msra.mxu0 0
  %4808 = vmatpush.bf16.xpose.msra.mxu0 0
  %4809 = vmatpush.bf16.xpose.msra.mxu0 0
  %4810 = vmatpush.bf16.xpose.msra.mxu0 0
  %4811 = vmatpush.bf16.xpose.msra.mxu0 %v4802
  %4812 = vmatmul.bf16.gmra.mxu0 %v4528
  %v4813 = vpop.f32.mrf.mxu0
  %v4814 = vadd.f32 0.0, %v4813
  %v4815 = vpop.f32.mrf.mxu0
  %4816 = vdwg.mxu0
  %v4819 = vunpack.c.l.b16 %v4617
  %v4820 = vunpack.c.l.b16 %v4618
  %v4821 = vpack.c.b16 %v4820, %v4819
  %4823 = vmatpush.bf16.xpose.msra.mxu0 0
  %4824 = vmatpush.bf16.xpose.msra.mxu0 0
  %4825 = vmatpush.bf16.xpose.msra.mxu0 0
  %4826 = vmatpush.bf16.xpose.msra.mxu0 0
  %4827 = vmatpush.bf16.xpose.msra.mxu0 0
  %4828 = vmatpush.bf16.xpose.msra.mxu0 0
  %4829 = vmatpush.bf16.xpose.msra.mxu0 0
  %4830 = vmatpush.bf16.xpose.msra.mxu0 %v4821
  %4831 = vmatmul.bf16.gmra.mxu0 %v4529
  %v4832 = vpop.f32.mrf.mxu0
  %v4833 = vadd.f32 0.0, %v4832
  %v4834 = vpop.f32.mrf.mxu0
  %4835 = vdwg.mxu0
  %v4838 = vunpack.c.l.b16 %v4619
  %v4839 = vunpack.c.l.b16 %v4620
  %v4840 = vpack.c.b16 %v4839, %v4838
  %4842 = vmatpush.bf16.xpose.msra.mxu0 0
  %4843 = vmatpush.bf16.xpose.msra.mxu0 0
  %4844 = vmatpush.bf16.xpose.msra.mxu0 0
  %4845 = vmatpush.bf16.xpose.msra.mxu0 0
  %4846 = vmatpush.bf16.xpose.msra.mxu0 0
  %4847 = vmatpush.bf16.xpose.msra.mxu0 0
  %4848 = vmatpush.bf16.xpose.msra.mxu0 0
  %4849 = vmatpush.bf16.xpose.msra.mxu0 %v4840
  %4850 = vmatmul.bf16.gmra.mxu0 %v4530
  %v4851 = vpop.f32.mrf.mxu0
  %v4852 = vadd.f32 0.0, %v4851
  %v4853 = vpop.f32.mrf.mxu0
  %4854 = vdwg.mxu0
  %v4857 = vunpack.c.l.b16 %v4621
  %v4858 = vunpack.c.l.b16 %v4622
  %v4859 = vpack.c.b16 %v4858, %v4857
  %4861 = vmatpush.bf16.xpose.msra.mxu0 0
  %4862 = vmatpush.bf16.xpose.msra.mxu0 0
  %4863 = vmatpush.bf16.xpose.msra.mxu0 0
  %4864 = vmatpush.bf16.xpose.msra.mxu0 0
  %4865 = vmatpush.bf16.xpose.msra.mxu0 0
  %4866 = vmatpush.bf16.xpose.msra.mxu0 0
  %4867 = vmatpush.bf16.xpose.msra.mxu0 0
  %4868 = vmatpush.bf16.xpose.msra.mxu0 %v4859
  %4869 = vmatmul.bf16.gmra.mxu0 %v4531
  %v4870 = vpop.f32.mrf.mxu0
  %v4871 = vadd.f32 0.0, %v4870
  %v4872 = vpop.f32.mrf.mxu0
  %4873 = vdwg.mxu0
  %v4876 = vunpack.c.l.b16 %v4623
  %v4877 = vunpack.c.l.b16 %v4624
  %v4878 = vpack.c.b16 %v4877, %v4876
  %4880 = vmatpush.bf16.xpose.msra.mxu0 0
  %4881 = vmatpush.bf16.xpose.msra.mxu0 0
  %4882 = vmatpush.bf16.xpose.msra.mxu0 0
  %4883 = vmatpush.bf16.xpose.msra.mxu0 0
  %4884 = vmatpush.bf16.xpose.msra.mxu0 0
  %4885 = vmatpush.bf16.xpose.msra.mxu0 0
  %4886 = vmatpush.bf16.xpose.msra.mxu0 0
  %4887 = vmatpush.bf16.xpose.msra.mxu0 %v4878
  %4888 = vmatmul.bf16.gmra.mxu0 %v4532
  %v4889 = vpop.f32.mrf.mxu0
  %v4890 = vadd.f32 0.0, %v4889
  %v4891 = vpop.f32.mrf.mxu0
  %4892 = vdwg.mxu0
  %v4895 = vunpack.c.l.b16 %v4625
  %v4896 = vunpack.c.l.b16 %v4626
  %v4897 = vpack.c.b16 %v4896, %v4895
  %4899 = vmatpush.bf16.xpose.msra.mxu0 0
  %4900 = vmatpush.bf16.xpose.msra.mxu0 0
  %4901 = vmatpush.bf16.xpose.msra.mxu0 0
  %4902 = vmatpush.bf16.xpose.msra.mxu0 0
  %4903 = vmatpush.bf16.xpose.msra.mxu0 0
  %4904 = vmatpush.bf16.xpose.msra.mxu0 0
  %4905 = vmatpush.bf16.xpose.msra.mxu0 0
  %4906 = vmatpush.bf16.xpose.msra.mxu0 %v4897
  %4907 = vmatmul.bf16.gmra.mxu0 %v4533
  %v4908 = vpop.f32.mrf.mxu0
  %v4909 = vadd.f32 0.0, %v4908
  %v4910 = vpop.f32.mrf.mxu0
  %4911 = vdwg.mxu0
  %v4914 = vunpack.c.l.b16 %v4627
  %v4915 = vunpack.c.l.b16 %v4628
  %v4916 = vpack.c.b16 %v4915, %v4914
  %4918 = vmatpush.bf16.xpose.msra.mxu0 0
  %4919 = vmatpush.bf16.xpose.msra.mxu0 0
  %4920 = vmatpush.bf16.xpose.msra.mxu0 0
  %4921 = vmatpush.bf16.xpose.msra.mxu0 0
  %4922 = vmatpush.bf16.xpose.msra.mxu0 0
  %4923 = vmatpush.bf16.xpose.msra.mxu0 0
  %4924 = vmatpush.bf16.xpose.msra.mxu0 0
  %4925 = vmatpush.bf16.xpose.msra.mxu0 %v4916
  %4926 = vmatmul.bf16.gmra.mxu0 %v4534
  %v4927 = vpop.f32.mrf.mxu0
  %v4928 = vadd.f32 0.0, %v4927
  %v4929 = vpop.f32.mrf.mxu0
  %4930 = vdwg.mxu0
  %v4933 = vunpack.c.l.b16 %v4629
  %v4934 = vunpack.c.l.b16 %v4630
  %v4935 = vpack.c.b16 %v4934, %v4933
  %4937 = vmatpush.bf16.xpose.msra.mxu0 0
  %4938 = vmatpush.bf16.xpose.msra.mxu0 0
  %4939 = vmatpush.bf16.xpose.msra.mxu0 0
  %4940 = vmatpush.bf16.xpose.msra.mxu0 0
  %4941 = vmatpush.bf16.xpose.msra.mxu0 0
  %4942 = vmatpush.bf16.xpose.msra.mxu0 0
  %4943 = vmatpush.bf16.xpose.msra.mxu0 0
  %4944 = vmatpush.bf16.xpose.msra.mxu0 %v4935
  %4945 = vmatmul.bf16.gmra.mxu0 %v4535
  %v4946 = vpop.f32.mrf.mxu0
  %v4947 = vadd.f32 0.0, %v4946
  %v4948 = vpop.f32.mrf.mxu0
  %4949 = vdwg.mxu0
  %v4952 = vunpack.c.l.b16 %v4631
  %v4953 = vunpack.c.l.b16 %v4632
  %v4954 = vpack.c.b16 %v4953, %v4952
  %4956 = vmatpush.bf16.xpose.msra.mxu0 0
  %4957 = vmatpush.bf16.xpose.msra.mxu0 0
  %4958 = vmatpush.bf16.xpose.msra.mxu0 0
  %4959 = vmatpush.bf16.xpose.msra.mxu0 0
  %4960 = vmatpush.bf16.xpose.msra.mxu0 0
  %4961 = vmatpush.bf16.xpose.msra.mxu0 0
  %4962 = vmatpush.bf16.xpose.msra.mxu0 0
  %4963 = vmatpush.bf16.xpose.msra.mxu0 %v4954
  %4964 = vmatmul.bf16.gmra.mxu0 %v4536
  %v4965 = vpop.f32.mrf.mxu0
  %v4966 = vadd.f32 0.0, %v4965
  %v4967 = vpop.f32.mrf.mxu0
  %4968 = vdwg.mxu0
  %v4969 = vsel %vm931, 1, 0
  %vm4970 = vcmp.eq.s32.totalorder %v4969, 1
  %v4971 = vsel %vm4970, %v4681, -1e+30
  %v4972 = vsel %vm4970, %v4700, -1e+30
  %v4973 = vsel %vm4970, %v4719, -1e+30
  %v4974 = vsel %vm4970, %v4738, -1e+30
  %v4975 = vsel %vm4970, %v4757, -1e+30
  %v4976 = vsel %vm4970, %v4776, -1e+30
  %v4977 = vsel %vm4970, %v4795, -1e+30
  %v4978 = vsel %vm4970, %v4814, -1e+30
  %v4979 = vsel %vm4970, %v4833, -1e+30
  %v4980 = vsel %vm4970, %v4852, -1e+30
  %v4981 = vsel %vm4970, %v4871, -1e+30
  %v4982 = vsel %vm4970, %v4890, -1e+30
  %v4983 = vsel %vm4970, %v4909, -1e+30
  %v4984 = vsel %vm4970, %v4928, -1e+30
  %v4985 = vsel %vm4970, %v4947, -1e+30
  %v4986 = vsel %vm4970, %v4966, -1e+30
  %v4987 = vsel %vm952, %v4971, -inf
  %4988 = vmax.xlane.f32.xlu0 %v4987
  %v4989 = vpop.xlane.xlu0 %4988
  %v4990 = vsel %vm952, %v4972, -inf
  %4991 = vmax.xlane.f32.xlu0 %v4990
  %v4992 = vpop.xlane.xlu0 %4991
  %v4993 = vsel %vm952, %v4973, -inf
  %4994 = vmax.xlane.f32.xlu0 %v4993
  %v4995 = vpop.xlane.xlu0 %4994
  %v4996 = vsel %vm952, %v4974, -inf
  %4997 = vmax.xlane.f32.xlu0 %v4996
  %v4998 = vpop.xlane.xlu0 %4997
  %v4999 = vsel %vm952, %v4975, -inf
  %5000 = vmax.xlane.f32.xlu0 %v4999
  %v5001 = vpop.xlane.xlu0 %5000
  %v5002 = vsel %vm952, %v4976, -inf
  %5003 = vmax.xlane.f32.xlu0 %v5002
  %v5004 = vpop.xlane.xlu0 %5003
  %v5005 = vsel %vm952, %v4977, -inf
  %5006 = vmax.xlane.f32.xlu0 %v5005
  %v5007 = vpop.xlane.xlu0 %5006
  %v5008 = vsel %vm952, %v4978, -inf
  %5009 = vmax.xlane.f32.xlu0 %v5008
  %v5010 = vpop.xlane.xlu0 %5009
  %v5011 = vsel %vm952, %v4979, -inf
  %5012 = vmax.xlane.f32.xlu0 %v5011
  %v5013 = vpop.xlane.xlu0 %5012
  %v5014 = vsel %vm952, %v4980, -inf
  %5015 = vmax.xlane.f32.xlu0 %v5014
  %v5016 = vpop.xlane.xlu0 %5015
  %v5017 = vsel %vm952, %v4981, -inf
  %5018 = vmax.xlane.f32.xlu0 %v5017
  %v5019 = vpop.xlane.xlu0 %5018
  %v5020 = vsel %vm952, %v4982, -inf
  %5021 = vmax.xlane.f32.xlu0 %v5020
  %v5022 = vpop.xlane.xlu0 %5021
  %v5023 = vsel %vm952, %v4983, -inf
  %5024 = vmax.xlane.f32.xlu0 %v5023
  %v5025 = vpop.xlane.xlu0 %5024
  %v5026 = vsel %vm952, %v4984, -inf
  %5027 = vmax.xlane.f32.xlu0 %v5026
  %v5028 = vpop.xlane.xlu0 %5027
  %v5029 = vsel %vm952, %v4985, -inf
  %5030 = vmax.xlane.f32.xlu0 %v5029
  %v5031 = vpop.xlane.xlu0 %5030
  %v5032 = vsel %vm952, %v4986, -inf
  %5033 = vmax.xlane.f32.xlu0 %v5032
  %v5034 = vpop.xlane.xlu0 %5033
  %v5035 = vsub.f32 %v4971, %v4989
  %v5036 = vsub.f32 %v4972, %v4992
  %v5037 = vsub.f32 %v4973, %v4995
  %v5038 = vsub.f32 %v4974, %v4998
  %v5039 = vsub.f32 %v4975, %v5001
  %v5040 = vsub.f32 %v4976, %v5004
  %v5041 = vsub.f32 %v4977, %v5007
  %v5042 = vsub.f32 %v4978, %v5010
  %v5043 = vsub.f32 %v4979, %v5013
  %v5044 = vsub.f32 %v4980, %v5016
  %v5045 = vsub.f32 %v4981, %v5019
  %v5046 = vsub.f32 %v4982, %v5022
  %v5047 = vsub.f32 %v4983, %v5025
  %v5048 = vsub.f32 %v4984, %v5028
  %v5049 = vsub.f32 %v4985, %v5031
  %v5050 = vsub.f32 %v4986, %v5034
  %v5051 = vmul.f32 %v5035, 1.442695
  %v5052 = vpow.pop %v5051
  %v5053 = vmul.f32 %v5036, 1.442695
  %v5054 = vpow.pop %v5053
  %v5055 = vmul.f32 %v5037, 1.442695
  %v5056 = vpow.pop %v5055
  %v5057 = vmul.f32 %v5038, 1.442695
  %v5058 = vpow.pop %v5057
  %v5059 = vmul.f32 %v5039, 1.442695
  %v5060 = vpow.pop %v5059
  %v5061 = vmul.f32 %v5040, 1.442695
  %v5062 = vpow.pop %v5061
  %v5063 = vmul.f32 %v5041, 1.442695
  %v5064 = vpow.pop %v5063
  %v5065 = vmul.f32 %v5042, 1.442695
  %v5066 = vpow.pop %v5065
  %v5067 = vmul.f32 %v5043, 1.442695
  %v5068 = vpow.pop %v5067
  %v5069 = vmul.f32 %v5044, 1.442695
  %v5070 = vpow.pop %v5069
  %v5071 = vmul.f32 %v5045, 1.442695
  %v5072 = vpow.pop %v5071
  %v5073 = vmul.f32 %v5046, 1.442695
  %v5074 = vpow.pop %v5073
  %v5075 = vmul.f32 %v5047, 1.442695
  %v5076 = vpow.pop %v5075
  %v5077 = vmul.f32 %v5048, 1.442695
  %v5078 = vpow.pop %v5077
  %v5079 = vmul.f32 %v5049, 1.442695
  %v5080 = vpow.pop %v5079
  %v5081 = vmul.f32 %v5050, 1.442695
  %v5082 = vpow.pop %v5081
  %v5083 = vsel %vm952, %v5052, 0.0
  %5084 = vadd.xlane.f32.xlu0 %v5083
  %v5085 = vpop.xlane.xlu0 %5084
  %v5086 = vsel %vm952, %v5054, 0.0
  %5087 = vadd.xlane.f32.xlu0 %v5086
  %v5088 = vpop.xlane.xlu0 %5087
  %v5089 = vsel %vm952, %v5056, 0.0
  %5090 = vadd.xlane.f32.xlu0 %v5089
  %v5091 = vpop.xlane.xlu0 %5090
  %v5092 = vsel %vm952, %v5058, 0.0
  %5093 = vadd.xlane.f32.xlu0 %v5092
  %v5094 = vpop.xlane.xlu0 %5093
  %v5095 = vsel %vm952, %v5060, 0.0
  %5096 = vadd.xlane.f32.xlu0 %v5095
  %v5097 = vpop.xlane.xlu0 %5096
  %v5098 = vsel %vm952, %v5062, 0.0
  %5099 = vadd.xlane.f32.xlu0 %v5098
  %v5100 = vpop.xlane.xlu0 %5099
  %v5101 = vsel %vm952, %v5064, 0.0
  %5102 = vadd.xlane.f32.xlu0 %v5101
  %v5103 = vpop.xlane.xlu0 %5102
  %v5104 = vsel %vm952, %v5066, 0.0
  %5105 = vadd.xlane.f32.xlu0 %v5104
  %v5106 = vpop.xlane.xlu0 %5105
  %v5107 = vsel %vm952, %v5068, 0.0
  %5108 = vadd.xlane.f32.xlu0 %v5107
  %v5109 = vpop.xlane.xlu0 %5108
  %v5110 = vsel %vm952, %v5070, 0.0
  %5111 = vadd.xlane.f32.xlu0 %v5110
  %v5112 = vpop.xlane.xlu0 %5111
  %v5113 = vsel %vm952, %v5072, 0.0
  %5114 = vadd.xlane.f32.xlu0 %v5113
  %v5115 = vpop.xlane.xlu0 %5114
  %v5116 = vsel %vm952, %v5074, 0.0
  %5117 = vadd.xlane.f32.xlu0 %v5116
  %v5118 = vpop.xlane.xlu0 %5117
  %v5119 = vsel %vm952, %v5076, 0.0
  %5120 = vadd.xlane.f32.xlu0 %v5119
  %v5121 = vpop.xlane.xlu0 %5120
  %v5122 = vsel %vm952, %v5078, 0.0
  %5123 = vadd.xlane.f32.xlu0 %v5122
  %v5124 = vpop.xlane.xlu0 %5123
  %v5125 = vsel %vm952, %v5080, 0.0
  %5126 = vadd.xlane.f32.xlu0 %v5125
  %v5127 = vpop.xlane.xlu0 %5126
  %v5128 = vsel %vm952, %v5082, 0.0
  %5129 = vadd.xlane.f32.xlu0 %v5128
  %v5130 = vpop.xlane.xlu0 %5129
  %v5131 = vrcp.pop %v5085
  %v5132 = vrcp.pop %v5088
  %v5133 = vrcp.pop %v5091
  %v5134 = vrcp.pop %v5094
  %v5135 = vrcp.pop %v5097
  %v5136 = vrcp.pop %v5100
  %v5137 = vrcp.pop %v5103
  %v5138 = vrcp.pop %v5106
  %v5139 = vrcp.pop %v5109
  %v5140 = vrcp.pop %v5112
  %v5141 = vrcp.pop %v5115
  %v5142 = vrcp.pop %v5118
  %v5143 = vrcp.pop %v5121
  %v5144 = vrcp.pop %v5124
  %v5145 = vrcp.pop %v5127
  %v5146 = vrcp.pop %v5130
  %v5147 = vmul.f32 %v5052, %v5131
  %v5148 = vmul.f32 %v5054, %v5132
  %v5149 = vmul.f32 %v5056, %v5133
  %v5150 = vmul.f32 %v5058, %v5134
  %v5151 = vmul.f32 %v5060, %v5135
  %v5152 = vmul.f32 %v5062, %v5136
  %v5153 = vmul.f32 %v5064, %v5137
  %v5154 = vmul.f32 %v5066, %v5138
  %v5155 = vmul.f32 %v5068, %v5139
  %v5156 = vmul.f32 %v5070, %v5140
  %v5157 = vmul.f32 %v5072, %v5141
  %v5158 = vmul.f32 %v5074, %v5142
  %v5159 = vmul.f32 %v5076, %v5143
  %v5160 = vmul.f32 %v5078, %v5144
  %v5161 = vmul.f32 %v5080, %v5145
  %v5162 = vmul.f32 %v5082, %v5146
  %v5163 = vpack.c.bf16 %v5147, %v5147
  %v5164 = vpack.c.bf16 %v5148, %v5148
  %v5165 = vpack.c.bf16 %v5149, %v5149
  %v5166 = vpack.c.bf16 %v5150, %v5150
  %v5167 = vpack.c.bf16 %v5151, %v5151
  %v5168 = vpack.c.bf16 %v5152, %v5152
  %v5169 = vpack.c.bf16 %v5153, %v5153
  %v5170 = vpack.c.bf16 %v5154, %v5154
  %v5171 = vpack.c.bf16 %v5155, %v5155
  %v5172 = vpack.c.bf16 %v5156, %v5156
  %v5173 = vpack.c.bf16 %v5157, %v5157
  %v5174 = vpack.c.bf16 %v5158, %v5158
  %v5175 = vpack.c.bf16 %v5159, %v5159
  %v5176 = vpack.c.bf16 %v5160, %v5160
  %v5177 = vpack.c.bf16 %v5161, %v5161
  %v5178 = vpack.c.bf16 %v5162, %v5162
  %v5181 = vunpack.c.l.b16 %v4633
  %v5182 = vunpack.c.l.b16 %v4634
  %v5183 = vpack.c.b16 %v5182, %v5181
  %v5186 = vsel %vm952, %v5163, 0
  %5188 = vmatpush.bf16.msra.mxu0 0
  %5189 = vmatpush.bf16.msra.mxu0 0
  %5190 = vmatpush.bf16.msra.mxu0 0
  %5191 = vmatpush.bf16.msra.mxu0 0
  %5192 = vmatpush.bf16.msra.mxu0 0
  %5193 = vmatpush.bf16.msra.mxu0 0
  %5194 = vmatpush.bf16.msra.mxu0 0
  %5195 = vmatpush.bf16.msra.mxu0 %v5183
  %5196 = vmatmul.bf16.gmra.mxu0 %v5186
  %v5197 = vpop.f32.mrf.mxu0
  %v5198 = vadd.f32 0.0, %v5197
  %v5199 = vpop.f32.mrf.mxu0
  %5200 = vdwg.mxu0
  %v5203 = vunpack.c.l.b16 %v4635
  %v5204 = vunpack.c.l.b16 %v4636
  %v5205 = vpack.c.b16 %v5204, %v5203
  %v5208 = vsel %vm952, %v5164, 0
  %5210 = vmatpush.bf16.msra.mxu0 0
  %5211 = vmatpush.bf16.msra.mxu0 0
  %5212 = vmatpush.bf16.msra.mxu0 0
  %5213 = vmatpush.bf16.msra.mxu0 0
  %5214 = vmatpush.bf16.msra.mxu0 0
  %5215 = vmatpush.bf16.msra.mxu0 0
  %5216 = vmatpush.bf16.msra.mxu0 0
  %5217 = vmatpush.bf16.msra.mxu0 %v5205
  %5218 = vmatmul.bf16.gmra.mxu0 %v5208
  %v5219 = vpop.f32.mrf.mxu0
  %v5220 = vadd.f32 0.0, %v5219
  %v5221 = vpop.f32.mrf.mxu0
  %5222 = vdwg.mxu0
  %v5225 = vunpack.c.l.b16 %v4637
  %v5226 = vunpack.c.l.b16 %v4638
  %v5227 = vpack.c.b16 %v5226, %v5225
  %v5230 = vsel %vm952, %v5165, 0
  %5232 = vmatpush.bf16.msra.mxu0 0
  %5233 = vmatpush.bf16.msra.mxu0 0
  %5234 = vmatpush.bf16.msra.mxu0 0
  %5235 = vmatpush.bf16.msra.mxu0 0
  %5236 = vmatpush.bf16.msra.mxu0 0
  %5237 = vmatpush.bf16.msra.mxu0 0
  %5238 = vmatpush.bf16.msra.mxu0 0
  %5239 = vmatpush.bf16.msra.mxu0 %v5227
  %5240 = vmatmul.bf16.gmra.mxu0 %v5230
  %v5241 = vpop.f32.mrf.mxu0
  %v5242 = vadd.f32 0.0, %v5241
  %v5243 = vpop.f32.mrf.mxu0
  %5244 = vdwg.mxu0
  %v5247 = vunpack.c.l.b16 %v4639
  %v5248 = vunpack.c.l.b16 %v4640
  %v5249 = vpack.c.b16 %v5248, %v5247
  %v5252 = vsel %vm952, %v5166, 0
  %5254 = vmatpush.bf16.msra.mxu0 0
  %5255 = vmatpush.bf16.msra.mxu0 0
  %5256 = vmatpush.bf16.msra.mxu0 0
  %5257 = vmatpush.bf16.msra.mxu0 0
  %5258 = vmatpush.bf16.msra.mxu0 0
  %5259 = vmatpush.bf16.msra.mxu0 0
  %5260 = vmatpush.bf16.msra.mxu0 0
  %5261 = vmatpush.bf16.msra.mxu0 %v5249
  %5262 = vmatmul.bf16.gmra.mxu0 %v5252
  %v5263 = vpop.f32.mrf.mxu0
  %v5264 = vadd.f32 0.0, %v5263
  %v5265 = vpop.f32.mrf.mxu0
  %5266 = vdwg.mxu0
  %v5269 = vunpack.c.l.b16 %v4641
  %v5270 = vunpack.c.l.b16 %v4642
  %v5271 = vpack.c.b16 %v5270, %v5269
  %v5274 = vsel %vm952, %v5167, 0
  %5276 = vmatpush.bf16.msra.mxu0 0
  %5277 = vmatpush.bf16.msra.mxu0 0
  %5278 = vmatpush.bf16.msra.mxu0 0
  %5279 = vmatpush.bf16.msra.mxu0 0
  %5280 = vmatpush.bf16.msra.mxu0 0
  %5281 = vmatpush.bf16.msra.mxu0 0
  %5282 = vmatpush.bf16.msra.mxu0 0
  %5283 = vmatpush.bf16.msra.mxu0 %v5271
  %5284 = vmatmul.bf16.gmra.mxu0 %v5274
  %v5285 = vpop.f32.mrf.mxu0
  %v5286 = vadd.f32 0.0, %v5285
  %v5287 = vpop.f32.mrf.mxu0
  %5288 = vdwg.mxu0
  %v5291 = vunpack.c.l.b16 %v4643
  %v5292 = vunpack.c.l.b16 %v4644
  %v5293 = vpack.c.b16 %v5292, %v5291
  %v5296 = vsel %vm952, %v5168, 0
  %5298 = vmatpush.bf16.msra.mxu0 0
  %5299 = vmatpush.bf16.msra.mxu0 0
  %5300 = vmatpush.bf16.msra.mxu0 0
  %5301 = vmatpush.bf16.msra.mxu0 0
  %5302 = vmatpush.bf16.msra.mxu0 0
  %5303 = vmatpush.bf16.msra.mxu0 0
  %5304 = vmatpush.bf16.msra.mxu0 0
  %5305 = vmatpush.bf16.msra.mxu0 %v5293
  %5306 = vmatmul.bf16.gmra.mxu0 %v5296
  %v5307 = vpop.f32.mrf.mxu0
  %v5308 = vadd.f32 0.0, %v5307
  %v5309 = vpop.f32.mrf.mxu0
  %5310 = vdwg.mxu0
  %v5313 = vunpack.c.l.b16 %v4645
  %v5314 = vunpack.c.l.b16 %v4646
  %v5315 = vpack.c.b16 %v5314, %v5313
  %v5318 = vsel %vm952, %v5169, 0
  %5320 = vmatpush.bf16.msra.mxu0 0
  %5321 = vmatpush.bf16.msra.mxu0 0
  %5322 = vmatpush.bf16.msra.mxu0 0
  %5323 = vmatpush.bf16.msra.mxu0 0
  %5324 = vmatpush.bf16.msra.mxu0 0
  %5325 = vmatpush.bf16.msra.mxu0 0
  %5326 = vmatpush.bf16.msra.mxu0 0
  %5327 = vmatpush.bf16.msra.mxu0 %v5315
  %5328 = vmatmul.bf16.gmra.mxu0 %v5318
  %v5329 = vpop.f32.mrf.mxu0
  %v5330 = vadd.f32 0.0, %v5329
  %v5331 = vpop.f32.mrf.mxu0
  %5332 = vdwg.mxu0
  %v5335 = vunpack.c.l.b16 %v4647
  %v5336 = vunpack.c.l.b16 %v4648
  %v5337 = vpack.c.b16 %v5336, %v5335
  %v5340 = vsel %vm952, %v5170, 0
  %5342 = vmatpush.bf16.msra.mxu0 0
  %5343 = vmatpush.bf16.msra.mxu0 0
  %5344 = vmatpush.bf16.msra.mxu0 0
  %5345 = vmatpush.bf16.msra.mxu0 0
  %5346 = vmatpush.bf16.msra.mxu0 0
  %5347 = vmatpush.bf16.msra.mxu0 0
  %5348 = vmatpush.bf16.msra.mxu0 0
  %5349 = vmatpush.bf16.msra.mxu0 %v5337
  %5350 = vmatmul.bf16.gmra.mxu0 %v5340
  %v5351 = vpop.f32.mrf.mxu0
  %v5352 = vadd.f32 0.0, %v5351
  %v5353 = vpop.f32.mrf.mxu0
  %5354 = vdwg.mxu0
  %v5357 = vunpack.c.l.b16 %v4649
  %v5358 = vunpack.c.l.b16 %v4650
  %v5359 = vpack.c.b16 %v5358, %v5357
  %v5362 = vsel %vm952, %v5171, 0
  %5364 = vmatpush.bf16.msra.mxu0 0
  %5365 = vmatpush.bf16.msra.mxu0 0
  %5366 = vmatpush.bf16.msra.mxu0 0
  %5367 = vmatpush.bf16.msra.mxu0 0
  %5368 = vmatpush.bf16.msra.mxu0 0
  %5369 = vmatpush.bf16.msra.mxu0 0
  %5370 = vmatpush.bf16.msra.mxu0 0
  %5371 = vmatpush.bf16.msra.mxu0 %v5359
  %5372 = vmatmul.bf16.gmra.mxu0 %v5362
  %v5373 = vpop.f32.mrf.mxu0
  %v5374 = vadd.f32 0.0, %v5373
  %v5375 = vpop.f32.mrf.mxu0
  %5376 = vdwg.mxu0
  %v5379 = vunpack.c.l.b16 %v4651
  %v5380 = vunpack.c.l.b16 %v4652
  %v5381 = vpack.c.b16 %v5380, %v5379
  %v5384 = vsel %vm952, %v5172, 0
  %5386 = vmatpush.bf16.msra.mxu0 0
  %5387 = vmatpush.bf16.msra.mxu0 0
  %5388 = vmatpush.bf16.msra.mxu0 0
  %5389 = vmatpush.bf16.msra.mxu0 0
  %5390 = vmatpush.bf16.msra.mxu0 0
  %5391 = vmatpush.bf16.msra.mxu0 0
  %5392 = vmatpush.bf16.msra.mxu0 0
  %5393 = vmatpush.bf16.msra.mxu0 %v5381
  %5394 = vmatmul.bf16.gmra.mxu0 %v5384
  %v5395 = vpop.f32.mrf.mxu0
  %v5396 = vadd.f32 0.0, %v5395
  %v5397 = vpop.f32.mrf.mxu0
  %5398 = vdwg.mxu0
  %v5401 = vunpack.c.l.b16 %v4653
  %v5402 = vunpack.c.l.b16 %v4654
  %v5403 = vpack.c.b16 %v5402, %v5401
  %v5406 = vsel %vm952, %v5173, 0
  %5408 = vmatpush.bf16.msra.mxu0 0
  %5409 = vmatpush.bf16.msra.mxu0 0
  %5410 = vmatpush.bf16.msra.mxu0 0
  %5411 = vmatpush.bf16.msra.mxu0 0
  %5412 = vmatpush.bf16.msra.mxu0 0
  %5413 = vmatpush.bf16.msra.mxu0 0
  %5414 = vmatpush.bf16.msra.mxu0 0
  %5415 = vmatpush.bf16.msra.mxu0 %v5403
  %5416 = vmatmul.bf16.gmra.mxu0 %v5406
  %v5417 = vpop.f32.mrf.mxu0
  %v5418 = vadd.f32 0.0, %v5417
  %v5419 = vpop.f32.mrf.mxu0
  %5420 = vdwg.mxu0
  %v5423 = vunpack.c.l.b16 %v4655
  %v5424 = vunpack.c.l.b16 %v4656
  %v5425 = vpack.c.b16 %v5424, %v5423
  %v5428 = vsel %vm952, %v5174, 0
  %5430 = vmatpush.bf16.msra.mxu0 0
  %5431 = vmatpush.bf16.msra.mxu0 0
  %5432 = vmatpush.bf16.msra.mxu0 0
  %5433 = vmatpush.bf16.msra.mxu0 0
  %5434 = vmatpush.bf16.msra.mxu0 0
  %5435 = vmatpush.bf16.msra.mxu0 0
  %5436 = vmatpush.bf16.msra.mxu0 0
  %5437 = vmatpush.bf16.msra.mxu0 %v5425
  %5438 = vmatmul.bf16.gmra.mxu0 %v5428
  %v5439 = vpop.f32.mrf.mxu0
  %v5440 = vadd.f32 0.0, %v5439
  %v5441 = vpop.f32.mrf.mxu0
  %5442 = vdwg.mxu0
  %v5445 = vunpack.c.l.b16 %v4657
  %v5446 = vunpack.c.l.b16 %v4658
  %v5447 = vpack.c.b16 %v5446, %v5445
  %v5450 = vsel %vm952, %v5175, 0
  %5452 = vmatpush.bf16.msra.mxu0 0
  %5453 = vmatpush.bf16.msra.mxu0 0
  %5454 = vmatpush.bf16.msra.mxu0 0
  %5455 = vmatpush.bf16.msra.mxu0 0
  %5456 = vmatpush.bf16.msra.mxu0 0
  %5457 = vmatpush.bf16.msra.mxu0 0
  %5458 = vmatpush.bf16.msra.mxu0 0
  %5459 = vmatpush.bf16.msra.mxu0 %v5447
  %5460 = vmatmul.bf16.gmra.mxu0 %v5450
  %v5461 = vpop.f32.mrf.mxu0
  %v5462 = vadd.f32 0.0, %v5461
  %v5463 = vpop.f32.mrf.mxu0
  %5464 = vdwg.mxu0
  %v5467 = vunpack.c.l.b16 %v4659
  %v5468 = vunpack.c.l.b16 %v4660
  %v5469 = vpack.c.b16 %v5468, %v5467
  %v5472 = vsel %vm952, %v5176, 0
  %5474 = vmatpush.bf16.msra.mxu0 0
  %5475 = vmatpush.bf16.msra.mxu0 0
  %5476 = vmatpush.bf16.msra.mxu0 0
  %5477 = vmatpush.bf16.msra.mxu0 0
  %5478 = vmatpush.bf16.msra.mxu0 0
  %5479 = vmatpush.bf16.msra.mxu0 0
  %5480 = vmatpush.bf16.msra.mxu0 0
  %5481 = vmatpush.bf16.msra.mxu0 %v5469
  %5482 = vmatmul.bf16.gmra.mxu0 %v5472
  %v5483 = vpop.f32.mrf.mxu0
  %v5484 = vadd.f32 0.0, %v5483
  %v5485 = vpop.f32.mrf.mxu0
  %5486 = vdwg.mxu0
  %v5489 = vunpack.c.l.b16 %v4661
  %v5490 = vunpack.c.l.b16 %v4662
  %v5491 = vpack.c.b16 %v5490, %v5489
  %v5494 = vsel %vm952, %v5177, 0
  %5496 = vmatpush.bf16.msra.mxu0 0
  %5497 = vmatpush.bf16.msra.mxu0 0
  %5498 = vmatpush.bf16.msra.mxu0 0
  %5499 = vmatpush.bf16.msra.mxu0 0
  %5500 = vmatpush.bf16.msra.mxu0 0
  %5501 = vmatpush.bf16.msra.mxu0 0
  %5502 = vmatpush.bf16.msra.mxu0 0
  %5503 = vmatpush.bf16.msra.mxu0 %v5491
  %5504 = vmatmul.bf16.gmra.mxu0 %v5494
  %v5505 = vpop.f32.mrf.mxu0
  %v5506 = vadd.f32 0.0, %v5505
  %v5507 = vpop.f32.mrf.mxu0
  %5508 = vdwg.mxu0
  %v5511 = vunpack.c.l.b16 %v4663
  %v5512 = vunpack.c.l.b16 %v4664
  %v5513 = vpack.c.b16 %v5512, %v5511
  %v5516 = vsel %vm952, %v5178, 0
  %5518 = vmatpush.bf16.msra.mxu0 0
  %5519 = vmatpush.bf16.msra.mxu0 0
  %5520 = vmatpush.bf16.msra.mxu0 0
  %5521 = vmatpush.bf16.msra.mxu0 0
  %5522 = vmatpush.bf16.msra.mxu0 0
  %5523 = vmatpush.bf16.msra.mxu0 0
  %5524 = vmatpush.bf16.msra.mxu0 0
  %5525 = vmatpush.bf16.msra.mxu0 %v5513
  %5526 = vmatmul.bf16.gmra.mxu0 %v5516
  %v5527 = vpop.f32.mrf.mxu0
  %v5528 = vadd.f32 0.0, %v5527
  %v5529 = vpop.f32.mrf.mxu0
  %5530 = vdwg.mxu0
  %v5531 = vpack.c.bf16 %v5220, %v5198
  %v5532 = vpack.c.bf16 %v5264, %v5242
  %v5533 = vpack.c.bf16 %v5308, %v5286
  %v5534 = vpack.c.bf16 %v5352, %v5330
  %v5535 = vpack.c.bf16 %v5396, %v5374
  %v5536 = vpack.c.bf16 %v5440, %v5418
  %v5537 = vpack.c.bf16 %v5484, %v5462
  %v5538 = vpack.c.bf16 %v5528, %v5506
  %v5539 = vld [vmem:[%s3] sm:$0xf]
  %v5540 = vld [vmem:[%s3 + $0x4] sm:$0xf]
  %v5541 = vld [vmem:[%s3 + $0x8] sm:$0xf]
  %v5542 = vld [vmem:[%s3 + $0xc] sm:$0xf]
  %v5543 = vld [vmem:[%s3 + $0x10] sm:$0xf]
  %v5544 = vld [vmem:[%s3 + $0x14] sm:$0xf]
  %v5545 = vld [vmem:[%s3 + $0x18] sm:$0xf]
  %v5546 = vld [vmem:[%s3 + $0x1c] sm:$0xf]
  %v5547 = vld [vmem:[%s3 + $0x20] sm:$0xf]
  %v5548 = vld [vmem:[%s3 + $0x24] sm:$0xf]
  %v5549 = vld [vmem:[%s3 + $0x28] sm:$0xf]
  %v5550 = vld [vmem:[%s3 + $0x2c] sm:$0xf]
  %v5551 = vld [vmem:[%s3 + $0x30] sm:$0xf]
  %v5552 = vld [vmem:[%s3 + $0x34] sm:$0xf]
  %v5553 = vld [vmem:[%s3 + $0x38] sm:$0xf]
  %v5554 = vld [vmem:[%s3 + $0x3c] sm:$0xf]
  %v5571 = vunpack.c.l.b16 %v5539
  %v5572 = vunpack.c.l.b16 %v5540
  %v5573 = vunpack.c.l.b16 %v5541
  %v5574 = vunpack.c.l.b16 %v5542
  %v5575 = vunpack.c.l.b16 %v5543
  %v5576 = vunpack.c.l.b16 %v5544
  %v5577 = vunpack.c.l.b16 %v5545
  %v5578 = vunpack.c.l.b16 %v5546
  %v5579 = vunpack.c.l.b16 %v5547
  %v5580 = vunpack.c.l.b16 %v5548
  %v5581 = vunpack.c.l.b16 %v5549
  %v5582 = vunpack.c.l.b16 %v5550
  %v5583 = vunpack.c.l.b16 %v5551
  %v5584 = vunpack.c.l.b16 %v5552
  %v5585 = vunpack.c.l.b16 %v5553
  %v5586 = vunpack.c.l.b16 %v5554
  %v5587 = vpack.c.b16 %v5572, %v5571
  %v5588 = vpack.c.b16 %v5574, %v5573
  %v5589 = vpack.c.b16 %v5576, %v5575
  %v5590 = vpack.c.b16 %v5578, %v5577
  %v5591 = vpack.c.b16 %v5580, %v5579
  %v5592 = vpack.c.b16 %v5582, %v5581
  %v5593 = vpack.c.b16 %v5584, %v5583
  %v5594 = vpack.c.b16 %v5586, %v5585
  %5603 = vmatpush.bf16.msra.mxu0 %v5594
  %5604 = vmatpush.bf16.msra.mxu0 %v5593
  %5605 = vmatpush.bf16.msra.mxu0 %v5592
  %5606 = vmatpush.bf16.msra.mxu0 %v5591
  %5607 = vmatpush.bf16.msra.mxu0 %v5590
  %5608 = vmatpush.bf16.msra.mxu0 %v5589
  %5609 = vmatpush.bf16.msra.mxu0 %v5588
  %5610 = vmatpush.bf16.msra.mxu0 %v5587
  %5611 = vmatmul.bf16.gmra.mxu0 %v5531
  %v5612 = vpop.f32.mrf.mxu0
  %v5613 = vadd.f32 %v4150, %v5612
  %v5614 = vpop.f32.mrf.mxu0
  %v5615 = vadd.f32 %v4151, %v5614
  %5616 = vmatmul.bf16.gmra.mxu0 %v5532
  %v5617 = vpop.f32.mrf.mxu0
  %v5618 = vadd.f32 %v4152, %v5617
  %v5619 = vpop.f32.mrf.mxu0
  %v5620 = vadd.f32 %v4153, %v5619
  %5621 = vmatmul.bf16.gmra.mxu0 %v5533
  %v5622 = vpop.f32.mrf.mxu0
  %v5623 = vadd.f32 %v4154, %v5622
  %v5624 = vpop.f32.mrf.mxu0
  %v5625 = vadd.f32 %v4155, %v5624
  %5626 = vmatmul.bf16.gmra.mxu0 %v5534
  %v5627 = vpop.f32.mrf.mxu0
  %v5628 = vadd.f32 %v4156, %v5627
  %v5629 = vpop.f32.mrf.mxu0
  %v5630 = vadd.f32 %v4157, %v5629
  %5631 = vmatmul.bf16.gmra.mxu0 %v5535
  %v5632 = vpop.f32.mrf.mxu0
  %v5633 = vadd.f32 %v4158, %v5632
  %v5634 = vpop.f32.mrf.mxu0
  %v5635 = vadd.f32 %v4159, %v5634
  %5636 = vmatmul.bf16.gmra.mxu0 %v5536
  %v5637 = vpop.f32.mrf.mxu0
  %v5638 = vadd.f32 %v4160, %v5637
  %v5639 = vpop.f32.mrf.mxu0
  %v5640 = vadd.f32 %v4161, %v5639
  %5641 = vmatmul.bf16.gmra.mxu0 %v5537
  %v5642 = vpop.f32.mrf.mxu0
  %v5643 = vadd.f32 %v4162, %v5642
  %v5644 = vpop.f32.mrf.mxu0
  %v5645 = vadd.f32 %v4163, %v5644
  %5646 = vmatmul.bf16.gmra.mxu0 %v5538
  %v5647 = vpop.f32.mrf.mxu0
  %v5648 = vadd.f32 %v4164, %v5647
  %v5649 = vpop.f32.mrf.mxu0
  %v5650 = vadd.f32 %v4165, %v5649
  %5651 = vdwg.mxu0
  %v5652 = vpack.c.bf16 %v5615, %v5613
  %v5653 = vpack.c.bf16 %v5620, %v5618
  %v5654 = vpack.c.bf16 %v5625, %v5623
  %v5655 = vpack.c.bf16 %v5630, %v5628
  %v5656 = vpack.c.bf16 %v5635, %v5633
  %v5657 = vpack.c.bf16 %v5640, %v5638
  %v5658 = vpack.c.bf16 %v5645, %v5643
  %v5659 = vpack.c.bf16 %v5650, %v5648
  %v5660 = vld [vmem:[%s4] sm:$0xff]
  %v5661 = vld [vmem:[%s4 + $0x8] sm:$0xff]
  %v5662 = vld [vmem:[%s4 + $0x10] sm:$0xff]
  %v5663 = vld [vmem:[%s4 + $0x18] sm:$0xff]
  %v5664 = vld [vmem:[%s4 + $0x20] sm:$0xff]
  %v5665 = vld [vmem:[%s4 + $0x28] sm:$0xff]
  %v5666 = vld [vmem:[%s4 + $0x30] sm:$0xff]
  %v5667 = vld [vmem:[%s4 + $0x38] sm:$0xff]
  %v5668 = vld [vmem:[%s4 + $0x40] sm:$0xff]
  %v5669 = vld [vmem:[%s4 + $0x48] sm:$0xff]
  %v5670 = vld [vmem:[%s4 + $0x50] sm:$0xff]
  %v5671 = vld [vmem:[%s4 + $0x58] sm:$0xff]
  %v5672 = vld [vmem:[%s4 + $0x60] sm:$0xff]
  %v5673 = vld [vmem:[%s4 + $0x68] sm:$0xff]
  %v5674 = vld [vmem:[%s4 + $0x70] sm:$0xff]
  %v5675 = vld [vmem:[%s4 + $0x78] sm:$0xff]
  %v5676 = vld [vmem:[%s4 + $0x80] sm:$0xff]
  %v5677 = vld [vmem:[%s4 + $0x88] sm:$0xff]
  %v5678 = vld [vmem:[%s4 + $0x90] sm:$0xff]
  %v5679 = vld [vmem:[%s4 + $0x98] sm:$0xff]
  %v5680 = vld [vmem:[%s4 + $0xa0] sm:$0xff]
  %v5681 = vld [vmem:[%s4 + $0xa8] sm:$0xff]
  %v5682 = vld [vmem:[%s4 + $0xb0] sm:$0xff]
  %v5683 = vld [vmem:[%s4 + $0xb8] sm:$0xff]
  %v5684 = vld [vmem:[%s4 + $0xc0] sm:$0xff]
  %v5685 = vld [vmem:[%s4 + $0xc8] sm:$0xff]
  %v5686 = vld [vmem:[%s4 + $0xd0] sm:$0xff]
  %v5687 = vld [vmem:[%s4 + $0xd8] sm:$0xff]
  %v5688 = vld [vmem:[%s4 + $0xe0] sm:$0xff]
  %v5689 = vld [vmem:[%s4 + $0xe8] sm:$0xff]
  %v5690 = vld [vmem:[%s4 + $0xf0] sm:$0xff]
  %v5691 = vld [vmem:[%s4 + $0xf8] sm:$0xff]
  %v5724 = vunpack.c.l.b16 %v5660
  %v5725 = vunpack.c.h.b16 %v5660
  %v5726 = vunpack.c.l.b16 %v5661
  %v5727 = vunpack.c.h.b16 %v5661
  %v5728 = vunpack.c.l.b16 %v5662
  %v5729 = vunpack.c.h.b16 %v5662
  %v5730 = vunpack.c.l.b16 %v5663
  %v5731 = vunpack.c.h.b16 %v5663
  %v5732 = vunpack.c.l.b16 %v5664
  %v5733 = vunpack.c.h.b16 %v5664
  %v5734 = vunpack.c.l.b16 %v5665
  %v5735 = vunpack.c.h.b16 %v5665
  %v5736 = vunpack.c.l.b16 %v5666
  %v5737 = vunpack.c.h.b16 %v5666
  %v5738 = vunpack.c.l.b16 %v5667
  %v5739 = vunpack.c.h.b16 %v5667
  %v5740 = vunpack.c.l.b16 %v5668
  %v5741 = vunpack.c.h.b16 %v5668
  %v5742 = vunpack.c.l.b16 %v5669
  %v5743 = vunpack.c.h.b16 %v5669
  %v5744 = vunpack.c.l.b16 %v5670
  %v5745 = vunpack.c.h.b16 %v5670
  %v5746 = vunpack.c.l.b16 %v5671
  %v5747 = vunpack.c.h.b16 %v5671
  %v5748 = vunpack.c.l.b16 %v5672
  %v5749 = vunpack.c.h.b16 %v5672
  %v5750 = vunpack.c.l.b16 %v5673
  %v5751 = vunpack.c.h.b16 %v5673
  %v5752 = vunpack.c.l.b16 %v5674
  %v5753 = vunpack.c.h.b16 %v5674
  %v5754 = vunpack.c.l.b16 %v5675
  %v5755 = vunpack.c.h.b16 %v5675
  %v5756 = vunpack.c.l.b16 %v5676
  %v5757 = vunpack.c.h.b16 %v5676
  %v5758 = vunpack.c.l.b16 %v5677
  %v5759 = vunpack.c.h.b16 %v5677
  %v5760 = vunpack.c.l.b16 %v5678
  %v5761 = vunpack.c.h.b16 %v5678
  %v5762 = vunpack.c.l.b16 %v5679
  %v5763 = vunpack.c.h.b16 %v5679
  %v5764 = vunpack.c.l.b16 %v5680
  %v5765 = vunpack.c.h.b16 %v5680
  %v5766 = vunpack.c.l.b16 %v5681
  %v5767 = vunpack.c.h.b16 %v5681
  %v5768 = vunpack.c.l.b16 %v5682
  %v5769 = vunpack.c.h.b16 %v5682
  %v5770 = vunpack.c.l.b16 %v5683
  %v5771 = vunpack.c.h.b16 %v5683
  %v5772 = vunpack.c.l.b16 %v5684
  %v5773 = vunpack.c.h.b16 %v5684
  %v5774 = vunpack.c.l.b16 %v5685
  %v5775 = vunpack.c.h.b16 %v5685
  %v5776 = vunpack.c.l.b16 %v5686
  %v5777 = vunpack.c.h.b16 %v5686
  %v5778 = vunpack.c.l.b16 %v5687
  %v5779 = vunpack.c.h.b16 %v5687
  %v5780 = vunpack.c.l.b16 %v5688
  %v5781 = vunpack.c.h.b16 %v5688
  %v5782 = vunpack.c.l.b16 %v5689
  %v5783 = vunpack.c.h.b16 %v5689
  %v5784 = vunpack.c.l.b16 %v5690
  %v5785 = vunpack.c.h.b16 %v5690
  %v5786 = vunpack.c.l.b16 %v5691
  %v5787 = vunpack.c.h.b16 %v5691
  %v5788 = vpack.c.b16 %v5728, %v5724
  %v5789 = vpack.c.b16 %v5729, %v5725
  %v5790 = vpack.c.b16 %v5730, %v5726
  %v5791 = vpack.c.b16 %v5731, %v5727
  %v5792 = vpack.c.b16 %v5736, %v5732
  %v5793 = vpack.c.b16 %v5737, %v5733
  %v5794 = vpack.c.b16 %v5738, %v5734
  %v5795 = vpack.c.b16 %v5739, %v5735
  %v5796 = vpack.c.b16 %v5744, %v5740
  %v5797 = vpack.c.b16 %v5745, %v5741
  %v5798 = vpack.c.b16 %v5746, %v5742
  %v5799 = vpack.c.b16 %v5747, %v5743
  %v5800 = vpack.c.b16 %v5752, %v5748
  %v5801 = vpack.c.b16 %v5753, %v5749
  %v5802 = vpack.c.b16 %v5754, %v5750
  %v5803 = vpack.c.b16 %v5755, %v5751
  %v5804 = vpack.c.b16 %v5760, %v5756
  %v5805 = vpack.c.b16 %v5761, %v5757
  %v5806 = vpack.c.b16 %v5762, %v5758
  %v5807 = vpack.c.b16 %v5763, %v5759
  %v5808 = vpack.c.b16 %v5768, %v5764
  %v5809 = vpack.c.b16 %v5769, %v5765
  %v5810 = vpack.c.b16 %v5770, %v5766
  %v5811 = vpack.c.b16 %v5771, %v5767
  %v5812 = vpack.c.b16 %v5776, %v5772
  %v5813 = vpack.c.b16 %v5777, %v5773
  %v5814 = vpack.c.b16 %v5778, %v5774
  %v5815 = vpack.c.b16 %v5779, %v5775
  %v5816 = vpack.c.b16 %v5784, %v5780
  %v5817 = vpack.c.b16 %v5785, %v5781
  %v5818 = vpack.c.b16 %v5786, %v5782
  %v5819 = vpack.c.b16 %v5787, %v5783
  %5852 = vmatpush.bf16.msra.mxu0 %v5816
  %5853 = vmatpush.bf16.msra.mxu0 %v5812
  %5854 = vmatpush.bf16.msra.mxu0 %v5808
  %5855 = vmatpush.bf16.msra.mxu0 %v5804
  %5856 = vmatpush.bf16.msra.mxu0 %v5800
  %5857 = vmatpush.bf16.msra.mxu0 %v5796
  %5858 = vmatpush.bf16.msra.mxu0 %v5792
  %5859 = vmatpush.bf16.msra.mxu0 %v5788
  %5860 = vmatmul.bf16.gmra.mxu0 %v5652
  %v5861 = vpop.f32.mrf.mxu0
  %v5862 = vadd.f32 0.0, %v5861
  %v5863 = vpop.f32.mrf.mxu0
  %v5864 = vadd.f32 0.0, %v5863
  %5865 = vmatmul.bf16.gmra.mxu0 %v5653
  %v5866 = vpop.f32.mrf.mxu0
  %v5867 = vadd.f32 0.0, %v5866
  %v5868 = vpop.f32.mrf.mxu0
  %v5869 = vadd.f32 0.0, %v5868
  %5870 = vmatmul.bf16.gmra.mxu0 %v5654
  %v5871 = vpop.f32.mrf.mxu0
  %v5872 = vadd.f32 0.0, %v5871
  %v5873 = vpop.f32.mrf.mxu0
  %v5874 = vadd.f32 0.0, %v5873
  %5875 = vmatmul.bf16.gmra.mxu0 %v5655
  %v5876 = vpop.f32.mrf.mxu0
  %v5877 = vadd.f32 0.0, %v5876
  %v5878 = vpop.f32.mrf.mxu0
  %v5879 = vadd.f32 0.0, %v5878
  %5880 = vmatmul.bf16.gmra.mxu0 %v5656
  %v5881 = vpop.f32.mrf.mxu0
  %v5882 = vadd.f32 0.0, %v5881
  %v5883 = vpop.f32.mrf.mxu0
  %v5884 = vadd.f32 0.0, %v5883
  %5885 = vmatmul.bf16.gmra.mxu0 %v5657
  %v5886 = vpop.f32.mrf.mxu0
  %v5887 = vadd.f32 0.0, %v5886
  %v5888 = vpop.f32.mrf.mxu0
  %v5889 = vadd.f32 0.0, %v5888
  %5890 = vmatmul.bf16.gmra.mxu0 %v5658
  %v5891 = vpop.f32.mrf.mxu0
  %v5892 = vadd.f32 0.0, %v5891
  %v5893 = vpop.f32.mrf.mxu0
  %v5894 = vadd.f32 0.0, %v5893
  %5895 = vmatmul.bf16.gmra.mxu0 %v5659
  %v5896 = vpop.f32.mrf.mxu0
  %v5897 = vadd.f32 0.0, %v5896
  %v5898 = vpop.f32.mrf.mxu0
  %v5899 = vadd.f32 0.0, %v5898
  %5900 = vdwg.mxu0
  %5901 = vmatpush.bf16.msra.mxu0 %v5817
  %5902 = vmatpush.bf16.msra.mxu0 %v5813
  %5903 = vmatpush.bf16.msra.mxu0 %v5809
  %5904 = vmatpush.bf16.msra.mxu0 %v5805
  %5905 = vmatpush.bf16.msra.mxu0 %v5801
  %5906 = vmatpush.bf16.msra.mxu0 %v5797
  %5907 = vmatpush.bf16.msra.mxu0 %v5793
  %5908 = vmatpush.bf16.msra.mxu0 %v5789
  %5909 = vmatmul.bf16.gmra.mxu0 %v5652
  %v5910 = vpop.f32.mrf.mxu0
  %v5911 = vadd.f32 0.0, %v5910
  %v5912 = vpop.f32.mrf.mxu0
  %v5913 = vadd.f32 0.0, %v5912
  %5914 = vmatmul.bf16.gmra.mxu0 %v5653
  %v5915 = vpop.f32.mrf.mxu0
  %v5916 = vadd.f32 0.0, %v5915
  %v5917 = vpop.f32.mrf.mxu0
  %v5918 = vadd.f32 0.0, %v5917
  %5919 = vmatmul.bf16.gmra.mxu0 %v5654
  %v5920 = vpop.f32.mrf.mxu0
  %v5921 = vadd.f32 0.0, %v5920
  %v5922 = vpop.f32.mrf.mxu0
  %v5923 = vadd.f32 0.0, %v5922
  %5924 = vmatmul.bf16.gmra.mxu0 %v5655
  %v5925 = vpop.f32.mrf.mxu0
  %v5926 = vadd.f32 0.0, %v5925
  %v5927 = vpop.f32.mrf.mxu0
  %v5928 = vadd.f32 0.0, %v5927
  %5929 = vmatmul.bf16.gmra.mxu0 %v5656
  %v5930 = vpop.f32.mrf.mxu0
  %v5931 = vadd.f32 0.0, %v5930
  %v5932 = vpop.f32.mrf.mxu0
  %v5933 = vadd.f32 0.0, %v5932
  %5934 = vmatmul.bf16.gmra.mxu0 %v5657
  %v5935 = vpop.f32.mrf.mxu0
  %v5936 = vadd.f32 0.0, %v5935
  %v5937 = vpop.f32.mrf.mxu0
  %v5938 = vadd.f32 0.0, %v5937
  %5939 = vmatmul.bf16.gmra.mxu0 %v5658
  %v5940 = vpop.f32.mrf.mxu0
  %v5941 = vadd.f32 0.0, %v5940
  %v5942 = vpop.f32.mrf.mxu0
  %v5943 = vadd.f32 0.0, %v5942
  %5944 = vmatmul.bf16.gmra.mxu0 %v5659
  %v5945 = vpop.f32.mrf.mxu0
  %v5946 = vadd.f32 0.0, %v5945
  %v5947 = vpop.f32.mrf.mxu0
  %v5948 = vadd.f32 0.0, %v5947
  %5949 = vdwg.mxu0
  %5950 = vmatpush.bf16.msra.mxu0 %v5818
  %5951 = vmatpush.bf16.msra.mxu0 %v5814
  %5952 = vmatpush.bf16.msra.mxu0 %v5810
  %5953 = vmatpush.bf16.msra.mxu0 %v5806
  %5954 = vmatpush.bf16.msra.mxu0 %v5802
  %5955 = vmatpush.bf16.msra.mxu0 %v5798
  %5956 = vmatpush.bf16.msra.mxu0 %v5794
  %5957 = vmatpush.bf16.msra.mxu0 %v5790
  %5958 = vmatmul.bf16.gmra.mxu0 %v5652
  %v5959 = vpop.f32.mrf.mxu0
  %v5960 = vadd.f32 0.0, %v5959
  %v5961 = vpop.f32.mrf.mxu0
  %v5962 = vadd.f32 0.0, %v5961
  %5963 = vmatmul.bf16.gmra.mxu0 %v5653
  %v5964 = vpop.f32.mrf.mxu0
  %v5965 = vadd.f32 0.0, %v5964
  %v5966 = vpop.f32.mrf.mxu0
  %v5967 = vadd.f32 0.0, %v5966
  %5968 = vmatmul.bf16.gmra.mxu0 %v5654
  %v5969 = vpop.f32.mrf.mxu0
  %v5970 = vadd.f32 0.0, %v5969
  %v5971 = vpop.f32.mrf.mxu0
  %v5972 = vadd.f32 0.0, %v5971
  %5973 = vmatmul.bf16.gmra.mxu0 %v5655
  %v5974 = vpop.f32.mrf.mxu0
  %v5975 = vadd.f32 0.0, %v5974
  %v5976 = vpop.f32.mrf.mxu0
  %v5977 = vadd.f32 0.0, %v5976
  %5978 = vmatmul.bf16.gmra.mxu0 %v5656
  %v5979 = vpop.f32.mrf.mxu0
  %v5980 = vadd.f32 0.0, %v5979
  %v5981 = vpop.f32.mrf.mxu0
  %v5982 = vadd.f32 0.0, %v5981
  %5983 = vmatmul.bf16.gmra.mxu0 %v5657
  %v5984 = vpop.f32.mrf.mxu0
  %v5985 = vadd.f32 0.0, %v5984
  %v5986 = vpop.f32.mrf.mxu0
  %v5987 = vadd.f32 0.0, %v5986
  %5988 = vmatmul.bf16.gmra.mxu0 %v5658
  %v5989 = vpop.f32.mrf.mxu0
  %v5990 = vadd.f32 0.0, %v5989
  %v5991 = vpop.f32.mrf.mxu0
  %v5992 = vadd.f32 0.0, %v5991
  %5993 = vmatmul.bf16.gmra.mxu0 %v5659
  %v5994 = vpop.f32.mrf.mxu0
  %v5995 = vadd.f32 0.0, %v5994
  %v5996 = vpop.f32.mrf.mxu0
  %v5997 = vadd.f32 0.0, %v5996
  %5998 = vdwg.mxu0
  %5999 = vmatpush.bf16.msra.mxu0 %v5819
  %6000 = vmatpush.bf16.msra.mxu0 %v5815
  %6001 = vmatpush.bf16.msra.mxu0 %v5811
  %6002 = vmatpush.bf16.msra.mxu0 %v5807
  %6003 = vmatpush.bf16.msra.mxu0 %v5803
  %6004 = vmatpush.bf16.msra.mxu0 %v5799
  %6005 = vmatpush.bf16.msra.mxu0 %v5795
  %6006 = vmatpush.bf16.msra.mxu0 %v5791
  %6007 = vmatmul.bf16.gmra.mxu0 %v5652
  %v6008 = vpop.f32.mrf.mxu0
  %v6009 = vadd.f32 0.0, %v6008
  %v6010 = vpop.f32.mrf.mxu0
  %v6011 = vadd.f32 0.0, %v6010
  %6012 = vmatmul.bf16.gmra.mxu0 %v5653
  %v6013 = vpop.f32.mrf.mxu0
  %v6014 = vadd.f32 0.0, %v6013
  %v6015 = vpop.f32.mrf.mxu0
  %v6016 = vadd.f32 0.0, %v6015
  %6017 = vmatmul.bf16.gmra.mxu0 %v5654
  %v6018 = vpop.f32.mrf.mxu0
  %v6019 = vadd.f32 0.0, %v6018
  %v6020 = vpop.f32.mrf.mxu0
  %v6021 = vadd.f32 0.0, %v6020
  %6022 = vmatmul.bf16.gmra.mxu0 %v5655
  %v6023 = vpop.f32.mrf.mxu0
  %v6024 = vadd.f32 0.0, %v6023
  %v6025 = vpop.f32.mrf.mxu0
  %v6026 = vadd.f32 0.0, %v6025
  %6027 = vmatmul.bf16.gmra.mxu0 %v5656
  %v6028 = vpop.f32.mrf.mxu0
  %v6029 = vadd.f32 0.0, %v6028
  %v6030 = vpop.f32.mrf.mxu0
  %v6031 = vadd.f32 0.0, %v6030
  %6032 = vmatmul.bf16.gmra.mxu0 %v5657
  %v6033 = vpop.f32.mrf.mxu0
  %v6034 = vadd.f32 0.0, %v6033
  %v6035 = vpop.f32.mrf.mxu0
  %v6036 = vadd.f32 0.0, %v6035
  %6037 = vmatmul.bf16.gmra.mxu0 %v5658
  %v6038 = vpop.f32.mrf.mxu0
  %v6039 = vadd.f32 0.0, %v6038
  %v6040 = vpop.f32.mrf.mxu0
  %v6041 = vadd.f32 0.0, %v6040
  %6042 = vmatmul.bf16.gmra.mxu0 %v5659
  %v6043 = vpop.f32.mrf.mxu0
  %v6044 = vadd.f32 0.0, %v6043
  %v6045 = vpop.f32.mrf.mxu0
  %v6046 = vadd.f32 0.0, %v6045
  %6047 = vdwg.mxu0
  %v6048 = vmul.f32 %v5862, %v5862
  %v6049 = vmul.f32 %v5911, %v5911
  %v6050 = vmul.f32 %v5960, %v5960
  %v6051 = vmul.f32 %v6009, %v6009
  %v6052 = vmul.f32 %v5864, %v5864
  %v6053 = vmul.f32 %v5913, %v5913
  %v6054 = vmul.f32 %v5962, %v5962
  %v6055 = vmul.f32 %v6011, %v6011
  %v6056 = vmul.f32 %v5867, %v5867
  %v6057 = vmul.f32 %v5916, %v5916
  %v6058 = vmul.f32 %v5965, %v5965
  %v6059 = vmul.f32 %v6014, %v6014
  %v6060 = vmul.f32 %v5869, %v5869
  %v6061 = vmul.f32 %v5918, %v5918
  %v6062 = vmul.f32 %v5967, %v5967
  %v6063 = vmul.f32 %v6016, %v6016
  %v6064 = vmul.f32 %v5872, %v5872
  %v6065 = vmul.f32 %v5921, %v5921
  %v6066 = vmul.f32 %v5970, %v5970
  %v6067 = vmul.f32 %v6019, %v6019
  %v6068 = vmul.f32 %v5874, %v5874
  %v6069 = vmul.f32 %v5923, %v5923
  %v6070 = vmul.f32 %v5972, %v5972
  %v6071 = vmul.f32 %v6021, %v6021
  %v6072 = vmul.f32 %v5877, %v5877
  %v6073 = vmul.f32 %v5926, %v5926
  %v6074 = vmul.f32 %v5975, %v5975
  %v6075 = vmul.f32 %v6024, %v6024
  %v6076 = vmul.f32 %v5879, %v5879
  %v6077 = vmul.f32 %v5928, %v5928
  %v6078 = vmul.f32 %v5977, %v5977
  %v6079 = vmul.f32 %v6026, %v6026
  %v6080 = vmul.f32 %v5882, %v5882
  %v6081 = vmul.f32 %v5931, %v5931
  %v6082 = vmul.f32 %v5980, %v5980
  %v6083 = vmul.f32 %v6029, %v6029
  %v6084 = vmul.f32 %v5884, %v5884
  %v6085 = vmul.f32 %v5933, %v5933
  %v6086 = vmul.f32 %v5982, %v5982
  %v6087 = vmul.f32 %v6031, %v6031
  %v6088 = vmul.f32 %v5887, %v5887
  %v6089 = vmul.f32 %v5936, %v5936
  %v6090 = vmul.f32 %v5985, %v5985
  %v6091 = vmul.f32 %v6034, %v6034
  %v6092 = vmul.f32 %v5889, %v5889
  %v6093 = vmul.f32 %v5938, %v5938
  %v6094 = vmul.f32 %v5987, %v5987
  %v6095 = vmul.f32 %v6036, %v6036
  %v6096 = vmul.f32 %v5892, %v5892
  %v6097 = vmul.f32 %v5941, %v5941
  %v6098 = vmul.f32 %v5990, %v5990
  %v6099 = vmul.f32 %v6039, %v6039
  %v6100 = vmul.f32 %v5894, %v5894
  %v6101 = vmul.f32 %v5943, %v5943
  %v6102 = vmul.f32 %v5992, %v5992
  %v6103 = vmul.f32 %v6041, %v6041
  %v6104 = vmul.f32 %v5897, %v5897
  %v6105 = vmul.f32 %v5946, %v5946
  %v6106 = vmul.f32 %v5995, %v5995
  %v6107 = vmul.f32 %v6044, %v6044
  %v6108 = vmul.f32 %v5899, %v5899
  %v6109 = vmul.f32 %v5948, %v5948
  %v6110 = vmul.f32 %v5997, %v5997
  %v6111 = vmul.f32 %v6046, %v6046
  %v6112 = vmul.f32 %v5862, %v6048
  %v6113 = vmul.f32 %v5911, %v6049
  %v6114 = vmul.f32 %v5960, %v6050
  %v6115 = vmul.f32 %v6009, %v6051
  %v6116 = vmul.f32 %v5864, %v6052
  %v6117 = vmul.f32 %v5913, %v6053
  %v6118 = vmul.f32 %v5962, %v6054
  %v6119 = vmul.f32 %v6011, %v6055
  %v6120 = vmul.f32 %v5867, %v6056
  %v6121 = vmul.f32 %v5916, %v6057
  %v6122 = vmul.f32 %v5965, %v6058
  %v6123 = vmul.f32 %v6014, %v6059
  %v6124 = vmul.f32 %v5869, %v6060
  %v6125 = vmul.f32 %v5918, %v6061
  %v6126 = vmul.f32 %v5967, %v6062
  %v6127 = vmul.f32 %v6016, %v6063
  %v6128 = vmul.f32 %v5872, %v6064
  %v6129 = vmul.f32 %v5921, %v6065
  %v6130 = vmul.f32 %v5970, %v6066
  %v6131 = vmul.f32 %v6019, %v6067
  %v6132 = vmul.f32 %v5874, %v6068
  %v6133 = vmul.f32 %v5923, %v6069
  %v6134 = vmul.f32 %v5972, %v6070
  %v6135 = vmul.f32 %v6021, %v6071
  %v6136 = vmul.f32 %v5877, %v6072
  %v6137 = vmul.f32 %v5926, %v6073
  %v6138 = vmul.f32 %v5975, %v6074
  %v6139 = vmul.f32 %v6024, %v6075
  %v6140 = vmul.f32 %v5879, %v6076
  %v6141 = vmul.f32 %v5928, %v6077
  %v6142 = vmul.f32 %v5977, %v6078
  %v6143 = vmul.f32 %v6026, %v6079
  %v6144 = vmul.f32 %v5882, %v6080
  %v6145 = vmul.f32 %v5931, %v6081
  %v6146 = vmul.f32 %v5980, %v6082
  %v6147 = vmul.f32 %v6029, %v6083
  %v6148 = vmul.f32 %v5884, %v6084
  %v6149 = vmul.f32 %v5933, %v6085
  %v6150 = vmul.f32 %v5982, %v6086
  %v6151 = vmul.f32 %v6031, %v6087
  %v6152 = vmul.f32 %v5887, %v6088
  %v6153 = vmul.f32 %v5936, %v6089
  %v6154 = vmul.f32 %v5985, %v6090
  %v6155 = vmul.f32 %v6034, %v6091
  %v6156 = vmul.f32 %v5889, %v6092
  %v6157 = vmul.f32 %v5938, %v6093
  %v6158 = vmul.f32 %v5987, %v6094
  %v6159 = vmul.f32 %v6036, %v6095
  %v6160 = vmul.f32 %v5892, %v6096
  %v6161 = vmul.f32 %v5941, %v6097
  %v6162 = vmul.f32 %v5990, %v6098
  %v6163 = vmul.f32 %v6039, %v6099
  %v6164 = vmul.f32 %v5894, %v6100
  %v6165 = vmul.f32 %v5943, %v6101
  %v6166 = vmul.f32 %v5992, %v6102
  %v6167 = vmul.f32 %v6041, %v6103
  %v6168 = vmul.f32 %v5897, %v6104
  %v6169 = vmul.f32 %v5946, %v6105
  %v6170 = vmul.f32 %v5995, %v6106
  %v6171 = vmul.f32 %v6044, %v6107
  %v6172 = vmul.f32 %v5899, %v6108
  %v6173 = vmul.f32 %v5948, %v6109
  %v6174 = vmul.f32 %v5997, %v6110
  %v6175 = vmul.f32 %v6046, %v6111
  %v6176 = vmul.f32 %v6112, 0.044715
  %v6177 = vmul.f32 %v6113, 0.044715
  %v6178 = vmul.f32 %v6114, 0.044715
  %v6179 = vmul.f32 %v6115, 0.044715
  %v6180 = vmul.f32 %v6116, 0.044715
  %v6181 = vmul.f32 %v6117, 0.044715
  %v6182 = vmul.f32 %v6118, 0.044715
  %v6183 = vmul.f32 %v6119, 0.044715
  %v6184 = vmul.f32 %v6120, 0.044715
  %v6185 = vmul.f32 %v6121, 0.044715
  %v6186 = vmul.f32 %v6122, 0.044715
  %v6187 = vmul.f32 %v6123, 0.044715
  %v6188 = vmul.f32 %v6124, 0.044715
  %v6189 = vmul.f32 %v6125, 0.044715
  %v6190 = vmul.f32 %v6126, 0.044715
  %v6191 = vmul.f32 %v6127, 0.044715
  %v6192 = vmul.f32 %v6128, 0.044715
  %v6193 = vmul.f32 %v6129, 0.044715
  %v6194 = vmul.f32 %v6130, 0.044715
  %v6195 = vmul.f32 %v6131, 0.044715
  %v6196 = vmul.f32 %v6132, 0.044715
  %v6197 = vmul.f32 %v6133, 0.044715
  %v6198 = vmul.f32 %v6134, 0.044715
  %v6199 = vmul.f32 %v6135, 0.044715
  %v6200 = vmul.f32 %v6136, 0.044715
  %v6201 = vmul.f32 %v6137, 0.044715
  %v6202 = vmul.f32 %v6138, 0.044715
  %v6203 = vmul.f32 %v6139, 0.044715
  %v6204 = vmul.f32 %v6140, 0.044715
  %v6205 = vmul.f32 %v6141, 0.044715
  %v6206 = vmul.f32 %v6142, 0.044715
  %v6207 = vmul.f32 %v6143, 0.044715
  %v6208 = vmul.f32 %v6144, 0.044715
  %v6209 = vmul.f32 %v6145, 0.044715
  %v6210 = vmul.f32 %v6146, 0.044715
  %v6211 = vmul.f32 %v6147, 0.044715
  %v6212 = vmul.f32 %v6148, 0.044715
  %v6213 = vmul.f32 %v6149, 0.044715
  %v6214 = vmul.f32 %v6150, 0.044715
  %v6215 = vmul.f32 %v6151, 0.044715
  %v6216 = vmul.f32 %v6152, 0.044715
  %v6217 = vmul.f32 %v6153, 0.044715
  %v6218 = vmul.f32 %v6154, 0.044715
  %v6219 = vmul.f32 %v6155, 0.044715
  %v6220 = vmul.f32 %v6156, 0.044715
  %v6221 = vmul.f32 %v6157, 0.044715
  %v6222 = vmul.f32 %v6158, 0.044715
  %v6223 = vmul.f32 %v6159, 0.044715
  %v6224 = vmul.f32 %v6160, 0.044715
  %v6225 = vmul.f32 %v6161, 0.044715
  %v6226 = vmul.f32 %v6162, 0.044715
  %v6227 = vmul.f32 %v6163, 0.044715
  %v6228 = vmul.f32 %v6164, 0.044715
  %v6229 = vmul.f32 %v6165, 0.044715
  %v6230 = vmul.f32 %v6166, 0.044715
  %v6231 = vmul.f32 %v6167, 0.044715
  %v6232 = vmul.f32 %v6168, 0.044715
  %v6233 = vmul.f32 %v6169, 0.044715
  %v6234 = vmul.f32 %v6170, 0.044715
  %v6235 = vmul.f32 %v6171, 0.044715
  %v6236 = vmul.f32 %v6172, 0.044715
  %v6237 = vmul.f32 %v6173, 0.044715
  %v6238 = vmul.f32 %v6174, 0.044715
  %v6239 = vmul.f32 %v6175, 0.044715
  %v6240 = vadd.f32 %v5862, %v6176
  %v6241 = vadd.f32 %v5911, %v6177
  %v6242 = vadd.f32 %v5960, %v6178
  %v6243 = vadd.f32 %v6009, %v6179
  %v6244 = vadd.f32 %v5864, %v6180
  %v6245 = vadd.f32 %v5913, %v6181
  %v6246 = vadd.f32 %v5962, %v6182
  %v6247 = vadd.f32 %v6011, %v6183
  %v6248 = vadd.f32 %v5867, %v6184
  %v6249 = vadd.f32 %v5916, %v6185
  %v6250 = vadd.f32 %v5965, %v6186
  %v6251 = vadd.f32 %v6014, %v6187
  %v6252 = vadd.f32 %v5869, %v6188
  %v6253 = vadd.f32 %v5918, %v6189
  %v6254 = vadd.f32 %v5967, %v6190
  %v6255 = vadd.f32 %v6016, %v6191
  %v6256 = vadd.f32 %v5872, %v6192
  %v6257 = vadd.f32 %v5921, %v6193
  %v6258 = vadd.f32 %v5970, %v6194
  %v6259 = vadd.f32 %v6019, %v6195
  %v6260 = vadd.f32 %v5874, %v6196
  %v6261 = vadd.f32 %v5923, %v6197
  %v6262 = vadd.f32 %v5972, %v6198
  %v6263 = vadd.f32 %v6021, %v6199
  %v6264 = vadd.f32 %v5877, %v6200
  %v6265 = vadd.f32 %v5926, %v6201
  %v6266 = vadd.f32 %v5975, %v6202
  %v6267 = vadd.f32 %v6024, %v6203
  %v6268 = vadd.f32 %v5879, %v6204
  %v6269 = vadd.f32 %v5928, %v6205
  %v6270 = vadd.f32 %v5977, %v6206
  %v6271 = vadd.f32 %v6026, %v6207
  %v6272 = vadd.f32 %v5882, %v6208
  %v6273 = vadd.f32 %v5931, %v6209
  %v6274 = vadd.f32 %v5980, %v6210
  %v6275 = vadd.f32 %v6029, %v6211
  %v6276 = vadd.f32 %v5884, %v6212
  %v6277 = vadd.f32 %v5933, %v6213
  %v6278 = vadd.f32 %v5982, %v6214
  %v6279 = vadd.f32 %v6031, %v6215
  %v6280 = vadd.f32 %v5887, %v6216
  %v6281 = vadd.f32 %v5936, %v6217
  %v6282 = vadd.f32 %v5985, %v6218
  %v6283 = vadd.f32 %v6034, %v6219
  %v6284 = vadd.f32 %v5889, %v6220
  %v6285 = vadd.f32 %v5938, %v6221
  %v6286 = vadd.f32 %v5987, %v6222
  %v6287 = vadd.f32 %v6036, %v6223
  %v6288 = vadd.f32 %v5892, %v6224
  %v6289 = vadd.f32 %v5941, %v6225
  %v6290 = vadd.f32 %v5990, %v6226
  %v6291 = vadd.f32 %v6039, %v6227
  %v6292 = vadd.f32 %v5894, %v6228
  %v6293 = vadd.f32 %v5943, %v6229
  %v6294 = vadd.f32 %v5992, %v6230
  %v6295 = vadd.f32 %v6041, %v6231
  %v6296 = vadd.f32 %v5897, %v6232
  %v6297 = vadd.f32 %v5946, %v6233
  %v6298 = vadd.f32 %v5995, %v6234
  %v6299 = vadd.f32 %v6044, %v6235
  %v6300 = vadd.f32 %v5899, %v6236
  %v6301 = vadd.f32 %v5948, %v6237
  %v6302 = vadd.f32 %v5997, %v6238
  %v6303 = vadd.f32 %v6046, %v6239
  %v6304 = vmul.f32 %v6240, 0.7978846
  %v6305 = vmul.f32 %v6241, 0.7978846
  %v6306 = vmul.f32 %v6242, 0.7978846
  %v6307 = vmul.f32 %v6243, 0.7978846
  %v6308 = vmul.f32 %v6244, 0.7978846
  %v6309 = vmul.f32 %v6245, 0.7978846
  %v6310 = vmul.f32 %v6246, 0.7978846
  %v6311 = vmul.f32 %v6247, 0.7978846
  %v6312 = vmul.f32 %v6248, 0.7978846
  %v6313 = vmul.f32 %v6249, 0.7978846
  %v6314 = vmul.f32 %v6250, 0.7978846
  %v6315 = vmul.f32 %v6251, 0.7978846
  %v6316 = vmul.f32 %v6252, 0.7978846
  %v6317 = vmul.f32 %v6253, 0.7978846
  %v6318 = vmul.f32 %v6254, 0.7978846
  %v6319 = vmul.f32 %v6255, 0.7978846
  %v6320 = vmul.f32 %v6256, 0.7978846
  %v6321 = vmul.f32 %v6257, 0.7978846
  %v6322 = vmul.f32 %v6258, 0.7978846
  %v6323 = vmul.f32 %v6259, 0.7978846
  %v6324 = vmul.f32 %v6260, 0.7978846
  %v6325 = vmul.f32 %v6261, 0.7978846
  %v6326 = vmul.f32 %v6262, 0.7978846
  %v6327 = vmul.f32 %v6263, 0.7978846
  %v6328 = vmul.f32 %v6264, 0.7978846
  %v6329 = vmul.f32 %v6265, 0.7978846
  %v6330 = vmul.f32 %v6266, 0.7978846
  %v6331 = vmul.f32 %v6267, 0.7978846
  %v6332 = vmul.f32 %v6268, 0.7978846
  %v6333 = vmul.f32 %v6269, 0.7978846
  %v6334 = vmul.f32 %v6270, 0.7978846
  %v6335 = vmul.f32 %v6271, 0.7978846
  %v6336 = vmul.f32 %v6272, 0.7978846
  %v6337 = vmul.f32 %v6273, 0.7978846
  %v6338 = vmul.f32 %v6274, 0.7978846
  %v6339 = vmul.f32 %v6275, 0.7978846
  %v6340 = vmul.f32 %v6276, 0.7978846
  %v6341 = vmul.f32 %v6277, 0.7978846
  %v6342 = vmul.f32 %v6278, 0.7978846
  %v6343 = vmul.f32 %v6279, 0.7978846
  %v6344 = vmul.f32 %v6280, 0.7978846
  %v6345 = vmul.f32 %v6281, 0.7978846
  %v6346 = vmul.f32 %v6282, 0.7978846
  %v6347 = vmul.f32 %v6283, 0.7978846
  %v6348 = vmul.f32 %v6284, 0.7978846
  %v6349 = vmul.f32 %v6285, 0.7978846
  %v6350 = vmul.f32 %v6286, 0.7978846
  %v6351 = vmul.f32 %v6287, 0.7978846
  %v6352 = vmul.f32 %v6288, 0.7978846
  %v6353 = vmul.f32 %v6289, 0.7978846
  %v6354 = vmul.f32 %v6290, 0.7978846
  %v6355 = vmul.f32 %v6291, 0.7978846
  %v6356 = vmul.f32 %v6292, 0.7978846
  %v6357 = vmul.f32 %v6293, 0.7978846
  %v6358 = vmul.f32 %v6294, 0.7978846
  %v6359 = vmul.f32 %v6295, 0.7978846
  %v6360 = vmul.f32 %v6296, 0.7978846
  %v6361 = vmul.f32 %v6297, 0.7978846
  %v6362 = vmul.f32 %v6298, 0.7978846
  %v6363 = vmul.f32 %v6299, 0.7978846
  %v6364 = vmul.f32 %v6300, 0.7978846
  %v6365 = vmul.f32 %v6301, 0.7978846
  %v6366 = vmul.f32 %v6302, 0.7978846
  %v6367 = vmul.f32 %v6303, 0.7978846
  %v6368 = vtanh.pop %v6304
  %v6369 = vtanh.pop %v6305
  %v6370 = vtanh.pop %v6306
  %v6371 = vtanh.pop %v6307
  %v6372 = vtanh.pop %v6308
  %v6373 = vtanh.pop %v6309
  %v6374 = vtanh.pop %v6310
  %v6375 = vtanh.pop %v6311
  %v6376 = vtanh.pop %v6312
  %v6377 = vtanh.pop %v6313
  %v6378 = vtanh.pop %v6314
  %v6379 = vtanh.pop %v6315
  %v6380 = vtanh.pop %v6316
  %v6381 = vtanh.pop %v6317
  %v6382 = vtanh.pop %v6318
  %v6383 = vtanh.pop %v6319
  %v6384 = vtanh.pop %v6320
  %v6385 = vtanh.pop %v6321
  %v6386 = vtanh.pop %v6322
  %v6387 = vtanh.pop %v6323
  %v6388 = vtanh.pop %v6324
  %v6389 = vtanh.pop %v6325
  %v6390 = vtanh.pop %v6326
  %v6391 = vtanh.pop %v6327
  %v6392 = vtanh.pop %v6328
  %v6393 = vtanh.pop %v6329
  %v6394 = vtanh.pop %v6330
  %v6395 = vtanh.pop %v6331
  %v6396 = vtanh.pop %v6332
  %v6397 = vtanh.pop %v6333
  %v6398 = vtanh.pop %v6334
  %v6399 = vtanh.pop %v6335
  %v6400 = vtanh.pop %v6336
  %v6401 = vtanh.pop %v6337
  %v6402 = vtanh.pop %v6338
  %v6403 = vtanh.pop %v6339
  %v6404 = vtanh.pop %v6340
  %v6405 = vtanh.pop %v6341
  %v6406 = vtanh.pop %v6342
  %v6407 = vtanh.pop %v6343
  %v6408 = vtanh.pop %v6344
  %v6409 = vtanh.pop %v6345
  %v6410 = vtanh.pop %v6346
  %v6411 = vtanh.pop %v6347
  %v6412 = vtanh.pop %v6348
  %v6413 = vtanh.pop %v6349
  %v6414 = vtanh.pop %v6350
  %v6415 = vtanh.pop %v6351
  %v6416 = vtanh.pop %v6352
  %v6417 = vtanh.pop %v6353
  %v6418 = vtanh.pop %v6354
  %v6419 = vtanh.pop %v6355
  %v6420 = vtanh.pop %v6356
  %v6421 = vtanh.pop %v6357
  %v6422 = vtanh.pop %v6358
  %v6423 = vtanh.pop %v6359
  %v6424 = vtanh.pop %v6360
  %v6425 = vtanh.pop %v6361
  %v6426 = vtanh.pop %v6362
  %v6427 = vtanh.pop %v6363
  %v6428 = vtanh.pop %v6364
  %v6429 = vtanh.pop %v6365
  %v6430 = vtanh.pop %v6366
  %v6431 = vtanh.pop %v6367
  %v6432 = vadd.f32 %v6368, 1.0
  %v6433 = vadd.f32 %v6369, 1.0
  %v6434 = vadd.f32 %v6370, 1.0
  %v6435 = vadd.f32 %v6371, 1.0
  %v6436 = vadd.f32 %v6372, 1.0
  %v6437 = vadd.f32 %v6373, 1.0
  %v6438 = vadd.f32 %v6374, 1.0
  %v6439 = vadd.f32 %v6375, 1.0
  %v6440 = vadd.f32 %v6376, 1.0
  %v6441 = vadd.f32 %v6377, 1.0
  %v6442 = vadd.f32 %v6378, 1.0
  %v6443 = vadd.f32 %v6379, 1.0
  %v6444 = vadd.f32 %v6380, 1.0
  %v6445 = vadd.f32 %v6381, 1.0
  %v6446 = vadd.f32 %v6382, 1.0
  %v6447 = vadd.f32 %v6383, 1.0
  %v6448 = vadd.f32 %v6384, 1.0
  %v6449 = vadd.f32 %v6385, 1.0
  %v6450 = vadd.f32 %v6386, 1.0
  %v6451 = vadd.f32 %v6387, 1.0
  %v6452 = vadd.f32 %v6388, 1.0
  %v6453 = vadd.f32 %v6389, 1.0
  %v6454 = vadd.f32 %v6390, 1.0
  %v6455 = vadd.f32 %v6391, 1.0
  %v6456 = vadd.f32 %v6392, 1.0
  %v6457 = vadd.f32 %v6393, 1.0
  %v6458 = vadd.f32 %v6394, 1.0
  %v6459 = vadd.f32 %v6395, 1.0
  %v6460 = vadd.f32 %v6396, 1.0
  %v6461 = vadd.f32 %v6397, 1.0
  %v6462 = vadd.f32 %v6398, 1.0
  %v6463 = vadd.f32 %v6399, 1.0
  %v6464 = vadd.f32 %v6400, 1.0
  %v6465 = vadd.f32 %v6401, 1.0
  %v6466 = vadd.f32 %v6402, 1.0
  %v6467 = vadd.f32 %v6403, 1.0
  %v6468 = vadd.f32 %v6404, 1.0
  %v6469 = vadd.f32 %v6405, 1.0
  %v6470 = vadd.f32 %v6406, 1.0
  %v6471 = vadd.f32 %v6407, 1.0
  %v6472 = vadd.f32 %v6408, 1.0
  %v6473 = vadd.f32 %v6409, 1.0
  %v6474 = vadd.f32 %v6410, 1.0
  %v6475 = vadd.f32 %v6411, 1.0
  %v6476 = vadd.f32 %v6412, 1.0
  %v6477 = vadd.f32 %v6413, 1.0
  %v6478 = vadd.f32 %v6414, 1.0
  %v6479 = vadd.f32 %v6415, 1.0
  %v6480 = vadd.f32 %v6416, 1.0
  %v6481 = vadd.f32 %v6417, 1.0
  %v6482 = vadd.f32 %v6418, 1.0
  %v6483 = vadd.f32 %v6419, 1.0
  %v6484 = vadd.f32 %v6420, 1.0
  %v6485 = vadd.f32 %v6421, 1.0
  %v6486 = vadd.f32 %v6422, 1.0
  %v6487 = vadd.f32 %v6423, 1.0
  %v6488 = vadd.f32 %v6424, 1.0
  %v6489 = vadd.f32 %v6425, 1.0
  %v6490 = vadd.f32 %v6426, 1.0
  %v6491 = vadd.f32 %v6427, 1.0
  %v6492 = vadd.f32 %v6428, 1.0
  %v6493 = vadd.f32 %v6429, 1.0
  %v6494 = vadd.f32 %v6430, 1.0
  %v6495 = vadd.f32 %v6431, 1.0
  %v6496 = vmul.f32 %v6432, 0.5
  %v6497 = vmul.f32 %v6433, 0.5
  %v6498 = vmul.f32 %v6434, 0.5
  %v6499 = vmul.f32 %v6435, 0.5
  %v6500 = vmul.f32 %v6436, 0.5
  %v6501 = vmul.f32 %v6437, 0.5
  %v6502 = vmul.f32 %v6438, 0.5
  %v6503 = vmul.f32 %v6439, 0.5
  %v6504 = vmul.f32 %v6440, 0.5
  %v6505 = vmul.f32 %v6441, 0.5
  %v6506 = vmul.f32 %v6442, 0.5
  %v6507 = vmul.f32 %v6443, 0.5
  %v6508 = vmul.f32 %v6444, 0.5
  %v6509 = vmul.f32 %v6445, 0.5
  %v6510 = vmul.f32 %v6446, 0.5
  %v6511 = vmul.f32 %v6447, 0.5
  %v6512 = vmul.f32 %v6448, 0.5
  %v6513 = vmul.f32 %v6449, 0.5
  %v6514 = vmul.f32 %v6450, 0.5
  %v6515 = vmul.f32 %v6451, 0.5
  %v6516 = vmul.f32 %v6452, 0.5
  %v6517 = vmul.f32 %v6453, 0.5
  %v6518 = vmul.f32 %v6454, 0.5
  %v6519 = vmul.f32 %v6455, 0.5
  %v6520 = vmul.f32 %v6456, 0.5
  %v6521 = vmul.f32 %v6457, 0.5
  %v6522 = vmul.f32 %v6458, 0.5
  %v6523 = vmul.f32 %v6459, 0.5
  %v6524 = vmul.f32 %v6460, 0.5
  %v6525 = vmul.f32 %v6461, 0.5
  %v6526 = vmul.f32 %v6462, 0.5
  %v6527 = vmul.f32 %v6463, 0.5
  %v6528 = vmul.f32 %v6464, 0.5
  %v6529 = vmul.f32 %v6465, 0.5
  %v6530 = vmul.f32 %v6466, 0.5
  %v6531 = vmul.f32 %v6467, 0.5
  %v6532 = vmul.f32 %v6468, 0.5
  %v6533 = vmul.f32 %v6469, 0.5
  %v6534 = vmul.f32 %v6470, 0.5
  %v6535 = vmul.f32 %v6471, 0.5
  %v6536 = vmul.f32 %v6472, 0.5
  %v6537 = vmul.f32 %v6473, 0.5
  %v6538 = vmul.f32 %v6474, 0.5
  %v6539 = vmul.f32 %v6475, 0.5
  %v6540 = vmul.f32 %v6476, 0.5
  %v6541 = vmul.f32 %v6477, 0.5
  %v6542 = vmul.f32 %v6478, 0.5
  %v6543 = vmul.f32 %v6479, 0.5
  %v6544 = vmul.f32 %v6480, 0.5
  %v6545 = vmul.f32 %v6481, 0.5
  %v6546 = vmul.f32 %v6482, 0.5
  %v6547 = vmul.f32 %v6483, 0.5
  %v6548 = vmul.f32 %v6484, 0.5
  %v6549 = vmul.f32 %v6485, 0.5
  %v6550 = vmul.f32 %v6486, 0.5
  %v6551 = vmul.f32 %v6487, 0.5
  %v6552 = vmul.f32 %v6488, 0.5
  %v6553 = vmul.f32 %v6489, 0.5
  %v6554 = vmul.f32 %v6490, 0.5
  %v6555 = vmul.f32 %v6491, 0.5
  %v6556 = vmul.f32 %v6492, 0.5
  %v6557 = vmul.f32 %v6493, 0.5
  %v6558 = vmul.f32 %v6494, 0.5
  %v6559 = vmul.f32 %v6495, 0.5
  %v6560 = vmul.f32 %v5862, %v6496
  %v6561 = vmul.f32 %v5911, %v6497
  %v6562 = vmul.f32 %v5960, %v6498
  %v6563 = vmul.f32 %v6009, %v6499
  %v6564 = vmul.f32 %v5864, %v6500
  %v6565 = vmul.f32 %v5913, %v6501
  %v6566 = vmul.f32 %v5962, %v6502
  %v6567 = vmul.f32 %v6011, %v6503
  %v6568 = vmul.f32 %v5867, %v6504
  %v6569 = vmul.f32 %v5916, %v6505
  %v6570 = vmul.f32 %v5965, %v6506
  %v6571 = vmul.f32 %v6014, %v6507
  %v6572 = vmul.f32 %v5869, %v6508
  %v6573 = vmul.f32 %v5918, %v6509
  %v6574 = vmul.f32 %v5967, %v6510
  %v6575 = vmul.f32 %v6016, %v6511
  %v6576 = vmul.f32 %v5872, %v6512
  %v6577 = vmul.f32 %v5921, %v6513
  %v6578 = vmul.f32 %v5970, %v6514
  %v6579 = vmul.f32 %v6019, %v6515
  %v6580 = vmul.f32 %v5874, %v6516
  %v6581 = vmul.f32 %v5923, %v6517
  %v6582 = vmul.f32 %v5972, %v6518
  %v6583 = vmul.f32 %v6021, %v6519
  %v6584 = vmul.f32 %v5877, %v6520
  %v6585 = vmul.f32 %v5926, %v6521
  %v6586 = vmul.f32 %v5975, %v6522
  %v6587 = vmul.f32 %v6024, %v6523
  %v6588 = vmul.f32 %v5879, %v6524
  %v6589 = vmul.f32 %v5928, %v6525
  %v6590 = vmul.f32 %v5977, %v6526
  %v6591 = vmul.f32 %v6026, %v6527
  %v6592 = vmul.f32 %v5882, %v6528
  %v6593 = vmul.f32 %v5931, %v6529
  %v6594 = vmul.f32 %v5980, %v6530
  %v6595 = vmul.f32 %v6029, %v6531
  %v6596 = vmul.f32 %v5884, %v6532
  %v6597 = vmul.f32 %v5933, %v6533
  %v6598 = vmul.f32 %v5982, %v6534
  %v6599 = vmul.f32 %v6031, %v6535
  %v6600 = vmul.f32 %v5887, %v6536
  %v6601 = vmul.f32 %v5936, %v6537
  %v6602 = vmul.f32 %v5985, %v6538
  %v6603 = vmul.f32 %v6034, %v6539
  %v6604 = vmul.f32 %v5889, %v6540
  %v6605 = vmul.f32 %v5938, %v6541
  %v6606 = vmul.f32 %v5987, %v6542
  %v6607 = vmul.f32 %v6036, %v6543
  %v6608 = vmul.f32 %v5892, %v6544
  %v6609 = vmul.f32 %v5941, %v6545
  %v6610 = vmul.f32 %v5990, %v6546
  %v6611 = vmul.f32 %v6039, %v6547
  %v6612 = vmul.f32 %v5894, %v6548
  %v6613 = vmul.f32 %v5943, %v6549
  %v6614 = vmul.f32 %v5992, %v6550
  %v6615 = vmul.f32 %v6041, %v6551
  %v6616 = vmul.f32 %v5897, %v6552
  %v6617 = vmul.f32 %v5946, %v6553
  %v6618 = vmul.f32 %v5995, %v6554
  %v6619 = vmul.f32 %v6044, %v6555
  %v6620 = vmul.f32 %v5899, %v6556
  %v6621 = vmul.f32 %v5948, %v6557
  %v6622 = vmul.f32 %v5997, %v6558
  %v6623 = vmul.f32 %v6046, %v6559
  %v6624 = vpack.c.bf16 %v6564, %v6560
  %v6625 = vpack.c.bf16 %v6565, %v6561
  %v6626 = vpack.c.bf16 %v6566, %v6562
  %v6627 = vpack.c.bf16 %v6567, %v6563
  %v6628 = vpack.c.bf16 %v6572, %v6568
  %v6629 = vpack.c.bf16 %v6573, %v6569
  %v6630 = vpack.c.bf16 %v6574, %v6570
  %v6631 = vpack.c.bf16 %v6575, %v6571
  %v6632 = vpack.c.bf16 %v6580, %v6576
  %v6633 = vpack.c.bf16 %v6581, %v6577
  %v6634 = vpack.c.bf16 %v6582, %v6578
  %v6635 = vpack.c.bf16 %v6583, %v6579
  %v6636 = vpack.c.bf16 %v6588, %v6584
  %v6637 = vpack.c.bf16 %v6589, %v6585
  %v6638 = vpack.c.bf16 %v6590, %v6586
  %v6639 = vpack.c.bf16 %v6591, %v6587
  %v6640 = vpack.c.bf16 %v6596, %v6592
  %v6641 = vpack.c.bf16 %v6597, %v6593
  %v6642 = vpack.c.bf16 %v6598, %v6594
  %v6643 = vpack.c.bf16 %v6599, %v6595
  %v6644 = vpack.c.bf16 %v6604, %v6600
  %v6645 = vpack.c.bf16 %v6605, %v6601
  %v6646 = vpack.c.bf16 %v6606, %v6602
  %v6647 = vpack.c.bf16 %v6607, %v6603
  %v6648 = vpack.c.bf16 %v6612, %v6608
  %v6649 = vpack.c.bf16 %v6613, %v6609
  %v6650 = vpack.c.bf16 %v6614, %v6610
  %v6651 = vpack.c.bf16 %v6615, %v6611
  %v6652 = vpack.c.bf16 %v6620, %v6616
  %v6653 = vpack.c.bf16 %v6621, %v6617
  %v6654 = vpack.c.bf16 %v6622, %v6618
  %v6655 = vpack.c.bf16 %v6623, %v6619
  %v6656 = vld [vmem:[%s5] sm:$0xf]
  %v6657 = vld [vmem:[%s5 + $0x4] sm:$0xf]
  %v6658 = vld [vmem:[%s5 + $0x8] sm:$0xf]
  %v6659 = vld [vmem:[%s5 + $0xc] sm:$0xf]
  %v6660 = vld [vmem:[%s5 + $0x10] sm:$0xf]
  %v6661 = vld [vmem:[%s5 + $0x14] sm:$0xf]
  %v6662 = vld [vmem:[%s5 + $0x18] sm:$0xf]
  %v6663 = vld [vmem:[%s5 + $0x1c] sm:$0xf]
  %v6664 = vld [vmem:[%s5 + $0x20] sm:$0xf]
  %v6665 = vld [vmem:[%s5 + $0x24] sm:$0xf]
  %v6666 = vld [vmem:[%s5 + $0x28] sm:$0xf]
  %v6667 = vld [vmem:[%s5 + $0x2c] sm:$0xf]
  %v6668 = vld [vmem:[%s5 + $0x30] sm:$0xf]
  %v6669 = vld [vmem:[%s5 + $0x34] sm:$0xf]
  %v6670 = vld [vmem:[%s5 + $0x38] sm:$0xf]
  %v6671 = vld [vmem:[%s5 + $0x3c] sm:$0xf]
  %v6672 = vld [vmem:[%s5 + $0x40] sm:$0xf]
  %v6673 = vld [vmem:[%s5 + $0x44] sm:$0xf]
  %v6674 = vld [vmem:[%s5 + $0x48] sm:$0xf]
  %v6675 = vld [vmem:[%s5 + $0x4c] sm:$0xf]
  %v6676 = vld [vmem:[%s5 + $0x50] sm:$0xf]
  %v6677 = vld [vmem:[%s5 + $0x54] sm:$0xf]
  %v6678 = vld [vmem:[%s5 + $0x58] sm:$0xf]
  %v6679 = vld [vmem:[%s5 + $0x5c] sm:$0xf]
  %v6680 = vld [vmem:[%s5 + $0x60] sm:$0xf]
  %v6681 = vld [vmem:[%s5 + $0x64] sm:$0xf]
  %v6682 = vld [vmem:[%s5 + $0x68] sm:$0xf]
  %v6683 = vld [vmem:[%s5 + $0x6c] sm:$0xf]
  %v6684 = vld [vmem:[%s5 + $0x70] sm:$0xf]
  %v6685 = vld [vmem:[%s5 + $0x74] sm:$0xf]
  %v6686 = vld [vmem:[%s5 + $0x78] sm:$0xf]
  %v6687 = vld [vmem:[%s5 + $0x7c] sm:$0xf]
  %v6688 = vld [vmem:[%s5 + $0x80] sm:$0xf]
  %v6689 = vld [vmem:[%s5 + $0x84] sm:$0xf]
  %v6690 = vld [vmem:[%s5 + $0x88] sm:$0xf]
  %v6691 = vld [vmem:[%s5 + $0x8c] sm:$0xf]
  %v6692 = vld [vmem:[%s5 + $0x90] sm:$0xf]
  %v6693 = vld [vmem:[%s5 + $0x94] sm:$0xf]
  %v6694 = vld [vmem:[%s5 + $0x98] sm:$0xf]
  %v6695 = vld [vmem:[%s5 + $0x9c] sm:$0xf]
  %v6696 = vld [vmem:[%s5 + $0xa0] sm:$0xf]
  %v6697 = vld [vmem:[%s5 + $0xa4] sm:$0xf]
  %v6698 = vld [vmem:[%s5 + $0xa8] sm:$0xf]
  %v6699 = vld [vmem:[%s5 + $0xac] sm:$0xf]
  %v6700 = vld [vmem:[%s5 + $0xb0] sm:$0xf]
  %v6701 = vld [vmem:[%s5 + $0xb4] sm:$0xf]
  %v6702 = vld [vmem:[%s5 + $0xb8] sm:$0xf]
  %v6703 = vld [vmem:[%s5 + $0xbc] sm:$0xf]
  %v6704 = vld [vmem:[%s5 + $0xc0] sm:$0xf]
  %v6705 = vld [vmem:[%s5 + $0xc4] sm:$0xf]
  %v6706 = vld [vmem:[%s5 + $0xc8] sm:$0xf]
  %v6707 = vld [vmem:[%s5 + $0xcc] sm:$0xf]
  %v6708 = vld [vmem:[%s5 + $0xd0] sm:$0xf]
  %v6709 = vld [vmem:[%s5 + $0xd4] sm:$0xf]
  %v6710 = vld [vmem:[%s5 + $0xd8] sm:$0xf]
  %v6711 = vld [vmem:[%s5 + $0xdc] sm:$0xf]
  %v6712 = vld [vmem:[%s5 + $0xe0] sm:$0xf]
  %v6713 = vld [vmem:[%s5 + $0xe4] sm:$0xf]
  %v6714 = vld [vmem:[%s5 + $0xe8] sm:$0xf]
  %v6715 = vld [vmem:[%s5 + $0xec] sm:$0xf]
  %v6716 = vld [vmem:[%s5 + $0xf0] sm:$0xf]
  %v6717 = vld [vmem:[%s5 + $0xf4] sm:$0xf]
  %v6718 = vld [vmem:[%s5 + $0xf8] sm:$0xf]
  %v6719 = vld [vmem:[%s5 + $0xfc] sm:$0xf]
  %v6784 = vunpack.c.l.b16 %v6656
  %v6785 = vunpack.c.l.b16 %v6657
  %v6786 = vunpack.c.l.b16 %v6658
  %v6787 = vunpack.c.l.b16 %v6659
  %v6788 = vunpack.c.l.b16 %v6660
  %v6789 = vunpack.c.l.b16 %v6661
  %v6790 = vunpack.c.l.b16 %v6662
  %v6791 = vunpack.c.l.b16 %v6663
  %v6792 = vunpack.c.l.b16 %v6664
  %v6793 = vunpack.c.l.b16 %v6665
  %v6794 = vunpack.c.l.b16 %v6666
  %v6795 = vunpack.c.l.b16 %v6667
  %v6796 = vunpack.c.l.b16 %v6668
  %v6797 = vunpack.c.l.b16 %v6669
  %v6798 = vunpack.c.l.b16 %v6670
  %v6799 = vunpack.c.l.b16 %v6671
  %v6800 = vunpack.c.l.b16 %v6672
  %v6801 = vunpack.c.l.b16 %v6673
  %v6802 = vunpack.c.l.b16 %v6674
  %v6803 = vunpack.c.l.b16 %v6675
  %v6804 = vunpack.c.l.b16 %v6676
  %v6805 = vunpack.c.l.b16 %v6677
  %v6806 = vunpack.c.l.b16 %v6678
  %v6807 = vunpack.c.l.b16 %v6679
  %v6808 = vunpack.c.l.b16 %v6680
  %v6809 = vunpack.c.l.b16 %v6681
  %v6810 = vunpack.c.l.b16 %v6682
  %v6811 = vunpack.c.l.b16 %v6683
  %v6812 = vunpack.c.l.b16 %v6684
  %v6813 = vunpack.c.l.b16 %v6685
  %v6814 = vunpack.c.l.b16 %v6686
  %v6815 = vunpack.c.l.b16 %v6687
  %v6816 = vunpack.c.l.b16 %v6688
  %v6817 = vunpack.c.l.b16 %v6689
  %v6818 = vunpack.c.l.b16 %v6690
  %v6819 = vunpack.c.l.b16 %v6691
  %v6820 = vunpack.c.l.b16 %v6692
  %v6821 = vunpack.c.l.b16 %v6693
  %v6822 = vunpack.c.l.b16 %v6694
  %v6823 = vunpack.c.l.b16 %v6695
  %v6824 = vunpack.c.l.b16 %v6696
  %v6825 = vunpack.c.l.b16 %v6697
  %v6826 = vunpack.c.l.b16 %v6698
  %v6827 = vunpack.c.l.b16 %v6699
  %v6828 = vunpack.c.l.b16 %v6700
  %v6829 = vunpack.c.l.b16 %v6701
  %v6830 = vunpack.c.l.b16 %v6702
  %v6831 = vunpack.c.l.b16 %v6703
  %v6832 = vunpack.c.l.b16 %v6704
  %v6833 = vunpack.c.l.b16 %v6705
  %v6834 = vunpack.c.l.b16 %v6706
  %v6835 = vunpack.c.l.b16 %v6707
  %v6836 = vunpack.c.l.b16 %v6708
  %v6837 = vunpack.c.l.b16 %v6709
  %v6838 = vunpack.c.l.b16 %v6710
  %v6839 = vunpack.c.l.b16 %v6711
  %v6840 = vunpack.c.l.b16 %v6712
  %v6841 = vunpack.c.l.b16 %v6713
  %v6842 = vunpack.c.l.b16 %v6714
  %v6843 = vunpack.c.l.b16 %v6715
  %v6844 = vunpack.c.l.b16 %v6716
  %v6845 = vunpack.c.l.b16 %v6717
  %v6846 = vunpack.c.l.b16 %v6718
  %v6847 = vunpack.c.l.b16 %v6719
  %v6848 = vpack.c.b16 %v6785, %v6784
  %v6849 = vpack.c.b16 %v6787, %v6786
  %v6850 = vpack.c.b16 %v6789, %v6788
  %v6851 = vpack.c.b16 %v6791, %v6790
  %v6852 = vpack.c.b16 %v6793, %v6792
  %v6853 = vpack.c.b16 %v6795, %v6794
  %v6854 = vpack.c.b16 %v6797, %v6796
  %v6855 = vpack.c.b16 %v6799, %v6798
  %v6856 = vpack.c.b16 %v6801, %v6800
  %v6857 = vpack.c.b16 %v6803, %v6802
  %v6858 = vpack.c.b16 %v6805, %v6804
  %v6859 = vpack.c.b16 %v6807, %v6806
  %v6860 = vpack.c.b16 %v6809, %v6808
  %v6861 = vpack.c.b16 %v6811, %v6810
  %v6862 = vpack.c.b16 %v6813, %v6812
  %v6863 = vpack.c.b16 %v6815, %v6814
  %v6864 = vpack.c.b16 %v6817, %v6816
  %v6865 = vpack.c.b16 %v6819, %v6818
  %v6866 = vpack.c.b16 %v6821, %v6820
  %v6867 = vpack.c.b16 %v6823, %v6822
  %v6868 = vpack.c.b16 %v6825, %v6824
  %v6869 = vpack.c.b16 %v6827, %v6826
  %v6870 = vpack.c.b16 %v6829, %v6828
  %v6871 = vpack.c.b16 %v6831, %v6830
  %v6872 = vpack.c.b16 %v6833, %v6832
  %v6873 = vpack.c.b16 %v6835, %v6834
  %v6874 = vpack.c.b16 %v6837, %v6836
  %v6875 = vpack.c.b16 %v6839, %v6838
  %v6876 = vpack.c.b16 %v6841, %v6840
  %v6877 = vpack.c.b16 %v6843, %v6842
  %v6878 = vpack.c.b16 %v6845, %v6844
  %v6879 = vpack.c.b16 %v6847, %v6846
  %6912 = vmatpush.bf16.msra.mxu0 %v6855
  %6913 = vmatpush.bf16.msra.mxu0 %v6854
  %6914 = vmatpush.bf16.msra.mxu0 %v6853
  %6915 = vmatpush.bf16.msra.mxu0 %v6852
  %6916 = vmatpush.bf16.msra.mxu0 %v6851
  %6917 = vmatpush.bf16.msra.mxu0 %v6850
  %6918 = vmatpush.bf16.msra.mxu0 %v6849
  %6919 = vmatpush.bf16.msra.mxu0 %v6848
  %6920 = vmatmul.bf16.gmra.mxu0 %v6624
  %v6921 = vpop.f32.mrf.mxu0
  %v6922 = vadd.f32 %v5613, %v6921
  %v6923 = vpop.f32.mrf.mxu0
  %v6924 = vadd.f32 %v5615, %v6923
  %6925 = vmatmul.bf16.gmra.mxu0 %v6628
  %v6926 = vpop.f32.mrf.mxu0
  %v6927 = vadd.f32 %v5618, %v6926
  %v6928 = vpop.f32.mrf.mxu0
  %v6929 = vadd.f32 %v5620, %v6928
  %6930 = vmatmul.bf16.gmra.mxu0 %v6632
  %v6931 = vpop.f32.mrf.mxu0
  %v6932 = vadd.f32 %v5623, %v6931
  %v6933 = vpop.f32.mrf.mxu0
  %v6934 = vadd.f32 %v5625, %v6933
  %6935 = vmatmul.bf16.gmra.mxu0 %v6636
  %v6936 = vpop.f32.mrf.mxu0
  %v6937 = vadd.f32 %v5628, %v6936
  %v6938 = vpop.f32.mrf.mxu0
  %v6939 = vadd.f32 %v5630, %v6938
  %6940 = vmatmul.bf16.gmra.mxu0 %v6640
  %v6941 = vpop.f32.mrf.mxu0
  %v6942 = vadd.f32 %v5633, %v6941
  %v6943 = vpop.f32.mrf.mxu0
  %v6944 = vadd.f32 %v5635, %v6943
  %6945 = vmatmul.bf16.gmra.mxu0 %v6644
  %v6946 = vpop.f32.mrf.mxu0
  %v6947 = vadd.f32 %v5638, %v6946
  %v6948 = vpop.f32.mrf.mxu0
  %v6949 = vadd.f32 %v5640, %v6948
  %6950 = vmatmul.bf16.gmra.mxu0 %v6648
  %v6951 = vpop.f32.mrf.mxu0
  %v6952 = vadd.f32 %v5643, %v6951
  %v6953 = vpop.f32.mrf.mxu0
  %v6954 = vadd.f32 %v5645, %v6953
  %6955 = vmatmul.bf16.gmra.mxu0 %v6652
  %v6956 = vpop.f32.mrf.mxu0
  %v6957 = vadd.f32 %v5648, %v6956
  %v6958 = vpop.f32.mrf.mxu0
  %v6959 = vadd.f32 %v5650, %v6958
  %6960 = vdwg.mxu0
  %6961 = vmatpush.bf16.msra.mxu0 %v6863
  %6962 = vmatpush.bf16.msra.mxu0 %v6862
  %6963 = vmatpush.bf16.msra.mxu0 %v6861
  %6964 = vmatpush.bf16.msra.mxu0 %v6860
  %6965 = vmatpush.bf16.msra.mxu0 %v6859
  %6966 = vmatpush.bf16.msra.mxu0 %v6858
  %6967 = vmatpush.bf16.msra.mxu0 %v6857
  %6968 = vmatpush.bf16.msra.mxu0 %v6856
  %6969 = vmatmul.bf16.gmra.mxu0 %v6625
  %v6970 = vpop.f32.mrf.mxu0
  %v6971 = vadd.f32 %v6922, %v6970
  %v6972 = vpop.f32.mrf.mxu0
  %v6973 = vadd.f32 %v6924, %v6972
  %6974 = vmatmul.bf16.gmra.mxu0 %v6629
  %v6975 = vpop.f32.mrf.mxu0
  %v6976 = vadd.f32 %v6927, %v6975
  %v6977 = vpop.f32.mrf.mxu0
  %v6978 = vadd.f32 %v6929, %v6977
  %6979 = vmatmul.bf16.gmra.mxu0 %v6633
  %v6980 = vpop.f32.mrf.mxu0
  %v6981 = vadd.f32 %v6932, %v6980
  %v6982 = vpop.f32.mrf.mxu0
  %v6983 = vadd.f32 %v6934, %v6982
  %6984 = vmatmul.bf16.gmra.mxu0 %v6637
  %v6985 = vpop.f32.mrf.mxu0
  %v6986 = vadd.f32 %v6937, %v6985
  %v6987 = vpop.f32.mrf.mxu0
  %v6988 = vadd.f32 %v6939, %v6987
  %6989 = vmatmul.bf16.gmra.mxu0 %v6641
  %v6990 = vpop.f32.mrf.mxu0
  %v6991 = vadd.f32 %v6942, %v6990
  %v6992 = vpop.f32.mrf.mxu0
  %v6993 = vadd.f32 %v6944, %v6992
  %6994 = vmatmul.bf16.gmra.mxu0 %v6645
  %v6995 = vpop.f32.mrf.mxu0
  %v6996 = vadd.f32 %v6947, %v6995
  %v6997 = vpop.f32.mrf.mxu0
  %v6998 = vadd.f32 %v6949, %v6997
  %6999 = vmatmul.bf16.gmra.mxu0 %v6649
  %v7000 = vpop.f32.mrf.mxu0
  %v7001 = vadd.f32 %v6952, %v7000
  %v7002 = vpop.f32.mrf.mxu0
  %v7003 = vadd.f32 %v6954, %v7002
  %7004 = vmatmul.bf16.gmra.mxu0 %v6653
  %v7005 = vpop.f32.mrf.mxu0
  %v7006 = vadd.f32 %v6957, %v7005
  %v7007 = vpop.f32.mrf.mxu0
  %v7008 = vadd.f32 %v6959, %v7007
  %7009 = vdwg.mxu0
  %7010 = vmatpush.bf16.msra.mxu0 %v6871
  %7011 = vmatpush.bf16.msra.mxu0 %v6870
  %7012 = vmatpush.bf16.msra.mxu0 %v6869
  %7013 = vmatpush.bf16.msra.mxu0 %v6868
  %7014 = vmatpush.bf16.msra.mxu0 %v6867
  %7015 = vmatpush.bf16.msra.mxu0 %v6866
  %7016 = vmatpush.bf16.msra.mxu0 %v6865
  %7017 = vmatpush.bf16.msra.mxu0 %v6864
  %7018 = vmatmul.bf16.gmra.mxu0 %v6626
  %v7019 = vpop.f32.mrf.mxu0
  %v7020 = vadd.f32 %v6971, %v7019
  %v7021 = vpop.f32.mrf.mxu0
  %v7022 = vadd.f32 %v6973, %v7021
  %7023 = vmatmul.bf16.gmra.mxu0 %v6630
  %v7024 = vpop.f32.mrf.mxu0
  %v7025 = vadd.f32 %v6976, %v7024
  %v7026 = vpop.f32.mrf.mxu0
  %v7027 = vadd.f32 %v6978, %v7026
  %7028 = vmatmul.bf16.gmra.mxu0 %v6634
  %v7029 = vpop.f32.mrf.mxu0
  %v7030 = vadd.f32 %v6981, %v7029
  %v7031 = vpop.f32.mrf.mxu0
  %v7032 = vadd.f32 %v6983, %v7031
  %7033 = vmatmul.bf16.gmra.mxu0 %v6638
  %v7034 = vpop.f32.mrf.mxu0
  %v7035 = vadd.f32 %v6986, %v7034
  %v7036 = vpop.f32.mrf.mxu0
  %v7037 = vadd.f32 %v6988, %v7036
  %7038 = vmatmul.bf16.gmra.mxu0 %v6642
  %v7039 = vpop.f32.mrf.mxu0
  %v7040 = vadd.f32 %v6991, %v7039
  %v7041 = vpop.f32.mrf.mxu0
  %v7042 = vadd.f32 %v6993, %v7041
  %7043 = vmatmul.bf16.gmra.mxu0 %v6646
  %v7044 = vpop.f32.mrf.mxu0
  %v7045 = vadd.f32 %v6996, %v7044
  %v7046 = vpop.f32.mrf.mxu0
  %v7047 = vadd.f32 %v6998, %v7046
  %7048 = vmatmul.bf16.gmra.mxu0 %v6650
  %v7049 = vpop.f32.mrf.mxu0
  %v7050 = vadd.f32 %v7001, %v7049
  %v7051 = vpop.f32.mrf.mxu0
  %v7052 = vadd.f32 %v7003, %v7051
  %7053 = vmatmul.bf16.gmra.mxu0 %v6654
  %v7054 = vpop.f32.mrf.mxu0
  %v7055 = vadd.f32 %v7006, %v7054
  %v7056 = vpop.f32.mrf.mxu0
  %v7057 = vadd.f32 %v7008, %v7056
  %7058 = vdwg.mxu0
  %7059 = vmatpush.bf16.msra.mxu0 %v6879
  %7060 = vmatpush.bf16.msra.mxu0 %v6878
  %7061 = vmatpush.bf16.msra.mxu0 %v6877
  %7062 = vmatpush.bf16.msra.mxu0 %v6876
  %7063 = vmatpush.bf16.msra.mxu0 %v6875
  %7064 = vmatpush.bf16.msra.mxu0 %v6874
  %7065 = vmatpush.bf16.msra.mxu0 %v6873
  %7066 = vmatpush.bf16.msra.mxu0 %v6872
  %7067 = vmatmul.bf16.gmra.mxu0 %v6627
  %v7068 = vpop.f32.mrf.mxu0
  %v7069 = vadd.f32 %v7020, %v7068
  %v7070 = vpop.f32.mrf.mxu0
  %v7071 = vadd.f32 %v7022, %v7070
  %7072 = vmatmul.bf16.gmra.mxu0 %v6631
  %v7073 = vpop.f32.mrf.mxu0
  %v7074 = vadd.f32 %v7025, %v7073
  %v7075 = vpop.f32.mrf.mxu0
  %v7076 = vadd.f32 %v7027, %v7075
  %7077 = vmatmul.bf16.gmra.mxu0 %v6635
  %v7078 = vpop.f32.mrf.mxu0
  %v7079 = vadd.f32 %v7030, %v7078
  %v7080 = vpop.f32.mrf.mxu0
  %v7081 = vadd.f32 %v7032, %v7080
  %7082 = vmatmul.bf16.gmra.mxu0 %v6639
  %v7083 = vpop.f32.mrf.mxu0
  %v7084 = vadd.f32 %v7035, %v7083
  %v7085 = vpop.f32.mrf.mxu0
  %v7086 = vadd.f32 %v7037, %v7085
  %7087 = vmatmul.bf16.gmra.mxu0 %v6643
  %v7088 = vpop.f32.mrf.mxu0
  %v7089 = vadd.f32 %v7040, %v7088
  %v7090 = vpop.f32.mrf.mxu0
  %v7091 = vadd.f32 %v7042, %v7090
  %7092 = vmatmul.bf16.gmra.mxu0 %v6647
  %v7093 = vpop.f32.mrf.mxu0
  %v7094 = vadd.f32 %v7045, %v7093
  %v7095 = vpop.f32.mrf.mxu0
  %v7096 = vadd.f32 %v7047, %v7095
  %7097 = vmatmul.bf16.gmra.mxu0 %v6651
  %v7098 = vpop.f32.mrf.mxu0
  %v7099 = vadd.f32 %v7050, %v7098
  %v7100 = vpop.f32.mrf.mxu0
  %v7101 = vadd.f32 %v7052, %v7100
  %7102 = vmatmul.bf16.gmra.mxu0 %v6655
  %v7103 = vpop.f32.mrf.mxu0
  %v7104 = vadd.f32 %v7055, %v7103
  %v7105 = vpop.f32.mrf.mxu0
  %v7106 = vadd.f32 %v7057, %v7105
  %7107 = vdwg.mxu0
  %v7108 = vpack.c.bf16 %v7071, %v7069
  %v7109 = vpack.c.bf16 %v7076, %v7074
  %v7110 = vpack.c.bf16 %v7081, %v7079
  %v7111 = vpack.c.bf16 %v7086, %v7084
  %v7112 = vpack.c.bf16 %v7091, %v7089
  %v7113 = vpack.c.bf16 %v7096, %v7094
  %v7114 = vpack.c.bf16 %v7101, %v7099
  %v7115 = vpack.c.bf16 %v7106, %v7104
  %v7116 = vld [vmem:[%s6] sm:$0xff]
  %v7117 = vld [vmem:[%s6 + $0x8] sm:$0xff]
  %v7118 = vld [vmem:[%s6 + $0x10] sm:$0xff]
  %v7119 = vld [vmem:[%s6 + $0x18] sm:$0xff]
  %v7120 = vld [vmem:[%s6 + $0x20] sm:$0xff]
  %v7121 = vld [vmem:[%s6 + $0x28] sm:$0xff]
  %v7122 = vld [vmem:[%s6 + $0x30] sm:$0xff]
  %v7123 = vld [vmem:[%s6 + $0x38] sm:$0xff]
  %v7124 = vld [vmem:[%s6 + $0x40] sm:$0xff]
  %v7125 = vld [vmem:[%s6 + $0x48] sm:$0xff]
  %v7126 = vld [vmem:[%s6 + $0x50] sm:$0xff]
  %v7127 = vld [vmem:[%s6 + $0x58] sm:$0xff]
  %v7128 = vld [vmem:[%s6 + $0x60] sm:$0xff]
  %v7129 = vld [vmem:[%s6 + $0x68] sm:$0xff]
  %v7130 = vld [vmem:[%s6 + $0x70] sm:$0xff]
  %v7131 = vld [vmem:[%s6 + $0x78] sm:$0xff]
  %v7148 = vunpack.c.l.b16 %v7116
  %v7149 = vunpack.c.h.b16 %v7116
  %v7150 = vunpack.c.l.b16 %v7117
  %v7151 = vunpack.c.h.b16 %v7117
  %v7152 = vunpack.c.l.b16 %v7118
  %v7153 = vunpack.c.h.b16 %v7118
  %v7154 = vunpack.c.l.b16 %v7119
  %v7155 = vunpack.c.h.b16 %v7119
  %v7156 = vunpack.c.l.b16 %v7120
  %v7157 = vunpack.c.h.b16 %v7120
  %v7158 = vunpack.c.l.b16 %v7121
  %v7159 = vunpack.c.h.b16 %v7121
  %v7160 = vunpack.c.l.b16 %v7122
  %v7161 = vunpack.c.h.b16 %v7122
  %v7162 = vunpack.c.l.b16 %v7123
  %v7163 = vunpack.c.h.b16 %v7123
  %v7164 = vunpack.c.l.b16 %v7124
  %v7165 = vunpack.c.h.b16 %v7124
  %v7166 = vunpack.c.l.b16 %v7125
  %v7167 = vunpack.c.h.b16 %v7125
  %v7168 = vunpack.c.l.b16 %v7126
  %v7169 = vunpack.c.h.b16 %v7126
  %v7170 = vunpack.c.l.b16 %v7127
  %v7171 = vunpack.c.h.b16 %v7127
  %v7172 = vunpack.c.l.b16 %v7128
  %v7173 = vunpack.c.h.b16 %v7128
  %v7174 = vunpack.c.l.b16 %v7129
  %v7175 = vunpack.c.h.b16 %v7129
  %v7176 = vunpack.c.l.b16 %v7130
  %v7177 = vunpack.c.h.b16 %v7130
  %v7178 = vunpack.c.l.b16 %v7131
  %v7179 = vunpack.c.h.b16 %v7131
  %v7180 = vpack.c.b16 %v7150, %v7148
  %v7181 = vpack.c.b16 %v7151, %v7149
  %v7182 = vpack.c.b16 %v7154, %v7152
  %v7183 = vpack.c.b16 %v7155, %v7153
  %v7184 = vpack.c.b16 %v7158, %v7156
  %v7185 = vpack.c.b16 %v7159, %v7157
  %v7186 = vpack.c.b16 %v7162, %v7160
  %v7187 = vpack.c.b16 %v7163, %v7161
  %v7188 = vpack.c.b16 %v7166, %v7164
  %v7189 = vpack.c.b16 %v7167, %v7165
  %v7190 = vpack.c.b16 %v7170, %v7168
  %v7191 = vpack.c.b16 %v7171, %v7169
  %v7192 = vpack.c.b16 %v7174, %v7172
  %v7193 = vpack.c.b16 %v7175, %v7173
  %v7194 = vpack.c.b16 %v7178, %v7176
  %v7195 = vpack.c.b16 %v7179, %v7177
  %7212 = vmatpush.bf16.msra.mxu0 %v7194
  %7213 = vmatpush.bf16.msra.mxu0 %v7192
  %7214 = vmatpush.bf16.msra.mxu0 %v7190
  %7215 = vmatpush.bf16.msra.mxu0 %v7188
  %7216 = vmatpush.bf16.msra.mxu0 %v7186
  %7217 = vmatpush.bf16.msra.mxu0 %v7184
  %7218 = vmatpush.bf16.msra.mxu0 %v7182
  %7219 = vmatpush.bf16.msra.mxu0 %v7180
  %7220 = vmatmul.bf16.gmra.mxu0 %v7108
  %v7221 = vpop.f32.mrf.mxu0
  %v7222 = vadd.f32 0.0, %v7221
  %v7223 = vpop.f32.mrf.mxu0
  %v7224 = vadd.f32 0.0, %v7223
  %7225 = vmatmul.bf16.gmra.mxu0 %v7109
  %v7226 = vpop.f32.mrf.mxu0
  %v7227 = vadd.f32 0.0, %v7226
  %v7228 = vpop.f32.mrf.mxu0
  %v7229 = vadd.f32 0.0, %v7228
  %7230 = vmatmul.bf16.gmra.mxu0 %v7110
  %v7231 = vpop.f32.mrf.mxu0
  %v7232 = vadd.f32 0.0, %v7231
  %v7233 = vpop.f32.mrf.mxu0
  %v7234 = vadd.f32 0.0, %v7233
  %7235 = vmatmul.bf16.gmra.mxu0 %v7111
  %v7236 = vpop.f32.mrf.mxu0
  %v7237 = vadd.f32 0.0, %v7236
  %v7238 = vpop.f32.mrf.mxu0
  %v7239 = vadd.f32 0.0, %v7238
  %7240 = vmatmul.bf16.gmra.mxu0 %v7112
  %v7241 = vpop.f32.mrf.mxu0
  %v7242 = vadd.f32 0.0, %v7241
  %v7243 = vpop.f32.mrf.mxu0
  %v7244 = vadd.f32 0.0, %v7243
  %7245 = vmatmul.bf16.gmra.mxu0 %v7113
  %v7246 = vpop.f32.mrf.mxu0
  %v7247 = vadd.f32 0.0, %v7246
  %v7248 = vpop.f32.mrf.mxu0
  %v7249 = vadd.f32 0.0, %v7248
  %7250 = vmatmul.bf16.gmra.mxu0 %v7114
  %v7251 = vpop.f32.mrf.mxu0
  %v7252 = vadd.f32 0.0, %v7251
  %v7253 = vpop.f32.mrf.mxu0
  %v7254 = vadd.f32 0.0, %v7253
  %7255 = vmatmul.bf16.gmra.mxu0 %v7115
  %v7256 = vpop.f32.mrf.mxu0
  %v7257 = vadd.f32 0.0, %v7256
  %v7258 = vpop.f32.mrf.mxu0
  %v7259 = vadd.f32 0.0, %v7258
  %7260 = vdwg.mxu0
  %7261 = vmatpush.bf16.msra.mxu0 %v7195
  %7262 = vmatpush.bf16.msra.mxu0 %v7193
  %7263 = vmatpush.bf16.msra.mxu0 %v7191
  %7264 = vmatpush.bf16.msra.mxu0 %v7189
  %7265 = vmatpush.bf16.msra.mxu0 %v7187
  %7266 = vmatpush.bf16.msra.mxu0 %v7185
  %7267 = vmatpush.bf16.msra.mxu0 %v7183
  %7268 = vmatpush.bf16.msra.mxu0 %v7181
  %7269 = vmatmul.bf16.gmra.mxu0 %v7108
  %v7270 = vpop.f32.mrf.mxu0
  %v7271 = vadd.f32 0.0, %v7270
  %v7272 = vpop.f32.mrf.mxu0
  %v7273 = vadd.f32 0.0, %v7272
  %7274 = vmatmul.bf16.gmra.mxu0 %v7109
  %v7275 = vpop.f32.mrf.mxu0
  %v7276 = vadd.f32 0.0, %v7275
  %v7277 = vpop.f32.mrf.mxu0
  %v7278 = vadd.f32 0.0, %v7277
  %7279 = vmatmul.bf16.gmra.mxu0 %v7110
  %v7280 = vpop.f32.mrf.mxu0
  %v7281 = vadd.f32 0.0, %v7280
  %v7282 = vpop.f32.mrf.mxu0
  %v7283 = vadd.f32 0.0, %v7282
  %7284 = vmatmul.bf16.gmra.mxu0 %v7111
  %v7285 = vpop.f32.mrf.mxu0
  %v7286 = vadd.f32 0.0, %v7285
  %v7287 = vpop.f32.mrf.mxu0
  %v7288 = vadd.f32 0.0, %v7287
  %7289 = vmatmul.bf16.gmra.mxu0 %v7112
  %v7290 = vpop.f32.mrf.mxu0
  %v7291 = vadd.f32 0.0, %v7290
  %v7292 = vpop.f32.mrf.mxu0
  %v7293 = vadd.f32 0.0, %v7292
  %7294 = vmatmul.bf16.gmra.mxu0 %v7113
  %v7295 = vpop.f32.mrf.mxu0
  %v7296 = vadd.f32 0.0, %v7295
  %v7297 = vpop.f32.mrf.mxu0
  %v7298 = vadd.f32 0.0, %v7297
  %7299 = vmatmul.bf16.gmra.mxu0 %v7114
  %v7300 = vpop.f32.mrf.mxu0
  %v7301 = vadd.f32 0.0, %v7300
  %v7302 = vpop.f32.mrf.mxu0
  %v7303 = vadd.f32 0.0, %v7302
  %7304 = vmatmul.bf16.gmra.mxu0 %v7115
  %v7305 = vpop.f32.mrf.mxu0
  %v7306 = vadd.f32 0.0, %v7305
  %v7307 = vpop.f32.mrf.mxu0
  %v7308 = vadd.f32 0.0, %v7307
  %7309 = vdwg.mxu0
  %s7310 = scalar_lea.vmem %s1, 128
  %v7311 = vld [vmem:[%s7310] sm:$0xff]
  %v7312 = vld [vmem:[%s7310 + $0x8] sm:$0xff]
  %v7313 = vld [vmem:[%s7310 + $0x10] sm:$0xff]
  %v7314 = vld [vmem:[%s7310 + $0x18] sm:$0xff]
  %v7315 = vld [vmem:[%s7310 + $0x20] sm:$0xff]
  %v7316 = vld [vmem:[%s7310 + $0x28] sm:$0xff]
  %v7317 = vld [vmem:[%s7310 + $0x30] sm:$0xff]
  %v7318 = vld [vmem:[%s7310 + $0x38] sm:$0xff]
  %v7319 = vld [vmem:[%s7310 + $0x40] sm:$0xff]
  %v7320 = vld [vmem:[%s7310 + $0x48] sm:$0xff]
  %v7321 = vld [vmem:[%s7310 + $0x50] sm:$0xff]
  %v7322 = vld [vmem:[%s7310 + $0x58] sm:$0xff]
  %v7323 = vld [vmem:[%s7310 + $0x60] sm:$0xff]
  %v7324 = vld [vmem:[%s7310 + $0x68] sm:$0xff]
  %v7325 = vld [vmem:[%s7310 + $0x70] sm:$0xff]
  %v7326 = vld [vmem:[%s7310 + $0x78] sm:$0xff]
  %v7327 = vmax.f32 %v7222, %v7271
  %7328 = vmax.xlane.f32.xlu0 %v7327
  %v7329 = vpop.xlane.xlu0 %7328
  %v7330 = vmax.f32 %v7224, %v7273
  %7331 = vmax.xlane.f32.xlu0 %v7330
  %v7332 = vpop.xlane.xlu0 %7331
  %v7333 = vmax.f32 %v7227, %v7276
  %7334 = vmax.xlane.f32.xlu0 %v7333
  %v7335 = vpop.xlane.xlu0 %7334
  %v7336 = vmax.f32 %v7229, %v7278
  %7337 = vmax.xlane.f32.xlu0 %v7336
  %v7338 = vpop.xlane.xlu0 %7337
  %v7339 = vmax.f32 %v7232, %v7281
  %7340 = vmax.xlane.f32.xlu0 %v7339
  %v7341 = vpop.xlane.xlu0 %7340
  %v7342 = vmax.f32 %v7234, %v7283
  %7343 = vmax.xlane.f32.xlu0 %v7342
  %v7344 = vpop.xlane.xlu0 %7343
  %v7345 = vmax.f32 %v7237, %v7286
  %7346 = vmax.xlane.f32.xlu0 %v7345
  %v7347 = vpop.xlane.xlu0 %7346
  %v7348 = vmax.f32 %v7239, %v7288
  %7349 = vmax.xlane.f32.xlu0 %v7348
  %v7350 = vpop.xlane.xlu0 %7349
  %v7351 = vmax.f32 %v7242, %v7291
  %7352 = vmax.xlane.f32.xlu0 %v7351
  %v7353 = vpop.xlane.xlu0 %7352
  %v7354 = vmax.f32 %v7244, %v7293
  %7355 = vmax.xlane.f32.xlu0 %v7354
  %v7356 = vpop.xlane.xlu0 %7355
  %v7357 = vmax.f32 %v7247, %v7296
  %7358 = vmax.xlane.f32.xlu0 %v7357
  %v7359 = vpop.xlane.xlu0 %7358
  %v7360 = vmax.f32 %v7249, %v7298
  %7361 = vmax.xlane.f32.xlu0 %v7360
  %v7362 = vpop.xlane.xlu0 %7361
  %v7363 = vmax.f32 %v7252, %v7301
  %7364 = vmax.xlane.f32.xlu0 %v7363
  %v7365 = vpop.xlane.xlu0 %7364
  %v7366 = vmax.f32 %v7254, %v7303
  %7367 = vmax.xlane.f32.xlu0 %v7366
  %v7368 = vpop.xlane.xlu0 %7367
  %v7369 = vmax.f32 %v7257, %v7306
  %7370 = vmax.xlane.f32.xlu0 %v7369
  %v7371 = vpop.xlane.xlu0 %7370
  %v7372 = vmax.f32 %v7259, %v7308
  %7373 = vmax.xlane.f32.xlu0 %v7372
  %v7374 = vpop.xlane.xlu0 %7373
  %v7375 = vsub.f32 %v7222, %v7329
  %v7376 = vsub.f32 %v7271, %v7329
  %v7377 = vsub.f32 %v7224, %v7332
  %v7378 = vsub.f32 %v7273, %v7332
  %v7379 = vsub.f32 %v7227, %v7335
  %v7380 = vsub.f32 %v7276, %v7335
  %v7381 = vsub.f32 %v7229, %v7338
  %v7382 = vsub.f32 %v7278, %v7338
  %v7383 = vsub.f32 %v7232, %v7341
  %v7384 = vsub.f32 %v7281, %v7341
  %v7385 = vsub.f32 %v7234, %v7344
  %v7386 = vsub.f32 %v7283, %v7344
  %v7387 = vsub.f32 %v7237, %v7347
  %v7388 = vsub.f32 %v7286, %v7347
  %v7389 = vsub.f32 %v7239, %v7350
  %v7390 = vsub.f32 %v7288, %v7350
  %v7391 = vsub.f32 %v7242, %v7353
  %v7392 = vsub.f32 %v7291, %v7353
  %v7393 = vsub.f32 %v7244, %v7356
  %v7394 = vsub.f32 %v7293, %v7356
  %v7395 = vsub.f32 %v7247, %v7359
  %v7396 = vsub.f32 %v7296, %v7359
  %v7397 = vsub.f32 %v7249, %v7362
  %v7398 = vsub.f32 %v7298, %v7362
  %v7399 = vsub.f32 %v7252, %v7365
  %v7400 = vsub.f32 %v7301, %v7365
  %v7401 = vsub.f32 %v7254, %v7368
  %v7402 = vsub.f32 %v7303, %v7368
  %v7403 = vsub.f32 %v7257, %v7371
  %v7404 = vsub.f32 %v7306, %v7371
  %v7405 = vsub.f32 %v7259, %v7374
  %v7406 = vsub.f32 %v7308, %v7374
  %v7407 = vmul.f32 %v7375, 1.442695
  %v7408 = vpow.pop %v7407
  %v7409 = vmul.f32 %v7376, 1.442695
  %v7410 = vpow.pop %v7409
  %v7411 = vmul.f32 %v7377, 1.442695
  %v7412 = vpow.pop %v7411
  %v7413 = vmul.f32 %v7378, 1.442695
  %v7414 = vpow.pop %v7413
  %v7415 = vmul.f32 %v7379, 1.442695
  %v7416 = vpow.pop %v7415
  %v7417 = vmul.f32 %v7380, 1.442695
  %v7418 = vpow.pop %v7417
  %v7419 = vmul.f32 %v7381, 1.442695
  %v7420 = vpow.pop %v7419
  %v7421 = vmul.f32 %v7382, 1.442695
  %v7422 = vpow.pop %v7421
  %v7423 = vmul.f32 %v7383, 1.442695
  %v7424 = vpow.pop %v7423
  %v7425 = vmul.f32 %v7384, 1.442695
  %v7426 = vpow.pop %v7425
  %v7427 = vmul.f32 %v7385, 1.442695
  %v7428 = vpow.pop %v7427
  %v7429 = vmul.f32 %v7386, 1.442695
  %v7430 = vpow.pop %v7429
  %v7431 = vmul.f32 %v7387, 1.442695
  %v7432 = vpow.pop %v7431
  %v7433 = vmul.f32 %v7388, 1.442695
  %v7434 = vpow.pop %v7433
  %v7435 = vmul.f32 %v7389, 1.442695
  %v7436 = vpow.pop %v7435
  %v7437 = vmul.f32 %v7390, 1.442695
  %v7438 = vpow.pop %v7437
  %v7439 = vmul.f32 %v7391, 1.442695
  %v7440 = vpow.pop %v7439
  %v7441 = vmul.f32 %v7392, 1.442695
  %v7442 = vpow.pop %v7441
  %v7443 = vmul.f32 %v7393, 1.442695
  %v7444 = vpow.pop %v7443
  %v7445 = vmul.f32 %v7394, 1.442695
  %v7446 = vpow.pop %v7445
  %v7447 = vmul.f32 %v7395, 1.442695
  %v7448 = vpow.pop %v7447
  %v7449 = vmul.f32 %v7396, 1.442695
  %v7450 = vpow.pop %v7449
  %v7451 = vmul.f32 %v7397, 1.442695
  %v7452 = vpow.pop %v7451
  %v7453 = vmul.f32 %v7398, 1.442695
  %v7454 = vpow.pop %v7453
  %v7455 = vmul.f32 %v7399, 1.442695
  %v7456 = vpow.pop %v7455
  %v7457 = vmul.f32 %v7400, 1.442695
  %v7458 = vpow.pop %v7457
  %v7459 = vmul.f32 %v7401, 1.442695
  %v7460 = vpow.pop %v7459
  %v7461 = vmul.f32 %v7402, 1.442695
  %v7462 = vpow.pop %v7461
  %v7463 = vmul.f32 %v7403, 1.442695
  %v7464 = vpow.pop %v7463
  %v7465 = vmul.f32 %v7404, 1.442695
  %v7466 = vpow.pop %v7465
  %v7467 = vmul.f32 %v7405, 1.442695
  %v7468 = vpow.pop %v7467
  %v7469 = vmul.f32 %v7406, 1.442695
  %v7470 = vpow.pop %v7469
  %v7471 = vadd.f32 %v7408, %v7410
  %7472 = vadd.xlane.f32.xlu0 %v7471
  %v7473 = vpop.xlane.xlu0 %7472
  %v7474 = vadd.f32 %v7412, %v7414
  %7475 = vadd.xlane.f32.xlu0 %v7474
  %v7476 = vpop.xlane.xlu0 %7475
  %v7477 = vadd.f32 %v7416, %v7418
  %7478 = vadd.xlane.f32.xlu0 %v7477
  %v7479 = vpop.xlane.xlu0 %7478
  %v7480 = vadd.f32 %v7420, %v7422
  %7481 = vadd.xlane.f32.xlu0 %v7480
  %v7482 = vpop.xlane.xlu0 %7481
  %v7483 = vadd.f32 %v7424, %v7426
  %7484 = vadd.xlane.f32.xlu0 %v7483
  %v7485 = vpop.xlane.xlu0 %7484
  %v7486 = vadd.f32 %v7428, %v7430
  %7487 = vadd.xlane.f32.xlu0 %v7486
  %v7488 = vpop.xlane.xlu0 %7487
  %v7489 = vadd.f32 %v7432, %v7434
  %7490 = vadd.xlane.f32.xlu0 %v7489
  %v7491 = vpop.xlane.xlu0 %7490
  %v7492 = vadd.f32 %v7436, %v7438
  %7493 = vadd.xlane.f32.xlu0 %v7492
  %v7494 = vpop.xlane.xlu0 %7493
  %v7495 = vadd.f32 %v7440, %v7442
  %7496 = vadd.xlane.f32.xlu0 %v7495
  %v7497 = vpop.xlane.xlu0 %7496
  %v7498 = vadd.f32 %v7444, %v7446
  %7499 = vadd.xlane.f32.xlu0 %v7498
  %v7500 = vpop.xlane.xlu0 %7499
  %v7501 = vadd.f32 %v7448, %v7450
  %7502 = vadd.xlane.f32.xlu0 %v7501
  %v7503 = vpop.xlane.xlu0 %7502
  %v7504 = vadd.f32 %v7452, %v7454
  %7505 = vadd.xlane.f32.xlu0 %v7504
  %v7506 = vpop.xlane.xlu0 %7505
  %v7507 = vadd.f32 %v7456, %v7458
  %7508 = vadd.xlane.f32.xlu0 %v7507
  %v7509 = vpop.xlane.xlu0 %7508
  %v7510 = vadd.f32 %v7460, %v7462
  %7511 = vadd.xlane.f32.xlu0 %v7510
  %v7512 = vpop.xlane.xlu0 %7511
  %v7513 = vadd.f32 %v7464, %v7466
  %7514 = vadd.xlane.f32.xlu0 %v7513
  %v7515 = vpop.xlane.xlu0 %7514
  %v7516 = vadd.f32 %v7468, %v7470
  %7517 = vadd.xlane.f32.xlu0 %v7516
  %v7518 = vpop.xlane.xlu0 %7517
  %v7519 = vlog2.pop %v7473
  %v7520 = vmul.f32 %v7519, 0.6931472
  %v7521 = vlog2.pop %v7476
  %v7522 = vmul.f32 %v7521, 0.6931472
  %v7523 = vlog2.pop %v7479
  %v7524 = vmul.f32 %v7523, 0.6931472
  %v7525 = vlog2.pop %v7482
  %v7526 = vmul.f32 %v7525, 0.6931472
  %v7527 = vlog2.pop %v7485
  %v7528 = vmul.f32 %v7527, 0.6931472
  %v7529 = vlog2.pop %v7488
  %v7530 = vmul.f32 %v7529, 0.6931472
  %v7531 = vlog2.pop %v7491
  %v7532 = vmul.f32 %v7531, 0.6931472
  %v7533 = vlog2.pop %v7494
  %v7534 = vmul.f32 %v7533, 0.6931472
  %v7535 = vlog2.pop %v7497
  %v7536 = vmul.f32 %v7535, 0.6931472
  %v7537 = vlog2.pop %v7500
  %v7538 = vmul.f32 %v7537, 0.6931472
  %v7539 = vlog2.pop %v7503
  %v7540 = vmul.f32 %v7539, 0.6931472
  %v7541 = vlog2.pop %v7506
  %v7542 = vmul.f32 %v7541, 0.6931472
  %v7543 = vlog2.pop %v7509
  %v7544 = vmul.f32 %v7543, 0.6931472
  %v7545 = vlog2.pop %v7512
  %v7546 = vmul.f32 %v7545, 0.6931472
  %v7547 = vlog2.pop %v7515
  %v7548 = vmul.f32 %v7547, 0.6931472
  %v7549 = vlog2.pop %v7518
  %v7550 = vmul.f32 %v7549, 0.6931472
  %v7551 = vadd.f32 %v7329, %v7520
  %v7552 = vadd.f32 %v7332, %v7522
  %v7553 = vadd.f32 %v7335, %v7524
  %v7554 = vadd.f32 %v7338, %v7526
  %v7555 = vadd.f32 %v7341, %v7528
  %v7556 = vadd.f32 %v7344, %v7530
  %v7557 = vadd.f32 %v7347, %v7532
  %v7558 = vadd.f32 %v7350, %v7534
  %v7559 = vadd.f32 %v7353, %v7536
  %v7560 = vadd.f32 %v7356, %v7538
  %v7561 = vadd.f32 %v7359, %v7540
  %v7562 = vadd.f32 %v7362, %v7542
  %v7563 = vadd.f32 %v7365, %v7544
  %v7564 = vadd.f32 %v7368, %v7546
  %v7565 = vadd.f32 %v7371, %v7548
  %v7566 = vadd.f32 %v7374, %v7550
  %7567 = vset.pattern.permute.xlu0 0
  %7568 = vperm.xlu0 %7567, %v7311
  %v7569 = vpop.permute.xlu0 %7568
  %7570 = vset.pattern.permute.xlu0 0
  %7571 = vperm.xlu0 %7570, %v7312
  %v7572 = vpop.permute.xlu0 %7571
  %7573 = vset.pattern.permute.xlu0 0
  %7574 = vperm.xlu0 %7573, %v7313
  %v7575 = vpop.permute.xlu0 %7574
  %7576 = vset.pattern.permute.xlu0 0
  %7577 = vperm.xlu0 %7576, %v7314
  %v7578 = vpop.permute.xlu0 %7577
  %7579 = vset.pattern.permute.xlu0 0
  %7580 = vperm.xlu0 %7579, %v7315
  %v7581 = vpop.permute.xlu0 %7580
  %7582 = vset.pattern.permute.xlu0 0
  %7583 = vperm.xlu0 %7582, %v7316
  %v7584 = vpop.permute.xlu0 %7583
  %7585 = vset.pattern.permute.xlu0 0
  %7586 = vperm.xlu0 %7585, %v7317
  %v7587 = vpop.permute.xlu0 %7586
  %7588 = vset.pattern.permute.xlu0 0
  %7589 = vperm.xlu0 %7588, %v7318
  %v7590 = vpop.permute.xlu0 %7589
  %7591 = vset.pattern.permute.xlu0 0
  %7592 = vperm.xlu0 %7591, %v7319
  %v7593 = vpop.permute.xlu0 %7592
  %7594 = vset.pattern.permute.xlu0 0
  %7595 = vperm.xlu0 %7594, %v7320
  %v7596 = vpop.permute.xlu0 %7595
  %7597 = vset.pattern.permute.xlu0 0
  %7598 = vperm.xlu0 %7597, %v7321
  %v7599 = vpop.permute.xlu0 %7598
  %7600 = vset.pattern.permute.xlu0 0
  %7601 = vperm.xlu0 %7600, %v7322
  %v7602 = vpop.permute.xlu0 %7601
  %7603 = vset.pattern.permute.xlu0 0
  %7604 = vperm.xlu0 %7603, %v7323
  %v7605 = vpop.permute.xlu0 %7604
  %7606 = vset.pattern.permute.xlu0 0
  %7607 = vperm.xlu0 %7606, %v7324
  %v7608 = vpop.permute.xlu0 %7607
  %7609 = vset.pattern.permute.xlu0 0
  %7610 = vperm.xlu0 %7609, %v7325
  %v7611 = vpop.permute.xlu0 %7610
  %7612 = vset.pattern.permute.xlu0 0
  %7613 = vperm.xlu0 %7612, %v7326
  %v7614 = vpop.permute.xlu0 %7613
  %vm7615 = vcmp.eq.s32.totalorder %v929, %v7569
  %vm7616 = vcmp.eq.s32.totalorder %v3532, %v7569
  %vm7617 = vcmp.eq.s32.totalorder %v929, %v7572
  %vm7618 = vcmp.eq.s32.totalorder %v3532, %v7572
  %vm7619 = vcmp.eq.s32.totalorder %v929, %v7575
  %vm7620 = vcmp.eq.s32.totalorder %v3532, %v7575
  %vm7621 = vcmp.eq.s32.totalorder %v929, %v7578
  %vm7622 = vcmp.eq.s32.totalorder %v3532, %v7578
  %vm7623 = vcmp.eq.s32.totalorder %v929, %v7581
  %vm7624 = vcmp.eq.s32.totalorder %v3532, %v7581
  %vm7625 = vcmp.eq.s32.totalorder %v929, %v7584
  %vm7626 = vcmp.eq.s32.totalorder %v3532, %v7584
  %vm7627 = vcmp.eq.s32.totalorder %v929, %v7587
  %vm7628 = vcmp.eq.s32.totalorder %v3532, %v7587
  %vm7629 = vcmp.eq.s32.totalorder %v929, %v7590
  %vm7630 = vcmp.eq.s32.totalorder %v3532, %v7590
  %vm7631 = vcmp.eq.s32.totalorder %v929, %v7593
  %vm7632 = vcmp.eq.s32.totalorder %v3532, %v7593
  %vm7633 = vcmp.eq.s32.totalorder %v929, %v7596
  %vm7634 = vcmp.eq.s32.totalorder %v3532, %v7596
  %vm7635 = vcmp.eq.s32.totalorder %v929, %v7599
  %vm7636 = vcmp.eq.s32.totalorder %v3532, %v7599
  %vm7637 = vcmp.eq.s32.totalorder %v929, %v7602
  %vm7638 = vcmp.eq.s32.totalorder %v3532, %v7602
  %vm7639 = vcmp.eq.s32.totalorder %v929, %v7605
  %vm7640 = vcmp.eq.s32.totalorder %v3532, %v7605
  %vm7641 = vcmp.eq.s32.totalorder %v929, %v7608
  %vm7642 = vcmp.eq.s32.totalorder %v3532, %v7608
  %vm7643 = vcmp.eq.s32.totalorder %v929, %v7611
  %vm7644 = vcmp.eq.s32.totalorder %v3532, %v7611
  %vm7645 = vcmp.eq.s32.totalorder %v929, %v7614
  %vm7646 = vcmp.eq.s32.totalorder %v3532, %v7614
  %v7647 = vsel %vm7615, %v7222, 0.0
  %v7648 = vsel %vm7616, %v7271, 0.0
  %v7649 = vsel %vm7617, %v7224, 0.0
  %v7650 = vsel %vm7618, %v7273, 0.0
  %v7651 = vsel %vm7619, %v7227, 0.0
  %v7652 = vsel %vm7620, %v7276, 0.0
  %v7653 = vsel %vm7621, %v7229, 0.0
  %v7654 = vsel %vm7622, %v7278, 0.0
  %v7655 = vsel %vm7623, %v7232, 0.0
  %v7656 = vsel %vm7624, %v7281, 0.0
  %v7657 = vsel %vm7625, %v7234, 0.0
  %v7658 = vsel %vm7626, %v7283, 0.0
  %v7659 = vsel %vm7627, %v7237, 0.0
  %v7660 = vsel %vm7628, %v7286, 0.0
  %v7661 = vsel %vm7629, %v7239, 0.0
  %v7662 = vsel %vm7630, %v7288, 0.0
  %v7663 = vsel %vm7631, %v7242, 0.0
  %v7664 = vsel %vm7632, %v7291, 0.0
  %v7665 = vsel %vm7633, %v7244, 0.0
  %v7666 = vsel %vm7634, %v7293, 0.0
  %v7667 = vsel %vm7635, %v7247, 0.0
  %v7668 = vsel %vm7636, %v7296, 0.0
  %v7669 = vsel %vm7637, %v7249, 0.0
  %v7670 = vsel %vm7638, %v7298, 0.0
  %v7671 = vsel %vm7639, %v7252, 0.0
  %v7672 = vsel %vm7640, %v7301, 0.0
  %v7673 = vsel %vm7641, %v7254, 0.0
  %v7674 = vsel %vm7642, %v7303, 0.0
  %v7675 = vsel %vm7643, %v7257, 0.0
  %v7676 = vsel %vm7644, %v7306, 0.0
  %v7677 = vsel %vm7645, %v7259, 0.0
  %v7678 = vsel %vm7646, %v7308, 0.0
  %v7679 = vadd.f32 %v7647, %v7648
  %7680 = vadd.xlane.f32.xlu0 %v7679
  %v7681 = vpop.xlane.xlu0 %7680
  %v7682 = vadd.f32 %v7649, %v7650
  %7683 = vadd.xlane.f32.xlu0 %v7682
  %v7684 = vpop.xlane.xlu0 %7683
  %v7685 = vadd.f32 %v7651, %v7652
  %7686 = vadd.xlane.f32.xlu0 %v7685
  %v7687 = vpop.xlane.xlu0 %7686
  %v7688 = vadd.f32 %v7653, %v7654
  %7689 = vadd.xlane.f32.xlu0 %v7688
  %v7690 = vpop.xlane.xlu0 %7689
  %v7691 = vadd.f32 %v7655, %v7656
  %7692 = vadd.xlane.f32.xlu0 %v7691
  %v7693 = vpop.xlane.xlu0 %7692
  %v7694 = vadd.f32 %v7657, %v7658
  %7695 = vadd.xlane.f32.xlu0 %v7694
  %v7696 = vpop.xlane.xlu0 %7695
  %v7697 = vadd.f32 %v7659, %v7660
  %7698 = vadd.xlane.f32.xlu0 %v7697
  %v7699 = vpop.xlane.xlu0 %7698
  %v7700 = vadd.f32 %v7661, %v7662
  %7701 = vadd.xlane.f32.xlu0 %v7700
  %v7702 = vpop.xlane.xlu0 %7701
  %v7703 = vadd.f32 %v7663, %v7664
  %7704 = vadd.xlane.f32.xlu0 %v7703
  %v7705 = vpop.xlane.xlu0 %7704
  %v7706 = vadd.f32 %v7665, %v7666
  %7707 = vadd.xlane.f32.xlu0 %v7706
  %v7708 = vpop.xlane.xlu0 %7707
  %v7709 = vadd.f32 %v7667, %v7668
  %7710 = vadd.xlane.f32.xlu0 %v7709
  %v7711 = vpop.xlane.xlu0 %7710
  %v7712 = vadd.f32 %v7669, %v7670
  %7713 = vadd.xlane.f32.xlu0 %v7712
  %v7714 = vpop.xlane.xlu0 %7713
  %v7715 = vadd.f32 %v7671, %v7672
  %7716 = vadd.xlane.f32.xlu0 %v7715
  %v7717 = vpop.xlane.xlu0 %7716
  %v7718 = vadd.f32 %v7673, %v7674
  %7719 = vadd.xlane.f32.xlu0 %v7718
  %v7720 = vpop.xlane.xlu0 %7719
  %v7721 = vadd.f32 %v7675, %v7676
  %7722 = vadd.xlane.f32.xlu0 %v7721
  %v7723 = vpop.xlane.xlu0 %7722
  %v7724 = vadd.f32 %v7677, %v7678
  %7725 = vadd.xlane.f32.xlu0 %v7724
  %v7726 = vpop.xlane.xlu0 %7725
  %v7727 = vsub.f32 %v7551, %v7681
  %v7728 = vsub.f32 %v7552, %v7684
  %v7729 = vsub.f32 %v7553, %v7687
  %v7730 = vsub.f32 %v7554, %v7690
  %v7731 = vsub.f32 %v7555, %v7693
  %v7732 = vsub.f32 %v7556, %v7696
  %v7733 = vsub.f32 %v7557, %v7699
  %v7734 = vsub.f32 %v7558, %v7702
  %v7735 = vsub.f32 %v7559, %v7705
  %v7736 = vsub.f32 %v7560, %v7708
  %v7737 = vsub.f32 %v7561, %v7711
  %v7738 = vsub.f32 %v7562, %v7714
  %v7739 = vsub.f32 %v7563, %v7717
  %v7740 = vsub.f32 %v7564, %v7720
  %v7741 = vsub.f32 %v7565, %v7723
  %v7742 = vsub.f32 %v7566, %v7726
  %vm7743 = vcmp.ne.s32.totalorder %v7311, 4294967196
  %vm7744 = vcmp.ne.s32.totalorder %v7312, 4294967196
  %vm7745 = vcmp.ne.s32.totalorder %v7313, 4294967196
  %vm7746 = vcmp.ne.s32.totalorder %v7314, 4294967196
  %vm7747 = vcmp.ne.s32.totalorder %v7315, 4294967196
  %vm7748 = vcmp.ne.s32.totalorder %v7316, 4294967196
  %vm7749 = vcmp.ne.s32.totalorder %v7317, 4294967196
  %vm7750 = vcmp.ne.s32.totalorder %v7318, 4294967196
  %vm7751 = vcmp.ne.s32.totalorder %v7319, 4294967196
  %vm7752 = vcmp.ne.s32.totalorder %v7320, 4294967196
  %vm7753 = vcmp.ne.s32.totalorder %v7321, 4294967196
  %vm7754 = vcmp.ne.s32.totalorder %v7322, 4294967196
  %vm7755 = vcmp.ne.s32.totalorder %v7323, 4294967196
  %vm7756 = vcmp.ne.s32.totalorder %v7324, 4294967196
  %vm7757 = vcmp.ne.s32.totalorder %v7325, 4294967196
  %vm7758 = vcmp.ne.s32.totalorder %v7326, 4294967196
  %v7759 = vsel %vm7743, 1, 0
  %v7760 = vsel %vm7744, 1, 0
  %v7761 = vsel %vm7745, 1, 0
  %v7762 = vsel %vm7746, 1, 0
  %v7763 = vsel %vm7747, 1, 0
  %v7764 = vsel %vm7748, 1, 0
  %v7765 = vsel %vm7749, 1, 0
  %v7766 = vsel %vm7750, 1, 0
  %v7767 = vsel %vm7751, 1, 0
  %v7768 = vsel %vm7752, 1, 0
  %v7769 = vsel %vm7753, 1, 0
  %v7770 = vsel %vm7754, 1, 0
  %v7771 = vsel %vm7755, 1, 0
  %v7772 = vsel %vm7756, 1, 0
  %v7773 = vsel %vm7757, 1, 0
  %v7774 = vsel %vm7758, 1, 0
  %v7775 = vcvt.s32.f32 %v7759
  %v7776 = vcvt.s32.f32 %v7760
  %v7777 = vcvt.s32.f32 %v7761
  %v7778 = vcvt.s32.f32 %v7762
  %v7779 = vcvt.s32.f32 %v7763
  %v7780 = vcvt.s32.f32 %v7764
  %v7781 = vcvt.s32.f32 %v7765
  %v7782 = vcvt.s32.f32 %v7766
  %v7783 = vcvt.s32.f32 %v7767
  %v7784 = vcvt.s32.f32 %v7768
  %v7785 = vcvt.s32.f32 %v7769
  %v7786 = vcvt.s32.f32 %v7770
  %v7787 = vcvt.s32.f32 %v7771
  %v7788 = vcvt.s32.f32 %v7772
  %v7789 = vcvt.s32.f32 %v7773
  %v7790 = vcvt.s32.f32 %v7774
  %v7791 = vmul.f32 %v7727, %v7775
  %v7792 = vmul.f32 %v7728, %v7776
  %v7793 = vmul.f32 %v7729, %v7777
  %v7794 = vmul.f32 %v7730, %v7778
  %v7795 = vmul.f32 %v7731, %v7779
  %v7796 = vmul.f32 %v7732, %v7780
  %v7797 = vmul.f32 %v7733, %v7781
  %v7798 = vmul.f32 %v7734, %v7782
  %v7799 = vmul.f32 %v7735, %v7783
  %v7800 = vmul.f32 %v7736, %v7784
  %v7801 = vmul.f32 %v7737, %v7785
  %v7802 = vmul.f32 %v7738, %v7786
  %v7803 = vmul.f32 %v7739, %v7787
  %v7804 = vmul.f32 %v7740, %v7788
  %v7805 = vmul.f32 %v7741, %v7789
  %v7806 = vmul.f32 %v7742, %v7790
  %v7807 = vsel %vm3773, %v7791, 0.0
  %v7808 = vsel %vm3773, %v7792, 0.0
  %v7809 = vadd.f32 %v7807, %v7808
  %v7810 = vsel %vm3773, %v7793, 0.0
  %v7811 = vadd.f32 %v7809, %v7810
  %v7812 = vsel %vm3773, %v7794, 0.0
  %v7813 = vadd.f32 %v7811, %v7812
  %v7814 = vsel %vm3773, %v7795, 0.0
  %v7815 = vadd.f32 %v7813, %v7814
  %v7816 = vsel %vm3773, %v7796, 0.0
  %v7817 = vadd.f32 %v7815, %v7816
  %v7818 = vsel %vm3773, %v7797, 0.0
  %v7819 = vadd.f32 %v7817, %v7818
  %v7820 = vsel %vm3773, %v7798, 0.0
  %v7821 = vadd.f32 %v7819, %v7820
  %v7822 = vsel %vm3773, %v7799, 0.0
  %v7823 = vadd.f32 %v7821, %v7822
  %v7824 = vsel %vm3773, %v7800, 0.0
  %v7825 = vadd.f32 %v7823, %v7824
  %v7826 = vsel %vm3773, %v7801, 0.0
  %v7827 = vadd.f32 %v7825, %v7826
  %v7828 = vsel %vm3773, %v7802, 0.0
  %v7829 = vadd.f32 %v7827, %v7828
  %v7830 = vsel %vm3773, %v7803, 0.0
  %v7831 = vadd.f32 %v7829, %v7830
  %v7832 = vsel %vm3773, %v7804, 0.0
  %v7833 = vadd.f32 %v7831, %v7832
  %v7834 = vsel %vm3773, %v7805, 0.0
  %v7835 = vadd.f32 %v7833, %v7834
  %v7836 = vsel %vm3773, %v7806, 0.0
  %v7837 = vadd.f32 %v7835, %v7836
  %7838 = vadd.xlane.f32.xlu0 %v7837
  %v7839 = vpop.xlane.xlu0 %7838
  %v7840 = vrot.slane %v7839, 4
  %v7841 = vadd.f32 %v7839, %v7840
  %v7842 = vrot.slane %v7841, 2
  %v7843 = vadd.f32 %v7841, %v7842
  %v7844 = vrot.slane %v7843, 1
  %v7845 = vadd.f32 %v7843, %v7844
  %s7846 = vtos %v7845
  %v7847 = vsel %vm3773, %v7775, 0.0
  %v7848 = vsel %vm3773, %v7776, 0.0
  %v7849 = vadd.f32 %v7847, %v7848
  %v7850 = vsel %vm3773, %v7777, 0.0
  %v7851 = vadd.f32 %v7849, %v7850
  %v7852 = vsel %vm3773, %v7778, 0.0
  %v7853 = vadd.f32 %v7851, %v7852
  %v7854 = vsel %vm3773, %v7779, 0.0
  %v7855 = vadd.f32 %v7853, %v7854
  %v7856 = vsel %vm3773, %v7780, 0.0
  %v7857 = vadd.f32 %v7855, %v7856
  %v7858 = vsel %vm3773, %v7781, 0.0
  %v7859 = vadd.f32 %v7857, %v7858
  %v7860 = vsel %vm3773, %v7782, 0.0
  %v7861 = vadd.f32 %v7859, %v7860
  %v7862 = vsel %vm3773, %v7783, 0.0
  %v7863 = vadd.f32 %v7861, %v7862
  %v7864 = vsel %vm3773, %v7784, 0.0
  %v7865 = vadd.f32 %v7863, %v7864
  %v7866 = vsel %vm3773, %v7785, 0.0
  %v7867 = vadd.f32 %v7865, %v7866
  %v7868 = vsel %vm3773, %v7786, 0.0
  %v7869 = vadd.f32 %v7867, %v7868
  %v7870 = vsel %vm3773, %v7787, 0.0
  %v7871 = vadd.f32 %v7869, %v7870
  %v7872 = vsel %vm3773, %v7788, 0.0
  %v7873 = vadd.f32 %v7871, %v7872
  %v7874 = vsel %vm3773, %v7789, 0.0
  %v7875 = vadd.f32 %v7873, %v7874
  %v7876 = vsel %vm3773, %v7790, 0.0
  %v7877 = vadd.f32 %v7875, %v7876
  %7878 = vadd.xlane.f32.xlu0 %v7877
  %v7879 = vpop.xlane.xlu0 %7878
  %v7880 = vrot.slane %v7879, 4
  %v7881 = vadd.f32 %v7879, %v7880
  %v7882 = vrot.slane %v7881, 2
  %v7883 = vadd.f32 %v7881, %v7882
  %v7884 = vrot.slane %v7883, 1
  %v7885 = vadd.f32 %v7883, %v7884
  %s7886 = vtos %v7885
  %p7887 = scmp.gt.f32.partialorder %s7886, 0.0
  %s7888 = smax.f32 %s7886, 1.0
  %v7889 = vstv %s7888
  %v7890 = vrcp.pop %v7889
  %v7891 = vmul.f32 %v7889, %v7890
  %v7892 = vsub.f32 1.0, %v7891
  %v7893 = vmul.f32 %v7890, %v7892
  %v7894 = vadd.f32 %v7890, %v7893
  %vm7895 = vweird.f32 %v7889
  %vm7896 = vweird.f32 %v7890
  %vm7897 = vmor %vm7895, %vm7896
  %v7898 = vsel %vm7897, %v7890, %v7894
  %v7899 = vand.u32 2147483647, %v7889
  %vm7900 = vcmp.eq.f32.partialorder %v7899, 8.507059e+37
  %v7901 = vand.u32 %v7889, 2147483648
  %v7902 = vor.u32 1.1754944e-38, %v7901
  %v7903 = vsel %vm7900, %v7902, %v7898
  %s7904 = vtos %v7903
  %s7905 = smul.f32 %s7846, %s7904
  %s7906 = scalar_select %p7887, %s7905, 0.0
  %v7907 = vld [vmem:[%s2 + $0x4] sm:$0xff]
  %v7908 = vld [vmem:[%s2 + $0x10] sm:$0xff]
  %v7909 = vld [vmem:[%s2 + $0x1c] sm:$0xff]
  %v7910 = vld [vmem:[%s2 + $0x28] sm:$0xff]
  %v7911 = vld [vmem:[%s2 + $0x34] sm:$0xff]
  %v7912 = vld [vmem:[%s2 + $0x40] sm:$0xff]
  %v7913 = vld [vmem:[%s2 + $0x4c] sm:$0xff]
  %v7914 = vld [vmem:[%s2 + $0x58] sm:$0xff]
  %v7915 = vld [vmem:[%s2 + $0x64] sm:$0xff]
  %v7916 = vld [vmem:[%s2 + $0x70] sm:$0xff]
  %v7917 = vld [vmem:[%s2 + $0x7c] sm:$0xff]
  %v7918 = vld [vmem:[%s2 + $0x88] sm:$0xff]
  %v7919 = vld [vmem:[%s2 + $0x94] sm:$0xff]
  %v7920 = vld [vmem:[%s2 + $0xa0] sm:$0xff]
  %v7921 = vld [vmem:[%s2 + $0xac] sm:$0xff]
  %v7922 = vld [vmem:[%s2 + $0xb8] sm:$0xff]
  %v7939 = vunpack.c.l.b16 %v7907
  %v7940 = vunpack.c.h.b16 %v7907
  %v7941 = vunpack.c.l.b16 %v7908
  %v7942 = vunpack.c.h.b16 %v7908
  %v7943 = vunpack.c.l.b16 %v7909
  %v7944 = vunpack.c.h.b16 %v7909
  %v7945 = vunpack.c.l.b16 %v7910
  %v7946 = vunpack.c.h.b16 %v7910
  %v7947 = vunpack.c.l.b16 %v7911
  %v7948 = vunpack.c.h.b16 %v7911
  %v7949 = vunpack.c.l.b16 %v7912
  %v7950 = vunpack.c.h.b16 %v7912
  %v7951 = vunpack.c.l.b16 %v7913
  %v7952 = vunpack.c.h.b16 %v7913
  %v7953 = vunpack.c.l.b16 %v7914
  %v7954 = vunpack.c.h.b16 %v7914
  %v7955 = vunpack.c.l.b16 %v7915
  %v7956 = vunpack.c.h.b16 %v7915
  %v7957 = vunpack.c.l.b16 %v7916
  %v7958 = vunpack.c.h.b16 %v7916
  %v7959 = vunpack.c.l.b16 %v7917
  %v7960 = vunpack.c.h.b16 %v7917
  %v7961 = vunpack.c.l.b16 %v7918
  %v7962 = vunpack.c.h.b16 %v7918
  %v7963 = vunpack.c.l.b16 %v7919
  %v7964 = vunpack.c.h.b16 %v7919
  %v7965 = vunpack.c.l.b16 %v7920
  %v7966 = vunpack.c.h.b16 %v7920
  %v7967 = vunpack.c.l.b16 %v7921
  %v7968 = vunpack.c.h.b16 %v7921
  %v7969 = vunpack.c.l.b16 %v7922
  %v7970 = vunpack.c.h.b16 %v7922
  %v7971 = vpack.c.b16 %v7941, %v7939
  %v7972 = vpack.c.b16 %v7942, %v7940
  %v7973 = vpack.c.b16 %v7945, %v7943
  %v7974 = vpack.c.b16 %v7946, %v7944
  %v7975 = vpack.c.b16 %v7949, %v7947
  %v7976 = vpack.c.b16 %v7950, %v7948
  %v7977 = vpack.c.b16 %v7953, %v7951
  %v7978 = vpack.c.b16 %v7954, %v7952
  %v7979 = vpack.c.b16 %v7957, %v7955
  %v7980 = vpack.c.b16 %v7958, %v7956
  %v7981 = vpack.c.b16 %v7961, %v7959
  %v7982 = vpack.c.b16 %v7962, %v7960
  %v7983 = vpack.c.b16 %v7965, %v7963
  %v7984 = vpack.c.b16 %v7966, %v7964
  %v7985 = vpack.c.b16 %v7969, %v7967
  %v7986 = vpack.c.b16 %v7970, %v7968
  %8003 = vmatpush.bf16.msra.mxu0 %v7985
  %8004 = vmatpush.bf16.msra.mxu0 %v7983
  %8005 = vmatpush.bf16.msra.mxu0 %v7981
  %8006 = vmatpush.bf16.msra.mxu0 %v7979
  %8007 = vmatpush.bf16.msra.mxu0 %v7977
  %8008 = vmatpush.bf16.msra.mxu0 %v7975
  %8009 = vmatpush.bf16.msra.mxu0 %v7973
  %8010 = vmatpush.bf16.msra.mxu0 %v7971
  %8011 = vmatmul.bf16.gmra.mxu0 %v7108
  %v8012 = vpop.f32.mrf.mxu0
  %v8013 = vadd.f32 0.0, %v8012
  %v8014 = vpop.f32.mrf.mxu0
  %v8015 = vadd.f32 0.0, %v8014
  %8016 = vmatmul.bf16.gmra.mxu0 %v7109
  %v8017 = vpop.f32.mrf.mxu0
  %v8018 = vadd.f32 0.0, %v8017
  %v8019 = vpop.f32.mrf.mxu0
  %v8020 = vadd.f32 0.0, %v8019
  %8021 = vmatmul.bf16.gmra.mxu0 %v7110
  %v8022 = vpop.f32.mrf.mxu0
  %v8023 = vadd.f32 0.0, %v8022
  %v8024 = vpop.f32.mrf.mxu0
  %v8025 = vadd.f32 0.0, %v8024
  %8026 = vmatmul.bf16.gmra.mxu0 %v7111
  %v8027 = vpop.f32.mrf.mxu0
  %v8028 = vadd.f32 0.0, %v8027
  %v8029 = vpop.f32.mrf.mxu0
  %v8030 = vadd.f32 0.0, %v8029
  %8031 = vmatmul.bf16.gmra.mxu0 %v7112
  %v8032 = vpop.f32.mrf.mxu0
  %v8033 = vadd.f32 0.0, %v8032
  %v8034 = vpop.f32.mrf.mxu0
  %v8035 = vadd.f32 0.0, %v8034
  %8036 = vmatmul.bf16.gmra.mxu0 %v7113
  %v8037 = vpop.f32.mrf.mxu0
  %v8038 = vadd.f32 0.0, %v8037
  %v8039 = vpop.f32.mrf.mxu0
  %v8040 = vadd.f32 0.0, %v8039
  %8041 = vmatmul.bf16.gmra.mxu0 %v7114
  %v8042 = vpop.f32.mrf.mxu0
  %v8043 = vadd.f32 0.0, %v8042
  %v8044 = vpop.f32.mrf.mxu0
  %v8045 = vadd.f32 0.0, %v8044
  %8046 = vmatmul.bf16.gmra.mxu0 %v7115
  %v8047 = vpop.f32.mrf.mxu0
  %v8048 = vadd.f32 0.0, %v8047
  %v8049 = vpop.f32.mrf.mxu0
  %v8050 = vadd.f32 0.0, %v8049
  %8051 = vdwg.mxu0
  %8052 = vmatpush.bf16.msra.mxu0 %v7986
  %8053 = vmatpush.bf16.msra.mxu0 %v7984
  %8054 = vmatpush.bf16.msra.mxu0 %v7982
  %8055 = vmatpush.bf16.msra.mxu0 %v7980
  %8056 = vmatpush.bf16.msra.mxu0 %v7978
  %8057 = vmatpush.bf16.msra.mxu0 %v7976
  %8058 = vmatpush.bf16.msra.mxu0 %v7974
  %8059 = vmatpush.bf16.msra.mxu0 %v7972
  %8060 = vmatmul.bf16.gmra.mxu0 %v7108
  %v8061 = vpop.f32.mrf.mxu0
  %v8062 = vadd.f32 0.0, %v8061
  %v8063 = vpop.f32.mrf.mxu0
  %v8064 = vadd.f32 0.0, %v8063
  %8065 = vmatmul.bf16.gmra.mxu0 %v7109
  %v8066 = vpop.f32.mrf.mxu0
  %v8067 = vadd.f32 0.0, %v8066
  %v8068 = vpop.f32.mrf.mxu0
  %v8069 = vadd.f32 0.0, %v8068
  %8070 = vmatmul.bf16.gmra.mxu0 %v7110
  %v8071 = vpop.f32.mrf.mxu0
  %v8072 = vadd.f32 0.0, %v8071
  %v8073 = vpop.f32.mrf.mxu0
  %v8074 = vadd.f32 0.0, %v8073
  %8075 = vmatmul.bf16.gmra.mxu0 %v7111
  %v8076 = vpop.f32.mrf.mxu0
  %v8077 = vadd.f32 0.0, %v8076
  %v8078 = vpop.f32.mrf.mxu0
  %v8079 = vadd.f32 0.0, %v8078
  %8080 = vmatmul.bf16.gmra.mxu0 %v7112
  %v8081 = vpop.f32.mrf.mxu0
  %v8082 = vadd.f32 0.0, %v8081
  %v8083 = vpop.f32.mrf.mxu0
  %v8084 = vadd.f32 0.0, %v8083
  %8085 = vmatmul.bf16.gmra.mxu0 %v7113
  %v8086 = vpop.f32.mrf.mxu0
  %v8087 = vadd.f32 0.0, %v8086
  %v8088 = vpop.f32.mrf.mxu0
  %v8089 = vadd.f32 0.0, %v8088
  %8090 = vmatmul.bf16.gmra.mxu0 %v7114
  %v8091 = vpop.f32.mrf.mxu0
  %v8092 = vadd.f32 0.0, %v8091
  %v8093 = vpop.f32.mrf.mxu0
  %v8094 = vadd.f32 0.0, %v8093
  %8095 = vmatmul.bf16.gmra.mxu0 %v7115
  %v8096 = vpop.f32.mrf.mxu0
  %v8097 = vadd.f32 0.0, %v8096
  %v8098 = vpop.f32.mrf.mxu0
  %v8099 = vadd.f32 0.0, %v8098
  %8100 = vdwg.mxu0
  %v8101 = vpack.c.bf16 %v8013, %v8013
  %v8102 = vpack.c.bf16 %v8015, %v8015
  %v8103 = vpack.c.bf16 %v8018, %v8018
  %v8104 = vpack.c.bf16 %v8020, %v8020
  %v8105 = vpack.c.bf16 %v8023, %v8023
  %v8106 = vpack.c.bf16 %v8025, %v8025
  %v8107 = vpack.c.bf16 %v8028, %v8028
  %v8108 = vpack.c.bf16 %v8030, %v8030
  %v8109 = vpack.c.bf16 %v8033, %v8033
  %v8110 = vpack.c.bf16 %v8035, %v8035
  %v8111 = vpack.c.bf16 %v8038, %v8038
  %v8112 = vpack.c.bf16 %v8040, %v8040
  %v8113 = vpack.c.bf16 %v8043, %v8043
  %v8114 = vpack.c.bf16 %v8045, %v8045
  %v8115 = vpack.c.bf16 %v8048, %v8048
  %v8116 = vpack.c.bf16 %v8050, %v8050
  %8117 = vst [vmem:[#allocation2] sm:$0xf] %v8101
  %8118 = vst [vmem:[#allocation2 + $0x8] sm:$0xf] %v8102
  %8119 = vst [vmem:[#allocation2 + $0x10] sm:$0xf] %v8103
  %8120 = vst [vmem:[#allocation2 + $0x18] sm:$0xf] %v8104
  %8121 = vst [vmem:[#allocation2 + $0x20] sm:$0xf] %v8105
  %8122 = vst [vmem:[#allocation2 + $0x28] sm:$0xf] %v8106
  %8123 = vst [vmem:[#allocation2 + $0x30] sm:$0xf] %v8107
  %8124 = vst [vmem:[#allocation2 + $0x38] sm:$0xf] %v8108
  %8125 = vst [vmem:[#allocation2 + $0x40] sm:$0xf] %v8109
  %8126 = vst [vmem:[#allocation2 + $0x48] sm:$0xf] %v8110
  %8127 = vst [vmem:[#allocation2 + $0x50] sm:$0xf] %v8111
  %8128 = vst [vmem:[#allocation2 + $0x58] sm:$0xf] %v8112
  %8129 = vst [vmem:[#allocation2 + $0x60] sm:$0xf] %v8113
  %8130 = vst [vmem:[#allocation2 + $0x68] sm:$0xf] %v8114
  %8131 = vst [vmem:[#allocation2 + $0x70] sm:$0xf] %v8115
  %8132 = vst [vmem:[#allocation2 + $0x78] sm:$0xf] %v8116
  %v8133 = vpack.c.bf16 %v8062, %v8062
  %v8134 = vpack.c.bf16 %v8064, %v8064
  %v8135 = vpack.c.bf16 %v8067, %v8067
  %v8136 = vpack.c.bf16 %v8069, %v8069
  %v8137 = vpack.c.bf16 %v8072, %v8072
  %v8138 = vpack.c.bf16 %v8074, %v8074
  %v8139 = vpack.c.bf16 %v8077, %v8077
  %v8140 = vpack.c.bf16 %v8079, %v8079
  %v8141 = vpack.c.bf16 %v8082, %v8082
  %v8142 = vpack.c.bf16 %v8084, %v8084
  %v8143 = vpack.c.bf16 %v8087, %v8087
  %v8144 = vpack.c.bf16 %v8089, %v8089
  %v8145 = vpack.c.bf16 %v8092, %v8092
  %v8146 = vpack.c.bf16 %v8094, %v8094
  %v8147 = vpack.c.bf16 %v8097, %v8097
  %v8148 = vpack.c.bf16 %v8099, %v8099
  %8149 = vst [vmem:[#allocation3] sm:$0xf] %v8133
  %8150 = vst [vmem:[#allocation3 + $0x8] sm:$0xf] %v8134
  %8151 = vst [vmem:[#allocation3 + $0x10] sm:$0xf] %v8135
  %8152 = vst [vmem:[#allocation3 + $0x18] sm:$0xf] %v8136
  %8153 = vst [vmem:[#allocation3 + $0x20] sm:$0xf] %v8137
  %8154 = vst [vmem:[#allocation3 + $0x28] sm:$0xf] %v8138
  %8155 = vst [vmem:[#allocation3 + $0x30] sm:$0xf] %v8139
  %8156 = vst [vmem:[#allocation3 + $0x38] sm:$0xf] %v8140
  %8157 = vst [vmem:[#allocation3 + $0x40] sm:$0xf] %v8141
  %8158 = vst [vmem:[#allocation3 + $0x48] sm:$0xf] %v8142
  %8159 = vst [vmem:[#allocation3 + $0x50] sm:$0xf] %v8143
  %8160 = vst [vmem:[#allocation3 + $0x58] sm:$0xf] %v8144
  %8161 = vst [vmem:[#allocation3 + $0x60] sm:$0xf] %v8145
  %8162 = vst [vmem:[#allocation3 + $0x68] sm:$0xf] %v8146
  %8163 = vst [vmem:[#allocation3 + $0x70] sm:$0xf] %v8147
  %8164 = vst [vmem:[#allocation3 + $0x78] sm:$0xf] %v8148
  %s8165 = sadd.f32 %s4132, %s7906
  %s8166 = smul.f32 %s8165, 0.5
  %v8167 = vstv %s8166
  %8168 = vst [vmem:[%s7] sm:$0xff] %v8167
  // Predicated region
  $region30: #{xl_autoregressive_forward.1} parent=0 // pred_check
    _
  $region31: #{xl_autoregressive_forward.1} parent=0 // pred_check_branch
    %8170 = sbr.rel (0) target = $region33
  $region32: #{xl_autoregressive_forward.1} parent=0 // pred_region
    _
  $region33: #{xl_autoregressive_forward.1} parent=0 // pred_fallthru
    _
  // Predicated region
  $region34: #{xl_autoregressive_forward.1} parent=0 // pred_check
    _
  $region35: #{xl_autoregressive_forward.1} parent=0 // pred_check_branch
    %8172 = sbr.rel (0) target = $region37
  $region36: #{xl_autoregressive_forward.1} parent=0 // pred_region
    _
  $region37: #{xl_autoregressive_forward.1} parent=0 // pred_fallthru
    _

</llo_original>
